<compile_context>
chip_gen: v6e
topology: v6e:2x2x1
jax: 0.10.0
libtpu: 0.0.40
codegen_flags: <defaults>
</compile_context>

<pallas_src>
import functools

import jax
import jax.numpy as jnp
from jax import lax
from jax.experimental import pallas as pl
from jax.experimental.pallas import tpu as pltpu

BN_EPS = 1e-5
ACT_DTYPE = jnp.bfloat16          # inter-layer activation dtype
MXU_DTYPE = jnp.bfloat16          # matmul operand dtype (f32 accumulation on MXU)
VMEM_LIMIT = 32 * 1024 * 1024     # safe on v5e/v6e (128 MiB phys) and v7x (64 MiB phys)
MIN_PALLAS_ROWS = 64              # below this, plain JAX (XLA) beats a pallas_call
TM_CAP = 512                      # max rows per M-tile


# ---------------------------------------------------------------------------
# small helpers
# ---------------------------------------------------------------------------
def _round_up(a, b):
    return (a + b - 1) // b * b


def _pick_tile(n, cap, mult=16):
    """Return (tile, padded_extent) for a dimension of size n (tile | padded)."""
    n_r = _round_up(n, mult)
    if n_r <= cap:
        return n_r, n_r
    return cap, _round_up(n, cap)


def _out_size(sz, k, stride, pad):
    return (sz + 2 * pad - k) // stride + 1


# ---------------------------------------------------------------------------
# Pallas kernel 1: fused conv-matmul + BN batch stats + affine(+res)(+ReLU)
# ---------------------------------------------------------------------------
def _conv_bn_fused_kernel(*refs, relu, has_res, m_real):
    if has_res:
        x_ref, w_ref, g_ref, b_ref, r_ref, o_ref, acc_ref, sum_ref, sq_ref = refs
    else:
        x_ref, w_ref, g_ref, b_ref, o_ref, acc_ref, sum_ref, sq_ref = refs

    i = pl.program_id(0)
    tm = x_ref.shape[0]

    # (tm, Kp) @ (Kp, Np) on the MXU with f32 accumulation.
    acc = jnp.dot(x_ref[...], w_ref[...], preferred_element_type=jnp.float32)

    # Stash this tile's f32 result in the full-size VMEM scratch.
    row0 = pl.multiple_of(i * tm, tm)
    acc_ref[pl.ds(row0, tm), :] = acc

    @pl.when(i == 0)
    def _init():
        sum_ref[...] = jnp.zeros_like(sum_ref)
        sq_ref[...] = jnp.zeros_like(sq_ref)

    # Per-channel partial sums for the BatchNorm batch statistics.
    # (Zero-padded M rows / K columns contribute nothing.)
    sum_ref[...] += jnp.sum(acc, axis=0, keepdims=True)
    sq_ref[...] += jnp.sum(acc * acc, axis=0, keepdims=True)

    @pl.when(i == pl.num_programs(0) - 1)
    def _finalize():
        inv_m = 1.0 / m_real
        mean = sum_ref[...] * inv_m
        var = jnp.maximum(sq_ref[...] * inv_m - mean * mean, 0.0)  # biased (PyTorch)
        scale = g_ref[...] * lax.rsqrt(var + BN_EPS)
        shift = b_ref[...] - mean * scale
        y = acc_ref[...] * scale + shift
        if has_res:
            y = y + r_ref[...].astype(jnp.float32)
        if relu:
            y = jnp.maximum(y, 0.0)
        o_ref[...] = y.astype(o_ref.dtype)


def conv_bn_fused(pat, wm, gamma, beta, residual, *, relu, m_real, tm):
    """pat: (Mp, Kp) bf16, wm: (Kp, Np) bf16, gamma/beta: (1, Np) f32,
    residual: (Mp, Np) bf16 or None.  Returns (Mp, Np) bf16."""
    mp, kp = pat.shape
    np_ = wm.shape[1]
    g = mp // tm
    has_res = residual is not None

    in_specs = [pl.BlockSpec((tm, kp), lambda i: (i, 0)),
                pl.BlockSpec((kp, np_), lambda i: (0, 0)),
                pl.BlockSpec((1, np_), lambda i: (0, 0)),
                pl.BlockSpec((1, np_), lambda i: (0, 0))]
    args = [pat, wm, gamma, beta]
    if has_res:
        in_specs.append(pl.BlockSpec((mp, np_), lambda i: (0, 0)))
        args.append(residual)

    kernel = functools.partial(_conv_bn_fused_kernel, relu=relu,
                               has_res=has_res, m_real=float(m_real))
    flops = 2 * mp * kp * np_
    bytes_accessed = (mp * kp + kp * np_ + mp * np_ * (2 if has_res else 1)) * 2

    return pl.pallas_call(
        kernel,
        out_shape=jax.ShapeDtypeStruct((mp, np_), ACT_DTYPE),
        grid_spec=pltpu.PrefetchScalarGridSpec(
            num_scalar_prefetch=0,
            grid=(g,),
            in_specs=in_specs,
            out_specs=pl.BlockSpec((mp, np_), lambda i: (0, 0)),
            scratch_shapes=[pltpu.VMEM((mp, np_), jnp.float32),
                            pltpu.VMEM((1, np_), jnp.float32),
                            pltpu.VMEM((1, np_), jnp.float32)]),
        compiler_params=pltpu.CompilerParams(
            dimension_semantics=("arbitrary",),
            vmem_limit_bytes=VMEM_LIMIT),
        cost_estimate=pl.CostEstimate(flops=flops, transcendentals=0,
                                      bytes_accessed=bytes_accessed),
    )(*args)


# ---------------------------------------------------------------------------
# Pallas kernel 2: elementwise max over pooling taps (lane-dense VPU max tree)
# ---------------------------------------------------------------------------
def _tapmax_kernel(t_ref, o_ref):
    o_ref[...] = jnp.max(t_ref[...], axis=0)


def tap_max(taps, tile):
    t, pp, l = taps.shape
    g = pp // tile
    return pl.pallas_call(
        _tapmax_kernel,
        out_shape=jax.ShapeDtypeStruct((pp, l), taps.dtype),
        grid_spec=pltpu.PrefetchScalarGridSpec(
            num_scalar_prefetch=0,
            grid=(g,),
            in_specs=[pl.BlockSpec((t, tile, l), lambda i: (0, i, 0))],
            out_specs=pl.BlockSpec((tile, l), lambda i: (i, 0))),
        compiler_params=pltpu.CompilerParams(
            dimension_semantics=("parallel",),
            vmem_limit_bytes=VMEM_LIMIT),
    )(taps)


# ---------------------------------------------------------------------------
# Glue: im2col (channels-last), conv+BN composition, pooling
# ---------------------------------------------------------------------------
def im2col3d(x, k, stride, pad):
    """x: (N, D, H, W, C) -> patches (N*Do*Ho*Wo, k^3*C), tap-major / C-minor."""
    n, d, h, w, c = x.shape
    xp = jnp.pad(x, ((0, 0), (pad, pad), (pad, pad), (pad, pad), (0, 0)))
    do, ho, wo = (_out_size(s, k, stride, pad) for s in (d, h, w))
    taps = []
    for kd in range(k):
        for kh in range(k):
            for kw in range(k):
                taps.append(xp[:,
                               kd:kd + (do - 1) * stride + 1:stride,
                               kh:kh + (ho - 1) * stride + 1:stride,
                               kw:kw + (wo - 1) * stride + 1:stride, :])
    pat = jnp.stack(taps, axis=4)                       # (N, Do, Ho, Wo, k^3, C)
    pat = pat.reshape(n * do * ho * wo, k ** 3 * c)
    return pat, (n, do, ho, wo)


def conv3d_bn(x, w, gamma, beta, *, stride, pad, relu, residual=None):
    """Conv3d(bias=False) + BatchNorm3d (training batch stats) [+res] [+ReLU]."""
    cout, cin, k = w.shape[0], w.shape[1], w.shape[2]
    pat, (nb, do, ho, wo) = im2col3d(x, k, stride, pad)
    # weight flattened tap-major / Cin-minor to match the patch K ordering
    wm = jnp.transpose(w, (2, 3, 4, 1, 0)).reshape(k ** 3 * cin, cout)
    m, kdim = pat.shape
    res_flat = residual.reshape(m, cout) if residual is not None else None

    if m >= MIN_PALLAS_ROWS:
        kp = _round_up(kdim, 128)         # lane/sublane-aligned contraction
        np_ = _round_up(cout, 128)        # lane-dense output columns
        tm, mp = _pick_tile(m, TM_CAP)
        pat_p = jnp.pad(pat.astype(MXU_DTYPE), ((0, mp - m), (0, kp - kdim)))
        wm_p = jnp.pad(wm.astype(MXU_DTYPE), ((0, kp - kdim), (0, np_ - cout)))
        g_p = jnp.pad(gamma.astype(jnp.float32), (0, np_ - cout)).reshape(1, np_)
        b_p = jnp.pad(beta.astype(jnp.float32), (0, np_ - cout)).reshape(1, np_)
        res_p = None
        if res_flat is not None:
            res_p = jnp.pad(res_flat.astype(ACT_DTYPE),
                            ((0, mp - m), (0, np_ - cout)))
        y = conv_bn_fused(pat_p, wm_p, g_p, b_p, res_p,
                          relu=relu, m_real=m, tm=tm)
        y = y[:m, :cout]
    else:
        # Tiny matmuls (a few rows at 1x1x1 / 2x2x2 spatial): plain JAX --
        # a pallas_call here is pure fixed launch overhead (per perf review).
        acc = jnp.dot(pat.astype(jnp.float32), wm.astype(jnp.float32))
        mean = jnp.mean(acc, axis=0)
        var = jnp.mean(jnp.square(acc - mean), axis=0)
        y = (acc - mean) * (gamma * lax.rsqrt(var + BN_EPS)) + beta
        if res_flat is not None:
            y = y + res_flat.astype(jnp.float32)
        if relu:
            y = jnp.maximum(y, 0.0)
        y = y.astype(ACT_DTYPE)
    return y.reshape(nb, do, ho, wo, cout)


def maxpool3d(x, k, stride, pad):
    n, d, h, w, c = x.shape
    # finite pad value: input is post-ReLU (>=0) so padded taps can never win
    neg = float(jnp.finfo(x.dtype).min)
    xp = jnp.pad(x, ((0, 0), (pad, pad), (pad, pad), (pad, pad), (0, 0)),
                 constant_values=neg)
    do, ho, wo = (_out_size(s, k, stride, pad) for s in (d, h, w))
    taps = []
    for kd in range(k):
        for kh in range(k):
            for kw in range(k):
                taps.append(xp[:,
                               kd:kd + (do - 1) * stride + 1:stride,
                               kh:kh + (ho - 1) * stride + 1:stride,
                               kw:kw + (wo - 1) * stride + 1:stride, :])
    # Lane-dense layout: rows = N*Do (sublanes), lanes = Ho*Wo*C.
    rows = n * do
    lanes = ho * wo * c
    t = jnp.stack(taps, axis=0).reshape(k ** 3, rows, lanes)
    tile, rows_p = _pick_tile(rows, TM_CAP, mult=8)
    lanes_p = _round_up(lanes, 128)
    if rows_p != rows or lanes_p != lanes:
        t = jnp.pad(t, ((0, 0), (0, rows_p - rows), (0, lanes_p - lanes)),
                    constant_values=neg)
    out = tap_max(t, tile)[:rows, :lanes]
    return out.reshape(n, do, ho, wo, c)


# ---------------------------------------------------------------------------
# Network composition
# ---------------------------------------------------------------------------
def residual_block(x, p, stride, has_shortcut):
    out = conv3d_bn(x, p['w1'], p['g1'], p['b1'], stride=stride, pad=1, relu=True)
    if has_shortcut:
        res = conv3d_bn(x, p['ws'], p['gs'], p['bs'], stride=stride, pad=0, relu=False)
    else:
        res = x
    # second conv: BN, then += residual, then ReLU (matches ResidualBlock.forward)
    return conv3d_bn(out, p['w2'], p['g2'], p['b2'], stride=1, pad=1, relu=True,
                     residual=res)


def run_layer(x, blocks, stride):
    x = residual_block(x, blocks[0], stride, True)
    for bp in blocks[1:]:
        x = residual_block(x, bp, 1, False)
    return x


def _to_ncdhw(x):
    return jnp.transpose(x, (0, 4, 1, 2, 3)).astype(jnp.float32)


def resnet_small_forward(params, x):
    """x: (N, C, D, H, W) float32 (PyTorch layout); returns (logits, one..four)."""
    x = jnp.transpose(x, (0, 2, 3, 4, 1)).astype(ACT_DTYPE)   # channels-last, bf16
    x = conv3d_bn(x, params['pre_w'], params['pre_g'], params['pre_b'],
                  stride=2, pad=3, relu=True)
    x = maxpool3d(x, 3, 2, 1)
    x = run_layer(x, params['layer1'], 1); one = x
    x = run_layer(x, params['layer2'], 2); two = x
    x = run_layer(x, params['layer3'], 2); three = x
    x = run_layer(x, params['layer4'], 2); four = x
    # AdaptiveMaxPool3d(1) + Linear(128, num_class): tiny -> plain JAX
    pooled = jnp.max(x.astype(jnp.float32), axis=(1, 2, 3))   # (N, 128)
    logits = pooled @ params['fc_w'] + params['fc_b']
    return (logits, _to_ncdhw(one), _to_ncdhw(two), _to_ncdhw(three), _to_ncdhw(four))


# ---------------------------------------------------------------------------
# Deterministic parameter construction (matches module __init__ shapes)
# ---------------------------------------------------------------------------
class KeyGen:
    def __init__(self, seed):
        self.key = jax.random.PRNGKey(seed)

    def __call__(self):
        self.key, k = jax.random.split(self.key)
        return k


def conv_w(kg, cout, cin, k):
    fan_in = cin * k ** 3
    return jax.random.normal(kg(), (cout, cin, k, k, k), jnp.float32) * (2.0 / fan_in) ** 0.5


def bn_p(cout):
    # PyTorch BatchNorm3d defaults: weight = 1, bias = 0
    return jnp.ones((cout,), jnp.float32), jnp.zeros((cout,), jnp.float32)


def make_block_params(kg, cin, cout, shortcut):
    p = {'w1': conv_w(kg, cout, cin, 3), 'w2': conv_w(kg, cout, cout, 3)}
    p['g1'], p['b1'] = bn_p(cout)
    p['g2'], p['b2'] = bn_p(cout)
    if shortcut:
        p['ws'] = conv_w(kg, cout, cin, 1)
        p['gs'], p['bs'] = bn_p(cout)
    return p


def make_layer_params(kg, cin, cout, n_blocks):
    blocks = [make_block_params(kg, cin, cout, True)]
    for _ in range(1, n_blocks):
        blocks.append(make_block_params(kg, cout, cout, False))
    return blocks


def make_params(kg, num_class=5, in_ch=3):
    params = {'pre_w': conv_w(kg, 16, in_ch, 7)}
    params['pre_g'], params['pre_b'] = bn_p(16)
    params['layer1'] = make_layer_params(kg, 16, 32, 3)
    params['layer2'] = make_layer_params(kg, 32, 64, 4)
    params['layer3'] = make_layer_params(kg, 64, 128, 6)
    params['layer4'] = make_layer_params(kg, 128, 128, 3)
    # nn.Linear(128, num_class): y = x @ W.T + b ; store W.T as (128, num_class)
    params['fc_w'] = jax.random.normal(kg(), (128, num_class), jnp.float32) * (1.0 / 128.0) ** 0.5
    params['fc_b'] = jax.random.normal(kg(), (num_class,), jnp.float32) * 0.01
    return params


# ---------------------------------------------------------------------------
if __name__ == "__main__":
    kg = KeyGen(0)
    params = make_params(kg, num_class=5, in_ch=3)

    # Small NCDHW input: batch=2, channels=3, D=H=W=16
    x = jax.random.normal(jax.random.PRNGKey(0), (2, 3, 16, 16, 16), jnp.float32)

    fwd = jax.jit(resnet_small_forward)
    logits, one, two, three, four = fwd(params, x)
    jax.block_until_ready((logits, one, two, three, four))

    assert logits.shape == (2, 5)
    assert one.shape == (2, 32, 4, 4, 4)
    assert two.shape == (2, 64, 2, 2, 2)
    assert three.shape == (2, 128, 1, 1, 1)
    assert four.shape == (2, 128, 1, 1, 1)
    assert bool(jnp.all(jnp.isfinite(logits)))

    print("KERNEL_OK")
</pallas_src>

<mosaic_0001>
module attributes {stable_mosaic.version = 11 : i64} {
  func.func @_conv_bn_fused_kernel(%arg0: i32, %arg1: memref<512x1152xbf16, #tpu.memory_space<vmem>>, %arg2: memref<1152x128xbf16, #tpu.memory_space<vmem>>, %arg3: memref<1x128xf32, #tpu.memory_space<vmem>>, %arg4: memref<1x128xf32, #tpu.memory_space<vmem>>, %arg5: memref<1024x128xbf16, #tpu.memory_space<vmem>>, %arg6: memref<1024x128xf32, #tpu.memory_space<vmem>>, %arg7: memref<1x128xf32, #tpu.memory_space<vmem>>, %arg8: memref<1x128xf32, #tpu.memory_space<vmem>>) attributes {dimension_semantics = [#tpu.dimension_semantics<arbitrary>], iteration_bounds = array<i64: 2>, scalar_prefetch = 0 : i64, scratch_operands = 3 : i64, tpu.core_type = #tpu.core_type<tc>, window_params = [{transform_indices = @transform_0, window_bounds = array<i64: 512, 1152>}, {pipeline_mode = #tpu.pipeline_mode<synchronous>, transform_indices = @transform_1, window_bounds = array<i64: 1152, 128>}, {pipeline_mode = #tpu.pipeline_mode<synchronous>, transform_indices = @transform_2, window_bounds = array<i64: 1, 128>}, {pipeline_mode = #tpu.pipeline_mode<synchronous>, transform_indices = @transform_3, window_bounds = array<i64: 1, 128>}, {pipeline_mode = #tpu.pipeline_mode<synchronous>, transform_indices = @transform_4, window_bounds = array<i64: 1024, 128>}]} {
    %c0 = arith.constant 0 : index
    %c0_0 = arith.constant 0 : index
    %0 = vector.load %arg1[%c0, %c0_0] : memref<512x1152xbf16, #tpu.memory_space<vmem>>, vector<512x1152xbf16>
    %c0_1 = arith.constant 0 : index
    %c0_2 = arith.constant 0 : index
    %1 = vector.load %arg2[%c0_1, %c0_2] : memref<1152x128xbf16, #tpu.memory_space<vmem>>, vector<1152x128xbf16>
    %cst = arith.constant dense<0.000000e+00> : vector<512x128xf32>
    %2 = tpu.matmul %0, %1, %cst {dimension_numbers = #tpu.dot_dimension_numbers<[1], [0], [0], [1], [0, 0, 1, 1], [], []>} : vector<512x1152xbf16>, vector<1152x128xbf16>, vector<512x128xf32> -> vector<512x128xf32>
    %c512_i32 = arith.constant 512 : i32
    %3 = arith.muli %arg0, %c512_i32 : i32
    %4 = tpu.assume_multiple %3, 512 : i32
    %5 = arith.index_cast %4 : i32 to index
    %c0_3 = arith.constant 0 : index
    %6 = vector.load %arg6[%5, %c0_3] : memref<1024x128xf32, #tpu.memory_space<vmem>>, vector<512x128xf32>
    tpu.vector_store %arg6[%5, %c0_3], %2 {strides = array<i32>} : memref<1024x128xf32, #tpu.memory_space<vmem>>, vector<512x128xf32>,
    %c0_i32 = arith.constant 0 : i32
    %7 = arith.cmpi eq, %arg0, %c0_i32 : i32
    %8 = arith.extui %7 : i1 to i32
    %c0_i32_4 = arith.constant 0 : i32
    %9 = arith.cmpi ne, %8, %c0_i32_4 : i32
    scf.if %9 {
      %cst_16 = arith.constant 0.000000e+00 : f32
      %24 = vector.broadcast %cst_16 : f32 to vector<1x128xf32>
      %c0_17 = arith.constant 0 : index
      %c0_18 = arith.constant 0 : index
      %25 = vector.load %arg7[%c0_17, %c0_18] : memref<1x128xf32, #tpu.memory_space<vmem>>, vector<1x128xf32>
      tpu.vector_store %arg7[%c0_17, %c0_18], %24 {strides = array<i32>} : memref<1x128xf32, #tpu.memory_space<vmem>>, vector<1x128xf32>,
      %cst_19 = arith.constant 0.000000e+00 : f32
      %26 = vector.broadcast %cst_19 : f32 to vector<1x128xf32>
      %c0_20 = arith.constant 0 : index
      %c0_21 = arith.constant 0 : index
      %27 = vector.load %arg8[%c0_20, %c0_21] : memref<1x128xf32, #tpu.memory_space<vmem>>, vector<1x128xf32>
      tpu.vector_store %arg8[%c0_20, %c0_21], %26 {strides = array<i32>} : memref<1x128xf32, #tpu.memory_space<vmem>>, vector<1x128xf32>,
    } else {
    }
    %c0_5 = arith.constant 0 : index
    %c0_6 = arith.constant 0 : index
    %10 = vector.load %arg7[%c0_5, %c0_6] : memref<1x128xf32, #tpu.memory_space<vmem>>, vector<1x128xf32>
    %cst_7 = arith.constant dense<0.000000e+00> : vector<128xf32>
    %11 = vector.multi_reduction <add>, %2, %cst_7 [0] : vector<512x128xf32> to vector<128xf32>
    %12 = vector.shape_cast %11 : vector<128xf32> to vector<1x128xf32>
    %13 = arith.addf %10, %12 : vector<1x128xf32>
    %c0_8 = arith.constant 0 : index
    %c0_9 = arith.constant 0 : index
    %14 = vector.load %arg7[%c0_8, %c0_9] : memref<1x128xf32, #tpu.memory_space<vmem>>, vector<1x128xf32>
    tpu.vector_store %arg7[%c0_8, %c0_9], %13 {strides = array<i32>} : memref<1x128xf32, #tpu.memory_space<vmem>>, vector<1x128xf32>,
    %c0_10 = arith.constant 0 : index
    %c0_11 = arith.constant 0 : index
    %15 = vector.load %arg8[%c0_10, %c0_11] : memref<1x128xf32, #tpu.memory_space<vmem>>, vector<1x128xf32>
    %16 = arith.mulf %2, %2 : vector<512x128xf32>
    %cst_12 = arith.constant dense<0.000000e+00> : vector<128xf32>
    %17 = vector.multi_reduction <add>, %16, %cst_12 [0] : vector<512x128xf32> to vector<128xf32>
    %18 = vector.shape_cast %17 : vector<128xf32> to vector<1x128xf32>
    %19 = arith.addf %15, %18 : vector<1x128xf32>
    %c0_13 = arith.constant 0 : index
    %c0_14 = arith.constant 0 : index
    %20 = vector.load %arg8[%c0_13, %c0_14] : memref<1x128xf32, #tpu.memory_space<vmem>>, vector<1x128xf32>
    tpu.vector_store %arg8[%c0_13, %c0_14], %19 {strides = array<i32>} : memref<1x128xf32, #tpu.memory_space<vmem>>, vector<1x128xf32>,
    %c1_i32 = arith.constant 1 : i32
    %21 = arith.cmpi eq, %arg0, %c1_i32 : i32
    %22 = arith.extui %21 : i1 to i32
    %c0_i32_15 = arith.constant 0 : i32
    %23 = arith.cmpi ne, %22, %c0_i32_15 : i32
    scf.if %23 {
      %c0_16 = arith.constant 0 : index
      %c0_17 = arith.constant 0 : index
      %24 = vector.load %arg7[%c0_16, %c0_17] : memref<1x128xf32, #tpu.memory_space<vmem>>, vector<1x128xf32>
      %cst_18 = arith.constant 9.765625E-4 : f32
      %25 = vector.broadcast %cst_18 : f32 to vector<1x128xf32>
      %26 = arith.mulf %24, %25 : vector<1x128xf32>
      %c0_19 = arith.constant 0 : index
      %c0_20 = arith.constant 0 : index
      %27 = vector.load %arg8[%c0_19, %c0_20] : memref<1x128xf32, #tpu.memory_space<vmem>>, vector<1x128xf32>
      %cst_21 = arith.constant 9.765625E-4 : f32
      %28 = vector.broadcast %cst_21 : f32 to vector<1x128xf32>
      %29 = arith.mulf %27, %28 : vector<1x128xf32>
      %30 = arith.mulf %26, %26 : vector<1x128xf32>
      %31 = arith.subf %29, %30 : vector<1x128xf32>
      %cst_22 = arith.constant 0.000000e+00 : f32
      %32 = vector.broadcast %cst_22 : f32 to vector<1x128xf32>
      %33 = arith.maximumf %31, %32 : vector<1x128xf32>
      %c0_23 = arith.constant 0 : index
      %c0_24 = arith.constant 0 : index
      %34 = vector.load %arg3[%c0_23, %c0_24] : memref<1x128xf32, #tpu.memory_space<vmem>>, vector<1x128xf32>
      %cst_25 = arith.constant 9.99999974E-6 : f32
      %35 = vector.broadcast %cst_25 : f32 to vector<1x128xf32>
      %36 = arith.addf %33, %35 : vector<1x128xf32>
      %37 = math.rsqrt %36 : vector<1x128xf32>
      %38 = arith.mulf %34, %37 : vector<1x128xf32>
      %c0_26 = arith.constant 0 : index
      %c0_27 = arith.constant 0 : index
      %39 = vector.load %arg4[%c0_26, %c0_27] : memref<1x128xf32, #tpu.memory_space<vmem>>, vector<1x128xf32>
      %40 = arith.mulf %26, %38 : vector<1x128xf32>
      %41 = arith.subf %39, %40 : vector<1x128xf32>
      %c0_28 = arith.constant 0 : index
      %c0_29 = arith.constant 0 : index
      %42 = vector.load %arg6[%c0_28, %c0_29] : memref<1024x128xf32, #tpu.memory_space<vmem>>, vector<1024x128xf32>
      %43 = vector.broadcast %38 : vector<1x128xf32> to vector<1024x128xf32>
      %44 = arith.mulf %42, %43 : vector<1024x128xf32>
      %45 = vector.broadcast %41 : vector<1x128xf32> to vector<1024x128xf32>
      %46 = arith.addf %44, %45 : vector<1024x128xf32>
      %cst_30 = arith.constant 0.000000e+00 : f32
      %47 = vector.broadcast %cst_30 : f32 to vector<1024x128xf32>
      %48 = arith.maximumf %46, %47 : vector<1024x128xf32>
      %49 = arith.truncf %48 : vector<1024x128xf32> to vector<1024x128xbf16>
      %c0_31 = arith.constant 0 : index
      %c0_32 = arith.constant 0 : index
      %50 = vector.load %arg5[%c0_31, %c0_32] : memref<1024x128xbf16, #tpu.memory_space<vmem>>, vector<1024x128xbf16>
      tpu.vector_store %arg5[%c0_31, %c0_32], %49 {strides = array<i32>} : memref<1024x128xbf16, #tpu.memory_space<vmem>>, vector<1024x128xbf16>,
    } else {
    }
    return
  }
  func.func @transform_0(%arg0: i32) -> (i32, i32) {
    %c0_i32 = arith.constant 0 : i32
    %c0_i32_0 = arith.constant 0 : i32
    return %arg0, %c0_i32 : i32, i32
  }
  func.func @transform_1(%arg0: i32) -> (i32, i32) {
    %c0_i32 = arith.constant 0 : i32
    %c0_i32_0 = arith.constant 0 : i32
    %c0_i32_1 = arith.constant 0 : i32
    return %c0_i32, %c0_i32_0 : i32, i32
  }
  func.func @transform_2(%arg0: i32) -> (i32, i32) {
    %c0_i32 = arith.constant 0 : i32
    %c0_i32_0 = arith.constant 0 : i32
    %c0_i32_1 = arith.constant 0 : i32
    return %c0_i32, %c0_i32_0 : i32, i32
  }
  func.func @transform_3(%arg0: i32) -> (i32, i32) {
    %c0_i32 = arith.constant 0 : i32
    %c0_i32_0 = arith.constant 0 : i32
    %c0_i32_1 = arith.constant 0 : i32
    return %c0_i32, %c0_i32_0 : i32, i32
  }
  func.func @transform_4(%arg0: i32) -> (i32, i32) {
    %c0_i32 = arith.constant 0 : i32
    %c0_i32_0 = arith.constant 0 : i32
    %c0_i32_1 = arith.constant 0 : i32
    return %c0_i32, %c0_i32_0 : i32, i32
  }
}

module attributes {stable_mosaic.version = 11 : i64} {
  func.func @_tapmax_kernel(%arg0: i32, %arg1: memref<27x8x256xbf16, #tpu.memory_space<vmem>>, %arg2: memref<8x256xbf16, #tpu.memory_space<vmem>>) attributes {dimension_semantics = [#tpu.dimension_semantics<parallel>], iteration_bounds = array<i64: 1>, scalar_prefetch = 0 : i64, scratch_operands = 0 : i64, tpu.core_type = #tpu.core_type<tc>, window_params = [{transform_indices = @transform_0, window_bounds = array<i64: 27, 8, 256>}, {transform_indices = @transform_1, window_bounds = array<i64: 8, 256>}]} {
    %c0 = arith.constant 0 : index
    %c0_0 = arith.constant 0 : index
    %c0_1 = arith.constant 0 : index
    %0 = vector.load %arg1[%c0, %c0_0, %c0_1] : memref<27x8x256xbf16, #tpu.memory_space<vmem>>, vector<27x8x256xbf16>
    %cst = arith.constant dense<0xFF80> : vector<8x256xbf16>
    %1 = vector.multi_reduction <maximumf>, %0, %cst [0] : vector<27x8x256xbf16> to vector<8x256xbf16>
    %c0_2 = arith.constant 0 : index
    %c0_3 = arith.constant 0 : index
    %2 = vector.load %arg2[%c0_2, %c0_3] : memref<8x256xbf16, #tpu.memory_space<vmem>>, vector<8x256xbf16>
    tpu.vector_store %arg2[%c0_2, %c0_3], %1 {strides = array<i32>} : memref<8x256xbf16, #tpu.memory_space<vmem>>, vector<8x256xbf16>,
    return
  }
  func.func @transform_0(%arg0: i32) -> (i32, i32, i32) {
    %c0_i32 = arith.constant 0 : i32
    %c0_i32_0 = arith.constant 0 : i32
    %c0_i32_1 = arith.constant 0 : i32
    return %c0_i32, %arg0, %c0_i32_0 : i32, i32, i32
  }
  func.func @transform_1(%arg0: i32) -> (i32, i32) {
    %c0_i32 = arith.constant 0 : i32
    %c0_i32_0 = arith.constant 0 : i32
    return %arg0, %c0_i32 : i32, i32
  }
}

module attributes {stable_mosaic.version = 11 : i64} {
  func.func @_conv_bn_fused_kernel(%arg0: i32, %arg1: memref<128x512xbf16, #tpu.memory_space<vmem>>, %arg2: memref<512x128xbf16, #tpu.memory_space<vmem>>, %arg3: memref<1x128xf32, #tpu.memory_space<vmem>>, %arg4: memref<1x128xf32, #tpu.memory_space<vmem>>, %arg5: memref<128x128xbf16, #tpu.memory_space<vmem>>, %arg6: memref<128x128xf32, #tpu.memory_space<vmem>>, %arg7: memref<1x128xf32, #tpu.memory_space<vmem>>, %arg8: memref<1x128xf32, #tpu.memory_space<vmem>>) attributes {dimension_semantics = [#tpu.dimension_semantics<arbitrary>], iteration_bounds = array<i64: 1>, scalar_prefetch = 0 : i64, scratch_operands = 3 : i64, tpu.core_type = #tpu.core_type<tc>, window_params = [{transform_indices = @transform_0, window_bounds = array<i64: 128, 512>}, {pipeline_mode = #tpu.pipeline_mode<synchronous>, transform_indices = @transform_1, window_bounds = array<i64: 512, 128>}, {pipeline_mode = #tpu.pipeline_mode<synchronous>, transform_indices = @transform_2, window_bounds = array<i64: 1, 128>}, {pipeline_mode = #tpu.pipeline_mode<synchronous>, transform_indices = @transform_3, window_bounds = array<i64: 1, 128>}, {pipeline_mode = #tpu.pipeline_mode<synchronous>, transform_indices = @transform_4, window_bounds = array<i64: 128, 128>}]} {
    %c0 = arith.constant 0 : index
    %c0_0 = arith.constant 0 : index
    %0 = vector.load %arg1[%c0, %c0_0] : memref<128x512xbf16, #tpu.memory_space<vmem>>, vector<128x512xbf16>
    %c0_1 = arith.constant 0 : index
    %c0_2 = arith.constant 0 : index
    %1 = vector.load %arg2[%c0_1, %c0_2] : memref<512x128xbf16, #tpu.memory_space<vmem>>, vector<512x128xbf16>
    %cst = arith.constant dense<0.000000e+00> : vector<128x128xf32>
    %2 = tpu.matmul %0, %1, %cst {dimension_numbers = #tpu.dot_dimension_numbers<[1], [0], [0], [1], [0, 0, 1, 1], [], []>} : vector<128x512xbf16>, vector<512x128xbf16>, vector<128x128xf32> -> vector<128x128xf32>
    %c128_i32 = arith.constant 128 : i32
    %3 = arith.muli %arg0, %c128_i32 : i32
    %4 = tpu.assume_multiple %3, 128 : i32
    %5 = arith.index_cast %4 : i32 to index
    %c0_3 = arith.constant 0 : index
    %6 = vector.load %arg6[%5, %c0_3] : memref<128x128xf32, #tpu.memory_space<vmem>>, vector<128x128xf32>
    tpu.vector_store %arg6[%5, %c0_3], %2 {strides = array<i32>} : memref<128x128xf32, #tpu.memory_space<vmem>>, vector<128x128xf32>,
    %c0_i32 = arith.constant 0 : i32
    %7 = arith.cmpi eq, %arg0, %c0_i32 : i32
    %8 = arith.extui %7 : i1 to i32
    %c0_i32_4 = arith.constant 0 : i32
    %9 = arith.cmpi ne, %8, %c0_i32_4 : i32
    scf.if %9 {
      %cst_17 = arith.constant 0.000000e+00 : f32
      %24 = vector.broadcast %cst_17 : f32 to vector<1x128xf32>
      %c0_18 = arith.constant 0 : index
      %c0_19 = arith.constant 0 : index
      %25 = vector.load %arg7[%c0_18, %c0_19] : memref<1x128xf32, #tpu.memory_space<vmem>>, vector<1x128xf32>
      tpu.vector_store %arg7[%c0_18, %c0_19], %24 {strides = array<i32>} : memref<1x128xf32, #tpu.memory_space<vmem>>, vector<1x128xf32>,
      %cst_20 = arith.constant 0.000000e+00 : f32
      %26 = vector.broadcast %cst_20 : f32 to vector<1x128xf32>
      %c0_21 = arith.constant 0 : index
      %c0_22 = arith.constant 0 : index
      %27 = vector.load %arg8[%c0_21, %c0_22] : memref<1x128xf32, #tpu.memory_space<vmem>>, vector<1x128xf32>
      tpu.vector_store %arg8[%c0_21, %c0_22], %26 {strides = array<i32>} : memref<1x128xf32, #tpu.memory_space<vmem>>, vector<1x128xf32>,
    } else {
    }
    %c0_5 = arith.constant 0 : index
    %c0_6 = arith.constant 0 : index
    %10 = vector.load %arg7[%c0_5, %c0_6] : memref<1x128xf32, #tpu.memory_space<vmem>>, vector<1x128xf32>
    %cst_7 = arith.constant dense<0.000000e+00> : vector<128xf32>
    %11 = vector.multi_reduction <add>, %2, %cst_7 [0] : vector<128x128xf32> to vector<128xf32>
    %12 = vector.shape_cast %11 : vector<128xf32> to vector<1x128xf32>
    %13 = arith.addf %10, %12 : vector<1x128xf32>
    %c0_8 = arith.constant 0 : index
    %c0_9 = arith.constant 0 : index
    %14 = vector.load %arg7[%c0_8, %c0_9] : memref<1x128xf32, #tpu.memory_space<vmem>>, vector<1x128xf32>
    tpu.vector_store %arg7[%c0_8, %c0_9], %13 {strides = array<i32>} : memref<1x128xf32, #tpu.memory_space<vmem>>, vector<1x128xf32>,
    %c0_10 = arith.constant 0 : index
    %c0_11 = arith.constant 0 : index
    %15 = vector.load %arg8[%c0_10, %c0_11] : memref<1x128xf32, #tpu.memory_space<vmem>>, vector<1x128xf32>
    %16 = arith.mulf %2, %2 : vector<128x128xf32>
    %cst_12 = arith.constant dense<0.000000e+00> : vector<128xf32>
    %17 = vector.multi_reduction <add>, %16, %cst_12 [0] : vector<128x128xf32> to vector<128xf32>
    %18 = vector.shape_cast %17 : vector<128xf32> to vector<1x128xf32>
    %19 = arith.addf %15, %18 : vector<1x128xf32>
    %c0_13 = arith.constant 0 : index
    %c0_14 = arith.constant 0 : index
    %20 = vector.load %arg8[%c0_13, %c0_14] : memref<1x128xf32, #tpu.memory_space<vmem>>, vector<1x128xf32>
    tpu.vector_store %arg8[%c0_13, %c0_14], %19 {strides = array<i32>} : memref<1x128xf32, #tpu.memory_space<vmem>>, vector<1x128xf32>,
    %c0_i32_15 = arith.constant 0 : i32
    %21 = arith.cmpi eq, %arg0, %c0_i32_15 : i32
    %22 = arith.extui %21 : i1 to i32
    %c0_i32_16 = arith.constant 0 : i32
    %23 = arith.cmpi ne, %22, %c0_i32_16 : i32
    scf.if %23 {
      %c0_17 = arith.constant 0 : index
      %c0_18 = arith.constant 0 : index
      %24 = vector.load %arg7[%c0_17, %c0_18] : memref<1x128xf32, #tpu.memory_space<vmem>>, vector<1x128xf32>
      %cst_19 = arith.constant 7.812500e-03 : f32
      %25 = vector.broadcast %cst_19 : f32 to vector<1x128xf32>
      %26 = arith.mulf %24, %25 : vector<1x128xf32>
      %c0_20 = arith.constant 0 : index
      %c0_21 = arith.constant 0 : index
      %27 = vector.load %arg8[%c0_20, %c0_21] : memref<1x128xf32, #tpu.memory_space<vmem>>, vector<1x128xf32>
      %cst_22 = arith.constant 7.812500e-03 : f32
      %28 = vector.broadcast %cst_22 : f32 to vector<1x128xf32>
      %29 = arith.mulf %27, %28 : vector<1x128xf32>
      %30 = arith.mulf %26, %26 : vector<1x128xf32>
      %31 = arith.subf %29, %30 : vector<1x128xf32>
      %cst_23 = arith.constant 0.000000e+00 : f32
      %32 = vector.broadcast %cst_23 : f32 to vector<1x128xf32>
      %33 = arith.maximumf %31, %32 : vector<1x128xf32>
      %c0_24 = arith.constant 0 : index
      %c0_25 = arith.constant 0 : index
      %34 = vector.load %arg3[%c0_24, %c0_25] : memref<1x128xf32, #tpu.memory_space<vmem>>, vector<1x128xf32>
      %cst_26 = arith.constant 9.99999974E-6 : f32
      %35 = vector.broadcast %cst_26 : f32 to vector<1x128xf32>
      %36 = arith.addf %33, %35 : vector<1x128xf32>
      %37 = math.rsqrt %36 : vector<1x128xf32>
      %38 = arith.mulf %34, %37 : vector<1x128xf32>
      %c0_27 = arith.constant 0 : index
      %c0_28 = arith.constant 0 : index
      %39 = vector.load %arg4[%c0_27, %c0_28] : memref<1x128xf32, #tpu.memory_space<vmem>>, vector<1x128xf32>
      %40 = arith.mulf %26, %38 : vector<1x128xf32>
      %41 = arith.subf %39, %40 : vector<1x128xf32>
      %c0_29 = arith.constant 0 : index
      %c0_30 = arith.constant 0 : index
      %42 = vector.load %arg6[%c0_29, %c0_30] : memref<128x128xf32, #tpu.memory_space<vmem>>, vector<128x128xf32>
      %43 = vector.broadcast %38 : vector<1x128xf32> to vector<128x128xf32>
      %44 = arith.mulf %42, %43 : vector<128x128xf32>
      %45 = vector.broadcast %41 : vector<1x128xf32> to vector<128x128xf32>
      %46 = arith.addf %44, %45 : vector<128x128xf32>
      %cst_31 = arith.constant 0.000000e+00 : f32
      %47 = vector.broadcast %cst_31 : f32 to vector<128x128xf32>
      %48 = arith.maximumf %46, %47 : vector<128x128xf32>
      %49 = arith.truncf %48 : vector<128x128xf32> to vector<128x128xbf16>
      %c0_32 = arith.constant 0 : index
      %c0_33 = arith.constant 0 : index
      %50 = vector.load %arg5[%c0_32, %c0_33] : memref<128x128xbf16, #tpu.memory_space<vmem>>, vector<128x128xbf16>
      tpu.vector_store %arg5[%c0_32, %c0_33], %49 {strides = array<i32>} : memref<128x128xbf16, #tpu.memory_space<vmem>>, vector<128x128xbf16>,
    } else {
    }
    return
  }
  func.func @transform_0(%arg0: i32) -> (i32, i32) {
    %c0_i32 = arith.constant 0 : i32
    %c0_i32_0 = arith.constant 0 : i32
    return %arg0, %c0_i32 : i32, i32
  }
  func.func @transform_1(%arg0: i32) -> (i32, i32) {
    %c0_i32 = arith.constant 0 : i32
    %c0_i32_0 = arith.constant 0 : i32
    %c0_i32_1 = arith.constant 0 : i32
    return %c0_i32, %c0_i32_0 : i32, i32
  }
  func.func @transform_2(%arg0: i32) -> (i32, i32) {
    %c0_i32 = arith.constant 0 : i32
    %c0_i32_0 = arith.constant 0 : i32
    %c0_i32_1 = arith.constant 0 : i32
    return %c0_i32, %c0_i32_0 : i32, i32
  }
  func.func @transform_3(%arg0: i32) -> (i32, i32) {
    %c0_i32 = arith.constant 0 : i32
    %c0_i32_0 = arith.constant 0 : i32
    %c0_i32_1 = arith.constant 0 : i32
    return %c0_i32, %c0_i32_0 : i32, i32
  }
  func.func @transform_4(%arg0: i32) -> (i32, i32) {
    %c0_i32 = arith.constant 0 : i32
    %c0_i32_0 = arith.constant 0 : i32
    %c0_i32_1 = arith.constant 0 : i32
    return %c0_i32, %c0_i32_0 : i32, i32
  }
}

module attributes {stable_mosaic.version = 11 : i64} {
  func.func @_conv_bn_fused_kernel(%arg0: i32, %arg1: memref<128x128xbf16, #tpu.memory_space<vmem>>, %arg2: memref<128x128xbf16, #tpu.memory_space<vmem>>, %arg3: memref<1x128xf32, #tpu.memory_space<vmem>>, %arg4: memref<1x128xf32, #tpu.memory_space<vmem>>, %arg5: memref<128x128xbf16, #tpu.memory_space<vmem>>, %arg6: memref<128x128xf32, #tpu.memory_space<vmem>>, %arg7: memref<1x128xf32, #tpu.memory_space<vmem>>, %arg8: memref<1x128xf32, #tpu.memory_space<vmem>>) attributes {dimension_semantics = [#tpu.dimension_semantics<arbitrary>], iteration_bounds = array<i64: 1>, scalar_prefetch = 0 : i64, scratch_operands = 3 : i64, tpu.core_type = #tpu.core_type<tc>, window_params = [{transform_indices = @transform_0, window_bounds = array<i64: 128, 128>}, {pipeline_mode = #tpu.pipeline_mode<synchronous>, transform_indices = @transform_1, window_bounds = array<i64: 128, 128>}, {pipeline_mode = #tpu.pipeline_mode<synchronous>, transform_indices = @transform_2, window_bounds = array<i64: 1, 128>}, {pipeline_mode = #tpu.pipeline_mode<synchronous>, transform_indices = @transform_3, window_bounds = array<i64: 1, 128>}, {pipeline_mode = #tpu.pipeline_mode<synchronous>, transform_indices = @transform_4, window_bounds = array<i64: 128, 128>}]} {
    %c0 = arith.constant 0 : index
    %c0_0 = arith.constant 0 : index
    %0 = vector.load %arg1[%c0, %c0_0] : memref<128x128xbf16, #tpu.memory_space<vmem>>, vector<128x128xbf16>
    %c0_1 = arith.constant 0 : index
    %c0_2 = arith.constant 0 : index
    %1 = vector.load %arg2[%c0_1, %c0_2] : memref<128x128xbf16, #tpu.memory_space<vmem>>, vector<128x128xbf16>
    %cst = arith.constant dense<0.000000e+00> : vector<128x128xf32>
    %2 = tpu.matmul %0, %1, %cst {dimension_numbers = #tpu.dot_dimension_numbers<[1], [0], [0], [1], [0, 0, 1, 1], [], []>} : vector<128x128xbf16>, vector<128x128xbf16>, vector<128x128xf32> -> vector<128x128xf32>
    %c128_i32 = arith.constant 128 : i32
    %3 = arith.muli %arg0, %c128_i32 : i32
    %4 = tpu.assume_multiple %3, 128 : i32
    %5 = arith.index_cast %4 : i32 to index
    %c0_3 = arith.constant 0 : index
    %6 = vector.load %arg6[%5, %c0_3] : memref<128x128xf32, #tpu.memory_space<vmem>>, vector<128x128xf32>
    tpu.vector_store %arg6[%5, %c0_3], %2 {strides = array<i32>} : memref<128x128xf32, #tpu.memory_space<vmem>>, vector<128x128xf32>,
    %c0_i32 = arith.constant 0 : i32
    %7 = arith.cmpi eq, %arg0, %c0_i32 : i32
    %8 = arith.extui %7 : i1 to i32
    %c0_i32_4 = arith.constant 0 : i32
    %9 = arith.cmpi ne, %8, %c0_i32_4 : i32
    scf.if %9 {
      %cst_17 = arith.constant 0.000000e+00 : f32
      %24 = vector.broadcast %cst_17 : f32 to vector<1x128xf32>
      %c0_18 = arith.constant 0 : index
      %c0_19 = arith.constant 0 : index
      %25 = vector.load %arg7[%c0_18, %c0_19] : memref<1x128xf32, #tpu.memory_space<vmem>>, vector<1x128xf32>
      tpu.vector_store %arg7[%c0_18, %c0_19], %24 {strides = array<i32>} : memref<1x128xf32, #tpu.memory_space<vmem>>, vector<1x128xf32>,
      %cst_20 = arith.constant 0.000000e+00 : f32
      %26 = vector.broadcast %cst_20 : f32 to vector<1x128xf32>
      %c0_21 = arith.constant 0 : index
      %c0_22 = arith.constant 0 : index
      %27 = vector.load %arg8[%c0_21, %c0_22] : memref<1x128xf32, #tpu.memory_space<vmem>>, vector<1x128xf32>
      tpu.vector_store %arg8[%c0_21, %c0_22], %26 {strides = array<i32>} : memref<1x128xf32, #tpu.memory_space<vmem>>, vector<1x128xf32>,
    } else {
    }
    %c0_5 = arith.constant 0 : index
    %c0_6 = arith.constant 0 : index
    %10 = vector.load %arg7[%c0_5, %c0_6] : memref<1x128xf32, #tpu.memory_space<vmem>>, vector<1x128xf32>
    %cst_7 = arith.constant dense<0.000000e+00> : vector<128xf32>
    %11 = vector.multi_reduction <add>, %2, %cst_7 [0] : vector<128x128xf32> to vector<128xf32>
    %12 = vector.shape_cast %11 : vector<128xf32> to vector<1x128xf32>
    %13 = arith.addf %10, %12 : vector<1x128xf32>
    %c0_8 = arith.constant 0 : index
    %c0_9 = arith.constant 0 : index
    %14 = vector.load %arg7[%c0_8, %c0_9] : memref<1x128xf32, #tpu.memory_space<vmem>>, vector<1x128xf32>
    tpu.vector_store %arg7[%c0_8, %c0_9], %13 {strides = array<i32>} : memref<1x128xf32, #tpu.memory_space<vmem>>, vector<1x128xf32>,
    %c0_10 = arith.constant 0 : index
    %c0_11 = arith.constant 0 : index
    %15 = vector.load %arg8[%c0_10, %c0_11] : memref<1x128xf32, #tpu.memory_space<vmem>>, vector<1x128xf32>
    %16 = arith.mulf %2, %2 : vector<128x128xf32>
    %cst_12 = arith.constant dense<0.000000e+00> : vector<128xf32>
    %17 = vector.multi_reduction <add>, %16, %cst_12 [0] : vector<128x128xf32> to vector<128xf32>
    %18 = vector.shape_cast %17 : vector<128xf32> to vector<1x128xf32>
    %19 = arith.addf %15, %18 : vector<1x128xf32>
    %c0_13 = arith.constant 0 : index
    %c0_14 = arith.constant 0 : index
    %20 = vector.load %arg8[%c0_13, %c0_14] : memref<1x128xf32, #tpu.memory_space<vmem>>, vector<1x128xf32>
    tpu.vector_store %arg8[%c0_13, %c0_14], %19 {strides = array<i32>} : memref<1x128xf32, #tpu.memory_space<vmem>>, vector<1x128xf32>,
    %c0_i32_15 = arith.constant 0 : i32
    %21 = arith.cmpi eq, %arg0, %c0_i32_15 : i32
    %22 = arith.extui %21 : i1 to i32
    %c0_i32_16 = arith.constant 0 : i32
    %23 = arith.cmpi ne, %22, %c0_i32_16 : i32
    scf.if %23 {
      %c0_17 = arith.constant 0 : index
      %c0_18 = arith.constant 0 : index
      %24 = vector.load %arg7[%c0_17, %c0_18] : memref<1x128xf32, #tpu.memory_space<vmem>>, vector<1x128xf32>
      %cst_19 = arith.constant 7.812500e-03 : f32
      %25 = vector.broadcast %cst_19 : f32 to vector<1x128xf32>
      %26 = arith.mulf %24, %25 : vector<1x128xf32>
      %c0_20 = arith.constant 0 : index
      %c0_21 = arith.constant 0 : index
      %27 = vector.load %arg8[%c0_20, %c0_21] : memref<1x128xf32, #tpu.memory_space<vmem>>, vector<1x128xf32>
      %cst_22 = arith.constant 7.812500e-03 : f32
      %28 = vector.broadcast %cst_22 : f32 to vector<1x128xf32>
      %29 = arith.mulf %27, %28 : vector<1x128xf32>
      %30 = arith.mulf %26, %26 : vector<1x128xf32>
      %31 = arith.subf %29, %30 : vector<1x128xf32>
      %cst_23 = arith.constant 0.000000e+00 : f32
      %32 = vector.broadcast %cst_23 : f32 to vector<1x128xf32>
      %33 = arith.maximumf %31, %32 : vector<1x128xf32>
      %c0_24 = arith.constant 0 : index
      %c0_25 = arith.constant 0 : index
      %34 = vector.load %arg3[%c0_24, %c0_25] : memref<1x128xf32, #tpu.memory_space<vmem>>, vector<1x128xf32>
      %cst_26 = arith.constant 9.99999974E-6 : f32
      %35 = vector.broadcast %cst_26 : f32 to vector<1x128xf32>
      %36 = arith.addf %33, %35 : vector<1x128xf32>
      %37 = math.rsqrt %36 : vector<1x128xf32>
      %38 = arith.mulf %34, %37 : vector<1x128xf32>
      %c0_27 = arith.constant 0 : index
      %c0_28 = arith.constant 0 : index
      %39 = vector.load %arg4[%c0_27, %c0_28] : memref<1x128xf32, #tpu.memory_space<vmem>>, vector<1x128xf32>
      %40 = arith.mulf %26, %38 : vector<1x128xf32>
      %41 = arith.subf %39, %40 : vector<1x128xf32>
      %c0_29 = arith.constant 0 : index
      %c0_30 = arith.constant 0 : index
      %42 = vector.load %arg6[%c0_29, %c0_30] : memref<128x128xf32, #tpu.memory_space<vmem>>, vector<128x128xf32>
      %43 = vector.broadcast %38 : vector<1x128xf32> to vector<128x128xf32>
      %44 = arith.mulf %42, %43 : vector<128x128xf32>
      %45 = vector.broadcast %41 : vector<1x128xf32> to vector<128x128xf32>
      %46 = arith.addf %44, %45 : vector<128x128xf32>
      %47 = arith.truncf %46 : vector<128x128xf32> to vector<128x128xbf16>
      %c0_31 = arith.constant 0 : index
      %c0_32 = arith.constant 0 : index
      %48 = vector.load %arg5[%c0_31, %c0_32] : memref<128x128xbf16, #tpu.memory_space<vmem>>, vector<128x128xbf16>
      tpu.vector_store %arg5[%c0_31, %c0_32], %47 {strides = array<i32>} : memref<128x128xbf16, #tpu.memory_space<vmem>>, vector<128x128xbf16>,
    } else {
    }
    return
  }
  func.func @transform_0(%arg0: i32) -> (i32, i32) {
    %c0_i32 = arith.constant 0 : i32
    %c0_i32_0 = arith.constant 0 : i32
    return %arg0, %c0_i32 : i32, i32
  }
  func.func @transform_1(%arg0: i32) -> (i32, i32) {
    %c0_i32 = arith.constant 0 : i32
    %c0_i32_0 = arith.constant 0 : i32
    %c0_i32_1 = arith.constant 0 : i32
    return %c0_i32, %c0_i32_0 : i32, i32
  }
  func.func @transform_2(%arg0: i32) -> (i32, i32) {
    %c0_i32 = arith.constant 0 : i32
    %c0_i32_0 = arith.constant 0 : i32
    %c0_i32_1 = arith.constant 0 : i32
    return %c0_i32, %c0_i32_0 : i32, i32
  }
  func.func @transform_3(%arg0: i32) -> (i32, i32) {
    %c0_i32 = arith.constant 0 : i32
    %c0_i32_0 = arith.constant 0 : i32
    %c0_i32_1 = arith.constant 0 : i32
    return %c0_i32, %c0_i32_0 : i32, i32
  }
  func.func @transform_4(%arg0: i32) -> (i32, i32) {
    %c0_i32 = arith.constant 0 : i32
    %c0_i32_0 = arith.constant 0 : i32
    %c0_i32_1 = arith.constant 0 : i32
    return %c0_i32, %c0_i32_0 : i32, i32
  }
}

module attributes {stable_mosaic.version = 11 : i64} {
  func.func @_conv_bn_fused_kernel(%arg0: i32, %arg1: memref<128x896xbf16, #tpu.memory_space<vmem>>, %arg2: memref<896x128xbf16, #tpu.memory_space<vmem>>, %arg3: memref<1x128xf32, #tpu.memory_space<vmem>>, %arg4: memref<1x128xf32, #tpu.memory_space<vmem>>, %arg5: memref<128x128xbf16, #tpu.memory_space<vmem>>, %arg6: memref<128x128xbf16, #tpu.memory_space<vmem>>, %arg7: memref<128x128xf32, #tpu.memory_space<vmem>>, %arg8: memref<1x128xf32, #tpu.memory_space<vmem>>, %arg9: memref<1x128xf32, #tpu.memory_space<vmem>>) attributes {dimension_semantics = [#tpu.dimension_semantics<arbitrary>], iteration_bounds = array<i64: 1>, scalar_prefetch = 0 : i64, scratch_operands = 3 : i64, tpu.core_type = #tpu.core_type<tc>, window_params = [{transform_indices = @transform_0, window_bounds = array<i64: 128, 896>}, {pipeline_mode = #tpu.pipeline_mode<synchronous>, transform_indices = @transform_1, window_bounds = array<i64: 896, 128>}, {pipeline_mode = #tpu.pipeline_mode<synchronous>, transform_indices = @transform_2, window_bounds = array<i64: 1, 128>}, {pipeline_mode = #tpu.pipeline_mode<synchronous>, transform_indices = @transform_3, window_bounds = array<i64: 1, 128>}, {pipeline_mode = #tpu.pipeline_mode<synchronous>, transform_indices = @transform_4, window_bounds = array<i64: 128, 128>}, {pipeline_mode = #tpu.pipeline_mode<synchronous>, transform_indices = @transform_5, window_bounds = array<i64: 128, 128>}]} {
    %c0 = arith.constant 0 : index
    %c0_0 = arith.constant 0 : index
    %0 = vector.load %arg1[%c0, %c0_0] : memref<128x896xbf16, #tpu.memory_space<vmem>>, vector<128x896xbf16>
    %c0_1 = arith.constant 0 : index
    %c0_2 = arith.constant 0 : index
    %1 = vector.load %arg2[%c0_1, %c0_2] : memref<896x128xbf16, #tpu.memory_space<vmem>>, vector<896x128xbf16>
    %cst = arith.constant dense<0.000000e+00> : vector<128x128xf32>
    %2 = tpu.matmul %0, %1, %cst {dimension_numbers = #tpu.dot_dimension_numbers<[1], [0], [0], [1], [0, 0, 1, 1], [], []>} : vector<128x896xbf16>, vector<896x128xbf16>, vector<128x128xf32> -> vector<128x128xf32>
    %c128_i32 = arith.constant 128 : i32
    %3 = arith.muli %arg0, %c128_i32 : i32
    %4 = tpu.assume_multiple %3, 128 : i32
    %5 = arith.index_cast %4 : i32 to index
    %c0_3 = arith.constant 0 : index
    %6 = vector.load %arg7[%5, %c0_3] : memref<128x128xf32, #tpu.memory_space<vmem>>, vector<128x128xf32>
    tpu.vector_store %arg7[%5, %c0_3], %2 {strides = array<i32>} : memref<128x128xf32, #tpu.memory_space<vmem>>, vector<128x128xf32>,
    %c0_i32 = arith.constant 0 : i32
    %7 = arith.cmpi eq, %arg0, %c0_i32 : i32
    %8 = arith.extui %7 : i1 to i32
    %c0_i32_4 = arith.constant 0 : i32
    %9 = arith.cmpi ne, %8, %c0_i32_4 : i32
    scf.if %9 {
      %cst_17 = arith.constant 0.000000e+00 : f32
      %24 = vector.broadcast %cst_17 : f32 to vector<1x128xf32>
      %c0_18 = arith.constant 0 : index
      %c0_19 = arith.constant 0 : index
      %25 = vector.load %arg8[%c0_18, %c0_19] : memref<1x128xf32, #tpu.memory_space<vmem>>, vector<1x128xf32>
      tpu.vector_store %arg8[%c0_18, %c0_19], %24 {strides = array<i32>} : memref<1x128xf32, #tpu.memory_space<vmem>>, vector<1x128xf32>,
      %cst_20 = arith.constant 0.000000e+00 : f32
      %26 = vector.broadcast %cst_20 : f32 to vector<1x128xf32>
      %c0_21 = arith.constant 0 : index
      %c0_22 = arith.constant 0 : index
      %27 = vector.load %arg9[%c0_21, %c0_22] : memref<1x128xf32, #tpu.memory_space<vmem>>, vector<1x128xf32>
      tpu.vector_store %arg9[%c0_21, %c0_22], %26 {strides = array<i32>} : memref<1x128xf32, #tpu.memory_space<vmem>>, vector<1x128xf32>,
    } else {
    }
    %c0_5 = arith.constant 0 : index
    %c0_6 = arith.constant 0 : index
    %10 = vector.load %arg8[%c0_5, %c0_6] : memref<1x128xf32, #tpu.memory_space<vmem>>, vector<1x128xf32>
    %cst_7 = arith.constant dense<0.000000e+00> : vector<128xf32>
    %11 = vector.multi_reduction <add>, %2, %cst_7 [0] : vector<128x128xf32> to vector<128xf32>
    %12 = vector.shape_cast %11 : vector<128xf32> to vector<1x128xf32>
    %13 = arith.addf %10, %12 : vector<1x128xf32>
    %c0_8 = arith.constant 0 : index
    %c0_9 = arith.constant 0 : index
    %14 = vector.load %arg8[%c0_8, %c0_9] : memref<1x128xf32, #tpu.memory_space<vmem>>, vector<1x128xf32>
    tpu.vector_store %arg8[%c0_8, %c0_9], %13 {strides = array<i32>} : memref<1x128xf32, #tpu.memory_space<vmem>>, vector<1x128xf32>,
    %c0_10 = arith.constant 0 : index
    %c0_11 = arith.constant 0 : index
    %15 = vector.load %arg9[%c0_10, %c0_11] : memref<1x128xf32, #tpu.memory_space<vmem>>, vector<1x128xf32>
    %16 = arith.mulf %2, %2 : vector<128x128xf32>
    %cst_12 = arith.constant dense<0.000000e+00> : vector<128xf32>
    %17 = vector.multi_reduction <add>, %16, %cst_12 [0] : vector<128x128xf32> to vector<128xf32>
    %18 = vector.shape_cast %17 : vector<128xf32> to vector<1x128xf32>
    %19 = arith.addf %15, %18 : vector<1x128xf32>
    %c0_13 = arith.constant 0 : index
    %c0_14 = arith.constant 0 : index
    %20 = vector.load %arg9[%c0_13, %c0_14] : memref<1x128xf32, #tpu.memory_space<vmem>>, vector<1x128xf32>
    tpu.vector_store %arg9[%c0_13, %c0_14], %19 {strides = array<i32>} : memref<1x128xf32, #tpu.memory_space<vmem>>, vector<1x128xf32>,
    %c0_i32_15 = arith.constant 0 : i32
    %21 = arith.cmpi eq, %arg0, %c0_i32_15 : i32
    %22 = arith.extui %21 : i1 to i32
    %c0_i32_16 = arith.constant 0 : i32
    %23 = arith.cmpi ne, %22, %c0_i32_16 : i32
    scf.if %23 {
      %c0_17 = arith.constant 0 : index
      %c0_18 = arith.constant 0 : index
      %24 = vector.load %arg8[%c0_17, %c0_18] : memref<1x128xf32, #tpu.memory_space<vmem>>, vector<1x128xf32>
      %cst_19 = arith.constant 7.812500e-03 : f32
      %25 = vector.broadcast %cst_19 : f32 to vector<1x128xf32>
      %26 = arith.mulf %24, %25 : vector<1x128xf32>
      %c0_20 = arith.constant 0 : index
      %c0_21 = arith.constant 0 : index
      %27 = vector.load %arg9[%c0_20, %c0_21] : memref<1x128xf32, #tpu.memory_space<vmem>>, vector<1x128xf32>
      %cst_22 = arith.constant 7.812500e-03 : f32
      %28 = vector.broadcast %cst_22 : f32 to vector<1x128xf32>
      %29 = arith.mulf %27, %28 : vector<1x128xf32>
      %30 = arith.mulf %26, %26 : vector<1x128xf32>
      %31 = arith.subf %29, %30 : vector<1x128xf32>
      %cst_23 = arith.constant 0.000000e+00 : f32
      %32 = vector.broadcast %cst_23 : f32 to vector<1x128xf32>
      %33 = arith.maximumf %31, %32 : vector<1x128xf32>
      %c0_24 = arith.constant 0 : index
      %c0_25 = arith.constant 0 : index
      %34 = vector.load %arg3[%c0_24, %c0_25] : memref<1x128xf32, #tpu.memory_space<vmem>>, vector<1x128xf32>
      %cst_26 = arith.constant 9.99999974E-6 : f32
      %35 = vector.broadcast %cst_26 : f32 to vector<1x128xf32>
      %36 = arith.addf %33, %35 : vector<1x128xf32>
      %37 = math.rsqrt %36 : vector<1x128xf32>
      %38 = arith.mulf %34, %37 : vector<1x128xf32>
      %c0_27 = arith.constant 0 : index
      %c0_28 = arith.constant 0 : index
      %39 = vector.load %arg4[%c0_27, %c0_28] : memref<1x128xf32, #tpu.memory_space<vmem>>, vector<1x128xf32>
      %40 = arith.mulf %26, %38 : vector<1x128xf32>
      %41 = arith.subf %39, %40 : vector<1x128xf32>
      %c0_29 = arith.constant 0 : index
      %c0_30 = arith.constant 0 : index
      %42 = vector.load %arg7[%c0_29, %c0_30] : memref<128x128xf32, #tpu.memory_space<vmem>>, vector<128x128xf32>
      %43 = vector.broadcast %38 : vector<1x128xf32> to vector<128x128xf32>
      %44 = arith.mulf %42, %43 : vector<128x128xf32>
      %45 = vector.broadcast %41 : vector<1x128xf32> to vector<128x128xf32>
      %46 = arith.addf %44, %45 : vector<128x128xf32>
      %c0_31 = arith.constant 0 : index
      %c0_32 = arith.constant 0 : index
      %47 = vector.load %arg5[%c0_31, %c0_32] : memref<128x128xbf16, #tpu.memory_space<vmem>>, vector<128x128xbf16>
      %48 = arith.extf %47 : vector<128x128xbf16> to vector<128x128xf32>
      %49 = arith.addf %46, %48 : vector<128x128xf32>
      %cst_33 = arith.constant 0.000000e+00 : f32
      %50 = vector.broadcast %cst_33 : f32 to vector<128x128xf32>
      %51 = arith.maximumf %49, %50 : vector<128x128xf32>
      %52 = arith.truncf %51 : vector<128x128xf32> to vector<128x128xbf16>
      %c0_34 = arith.constant 0 : index
      %c0_35 = arith.constant 0 : index
      %53 = vector.load %arg6[%c0_34, %c0_35] : memref<128x128xbf16, #tpu.memory_space<vmem>>, vector<128x128xbf16>
      tpu.vector_store %arg6[%c0_34, %c0_35], %52 {strides = array<i32>} : memref<128x128xbf16, #tpu.memory_space<vmem>>, vector<128x128xbf16>,
    } else {
    }
    return
  }
  func.func @transform_0(%arg0: i32) -> (i32, i32) {
    %c0_i32 = arith.constant 0 : i32
    %c0_i32_0 = arith.constant 0 : i32
    return %arg0, %c0_i32 : i32, i32
  }
  func.func @transform_1(%arg0: i32) -> (i32, i32) {
    %c0_i32 = arith.constant 0 : i32
    %c0_i32_0 = arith.constant 0 : i32
    %c0_i32_1 = arith.constant 0 : i32
    return %c0_i32, %c0_i32_0 : i32, i32
  }
  func.func @transform_2(%arg0: i32) -> (i32, i32) {
    %c0_i32 = arith.constant 0 : i32
    %c0_i32_0 = arith.constant 0 : i32
    %c0_i32_1 = arith.constant 0 : i32
    return %c0_i32, %c0_i32_0 : i32, i32
  }
  func.func @transform_3(%arg0: i32) -> (i32, i32) {
    %c0_i32 = arith.constant 0 : i32
    %c0_i32_0 = arith.constant 0 : i32
    %c0_i32_1 = arith.constant 0 : i32
    return %c0_i32, %c0_i32_0 : i32, i32
  }
  func.func @transform_4(%arg0: i32) -> (i32, i32) {
    %c0_i32 = arith.constant 0 : i32
    %c0_i32_0 = arith.constant 0 : i32
    %c0_i32_1 = arith.constant 0 : i32
    return %c0_i32, %c0_i32_0 : i32, i32
  }
  func.func @transform_5(%arg0: i32) -> (i32, i32) {
    %c0_i32 = arith.constant 0 : i32
    %c0_i32_0 = arith.constant 0 : i32
    %c0_i32_1 = arith.constant 0 : i32
    return %c0_i32, %c0_i32_0 : i32, i32
  }
}

module attributes {stable_mosaic.version = 11 : i64} {
  func.func @_conv_bn_fused_kernel(%arg0: i32, %arg1: memref<128x896xbf16, #tpu.memory_space<vmem>>, %arg2: memref<896x128xbf16, #tpu.memory_space<vmem>>, %arg3: memref<1x128xf32, #tpu.memory_space<vmem>>, %arg4: memref<1x128xf32, #tpu.memory_space<vmem>>, %arg5: memref<128x128xbf16, #tpu.memory_space<vmem>>, %arg6: memref<128x128xf32, #tpu.memory_space<vmem>>, %arg7: memref<1x128xf32, #tpu.memory_space<vmem>>, %arg8: memref<1x128xf32, #tpu.memory_space<vmem>>) attributes {dimension_semantics = [#tpu.dimension_semantics<arbitrary>], iteration_bounds = array<i64: 1>, scalar_prefetch = 0 : i64, scratch_operands = 3 : i64, tpu.core_type = #tpu.core_type<tc>, window_params = [{transform_indices = @transform_0, window_bounds = array<i64: 128, 896>}, {pipeline_mode = #tpu.pipeline_mode<synchronous>, transform_indices = @transform_1, window_bounds = array<i64: 896, 128>}, {pipeline_mode = #tpu.pipeline_mode<synchronous>, transform_indices = @transform_2, window_bounds = array<i64: 1, 128>}, {pipeline_mode = #tpu.pipeline_mode<synchronous>, transform_indices = @transform_3, window_bounds = array<i64: 1, 128>}, {pipeline_mode = #tpu.pipeline_mode<synchronous>, transform_indices = @transform_4, window_bounds = array<i64: 128, 128>}]} {
    %c0 = arith.constant 0 : index
    %c0_0 = arith.constant 0 : index
    %0 = vector.load %arg1[%c0, %c0_0] : memref<128x896xbf16, #tpu.memory_space<vmem>>, vector<128x896xbf16>
    %c0_1 = arith.constant 0 : index
    %c0_2 = arith.constant 0 : index
    %1 = vector.load %arg2[%c0_1, %c0_2] : memref<896x128xbf16, #tpu.memory_space<vmem>>, vector<896x128xbf16>
    %cst = arith.constant dense<0.000000e+00> : vector<128x128xf32>
    %2 = tpu.matmul %0, %1, %cst {dimension_numbers = #tpu.dot_dimension_numbers<[1], [0], [0], [1], [0, 0, 1, 1], [], []>} : vector<128x896xbf16>, vector<896x128xbf16>, vector<128x128xf32> -> vector<128x128xf32>
    %c128_i32 = arith.constant 128 : i32
    %3 = arith.muli %arg0, %c128_i32 : i32
    %4 = tpu.assume_multiple %3, 128 : i32
    %5 = arith.index_cast %4 : i32 to index
    %c0_3 = arith.constant 0 : index
    %6 = vector.load %arg6[%5, %c0_3] : memref<128x128xf32, #tpu.memory_space<vmem>>, vector<128x128xf32>
    tpu.vector_store %arg6[%5, %c0_3], %2 {strides = array<i32>} : memref<128x128xf32, #tpu.memory_space<vmem>>, vector<128x128xf32>,
    %c0_i32 = arith.constant 0 : i32
    %7 = arith.cmpi eq, %arg0, %c0_i32 : i32
    %8 = arith.extui %7 : i1 to i32
    %c0_i32_4 = arith.constant 0 : i32
    %9 = arith.cmpi ne, %8, %c0_i32_4 : i32
    scf.if %9 {
      %cst_17 = arith.constant 0.000000e+00 : f32
      %24 = vector.broadcast %cst_17 : f32 to vector<1x128xf32>
      %c0_18 = arith.constant 0 : index
      %c0_19 = arith.constant 0 : index
      %25 = vector.load %arg7[%c0_18, %c0_19] : memref<1x128xf32, #tpu.memory_space<vmem>>, vector<1x128xf32>
      tpu.vector_store %arg7[%c0_18, %c0_19], %24 {strides = array<i32>} : memref<1x128xf32, #tpu.memory_space<vmem>>, vector<1x128xf32>,
      %cst_20 = arith.constant 0.000000e+00 : f32
      %26 = vector.broadcast %cst_20 : f32 to vector<1x128xf32>
      %c0_21 = arith.constant 0 : index
      %c0_22 = arith.constant 0 : index
      %27 = vector.load %arg8[%c0_21, %c0_22] : memref<1x128xf32, #tpu.memory_space<vmem>>, vector<1x128xf32>
      tpu.vector_store %arg8[%c0_21, %c0_22], %26 {strides = array<i32>} : memref<1x128xf32, #tpu.memory_space<vmem>>, vector<1x128xf32>,
    } else {
    }
    %c0_5 = arith.constant 0 : index
    %c0_6 = arith.constant 0 : index
    %10 = vector.load %arg7[%c0_5, %c0_6] : memref<1x128xf32, #tpu.memory_space<vmem>>, vector<1x128xf32>
    %cst_7 = arith.constant dense<0.000000e+00> : vector<128xf32>
    %11 = vector.multi_reduction <add>, %2, %cst_7 [0] : vector<128x128xf32> to vector<128xf32>
    %12 = vector.shape_cast %11 : vector<128xf32> to vector<1x128xf32>
    %13 = arith.addf %10, %12 : vector<1x128xf32>
    %c0_8 = arith.constant 0 : index
    %c0_9 = arith.constant 0 : index
    %14 = vector.load %arg7[%c0_8, %c0_9] : memref<1x128xf32, #tpu.memory_space<vmem>>, vector<1x128xf32>
    tpu.vector_store %arg7[%c0_8, %c0_9], %13 {strides = array<i32>} : memref<1x128xf32, #tpu.memory_space<vmem>>, vector<1x128xf32>,
    %c0_10 = arith.constant 0 : index
    %c0_11 = arith.constant 0 : index
    %15 = vector.load %arg8[%c0_10, %c0_11] : memref<1x128xf32, #tpu.memory_space<vmem>>, vector<1x128xf32>
    %16 = arith.mulf %2, %2 : vector<128x128xf32>
    %cst_12 = arith.constant dense<0.000000e+00> : vector<128xf32>
    %17 = vector.multi_reduction <add>, %16, %cst_12 [0] : vector<128x128xf32> to vector<128xf32>
    %18 = vector.shape_cast %17 : vector<128xf32> to vector<1x128xf32>
    %19 = arith.addf %15, %18 : vector<1x128xf32>
    %c0_13 = arith.constant 0 : index
    %c0_14 = arith.constant 0 : index
    %20 = vector.load %arg8[%c0_13, %c0_14] : memref<1x128xf32, #tpu.memory_space<vmem>>, vector<1x128xf32>
    tpu.vector_store %arg8[%c0_13, %c0_14], %19 {strides = array<i32>} : memref<1x128xf32, #tpu.memory_space<vmem>>, vector<1x128xf32>,
    %c0_i32_15 = arith.constant 0 : i32
    %21 = arith.cmpi eq, %arg0, %c0_i32_15 : i32
    %22 = arith.extui %21 : i1 to i32
    %c0_i32_16 = arith.constant 0 : i32
    %23 = arith.cmpi ne, %22, %c0_i32_16 : i32
    scf.if %23 {
      %c0_17 = arith.constant 0 : index
      %c0_18 = arith.constant 0 : index
      %24 = vector.load %arg7[%c0_17, %c0_18] : memref<1x128xf32, #tpu.memory_space<vmem>>, vector<1x128xf32>
      %cst_19 = arith.constant 7.812500e-03 : f32
      %25 = vector.broadcast %cst_19 : f32 to vector<1x128xf32>
      %26 = arith.mulf %24, %25 : vector<1x128xf32>
      %c0_20 = arith.constant 0 : index
      %c0_21 = arith.constant 0 : index
      %27 = vector.load %arg8[%c0_20, %c0_21] : memref<1x128xf32, #tpu.memory_space<vmem>>, vector<1x128xf32>
      %cst_22 = arith.constant 7.812500e-03 : f32
      %28 = vector.broadcast %cst_22 : f32 to vector<1x128xf32>
      %29 = arith.mulf %27, %28 : vector<1x128xf32>
      %30 = arith.mulf %26, %26 : vector<1x128xf32>
      %31 = arith.subf %29, %30 : vector<1x128xf32>
      %cst_23 = arith.constant 0.000000e+00 : f32
      %32 = vector.broadcast %cst_23 : f32 to vector<1x128xf32>
      %33 = arith.maximumf %31, %32 : vector<1x128xf32>
      %c0_24 = arith.constant 0 : index
      %c0_25 = arith.constant 0 : index
      %34 = vector.load %arg3[%c0_24, %c0_25] : memref<1x128xf32, #tpu.memory_space<vmem>>, vector<1x128xf32>
      %cst_26 = arith.constant 9.99999974E-6 : f32
      %35 = vector.broadcast %cst_26 : f32 to vector<1x128xf32>
      %36 = arith.addf %33, %35 : vector<1x128xf32>
      %37 = math.rsqrt %36 : vector<1x128xf32>
      %38 = arith.mulf %34, %37 : vector<1x128xf32>
      %c0_27 = arith.constant 0 : index
      %c0_28 = arith.constant 0 : index
      %39 = vector.load %arg4[%c0_27, %c0_28] : memref<1x128xf32, #tpu.memory_space<vmem>>, vector<1x128xf32>
      %40 = arith.mulf %26, %38 : vector<1x128xf32>
      %41 = arith.subf %39, %40 : vector<1x128xf32>
      %c0_29 = arith.constant 0 : index
      %c0_30 = arith.constant 0 : index
      %42 = vector.load %arg6[%c0_29, %c0_30] : memref<128x128xf32, #tpu.memory_space<vmem>>, vector<128x128xf32>
      %43 = vector.broadcast %38 : vector<1x128xf32> to vector<128x128xf32>
      %44 = arith.mulf %42, %43 : vector<128x128xf32>
      %45 = vector.broadcast %41 : vector<1x128xf32> to vector<128x128xf32>
      %46 = arith.addf %44, %45 : vector<128x128xf32>
      %cst_31 = arith.constant 0.000000e+00 : f32
      %47 = vector.broadcast %cst_31 : f32 to vector<128x128xf32>
      %48 = arith.maximumf %46, %47 : vector<128x128xf32>
      %49 = arith.truncf %48 : vector<128x128xf32> to vector<128x128xbf16>
      %c0_32 = arith.constant 0 : index
      %c0_33 = arith.constant 0 : index
      %50 = vector.load %arg5[%c0_32, %c0_33] : memref<128x128xbf16, #tpu.memory_space<vmem>>, vector<128x128xbf16>
      tpu.vector_store %arg5[%c0_32, %c0_33], %49 {strides = array<i32>} : memref<128x128xbf16, #tpu.memory_space<vmem>>, vector<128x128xbf16>,
    } else {
    }
    return
  }
  func.func @transform_0(%arg0: i32) -> (i32, i32) {
    %c0_i32 = arith.constant 0 : i32
    %c0_i32_0 = arith.constant 0 : i32
    return %arg0, %c0_i32 : i32, i32
  }
  func.func @transform_1(%arg0: i32) -> (i32, i32) {
    %c0_i32 = arith.constant 0 : i32
    %c0_i32_0 = arith.constant 0 : i32
    %c0_i32_1 = arith.constant 0 : i32
    return %c0_i32, %c0_i32_0 : i32, i32
  }
  func.func @transform_2(%arg0: i32) -> (i32, i32) {
    %c0_i32 = arith.constant 0 : i32
    %c0_i32_0 = arith.constant 0 : i32
    %c0_i32_1 = arith.constant 0 : i32
    return %c0_i32, %c0_i32_0 : i32, i32
  }
  func.func @transform_3(%arg0: i32) -> (i32, i32) {
    %c0_i32 = arith.constant 0 : i32
    %c0_i32_0 = arith.constant 0 : i32
    %c0_i32_1 = arith.constant 0 : i32
    return %c0_i32, %c0_i32_0 : i32, i32
  }
  func.func @transform_4(%arg0: i32) -> (i32, i32) {
    %c0_i32 = arith.constant 0 : i32
    %c0_i32_0 = arith.constant 0 : i32
    %c0_i32_1 = arith.constant 0 : i32
    return %c0_i32, %c0_i32_0 : i32, i32
  }
}

</mosaic_0001>

<llo_original>
// kernel: resnet_small_forward.10
$region0: #{resnet_small_forward.10}
  #allocation0 [shape = 'u32[]', space=smem, size = 0x4, offset = 0x4, fixed_abs, tag = 'smem constant byte address 0x4 - core index']
  #allocation1 [shape = 'u32[144,128]{1,0:T(1,128)}', space=vmem, size = 0x12000, scoped, tag = 'internal scratch']
  %s0 = inlined_call_operand.vmem [shape: bf16[27,8,256], index: 0, kind: input, shape index: {}]
  %s1 = inlined_call_operand.vmem [shape: bf16[8,256], index: 1, kind: output, shape index: {}]
  %s2 = sld [smem:[#allocation0]]
  $region14: #{resnet_small_forward.10} parent=0
    _
  %s4 = ssub.s32 1, %s2
  %s5 = scalar_select 0, %s4, %s2
  // Predicated region
  $region2: #{resnet_small_forward.10} parent=0 // pred_check
    _
  $region3: #{resnet_small_forward.10} parent=0 // pred_check_branch
    %7 = sbr.rel (0) target = $region5
  $region4: #{resnet_small_forward.10} parent=0 // pred_region
    _
  $region5: #{resnet_small_forward.10} parent=0 // pred_fallthru
    _
  %v8 = vld [vmem:[%s0] sm:$0xff]
  %v9 = vld [vmem:[%s0 + $0x8] sm:$0xff]
  %v10 = vld [vmem:[%s0 + $0x10] sm:$0xff]
  %v11 = vld [vmem:[%s0 + $0x18] sm:$0xff]
  %v12 = vld [vmem:[%s0 + $0x20] sm:$0xff]
  %v13 = vld [vmem:[%s0 + $0x28] sm:$0xff]
  %v14 = vld [vmem:[%s0 + $0x30] sm:$0xff]
  %v15 = vld [vmem:[%s0 + $0x38] sm:$0xff]
  %v16 = vld [vmem:[%s0 + $0x40] sm:$0xff]
  %v17 = vld [vmem:[%s0 + $0x48] sm:$0xff]
  %v18 = vld [vmem:[%s0 + $0x50] sm:$0xff]
  %v19 = vld [vmem:[%s0 + $0x58] sm:$0xff]
  %v20 = vld [vmem:[%s0 + $0x60] sm:$0xff]
  %v21 = vld [vmem:[%s0 + $0x68] sm:$0xff]
  %v22 = vld [vmem:[%s0 + $0x70] sm:$0xff]
  %v23 = vld [vmem:[%s0 + $0x78] sm:$0xff]
  %v24 = vld [vmem:[%s0 + $0x80] sm:$0xff]
  %v25 = vld [vmem:[%s0 + $0x88] sm:$0xff]
  %v26 = vld [vmem:[%s0 + $0x90] sm:$0xff]
  %v27 = vld [vmem:[%s0 + $0x98] sm:$0xff]
  %v28 = vld [vmem:[%s0 + $0xa0] sm:$0xff]
  %v29 = vld [vmem:[%s0 + $0xa8] sm:$0xff]
  %v30 = vld [vmem:[%s0 + $0xb0] sm:$0xff]
  %v31 = vld [vmem:[%s0 + $0xb8] sm:$0xff]
  %v32 = vld [vmem:[%s0 + $0xc0] sm:$0xff]
  %v33 = vld [vmem:[%s0 + $0xc8] sm:$0xff]
  %v34 = vld [vmem:[%s0 + $0xd0] sm:$0xff]
  %v35 = vmax.bf16 %v8, %v12
  %v36 = vmax.bf16 %v9, %v13
  %v37 = vmax.bf16 %v10, %v14
  %v38 = vmax.bf16 %v11, %v15
  %v39 = vmax.bf16 %v35, %v16
  %v40 = vmax.bf16 %v36, %v17
  %v41 = vmax.bf16 %v37, %v18
  %v42 = vmax.bf16 %v38, %v19
  %v43 = vmax.bf16 %v39, %v20
  %v44 = vmax.bf16 %v40, %v21
  %v45 = vmax.bf16 %v41, %v22
  %v46 = vmax.bf16 %v42, %v23
  %v47 = vmax.bf16 %v43, %v24
  %v48 = vmax.bf16 %v44, %v25
  %v49 = vmax.bf16 %v45, %v26
  %v50 = vmax.bf16 %v46, %v27
  %v51 = vmax.bf16 %v47, %v28
  %v52 = vmax.bf16 %v48, %v29
  %v53 = vmax.bf16 %v49, %v30
  %v54 = vmax.bf16 %v50, %v31
  %v55 = vmax.bf16 %v51, %v32
  %v56 = vmax.bf16 %v52, %v33
  %v57 = vmax.bf16 %v53, %v34
  %v58 = vmax.bf16 %v55, %v56
  %v59 = vmax.bf16 %v57, %v54
  %v60 = vmax.bf16 %v58, %v59
  %61 = vst [vmem:[%s1] sm:$0xff] %v60
  // Predicated region
  $region6: #{resnet_small_forward.10} parent=0 // pred_check
    _
  $region7: #{resnet_small_forward.10} parent=0 // pred_check_branch
    %63 = sbr.rel (0) target = $region9
  $region8: #{resnet_small_forward.10} parent=0 // pred_region
    _
  $region9: #{resnet_small_forward.10} parent=0 // pred_fallthru
    _
  // Predicated region
  $region10: #{resnet_small_forward.10} parent=0 // pred_check
    _
  $region11: #{resnet_small_forward.10} parent=0 // pred_check_branch
    %65 = sbr.rel (0) target = $region13
  $region12: #{resnet_small_forward.10} parent=0 // pred_region
    _
  $region13: #{resnet_small_forward.10} parent=0 // pred_fallthru
    _

// kernel: resnet_small_forward.9
$region0: #{resnet_small_forward.9}
  #allocation0 [shape = 'u32[]', space=smem, size = 0x4, offset = 0x4, fixed_abs, tag = 'smem constant byte address 0x4 - core index']
  #allocation1 [shape = 'u32[144,128]{1,0:T(1,128)}', space=vmem, size = 0x12000, scoped, tag = 'internal scratch']
  #allocation2 [shape = 'f32[1024,128]{1,0:T(8,128)}', space=vmem, size = 0x80000, scoped, tag = 'scratch operand']
  #allocation3 [shape = 'f32[1,128]{1,0:T(1,128)}', space=vmem, size = 0x200, scoped, tag = 'scratch operand']
  #allocation4 [shape = 'f32[1,128]{1,0:T(1,128)}', space=vmem, size = 0x200, scoped, tag = 'scratch operand']
  %s0 = inlined_call_operand.vmem [shape: bf16[1024,1152], index: 0, kind: input, shape index: {}]
  %s1 = inlined_call_operand.vmem [shape: bf16[1152,128], index: 1, kind: input, shape index: {}]
  %s2 = inlined_call_operand.vmem [shape: f32[1,128], index: 2, kind: input, shape index: {}]
  %s3 = inlined_call_operand.vmem [shape: f32[1,128], index: 3, kind: input, shape index: {}]
  %s4 = inlined_call_operand.vmem [shape: bf16[1024,128], index: 4, kind: output, shape index: {}]
  %s5 = sld [smem:[#allocation0]]
  $region57: #{resnet_small_forward.9} parent=0
    _
  %s7 = ssub.s32 1, %s5
  %s8 = scalar_select 0, %s7, %s5
  loop: start=0, step=1, limit=4
  $region2: #{resnet_small_forward.9} parent=0 // loop_pre_header
    _
  $region3: #{resnet_small_forward.9} parent=0 // loop_header
    %s10 = sphi 0, %s14
    %p11 = scmp.ge.s32.totalorder %s10, 4
    %s20 = sphi 0, %s22
    %s23 = sphi 0, %s20
    %s24 = sphi 0, %s23
    %s40 = sphi 0, %s24
    %s44 = sphi 0, %s44
    %s46 = sphi 0, %s44
    %s47 = sphi 0, %s46
    %s61 = sphi 0, %s47
    %s65 = sphi 0, %s65
    %s67 = sphi 0, %s65
    %s68 = sphi 0, %s67
    %s82 = sphi 0, %s68
    %s86 = sphi 0, %s86
    %s88 = sphi 0, %s86
    %s89 = sphi 0, %s88
    %s103 = sphi 0, %s89
    %s107 = sphi 0, %s107
    %s109 = sphi 0, %s107
    %s110 = sphi 0, %s109
    %s124 = sphi 0, %s110
  $region4: #{resnet_small_forward.9} parent=0 // loop_header_branch
    %13 = sbr.rel (%p11) target = $region8
  $region5: #{resnet_small_forward.9} parent=0 // loop_body
    %s15 = ssub.s32 %s10, 1
    %s16 = ssub.s32 %s10, 2
    %s17 = sadd.s32 %s10, 1
    %s18 = ssub.s32 %s10, %s17
    %p19 = scmp.eq.s32.totalorder %s18, 0
    %s21 = sadd.s32 %s20, 1
    %s22 = scalar_select %p19, %s20, %s21
    %p25 = pneg %p19
    %p26 = scmp.eq.s32.totalorder %s10, 1
    %p27 = por %p25, %p26
    %p28 = scmp.ne.s32.totalorder %s20, %s23
    %p29 = scmp.eq.s32.totalorder %s10, 0
    %p30 = por %p28, %p29
    %p31 = scmp.ne.s32.totalorder %s20, %s23
    %p32 = scmp.eq.s32.totalorder %s15, 1
    %p33 = por %p31, %p32
    %p34 = scmp.ne.s32.totalorder %s23, %s24
    %p35 = scmp.eq.s32.totalorder %s15, 0
    %p36 = por %p34, %p35
    %p37 = scmp.ne.s32.totalorder %s23, %s24
    %p38 = scmp.eq.s32.totalorder %s16, 1
    %p39 = por %p37, %p38
    %p41 = scmp.ne.s32.totalorder %s24, %s40
    %p42 = scmp.eq.s32.totalorder %s16, 0
    %p43 = por %p41, %p42
    %s45 = sadd.s32 %s44, 1
    %p48 = scmp.eq.s32.totalorder %s10, 1
    %p49 = scmp.ne.s32.totalorder %s44, %s46
    %p50 = scmp.eq.s32.totalorder %s10, 0
    %p51 = por %p49, %p50
    %p52 = scmp.ne.s32.totalorder %s44, %s46
    %p53 = scmp.eq.s32.totalorder %s15, 1
    %p54 = por %p52, %p53
    %p55 = scmp.ne.s32.totalorder %s46, %s47
    %p56 = scmp.eq.s32.totalorder %s15, 0
    %p57 = por %p55, %p56
    %p58 = scmp.ne.s32.totalorder %s46, %s47
    %p59 = scmp.eq.s32.totalorder %s16, 1
    %p60 = por %p58, %p59
    %p62 = scmp.ne.s32.totalorder %s47, %s61
    %p63 = scmp.eq.s32.totalorder %s16, 0
    %p64 = por %p62, %p63
    %s66 = sadd.s32 %s65, 1
    %p69 = scmp.eq.s32.totalorder %s10, 1
    %p70 = scmp.ne.s32.totalorder %s65, %s67
    %p71 = scmp.eq.s32.totalorder %s10, 0
    %p72 = por %p70, %p71
    %p73 = scmp.ne.s32.totalorder %s65, %s67
    %p74 = scmp.eq.s32.totalorder %s15, 1
    %p75 = por %p73, %p74
    %p76 = scmp.ne.s32.totalorder %s67, %s68
    %p77 = scmp.eq.s32.totalorder %s15, 0
    %p78 = por %p76, %p77
    %p79 = scmp.ne.s32.totalorder %s67, %s68
    %p80 = scmp.eq.s32.totalorder %s16, 1
    %p81 = por %p79, %p80
    %p83 = scmp.ne.s32.totalorder %s68, %s82
    %p84 = scmp.eq.s32.totalorder %s16, 0
    %p85 = por %p83, %p84
    %s87 = sadd.s32 %s86, 1
    %p90 = scmp.eq.s32.totalorder %s10, 1
    %p91 = scmp.ne.s32.totalorder %s86, %s88
    %p92 = scmp.eq.s32.totalorder %s10, 0
    %p93 = por %p91, %p92
    %p94 = scmp.ne.s32.totalorder %s86, %s88
    %p95 = scmp.eq.s32.totalorder %s15, 1
    %p96 = por %p94, %p95
    %p97 = scmp.ne.s32.totalorder %s88, %s89
    %p98 = scmp.eq.s32.totalorder %s15, 0
    %p99 = por %p97, %p98
    %p100 = scmp.ne.s32.totalorder %s88, %s89
    %p101 = scmp.eq.s32.totalorder %s16, 1
    %p102 = por %p100, %p101
    %p104 = scmp.ne.s32.totalorder %s89, %s103
    %p105 = scmp.eq.s32.totalorder %s16, 0
    %p106 = por %p104, %p105
    %s108 = sadd.s32 %s107, 1
    %p111 = scmp.eq.s32.totalorder %s10, 1
    %p112 = scmp.ne.s32.totalorder %s107, %s109
    %p113 = scmp.eq.s32.totalorder %s10, 0
    %p114 = por %p112, %p113
    %p115 = scmp.ne.s32.totalorder %s107, %s109
    %p116 = scmp.eq.s32.totalorder %s15, 1
    %p117 = por %p115, %p116
    %p118 = scmp.ne.s32.totalorder %s109, %s110
    %p119 = scmp.eq.s32.totalorder %s15, 0
    %p120 = por %p118, %p119
    %p121 = scmp.ne.s32.totalorder %s109, %s110
    %p122 = scmp.eq.s32.totalorder %s16, 1
    %p123 = por %p121, %p122
    %p125 = scmp.ne.s32.totalorder %s110, %s124
    %p126 = scmp.eq.s32.totalorder %s16, 0
    %p127 = por %p125, %p126
    %p128 = scmp.le.s32.totalorder 1, %s10
    %p129 = scmp.lt.s32.totalorder %s10, 3
    %p130 = pnand %p128, %p129
    %p131 = pneg %p130
    // Predicated region
    $region9: #{resnet_small_forward.9} parent=5 // pred_check
      _
    $region10: #{resnet_small_forward.9} parent=5 // pred_check_branch
      %133 = sbr.rel (%p130) target = $region12
    $region11: #{resnet_small_forward.9} parent=5 // pred_region
      %s134 = ssub.s32 %s10, 1
      // Predicated region
      $region13: #{resnet_small_forward.9} parent=11 // pred_check
        %p135 = pneg %p57
      $region14: #{resnet_small_forward.9} parent=11 // pred_check_branch
        %137 = sbr.rel (%p135) target = $region16
      $region15: #{resnet_small_forward.9} parent=11 // pred_region
        _
      $region16: #{resnet_small_forward.9} parent=11 // pred_fallthru
        _
      // Predicated region
      $region17: #{resnet_small_forward.9} parent=11 // pred_check
        %p138 = pneg %p78
      $region18: #{resnet_small_forward.9} parent=11 // pred_check_branch
        %140 = sbr.rel (%p138) target = $region20
      $region19: #{resnet_small_forward.9} parent=11 // pred_region
        _
      $region20: #{resnet_small_forward.9} parent=11 // pred_fallthru
        _
      // Predicated region
      $region21: #{resnet_small_forward.9} parent=11 // pred_check
        %p141 = pneg %p99
      $region22: #{resnet_small_forward.9} parent=11 // pred_check_branch
        %143 = sbr.rel (%p141) target = $region24
      $region23: #{resnet_small_forward.9} parent=11 // pred_region
        _
      $region24: #{resnet_small_forward.9} parent=11 // pred_fallthru
        _
    $region12: #{resnet_small_forward.9} parent=5 // pred_fallthru
      _
    %p144 = scmp.lt.s32.totalorder %s10, 2
    // Predicated region
    $region25: #{resnet_small_forward.9} parent=5 // pred_check
      %p145 = pneg %p144
    $region26: #{resnet_small_forward.9} parent=5 // pred_check_branch
      %147 = sbr.rel (%p145) target = $region28
    $region27: #{resnet_small_forward.9} parent=5 // pred_region
      // Predicated region
      $region29: #{resnet_small_forward.9} parent=27 // pred_check
        %p148 = pneg %p30
      $region30: #{resnet_small_forward.9} parent=27 // pred_check_branch
        %150 = sbr.rel (%p148) target = $region32
      $region31: #{resnet_small_forward.9} parent=27 // pred_region
        %s151 = smul.u32 64, %s10
        %p152 = scmp.lt.s32.totalorder %s151, 127
        %s153 = scalar_select %p152, %s151, 127
        %s154 = smul.addr %s153, 9
        %s155 = smul.addr %s154, 4
        %s156 = scalar_lea.vmem %s0, %s155
        %s157 = smul.u32 64, %s10
      $region32: #{resnet_small_forward.9} parent=27 // pred_fallthru
        _
    $region28: #{resnet_small_forward.9} parent=5 // pred_fallthru
      _
    %p158 = scmp.le.s32.totalorder 1, %s10
    %p159 = scmp.lt.s32.totalorder %s10, 3
    %p160 = pnand %p158, %p159
    %p161 = pneg %p160
    // Predicated region
    $region33: #{resnet_small_forward.9} parent=5 // pred_check
      _
    $region34: #{resnet_small_forward.9} parent=5 // pred_check_branch
      %163 = sbr.rel (%p160) target = $region36
    $region35: #{resnet_small_forward.9} parent=5 // pred_region
      %s164 = ssub.s32 %s10, 1
      %s165 = smul.u32 64, %s15
      %p166 = scmp.lt.s32.totalorder %s165, 127
      %s167 = scalar_select %p166, %s165, 127
      %s168 = smul.addr %s167, 9
      %s169 = smul.addr %s168, 4
      %s170 = scalar_lea.vmem %s0, %s169
      %p171 = pneg %p36
      %p172 = pneg %p33
      %p173 = pneg %p57
      %p174 = pneg %p54
      %p175 = pneg %p78
      %p176 = pneg %p75
      %p177 = pneg %p99
      %p178 = pneg %p96
      %p179 = pneg %p120
      %p180 = pneg %p117
      %s181 = smul.u32 64, %s15
      %p182 = scmp.lt.s32.totalorder %s181, 127
      %s183 = scalar_select %p182, %s181, 127
      %s184 = smul.addr %s183, 9
      %s185 = smul.addr %s184, 4
      %s186 = scalar_lea.vmem %s0, %s185
      %s187 = smul.u32 64, %s15
      %v189 = vld [vmem:[%s186] sm:$0xff]
      %v190 = vld [vmem:[%s186 + $0x8] sm:$0xff]
      %v191 = vld [vmem:[%s186 + $0x10] sm:$0xff]
      %v192 = vld [vmem:[%s186 + $0x18] sm:$0xff]
      %v193 = vld [vmem:[%s186 + $0x20] sm:$0xf]
      %v194 = vld [vmem:[%s186 + $0x24] sm:$0xff]
      %v195 = vld [vmem:[%s186 + $0x2c] sm:$0xff]
      %v196 = vld [vmem:[%s186 + $0x34] sm:$0xff]
      %v197 = vld [vmem:[%s186 + $0x3c] sm:$0xff]
      %v198 = vld [vmem:[%s186 + $0x44] sm:$0xf]
      %v199 = vld [vmem:[%s186 + $0x48] sm:$0xff]
      %v200 = vld [vmem:[%s186 + $0x50] sm:$0xff]
      %v201 = vld [vmem:[%s186 + $0x58] sm:$0xff]
      %v202 = vld [vmem:[%s186 + $0x60] sm:$0xff]
      %v203 = vld [vmem:[%s186 + $0x68] sm:$0xf]
      %v204 = vld [vmem:[%s186 + $0x6c] sm:$0xff]
      %v205 = vld [vmem:[%s186 + $0x74] sm:$0xff]
      %v206 = vld [vmem:[%s186 + $0x7c] sm:$0xff]
      %v207 = vld [vmem:[%s186 + $0x84] sm:$0xff]
      %v208 = vld [vmem:[%s186 + $0x8c] sm:$0xf]
      %v209 = vld [vmem:[%s186 + $0x90] sm:$0xff]
      %v210 = vld [vmem:[%s186 + $0x98] sm:$0xff]
      %v211 = vld [vmem:[%s186 + $0xa0] sm:$0xff]
      %v212 = vld [vmem:[%s186 + $0xa8] sm:$0xff]
      %v213 = vld [vmem:[%s186 + $0xb0] sm:$0xf]
      %v214 = vld [vmem:[%s186 + $0xb4] sm:$0xff]
      %v215 = vld [vmem:[%s186 + $0xbc] sm:$0xff]
      %v216 = vld [vmem:[%s186 + $0xc4] sm:$0xff]
      %v217 = vld [vmem:[%s186 + $0xcc] sm:$0xff]
      %v218 = vld [vmem:[%s186 + $0xd4] sm:$0xf]
      %v219 = vld [vmem:[%s186 + $0xd8] sm:$0xff]
      %v220 = vld [vmem:[%s186 + $0xe0] sm:$0xff]
      %v221 = vld [vmem:[%s186 + $0xe8] sm:$0xff]
      %v222 = vld [vmem:[%s186 + $0xf0] sm:$0xff]
      %v223 = vld [vmem:[%s186 + $0xf8] sm:$0xf]
      %v224 = vld [vmem:[%s186 + $0xfc] sm:$0xff]
      %v225 = vld [vmem:[%s186 + $0x104] sm:$0xff]
      %v226 = vld [vmem:[%s186 + $0x10c] sm:$0xff]
      %v227 = vld [vmem:[%s186 + $0x114] sm:$0xff]
      %v228 = vld [vmem:[%s186 + $0x11c] sm:$0xf]
      %v229 = vld [vmem:[%s186 + $0x120] sm:$0xff]
      %v230 = vld [vmem:[%s186 + $0x128] sm:$0xff]
      %v231 = vld [vmem:[%s186 + $0x130] sm:$0xff]
      %v232 = vld [vmem:[%s186 + $0x138] sm:$0xff]
      %v233 = vld [vmem:[%s186 + $0x140] sm:$0xf]
      %v234 = vld [vmem:[%s186 + $0x144] sm:$0xff]
      %v235 = vld [vmem:[%s186 + $0x14c] sm:$0xff]
      %v236 = vld [vmem:[%s186 + $0x154] sm:$0xff]
      %v237 = vld [vmem:[%s186 + $0x15c] sm:$0xff]
      %v238 = vld [vmem:[%s186 + $0x164] sm:$0xf]
      %v239 = vld [vmem:[%s186 + $0x168] sm:$0xff]
      %v240 = vld [vmem:[%s186 + $0x170] sm:$0xff]
      %v241 = vld [vmem:[%s186 + $0x178] sm:$0xff]
      %v242 = vld [vmem:[%s186 + $0x180] sm:$0xff]
      %v243 = vld [vmem:[%s186 + $0x188] sm:$0xf]
      %v244 = vld [vmem:[%s186 + $0x18c] sm:$0xff]
      %v245 = vld [vmem:[%s186 + $0x194] sm:$0xff]
      %v246 = vld [vmem:[%s186 + $0x19c] sm:$0xff]
      %v247 = vld [vmem:[%s186 + $0x1a4] sm:$0xff]
      %v248 = vld [vmem:[%s186 + $0x1ac] sm:$0xf]
      %v249 = vld [vmem:[%s186 + $0x1b0] sm:$0xff]
      %v250 = vld [vmem:[%s186 + $0x1b8] sm:$0xff]
      %v251 = vld [vmem:[%s186 + $0x1c0] sm:$0xff]
      %v252 = vld [vmem:[%s186 + $0x1c8] sm:$0xff]
      %v253 = vld [vmem:[%s186 + $0x1d0] sm:$0xf]
      %v254 = vld [vmem:[%s186 + $0x1d4] sm:$0xff]
      %v255 = vld [vmem:[%s186 + $0x1dc] sm:$0xff]
      %v256 = vld [vmem:[%s186 + $0x1e4] sm:$0xff]
      %v257 = vld [vmem:[%s186 + $0x1ec] sm:$0xff]
      %v258 = vld [vmem:[%s186 + $0x1f4] sm:$0xf]
      %v259 = vld [vmem:[%s186 + $0x1f8] sm:$0xff]
      %v260 = vld [vmem:[%s186 + $0x200] sm:$0xff]
      %v261 = vld [vmem:[%s186 + $0x208] sm:$0xff]
      %v262 = vld [vmem:[%s186 + $0x210] sm:$0xff]
      %v263 = vld [vmem:[%s186 + $0x218] sm:$0xf]
      %v264 = vld [vmem:[%s186 + $0x21c] sm:$0xff]
      %v265 = vld [vmem:[%s186 + $0x224] sm:$0xff]
      %v266 = vld [vmem:[%s186 + $0x22c] sm:$0xff]
      %v267 = vld [vmem:[%s186 + $0x234] sm:$0xff]
      %v268 = vld [vmem:[%s186 + $0x23c] sm:$0xf]
      %v269 = vld [vmem:[%s186 + $0x240] sm:$0xff]
      %v270 = vld [vmem:[%s186 + $0x248] sm:$0xff]
      %v271 = vld [vmem:[%s186 + $0x250] sm:$0xff]
      %v272 = vld [vmem:[%s186 + $0x258] sm:$0xff]
      %v273 = vld [vmem:[%s186 + $0x260] sm:$0xf]
      %v274 = vld [vmem:[%s186 + $0x264] sm:$0xff]
      %v275 = vld [vmem:[%s186 + $0x26c] sm:$0xff]
      %v276 = vld [vmem:[%s186 + $0x274] sm:$0xff]
      %v277 = vld [vmem:[%s186 + $0x27c] sm:$0xff]
      %v278 = vld [vmem:[%s186 + $0x284] sm:$0xf]
      %v279 = vld [vmem:[%s186 + $0x288] sm:$0xff]
      %v280 = vld [vmem:[%s186 + $0x290] sm:$0xff]
      %v281 = vld [vmem:[%s186 + $0x298] sm:$0xff]
      %v282 = vld [vmem:[%s186 + $0x2a0] sm:$0xff]
      %v283 = vld [vmem:[%s186 + $0x2a8] sm:$0xf]
      %v284 = vld [vmem:[%s186 + $0x2ac] sm:$0xff]
      %v285 = vld [vmem:[%s186 + $0x2b4] sm:$0xff]
      %v286 = vld [vmem:[%s186 + $0x2bc] sm:$0xff]
      %v287 = vld [vmem:[%s186 + $0x2c4] sm:$0xff]
      %v288 = vld [vmem:[%s186 + $0x2cc] sm:$0xf]
      %v289 = vld [vmem:[%s186 + $0x2d0] sm:$0xff]
      %v290 = vld [vmem:[%s186 + $0x2d8] sm:$0xff]
      %v291 = vld [vmem:[%s186 + $0x2e0] sm:$0xff]
      %v292 = vld [vmem:[%s186 + $0x2e8] sm:$0xff]
      %v293 = vld [vmem:[%s186 + $0x2f0] sm:$0xf]
      %v294 = vld [vmem:[%s186 + $0x2f4] sm:$0xff]
      %v295 = vld [vmem:[%s186 + $0x2fc] sm:$0xff]
      %v296 = vld [vmem:[%s186 + $0x304] sm:$0xff]
      %v297 = vld [vmem:[%s186 + $0x30c] sm:$0xff]
      %v298 = vld [vmem:[%s186 + $0x314] sm:$0xf]
      %v299 = vld [vmem:[%s186 + $0x318] sm:$0xff]
      %v300 = vld [vmem:[%s186 + $0x320] sm:$0xff]
      %v301 = vld [vmem:[%s186 + $0x328] sm:$0xff]
      %v302 = vld [vmem:[%s186 + $0x330] sm:$0xff]
      %v303 = vld [vmem:[%s186 + $0x338] sm:$0xf]
      %v304 = vld [vmem:[%s186 + $0x33c] sm:$0xff]
      %v305 = vld [vmem:[%s186 + $0x344] sm:$0xff]
      %v306 = vld [vmem:[%s186 + $0x34c] sm:$0xff]
      %v307 = vld [vmem:[%s186 + $0x354] sm:$0xff]
      %v308 = vld [vmem:[%s186 + $0x35c] sm:$0xf]
      %v309 = vld [vmem:[%s186 + $0x360] sm:$0xff]
      %v310 = vld [vmem:[%s186 + $0x368] sm:$0xff]
      %v311 = vld [vmem:[%s186 + $0x370] sm:$0xff]
      %v312 = vld [vmem:[%s186 + $0x378] sm:$0xff]
      %v313 = vld [vmem:[%s186 + $0x380] sm:$0xf]
      %v314 = vld [vmem:[%s186 + $0x384] sm:$0xff]
      %v315 = vld [vmem:[%s186 + $0x38c] sm:$0xff]
      %v316 = vld [vmem:[%s186 + $0x394] sm:$0xff]
      %v317 = vld [vmem:[%s186 + $0x39c] sm:$0xff]
      %v318 = vld [vmem:[%s186 + $0x3a4] sm:$0xf]
      %v319 = vld [vmem:[%s186 + $0x3a8] sm:$0xff]
      %v320 = vld [vmem:[%s186 + $0x3b0] sm:$0xff]
      %v321 = vld [vmem:[%s186 + $0x3b8] sm:$0xff]
      %v322 = vld [vmem:[%s186 + $0x3c0] sm:$0xff]
      %v323 = vld [vmem:[%s186 + $0x3c8] sm:$0xf]
      %v324 = vld [vmem:[%s186 + $0x3cc] sm:$0xff]
      %v325 = vld [vmem:[%s186 + $0x3d4] sm:$0xff]
      %v326 = vld [vmem:[%s186 + $0x3dc] sm:$0xff]
      %v327 = vld [vmem:[%s186 + $0x3e4] sm:$0xff]
      %v328 = vld [vmem:[%s186 + $0x3ec] sm:$0xf]
      %v329 = vld [vmem:[%s186 + $0x3f0] sm:$0xff]
      %v330 = vld [vmem:[%s186 + $0x3f8] sm:$0xff]
      %v331 = vld [vmem:[%s186 + $0x400] sm:$0xff]
      %v332 = vld [vmem:[%s186 + $0x408] sm:$0xff]
      %v333 = vld [vmem:[%s186 + $0x410] sm:$0xf]
      %v334 = vld [vmem:[%s186 + $0x414] sm:$0xff]
      %v335 = vld [vmem:[%s186 + $0x41c] sm:$0xff]
      %v336 = vld [vmem:[%s186 + $0x424] sm:$0xff]
      %v337 = vld [vmem:[%s186 + $0x42c] sm:$0xff]
      %v338 = vld [vmem:[%s186 + $0x434] sm:$0xf]
      %v339 = vld [vmem:[%s186 + $0x438] sm:$0xff]
      %v340 = vld [vmem:[%s186 + $0x440] sm:$0xff]
      %v341 = vld [vmem:[%s186 + $0x448] sm:$0xff]
      %v342 = vld [vmem:[%s186 + $0x450] sm:$0xff]
      %v343 = vld [vmem:[%s186 + $0x458] sm:$0xf]
      %v344 = vld [vmem:[%s186 + $0x45c] sm:$0xff]
      %v345 = vld [vmem:[%s186 + $0x464] sm:$0xff]
      %v346 = vld [vmem:[%s186 + $0x46c] sm:$0xff]
      %v347 = vld [vmem:[%s186 + $0x474] sm:$0xff]
      %v348 = vld [vmem:[%s186 + $0x47c] sm:$0xf]
      %v349 = vld [vmem:[%s186 + $0x480] sm:$0xff]
      %v350 = vld [vmem:[%s186 + $0x488] sm:$0xff]
      %v351 = vld [vmem:[%s186 + $0x490] sm:$0xff]
      %v352 = vld [vmem:[%s186 + $0x498] sm:$0xff]
      %v353 = vld [vmem:[%s186 + $0x4a0] sm:$0xf]
      %v354 = vld [vmem:[%s186 + $0x4a4] sm:$0xff]
      %v355 = vld [vmem:[%s186 + $0x4ac] sm:$0xff]
      %v356 = vld [vmem:[%s186 + $0x4b4] sm:$0xff]
      %v357 = vld [vmem:[%s186 + $0x4bc] sm:$0xff]
      %v358 = vld [vmem:[%s186 + $0x4c4] sm:$0xf]
      %v359 = vld [vmem:[%s186 + $0x4c8] sm:$0xff]
      %v360 = vld [vmem:[%s186 + $0x4d0] sm:$0xff]
      %v361 = vld [vmem:[%s186 + $0x4d8] sm:$0xff]
      %v362 = vld [vmem:[%s186 + $0x4e0] sm:$0xff]
      %v363 = vld [vmem:[%s186 + $0x4e8] sm:$0xf]
      %v364 = vld [vmem:[%s186 + $0x4ec] sm:$0xff]
      %v365 = vld [vmem:[%s186 + $0x4f4] sm:$0xff]
      %v366 = vld [vmem:[%s186 + $0x4fc] sm:$0xff]
      %v367 = vld [vmem:[%s186 + $0x504] sm:$0xff]
      %v368 = vld [vmem:[%s186 + $0x50c] sm:$0xf]
      %v369 = vld [vmem:[%s186 + $0x510] sm:$0xff]
      %v370 = vld [vmem:[%s186 + $0x518] sm:$0xff]
      %v371 = vld [vmem:[%s186 + $0x520] sm:$0xff]
      %v372 = vld [vmem:[%s186 + $0x528] sm:$0xff]
      %v373 = vld [vmem:[%s186 + $0x530] sm:$0xf]
      %v374 = vld [vmem:[%s186 + $0x534] sm:$0xff]
      %v375 = vld [vmem:[%s186 + $0x53c] sm:$0xff]
      %v376 = vld [vmem:[%s186 + $0x544] sm:$0xff]
      %v377 = vld [vmem:[%s186 + $0x54c] sm:$0xff]
      %v378 = vld [vmem:[%s186 + $0x554] sm:$0xf]
      %v379 = vld [vmem:[%s186 + $0x558] sm:$0xff]
      %v380 = vld [vmem:[%s186 + $0x560] sm:$0xff]
      %v381 = vld [vmem:[%s186 + $0x568] sm:$0xff]
      %v382 = vld [vmem:[%s186 + $0x570] sm:$0xff]
      %v383 = vld [vmem:[%s186 + $0x578] sm:$0xf]
      %v384 = vld [vmem:[%s186 + $0x57c] sm:$0xff]
      %v385 = vld [vmem:[%s186 + $0x584] sm:$0xff]
      %v386 = vld [vmem:[%s186 + $0x58c] sm:$0xff]
      %v387 = vld [vmem:[%s186 + $0x594] sm:$0xff]
      %v388 = vld [vmem:[%s186 + $0x59c] sm:$0xf]
      %v389 = vld [vmem:[%s186 + $0x5a0] sm:$0xff]
      %v390 = vld [vmem:[%s186 + $0x5a8] sm:$0xff]
      %v391 = vld [vmem:[%s186 + $0x5b0] sm:$0xff]
      %v392 = vld [vmem:[%s186 + $0x5b8] sm:$0xff]
      %v393 = vld [vmem:[%s186 + $0x5c0] sm:$0xf]
      %v394 = vld [vmem:[%s186 + $0x5c4] sm:$0xff]
      %v395 = vld [vmem:[%s186 + $0x5cc] sm:$0xff]
      %v396 = vld [vmem:[%s186 + $0x5d4] sm:$0xff]
      %v397 = vld [vmem:[%s186 + $0x5dc] sm:$0xff]
      %v398 = vld [vmem:[%s186 + $0x5e4] sm:$0xf]
      %v399 = vld [vmem:[%s186 + $0x5e8] sm:$0xff]
      %v400 = vld [vmem:[%s186 + $0x5f0] sm:$0xff]
      %v401 = vld [vmem:[%s186 + $0x5f8] sm:$0xff]
      %v402 = vld [vmem:[%s186 + $0x600] sm:$0xff]
      %v403 = vld [vmem:[%s186 + $0x608] sm:$0xf]
      %v404 = vld [vmem:[%s186 + $0x60c] sm:$0xff]
      %v405 = vld [vmem:[%s186 + $0x614] sm:$0xff]
      %v406 = vld [vmem:[%s186 + $0x61c] sm:$0xff]
      %v407 = vld [vmem:[%s186 + $0x624] sm:$0xff]
      %v408 = vld [vmem:[%s186 + $0x62c] sm:$0xf]
      %v409 = vld [vmem:[%s186 + $0x630] sm:$0xff]
      %v410 = vld [vmem:[%s186 + $0x638] sm:$0xff]
      %v411 = vld [vmem:[%s186 + $0x640] sm:$0xff]
      %v412 = vld [vmem:[%s186 + $0x648] sm:$0xff]
      %v413 = vld [vmem:[%s186 + $0x650] sm:$0xf]
      %v414 = vld [vmem:[%s186 + $0x654] sm:$0xff]
      %v415 = vld [vmem:[%s186 + $0x65c] sm:$0xff]
      %v416 = vld [vmem:[%s186 + $0x664] sm:$0xff]
      %v417 = vld [vmem:[%s186 + $0x66c] sm:$0xff]
      %v418 = vld [vmem:[%s186 + $0x674] sm:$0xf]
      %v419 = vld [vmem:[%s186 + $0x678] sm:$0xff]
      %v420 = vld [vmem:[%s186 + $0x680] sm:$0xff]
      %v421 = vld [vmem:[%s186 + $0x688] sm:$0xff]
      %v422 = vld [vmem:[%s186 + $0x690] sm:$0xff]
      %v423 = vld [vmem:[%s186 + $0x698] sm:$0xf]
      %v424 = vld [vmem:[%s186 + $0x69c] sm:$0xff]
      %v425 = vld [vmem:[%s186 + $0x6a4] sm:$0xff]
      %v426 = vld [vmem:[%s186 + $0x6ac] sm:$0xff]
      %v427 = vld [vmem:[%s186 + $0x6b4] sm:$0xff]
      %v428 = vld [vmem:[%s186 + $0x6bc] sm:$0xf]
      %v429 = vld [vmem:[%s186 + $0x6c0] sm:$0xff]
      %v430 = vld [vmem:[%s186 + $0x6c8] sm:$0xff]
      %v431 = vld [vmem:[%s186 + $0x6d0] sm:$0xff]
      %v432 = vld [vmem:[%s186 + $0x6d8] sm:$0xff]
      %v433 = vld [vmem:[%s186 + $0x6e0] sm:$0xf]
      %v434 = vld [vmem:[%s186 + $0x6e4] sm:$0xff]
      %v435 = vld [vmem:[%s186 + $0x6ec] sm:$0xff]
      %v436 = vld [vmem:[%s186 + $0x6f4] sm:$0xff]
      %v437 = vld [vmem:[%s186 + $0x6fc] sm:$0xff]
      %v438 = vld [vmem:[%s186 + $0x704] sm:$0xf]
      %v439 = vld [vmem:[%s186 + $0x708] sm:$0xff]
      %v440 = vld [vmem:[%s186 + $0x710] sm:$0xff]
      %v441 = vld [vmem:[%s186 + $0x718] sm:$0xff]
      %v442 = vld [vmem:[%s186 + $0x720] sm:$0xff]
      %v443 = vld [vmem:[%s186 + $0x728] sm:$0xf]
      %v444 = vld [vmem:[%s186 + $0x72c] sm:$0xff]
      %v445 = vld [vmem:[%s186 + $0x734] sm:$0xff]
      %v446 = vld [vmem:[%s186 + $0x73c] sm:$0xff]
      %v447 = vld [vmem:[%s186 + $0x744] sm:$0xff]
      %v448 = vld [vmem:[%s186 + $0x74c] sm:$0xf]
      %v449 = vld [vmem:[%s186 + $0x750] sm:$0xff]
      %v450 = vld [vmem:[%s186 + $0x758] sm:$0xff]
      %v451 = vld [vmem:[%s186 + $0x760] sm:$0xff]
      %v452 = vld [vmem:[%s186 + $0x768] sm:$0xff]
      %v453 = vld [vmem:[%s186 + $0x770] sm:$0xf]
      %v454 = vld [vmem:[%s186 + $0x774] sm:$0xff]
      %v455 = vld [vmem:[%s186 + $0x77c] sm:$0xff]
      %v456 = vld [vmem:[%s186 + $0x784] sm:$0xff]
      %v457 = vld [vmem:[%s186 + $0x78c] sm:$0xff]
      %v458 = vld [vmem:[%s186 + $0x794] sm:$0xf]
      %v459 = vld [vmem:[%s186 + $0x798] sm:$0xff]
      %v460 = vld [vmem:[%s186 + $0x7a0] sm:$0xff]
      %v461 = vld [vmem:[%s186 + $0x7a8] sm:$0xff]
      %v462 = vld [vmem:[%s186 + $0x7b0] sm:$0xff]
      %v463 = vld [vmem:[%s186 + $0x7b8] sm:$0xf]
      %v464 = vld [vmem:[%s186 + $0x7bc] sm:$0xff]
      %v465 = vld [vmem:[%s186 + $0x7c4] sm:$0xff]
      %v466 = vld [vmem:[%s186 + $0x7cc] sm:$0xff]
      %v467 = vld [vmem:[%s186 + $0x7d4] sm:$0xff]
      %v468 = vld [vmem:[%s186 + $0x7dc] sm:$0xf]
      %v469 = vld [vmem:[%s186 + $0x7e0] sm:$0xff]
      %v470 = vld [vmem:[%s186 + $0x7e8] sm:$0xff]
      %v471 = vld [vmem:[%s186 + $0x7f0] sm:$0xff]
      %v472 = vld [vmem:[%s186 + $0x7f8] sm:$0xff]
      %v473 = vld [vmem:[%s186 + $0x800] sm:$0xf]
      %v474 = vld [vmem:[%s186 + $0x804] sm:$0xff]
      %v475 = vld [vmem:[%s186 + $0x80c] sm:$0xff]
      %v476 = vld [vmem:[%s186 + $0x814] sm:$0xff]
      %v477 = vld [vmem:[%s186 + $0x81c] sm:$0xff]
      %v478 = vld [vmem:[%s186 + $0x824] sm:$0xf]
      %v479 = vld [vmem:[%s186 + $0x828] sm:$0xff]
      %v480 = vld [vmem:[%s186 + $0x830] sm:$0xff]
      %v481 = vld [vmem:[%s186 + $0x838] sm:$0xff]
      %v482 = vld [vmem:[%s186 + $0x840] sm:$0xff]
      %v483 = vld [vmem:[%s186 + $0x848] sm:$0xf]
      %v484 = vld [vmem:[%s186 + $0x84c] sm:$0xff]
      %v485 = vld [vmem:[%s186 + $0x854] sm:$0xff]
      %v486 = vld [vmem:[%s186 + $0x85c] sm:$0xff]
      %v487 = vld [vmem:[%s186 + $0x864] sm:$0xff]
      %v488 = vld [vmem:[%s186 + $0x86c] sm:$0xf]
      %v489 = vld [vmem:[%s186 + $0x870] sm:$0xff]
      %v490 = vld [vmem:[%s186 + $0x878] sm:$0xff]
      %v491 = vld [vmem:[%s186 + $0x880] sm:$0xff]
      %v492 = vld [vmem:[%s186 + $0x888] sm:$0xff]
      %v493 = vld [vmem:[%s186 + $0x890] sm:$0xf]
      %v494 = vld [vmem:[%s186 + $0x894] sm:$0xff]
      %v495 = vld [vmem:[%s186 + $0x89c] sm:$0xff]
      %v496 = vld [vmem:[%s186 + $0x8a4] sm:$0xff]
      %v497 = vld [vmem:[%s186 + $0x8ac] sm:$0xff]
      %v498 = vld [vmem:[%s186 + $0x8b4] sm:$0xf]
      %v499 = vld [vmem:[%s186 + $0x8b8] sm:$0xff]
      %v500 = vld [vmem:[%s186 + $0x8c0] sm:$0xff]
      %v501 = vld [vmem:[%s186 + $0x8c8] sm:$0xff]
      %v502 = vld [vmem:[%s186 + $0x8d0] sm:$0xff]
      %v503 = vld [vmem:[%s186 + $0x8d8] sm:$0xf]
      %v504 = vld [vmem:[%s186 + $0x8dc] sm:$0xff]
      %v505 = vld [vmem:[%s186 + $0x8e4] sm:$0xff]
      %v506 = vld [vmem:[%s186 + $0x8ec] sm:$0xff]
      %v507 = vld [vmem:[%s186 + $0x8f4] sm:$0xff]
      %v508 = vld [vmem:[%s186 + $0x8fc] sm:$0xf]
      %v509 = vld [vmem:[%s1] sm:$0xf]
      %v510 = vld [vmem:[%s1 + $0x4] sm:$0xf]
      %v511 = vld [vmem:[%s1 + $0x8] sm:$0xf]
      %v512 = vld [vmem:[%s1 + $0xc] sm:$0xf]
      %v513 = vld [vmem:[%s1 + $0x10] sm:$0xf]
      %v514 = vld [vmem:[%s1 + $0x14] sm:$0xf]
      %v515 = vld [vmem:[%s1 + $0x18] sm:$0xf]
      %v516 = vld [vmem:[%s1 + $0x1c] sm:$0xf]
      %v517 = vld [vmem:[%s1 + $0x20] sm:$0xf]
      %v518 = vld [vmem:[%s1 + $0x24] sm:$0xf]
      %v519 = vld [vmem:[%s1 + $0x28] sm:$0xf]
      %v520 = vld [vmem:[%s1 + $0x2c] sm:$0xf]
      %v521 = vld [vmem:[%s1 + $0x30] sm:$0xf]
      %v522 = vld [vmem:[%s1 + $0x34] sm:$0xf]
      %v523 = vld [vmem:[%s1 + $0x38] sm:$0xf]
      %v524 = vld [vmem:[%s1 + $0x3c] sm:$0xf]
      %v525 = vld [vmem:[%s1 + $0x40] sm:$0xf]
      %v526 = vld [vmem:[%s1 + $0x44] sm:$0xf]
      %v527 = vld [vmem:[%s1 + $0x48] sm:$0xf]
      %v528 = vld [vmem:[%s1 + $0x4c] sm:$0xf]
      %v529 = vld [vmem:[%s1 + $0x50] sm:$0xf]
      %v530 = vld [vmem:[%s1 + $0x54] sm:$0xf]
      %v531 = vld [vmem:[%s1 + $0x58] sm:$0xf]
      %v532 = vld [vmem:[%s1 + $0x5c] sm:$0xf]
      %v533 = vld [vmem:[%s1 + $0x60] sm:$0xf]
      %v534 = vld [vmem:[%s1 + $0x64] sm:$0xf]
      %v535 = vld [vmem:[%s1 + $0x68] sm:$0xf]
      %v536 = vld [vmem:[%s1 + $0x6c] sm:$0xf]
      %v537 = vld [vmem:[%s1 + $0x70] sm:$0xf]
      %v538 = vld [vmem:[%s1 + $0x74] sm:$0xf]
      %v539 = vld [vmem:[%s1 + $0x78] sm:$0xf]
      %v540 = vld [vmem:[%s1 + $0x7c] sm:$0xf]
      %v541 = vld [vmem:[%s1 + $0x80] sm:$0xf]
      %v542 = vld [vmem:[%s1 + $0x84] sm:$0xf]
      %v543 = vld [vmem:[%s1 + $0x88] sm:$0xf]
      %v544 = vld [vmem:[%s1 + $0x8c] sm:$0xf]
      %v545 = vld [vmem:[%s1 + $0x90] sm:$0xf]
      %v546 = vld [vmem:[%s1 + $0x94] sm:$0xf]
      %v547 = vld [vmem:[%s1 + $0x98] sm:$0xf]
      %v548 = vld [vmem:[%s1 + $0x9c] sm:$0xf]
      %v549 = vld [vmem:[%s1 + $0xa0] sm:$0xf]
      %v550 = vld [vmem:[%s1 + $0xa4] sm:$0xf]
      %v551 = vld [vmem:[%s1 + $0xa8] sm:$0xf]
      %v552 = vld [vmem:[%s1 + $0xac] sm:$0xf]
      %v553 = vld [vmem:[%s1 + $0xb0] sm:$0xf]
      %v554 = vld [vmem:[%s1 + $0xb4] sm:$0xf]
      %v555 = vld [vmem:[%s1 + $0xb8] sm:$0xf]
      %v556 = vld [vmem:[%s1 + $0xbc] sm:$0xf]
      %v557 = vld [vmem:[%s1 + $0xc0] sm:$0xf]
      %v558 = vld [vmem:[%s1 + $0xc4] sm:$0xf]
      %v559 = vld [vmem:[%s1 + $0xc8] sm:$0xf]
      %v560 = vld [vmem:[%s1 + $0xcc] sm:$0xf]
      %v561 = vld [vmem:[%s1 + $0xd0] sm:$0xf]
      %v562 = vld [vmem:[%s1 + $0xd4] sm:$0xf]
      %v563 = vld [vmem:[%s1 + $0xd8] sm:$0xf]
      %v564 = vld [vmem:[%s1 + $0xdc] sm:$0xf]
      %v565 = vld [vmem:[%s1 + $0xe0] sm:$0xf]
      %v566 = vld [vmem:[%s1 + $0xe4] sm:$0xf]
      %v567 = vld [vmem:[%s1 + $0xe8] sm:$0xf]
      %v568 = vld [vmem:[%s1 + $0xec] sm:$0xf]
      %v569 = vld [vmem:[%s1 + $0xf0] sm:$0xf]
      %v570 = vld [vmem:[%s1 + $0xf4] sm:$0xf]
      %v571 = vld [vmem:[%s1 + $0xf8] sm:$0xf]
      %v572 = vld [vmem:[%s1 + $0xfc] sm:$0xf]
      %v573 = vld [vmem:[%s1 + $0x100] sm:$0xf]
      %v574 = vld [vmem:[%s1 + $0x104] sm:$0xf]
      %v575 = vld [vmem:[%s1 + $0x108] sm:$0xf]
      %v576 = vld [vmem:[%s1 + $0x10c] sm:$0xf]
      %v577 = vld [vmem:[%s1 + $0x110] sm:$0xf]
      %v578 = vld [vmem:[%s1 + $0x114] sm:$0xf]
      %v579 = vld [vmem:[%s1 + $0x118] sm:$0xf]
      %v580 = vld [vmem:[%s1 + $0x11c] sm:$0xf]
      %v581 = vld [vmem:[%s1 + $0x120] sm:$0xf]
      %v582 = vld [vmem:[%s1 + $0x124] sm:$0xf]
      %v583 = vld [vmem:[%s1 + $0x128] sm:$0xf]
      %v584 = vld [vmem:[%s1 + $0x12c] sm:$0xf]
      %v585 = vld [vmem:[%s1 + $0x130] sm:$0xf]
      %v586 = vld [vmem:[%s1 + $0x134] sm:$0xf]
      %v587 = vld [vmem:[%s1 + $0x138] sm:$0xf]
      %v588 = vld [vmem:[%s1 + $0x13c] sm:$0xf]
      %v589 = vld [vmem:[%s1 + $0x140] sm:$0xf]
      %v590 = vld [vmem:[%s1 + $0x144] sm:$0xf]
      %v591 = vld [vmem:[%s1 + $0x148] sm:$0xf]
      %v592 = vld [vmem:[%s1 + $0x14c] sm:$0xf]
      %v593 = vld [vmem:[%s1 + $0x150] sm:$0xf]
      %v594 = vld [vmem:[%s1 + $0x154] sm:$0xf]
      %v595 = vld [vmem:[%s1 + $0x158] sm:$0xf]
      %v596 = vld [vmem:[%s1 + $0x15c] sm:$0xf]
      %v597 = vld [vmem:[%s1 + $0x160] sm:$0xf]
      %v598 = vld [vmem:[%s1 + $0x164] sm:$0xf]
      %v599 = vld [vmem:[%s1 + $0x168] sm:$0xf]
      %v600 = vld [vmem:[%s1 + $0x16c] sm:$0xf]
      %v601 = vld [vmem:[%s1 + $0x170] sm:$0xf]
      %v602 = vld [vmem:[%s1 + $0x174] sm:$0xf]
      %v603 = vld [vmem:[%s1 + $0x178] sm:$0xf]
      %v604 = vld [vmem:[%s1 + $0x17c] sm:$0xf]
      %v605 = vld [vmem:[%s1 + $0x180] sm:$0xf]
      %v606 = vld [vmem:[%s1 + $0x184] sm:$0xf]
      %v607 = vld [vmem:[%s1 + $0x188] sm:$0xf]
      %v608 = vld [vmem:[%s1 + $0x18c] sm:$0xf]
      %v609 = vld [vmem:[%s1 + $0x190] sm:$0xf]
      %v610 = vld [vmem:[%s1 + $0x194] sm:$0xf]
      %v611 = vld [vmem:[%s1 + $0x198] sm:$0xf]
      %v612 = vld [vmem:[%s1 + $0x19c] sm:$0xf]
      %v613 = vld [vmem:[%s1 + $0x1a0] sm:$0xf]
      %v614 = vld [vmem:[%s1 + $0x1a4] sm:$0xf]
      %v615 = vld [vmem:[%s1 + $0x1a8] sm:$0xf]
      %v616 = vld [vmem:[%s1 + $0x1ac] sm:$0xf]
      %v617 = vld [vmem:[%s1 + $0x1b0] sm:$0xf]
      %v618 = vld [vmem:[%s1 + $0x1b4] sm:$0xf]
      %v619 = vld [vmem:[%s1 + $0x1b8] sm:$0xf]
      %v620 = vld [vmem:[%s1 + $0x1bc] sm:$0xf]
      %v621 = vld [vmem:[%s1 + $0x1c0] sm:$0xf]
      %v622 = vld [vmem:[%s1 + $0x1c4] sm:$0xf]
      %v623 = vld [vmem:[%s1 + $0x1c8] sm:$0xf]
      %v624 = vld [vmem:[%s1 + $0x1cc] sm:$0xf]
      %v625 = vld [vmem:[%s1 + $0x1d0] sm:$0xf]
      %v626 = vld [vmem:[%s1 + $0x1d4] sm:$0xf]
      %v627 = vld [vmem:[%s1 + $0x1d8] sm:$0xf]
      %v628 = vld [vmem:[%s1 + $0x1dc] sm:$0xf]
      %v629 = vld [vmem:[%s1 + $0x1e0] sm:$0xf]
      %v630 = vld [vmem:[%s1 + $0x1e4] sm:$0xf]
      %v631 = vld [vmem:[%s1 + $0x1e8] sm:$0xf]
      %v632 = vld [vmem:[%s1 + $0x1ec] sm:$0xf]
      %v633 = vld [vmem:[%s1 + $0x1f0] sm:$0xf]
      %v634 = vld [vmem:[%s1 + $0x1f4] sm:$0xf]
      %v635 = vld [vmem:[%s1 + $0x1f8] sm:$0xf]
      %v636 = vld [vmem:[%s1 + $0x1fc] sm:$0xf]
      %v637 = vld [vmem:[%s1 + $0x200] sm:$0xf]
      %v638 = vld [vmem:[%s1 + $0x204] sm:$0xf]
      %v639 = vld [vmem:[%s1 + $0x208] sm:$0xf]
      %v640 = vld [vmem:[%s1 + $0x20c] sm:$0xf]
      %v641 = vld [vmem:[%s1 + $0x210] sm:$0xf]
      %v642 = vld [vmem:[%s1 + $0x214] sm:$0xf]
      %v643 = vld [vmem:[%s1 + $0x218] sm:$0xf]
      %v644 = vld [vmem:[%s1 + $0x21c] sm:$0xf]
      %v645 = vld [vmem:[%s1 + $0x220] sm:$0xf]
      %v646 = vld [vmem:[%s1 + $0x224] sm:$0xf]
      %v647 = vld [vmem:[%s1 + $0x228] sm:$0xf]
      %v648 = vld [vmem:[%s1 + $0x22c] sm:$0xf]
      %v649 = vld [vmem:[%s1 + $0x230] sm:$0xf]
      %v650 = vld [vmem:[%s1 + $0x234] sm:$0xf]
      %v651 = vld [vmem:[%s1 + $0x238] sm:$0xf]
      %v652 = vld [vmem:[%s1 + $0x23c] sm:$0xf]
      %v973 = vunpack.c.l.b16 %v189
      %v974 = vunpack.c.h.b16 %v189
      %v975 = vunpack.c.l.b16 %v190
      %v976 = vunpack.c.h.b16 %v190
      %v977 = vunpack.c.l.b16 %v191
      %v978 = vunpack.c.h.b16 %v191
      %v979 = vunpack.c.l.b16 %v192
      %v980 = vunpack.c.h.b16 %v192
      %v981 = vunpack.c.l.b16 %v193
      %v982 = vunpack.c.l.b16 %v194
      %v983 = vunpack.c.h.b16 %v194
      %v984 = vunpack.c.l.b16 %v195
      %v985 = vunpack.c.h.b16 %v195
      %v986 = vunpack.c.l.b16 %v196
      %v987 = vunpack.c.h.b16 %v196
      %v988 = vunpack.c.l.b16 %v197
      %v989 = vunpack.c.h.b16 %v197
      %v990 = vunpack.c.l.b16 %v198
      %v991 = vunpack.c.l.b16 %v199
      %v992 = vunpack.c.h.b16 %v199
      %v993 = vunpack.c.l.b16 %v200
      %v994 = vunpack.c.h.b16 %v200
      %v995 = vunpack.c.l.b16 %v201
      %v996 = vunpack.c.h.b16 %v201
      %v997 = vunpack.c.l.b16 %v202
      %v998 = vunpack.c.h.b16 %v202
      %v999 = vunpack.c.l.b16 %v203
      %v1000 = vunpack.c.l.b16 %v204
      %v1001 = vunpack.c.h.b16 %v204
      %v1002 = vunpack.c.l.b16 %v205
      %v1003 = vunpack.c.h.b16 %v205
      %v1004 = vunpack.c.l.b16 %v206
      %v1005 = vunpack.c.h.b16 %v206
      %v1006 = vunpack.c.l.b16 %v207
      %v1007 = vunpack.c.h.b16 %v207
      %v1008 = vunpack.c.l.b16 %v208
      %v1009 = vunpack.c.l.b16 %v209
      %v1010 = vunpack.c.h.b16 %v209
      %v1011 = vunpack.c.l.b16 %v210
      %v1012 = vunpack.c.h.b16 %v210
      %v1013 = vunpack.c.l.b16 %v211
      %v1014 = vunpack.c.h.b16 %v211
      %v1015 = vunpack.c.l.b16 %v212
      %v1016 = vunpack.c.h.b16 %v212
      %v1017 = vunpack.c.l.b16 %v213
      %v1018 = vunpack.c.l.b16 %v214
      %v1019 = vunpack.c.h.b16 %v214
      %v1020 = vunpack.c.l.b16 %v215
      %v1021 = vunpack.c.h.b16 %v215
      %v1022 = vunpack.c.l.b16 %v216
      %v1023 = vunpack.c.h.b16 %v216
      %v1024 = vunpack.c.l.b16 %v217
      %v1025 = vunpack.c.h.b16 %v217
      %v1026 = vunpack.c.l.b16 %v218
      %v1027 = vunpack.c.l.b16 %v219
      %v1028 = vunpack.c.h.b16 %v219
      %v1029 = vunpack.c.l.b16 %v220
      %v1030 = vunpack.c.h.b16 %v220
      %v1031 = vunpack.c.l.b16 %v221
      %v1032 = vunpack.c.h.b16 %v221
      %v1033 = vunpack.c.l.b16 %v222
      %v1034 = vunpack.c.h.b16 %v222
      %v1035 = vunpack.c.l.b16 %v223
      %v1036 = vunpack.c.l.b16 %v224
      %v1037 = vunpack.c.h.b16 %v224
      %v1038 = vunpack.c.l.b16 %v225
      %v1039 = vunpack.c.h.b16 %v225
      %v1040 = vunpack.c.l.b16 %v226
      %v1041 = vunpack.c.h.b16 %v226
      %v1042 = vunpack.c.l.b16 %v227
      %v1043 = vunpack.c.h.b16 %v227
      %v1044 = vunpack.c.l.b16 %v228
      %v1045 = vunpack.c.l.b16 %v229
      %v1046 = vunpack.c.h.b16 %v229
      %v1047 = vunpack.c.l.b16 %v230
      %v1048 = vunpack.c.h.b16 %v230
      %v1049 = vunpack.c.l.b16 %v231
      %v1050 = vunpack.c.h.b16 %v231
      %v1051 = vunpack.c.l.b16 %v232
      %v1052 = vunpack.c.h.b16 %v232
      %v1053 = vunpack.c.l.b16 %v233
      %v1054 = vunpack.c.l.b16 %v234
      %v1055 = vunpack.c.h.b16 %v234
      %v1056 = vunpack.c.l.b16 %v235
      %v1057 = vunpack.c.h.b16 %v235
      %v1058 = vunpack.c.l.b16 %v236
      %v1059 = vunpack.c.h.b16 %v236
      %v1060 = vunpack.c.l.b16 %v237
      %v1061 = vunpack.c.h.b16 %v237
      %v1062 = vunpack.c.l.b16 %v238
      %v1063 = vunpack.c.l.b16 %v239
      %v1064 = vunpack.c.h.b16 %v239
      %v1065 = vunpack.c.l.b16 %v240
      %v1066 = vunpack.c.h.b16 %v240
      %v1067 = vunpack.c.l.b16 %v241
      %v1068 = vunpack.c.h.b16 %v241
      %v1069 = vunpack.c.l.b16 %v242
      %v1070 = vunpack.c.h.b16 %v242
      %v1071 = vunpack.c.l.b16 %v243
      %v1072 = vunpack.c.l.b16 %v244
      %v1073 = vunpack.c.h.b16 %v244
      %v1074 = vunpack.c.l.b16 %v245
      %v1075 = vunpack.c.h.b16 %v245
      %v1076 = vunpack.c.l.b16 %v246
      %v1077 = vunpack.c.h.b16 %v246
      %v1078 = vunpack.c.l.b16 %v247
      %v1079 = vunpack.c.h.b16 %v247
      %v1080 = vunpack.c.l.b16 %v248
      %v1081 = vunpack.c.l.b16 %v249
      %v1082 = vunpack.c.h.b16 %v249
      %v1083 = vunpack.c.l.b16 %v250
      %v1084 = vunpack.c.h.b16 %v250
      %v1085 = vunpack.c.l.b16 %v251
      %v1086 = vunpack.c.h.b16 %v251
      %v1087 = vunpack.c.l.b16 %v252
      %v1088 = vunpack.c.h.b16 %v252
      %v1089 = vunpack.c.l.b16 %v253
      %v1090 = vunpack.c.l.b16 %v254
      %v1091 = vunpack.c.h.b16 %v254
      %v1092 = vunpack.c.l.b16 %v255
      %v1093 = vunpack.c.h.b16 %v255
      %v1094 = vunpack.c.l.b16 %v256
      %v1095 = vunpack.c.h.b16 %v256
      %v1096 = vunpack.c.l.b16 %v257
      %v1097 = vunpack.c.h.b16 %v257
      %v1098 = vunpack.c.l.b16 %v258
      %v1099 = vunpack.c.l.b16 %v259
      %v1100 = vunpack.c.h.b16 %v259
      %v1101 = vunpack.c.l.b16 %v260
      %v1102 = vunpack.c.h.b16 %v260
      %v1103 = vunpack.c.l.b16 %v261
      %v1104 = vunpack.c.h.b16 %v261
      %v1105 = vunpack.c.l.b16 %v262
      %v1106 = vunpack.c.h.b16 %v262
      %v1107 = vunpack.c.l.b16 %v263
      %v1108 = vunpack.c.l.b16 %v264
      %v1109 = vunpack.c.h.b16 %v264
      %v1110 = vunpack.c.l.b16 %v265
      %v1111 = vunpack.c.h.b16 %v265
      %v1112 = vunpack.c.l.b16 %v266
      %v1113 = vunpack.c.h.b16 %v266
      %v1114 = vunpack.c.l.b16 %v267
      %v1115 = vunpack.c.h.b16 %v267
      %v1116 = vunpack.c.l.b16 %v268
      %v1117 = vunpack.c.l.b16 %v269
      %v1118 = vunpack.c.h.b16 %v269
      %v1119 = vunpack.c.l.b16 %v270
      %v1120 = vunpack.c.h.b16 %v270
      %v1121 = vunpack.c.l.b16 %v271
      %v1122 = vunpack.c.h.b16 %v271
      %v1123 = vunpack.c.l.b16 %v272
      %v1124 = vunpack.c.h.b16 %v272
      %v1125 = vunpack.c.l.b16 %v273
      %v1126 = vunpack.c.l.b16 %v274
      %v1127 = vunpack.c.h.b16 %v274
      %v1128 = vunpack.c.l.b16 %v275
      %v1129 = vunpack.c.h.b16 %v275
      %v1130 = vunpack.c.l.b16 %v276
      %v1131 = vunpack.c.h.b16 %v276
      %v1132 = vunpack.c.l.b16 %v277
      %v1133 = vunpack.c.h.b16 %v277
      %v1134 = vunpack.c.l.b16 %v278
      %v1135 = vunpack.c.l.b16 %v279
      %v1136 = vunpack.c.h.b16 %v279
      %v1137 = vunpack.c.l.b16 %v280
      %v1138 = vunpack.c.h.b16 %v280
      %v1139 = vunpack.c.l.b16 %v281
      %v1140 = vunpack.c.h.b16 %v281
      %v1141 = vunpack.c.l.b16 %v282
      %v1142 = vunpack.c.h.b16 %v282
      %v1143 = vunpack.c.l.b16 %v283
      %v1144 = vunpack.c.l.b16 %v284
      %v1145 = vunpack.c.h.b16 %v284
      %v1146 = vunpack.c.l.b16 %v285
      %v1147 = vunpack.c.h.b16 %v285
      %v1148 = vunpack.c.l.b16 %v286
      %v1149 = vunpack.c.h.b16 %v286
      %v1150 = vunpack.c.l.b16 %v287
      %v1151 = vunpack.c.h.b16 %v287
      %v1152 = vunpack.c.l.b16 %v288
      %v1153 = vunpack.c.l.b16 %v289
      %v1154 = vunpack.c.h.b16 %v289
      %v1155 = vunpack.c.l.b16 %v290
      %v1156 = vunpack.c.h.b16 %v290
      %v1157 = vunpack.c.l.b16 %v291
      %v1158 = vunpack.c.h.b16 %v291
      %v1159 = vunpack.c.l.b16 %v292
      %v1160 = vunpack.c.h.b16 %v292
      %v1161 = vunpack.c.l.b16 %v293
      %v1162 = vunpack.c.l.b16 %v294
      %v1163 = vunpack.c.h.b16 %v294
      %v1164 = vunpack.c.l.b16 %v295
      %v1165 = vunpack.c.h.b16 %v295
      %v1166 = vunpack.c.l.b16 %v296
      %v1167 = vunpack.c.h.b16 %v296
      %v1168 = vunpack.c.l.b16 %v297
      %v1169 = vunpack.c.h.b16 %v297
      %v1170 = vunpack.c.l.b16 %v298
      %v1171 = vunpack.c.l.b16 %v299
      %v1172 = vunpack.c.h.b16 %v299
      %v1173 = vunpack.c.l.b16 %v300
      %v1174 = vunpack.c.h.b16 %v300
      %v1175 = vunpack.c.l.b16 %v301
      %v1176 = vunpack.c.h.b16 %v301
      %v1177 = vunpack.c.l.b16 %v302
      %v1178 = vunpack.c.h.b16 %v302
      %v1179 = vunpack.c.l.b16 %v303
      %v1180 = vunpack.c.l.b16 %v304
      %v1181 = vunpack.c.h.b16 %v304
      %v1182 = vunpack.c.l.b16 %v305
      %v1183 = vunpack.c.h.b16 %v305
      %v1184 = vunpack.c.l.b16 %v306
      %v1185 = vunpack.c.h.b16 %v306
      %v1186 = vunpack.c.l.b16 %v307
      %v1187 = vunpack.c.h.b16 %v307
      %v1188 = vunpack.c.l.b16 %v308
      %v1189 = vunpack.c.l.b16 %v309
      %v1190 = vunpack.c.h.b16 %v309
      %v1191 = vunpack.c.l.b16 %v310
      %v1192 = vunpack.c.h.b16 %v310
      %v1193 = vunpack.c.l.b16 %v311
      %v1194 = vunpack.c.h.b16 %v311
      %v1195 = vunpack.c.l.b16 %v312
      %v1196 = vunpack.c.h.b16 %v312
      %v1197 = vunpack.c.l.b16 %v313
      %v1198 = vunpack.c.l.b16 %v314
      %v1199 = vunpack.c.h.b16 %v314
      %v1200 = vunpack.c.l.b16 %v315
      %v1201 = vunpack.c.h.b16 %v315
      %v1202 = vunpack.c.l.b16 %v316
      %v1203 = vunpack.c.h.b16 %v316
      %v1204 = vunpack.c.l.b16 %v317
      %v1205 = vunpack.c.h.b16 %v317
      %v1206 = vunpack.c.l.b16 %v318
      %v1207 = vunpack.c.l.b16 %v319
      %v1208 = vunpack.c.h.b16 %v319
      %v1209 = vunpack.c.l.b16 %v320
      %v1210 = vunpack.c.h.b16 %v320
      %v1211 = vunpack.c.l.b16 %v321
      %v1212 = vunpack.c.h.b16 %v321
      %v1213 = vunpack.c.l.b16 %v322
      %v1214 = vunpack.c.h.b16 %v322
      %v1215 = vunpack.c.l.b16 %v323
      %v1216 = vunpack.c.l.b16 %v324
      %v1217 = vunpack.c.h.b16 %v324
      %v1218 = vunpack.c.l.b16 %v325
      %v1219 = vunpack.c.h.b16 %v325
      %v1220 = vunpack.c.l.b16 %v326
      %v1221 = vunpack.c.h.b16 %v326
      %v1222 = vunpack.c.l.b16 %v327
      %v1223 = vunpack.c.h.b16 %v327
      %v1224 = vunpack.c.l.b16 %v328
      %v1225 = vunpack.c.l.b16 %v329
      %v1226 = vunpack.c.h.b16 %v329
      %v1227 = vunpack.c.l.b16 %v330
      %v1228 = vunpack.c.h.b16 %v330
      %v1229 = vunpack.c.l.b16 %v331
      %v1230 = vunpack.c.h.b16 %v331
      %v1231 = vunpack.c.l.b16 %v332
      %v1232 = vunpack.c.h.b16 %v332
      %v1233 = vunpack.c.l.b16 %v333
      %v1234 = vunpack.c.l.b16 %v334
      %v1235 = vunpack.c.h.b16 %v334
      %v1236 = vunpack.c.l.b16 %v335
      %v1237 = vunpack.c.h.b16 %v335
      %v1238 = vunpack.c.l.b16 %v336
      %v1239 = vunpack.c.h.b16 %v336
      %v1240 = vunpack.c.l.b16 %v337
      %v1241 = vunpack.c.h.b16 %v337
      %v1242 = vunpack.c.l.b16 %v338
      %v1243 = vunpack.c.l.b16 %v339
      %v1244 = vunpack.c.h.b16 %v339
      %v1245 = vunpack.c.l.b16 %v340
      %v1246 = vunpack.c.h.b16 %v340
      %v1247 = vunpack.c.l.b16 %v341
      %v1248 = vunpack.c.h.b16 %v341
      %v1249 = vunpack.c.l.b16 %v342
      %v1250 = vunpack.c.h.b16 %v342
      %v1251 = vunpack.c.l.b16 %v343
      %v1252 = vunpack.c.l.b16 %v344
      %v1253 = vunpack.c.h.b16 %v344
      %v1254 = vunpack.c.l.b16 %v345
      %v1255 = vunpack.c.h.b16 %v345
      %v1256 = vunpack.c.l.b16 %v346
      %v1257 = vunpack.c.h.b16 %v346
      %v1258 = vunpack.c.l.b16 %v347
      %v1259 = vunpack.c.h.b16 %v347
      %v1260 = vunpack.c.l.b16 %v348
      %v1261 = vunpack.c.l.b16 %v349
      %v1262 = vunpack.c.h.b16 %v349
      %v1263 = vunpack.c.l.b16 %v350
      %v1264 = vunpack.c.h.b16 %v350
      %v1265 = vunpack.c.l.b16 %v351
      %v1266 = vunpack.c.h.b16 %v351
      %v1267 = vunpack.c.l.b16 %v352
      %v1268 = vunpack.c.h.b16 %v352
      %v1269 = vunpack.c.l.b16 %v353
      %v1270 = vunpack.c.l.b16 %v354
      %v1271 = vunpack.c.h.b16 %v354
      %v1272 = vunpack.c.l.b16 %v355
      %v1273 = vunpack.c.h.b16 %v355
      %v1274 = vunpack.c.l.b16 %v356
      %v1275 = vunpack.c.h.b16 %v356
      %v1276 = vunpack.c.l.b16 %v357
      %v1277 = vunpack.c.h.b16 %v357
      %v1278 = vunpack.c.l.b16 %v358
      %v1279 = vunpack.c.l.b16 %v359
      %v1280 = vunpack.c.h.b16 %v359
      %v1281 = vunpack.c.l.b16 %v360
      %v1282 = vunpack.c.h.b16 %v360
      %v1283 = vunpack.c.l.b16 %v361
      %v1284 = vunpack.c.h.b16 %v361
      %v1285 = vunpack.c.l.b16 %v362
      %v1286 = vunpack.c.h.b16 %v362
      %v1287 = vunpack.c.l.b16 %v363
      %v1288 = vunpack.c.l.b16 %v364
      %v1289 = vunpack.c.h.b16 %v364
      %v1290 = vunpack.c.l.b16 %v365
      %v1291 = vunpack.c.h.b16 %v365
      %v1292 = vunpack.c.l.b16 %v366
      %v1293 = vunpack.c.h.b16 %v366
      %v1294 = vunpack.c.l.b16 %v367
      %v1295 = vunpack.c.h.b16 %v367
      %v1296 = vunpack.c.l.b16 %v368
      %v1297 = vunpack.c.l.b16 %v369
      %v1298 = vunpack.c.h.b16 %v369
      %v1299 = vunpack.c.l.b16 %v370
      %v1300 = vunpack.c.h.b16 %v370
      %v1301 = vunpack.c.l.b16 %v371
      %v1302 = vunpack.c.h.b16 %v371
      %v1303 = vunpack.c.l.b16 %v372
      %v1304 = vunpack.c.h.b16 %v372
      %v1305 = vunpack.c.l.b16 %v373
      %v1306 = vunpack.c.l.b16 %v374
      %v1307 = vunpack.c.h.b16 %v374
      %v1308 = vunpack.c.l.b16 %v375
      %v1309 = vunpack.c.h.b16 %v375
      %v1310 = vunpack.c.l.b16 %v376
      %v1311 = vunpack.c.h.b16 %v376
      %v1312 = vunpack.c.l.b16 %v377
      %v1313 = vunpack.c.h.b16 %v377
      %v1314 = vunpack.c.l.b16 %v378
      %v1315 = vunpack.c.l.b16 %v379
      %v1316 = vunpack.c.h.b16 %v379
      %v1317 = vunpack.c.l.b16 %v380
      %v1318 = vunpack.c.h.b16 %v380
      %v1319 = vunpack.c.l.b16 %v381
      %v1320 = vunpack.c.h.b16 %v381
      %v1321 = vunpack.c.l.b16 %v382
      %v1322 = vunpack.c.h.b16 %v382
      %v1323 = vunpack.c.l.b16 %v383
      %v1324 = vunpack.c.l.b16 %v384
      %v1325 = vunpack.c.h.b16 %v384
      %v1326 = vunpack.c.l.b16 %v385
      %v1327 = vunpack.c.h.b16 %v385
      %v1328 = vunpack.c.l.b16 %v386
      %v1329 = vunpack.c.h.b16 %v386
      %v1330 = vunpack.c.l.b16 %v387
      %v1331 = vunpack.c.h.b16 %v387
      %v1332 = vunpack.c.l.b16 %v388
      %v1333 = vunpack.c.l.b16 %v389
      %v1334 = vunpack.c.h.b16 %v389
      %v1335 = vunpack.c.l.b16 %v390
      %v1336 = vunpack.c.h.b16 %v390
      %v1337 = vunpack.c.l.b16 %v391
      %v1338 = vunpack.c.h.b16 %v391
      %v1339 = vunpack.c.l.b16 %v392
      %v1340 = vunpack.c.h.b16 %v392
      %v1341 = vunpack.c.l.b16 %v393
      %v1342 = vunpack.c.l.b16 %v394
      %v1343 = vunpack.c.h.b16 %v394
      %v1344 = vunpack.c.l.b16 %v395
      %v1345 = vunpack.c.h.b16 %v395
      %v1346 = vunpack.c.l.b16 %v396
      %v1347 = vunpack.c.h.b16 %v396
      %v1348 = vunpack.c.l.b16 %v397
      %v1349 = vunpack.c.h.b16 %v397
      %v1350 = vunpack.c.l.b16 %v398
      %v1351 = vunpack.c.l.b16 %v399
      %v1352 = vunpack.c.h.b16 %v399
      %v1353 = vunpack.c.l.b16 %v400
      %v1354 = vunpack.c.h.b16 %v400
      %v1355 = vunpack.c.l.b16 %v401
      %v1356 = vunpack.c.h.b16 %v401
      %v1357 = vunpack.c.l.b16 %v402
      %v1358 = vunpack.c.h.b16 %v402
      %v1359 = vunpack.c.l.b16 %v403
      %v1360 = vunpack.c.l.b16 %v404
      %v1361 = vunpack.c.h.b16 %v404
      %v1362 = vunpack.c.l.b16 %v405
      %v1363 = vunpack.c.h.b16 %v405
      %v1364 = vunpack.c.l.b16 %v406
      %v1365 = vunpack.c.h.b16 %v406
      %v1366 = vunpack.c.l.b16 %v407
      %v1367 = vunpack.c.h.b16 %v407
      %v1368 = vunpack.c.l.b16 %v408
      %v1369 = vunpack.c.l.b16 %v409
      %v1370 = vunpack.c.h.b16 %v409
      %v1371 = vunpack.c.l.b16 %v410
      %v1372 = vunpack.c.h.b16 %v410
      %v1373 = vunpack.c.l.b16 %v411
      %v1374 = vunpack.c.h.b16 %v411
      %v1375 = vunpack.c.l.b16 %v412
      %v1376 = vunpack.c.h.b16 %v412
      %v1377 = vunpack.c.l.b16 %v413
      %v1378 = vunpack.c.l.b16 %v414
      %v1379 = vunpack.c.h.b16 %v414
      %v1380 = vunpack.c.l.b16 %v415
      %v1381 = vunpack.c.h.b16 %v415
      %v1382 = vunpack.c.l.b16 %v416
      %v1383 = vunpack.c.h.b16 %v416
      %v1384 = vunpack.c.l.b16 %v417
      %v1385 = vunpack.c.h.b16 %v417
      %v1386 = vunpack.c.l.b16 %v418
      %v1387 = vunpack.c.l.b16 %v419
      %v1388 = vunpack.c.h.b16 %v419
      %v1389 = vunpack.c.l.b16 %v420
      %v1390 = vunpack.c.h.b16 %v420
      %v1391 = vunpack.c.l.b16 %v421
      %v1392 = vunpack.c.h.b16 %v421
      %v1393 = vunpack.c.l.b16 %v422
      %v1394 = vunpack.c.h.b16 %v422
      %v1395 = vunpack.c.l.b16 %v423
      %v1396 = vunpack.c.l.b16 %v424
      %v1397 = vunpack.c.h.b16 %v424
      %v1398 = vunpack.c.l.b16 %v425
      %v1399 = vunpack.c.h.b16 %v425
      %v1400 = vunpack.c.l.b16 %v426
      %v1401 = vunpack.c.h.b16 %v426
      %v1402 = vunpack.c.l.b16 %v427
      %v1403 = vunpack.c.h.b16 %v427
      %v1404 = vunpack.c.l.b16 %v428
      %v1405 = vunpack.c.l.b16 %v429
      %v1406 = vunpack.c.h.b16 %v429
      %v1407 = vunpack.c.l.b16 %v430
      %v1408 = vunpack.c.h.b16 %v430
      %v1409 = vunpack.c.l.b16 %v431
      %v1410 = vunpack.c.h.b16 %v431
      %v1411 = vunpack.c.l.b16 %v432
      %v1412 = vunpack.c.h.b16 %v432
      %v1413 = vunpack.c.l.b16 %v433
      %v1414 = vunpack.c.l.b16 %v434
      %v1415 = vunpack.c.h.b16 %v434
      %v1416 = vunpack.c.l.b16 %v435
      %v1417 = vunpack.c.h.b16 %v435
      %v1418 = vunpack.c.l.b16 %v436
      %v1419 = vunpack.c.h.b16 %v436
      %v1420 = vunpack.c.l.b16 %v437
      %v1421 = vunpack.c.h.b16 %v437
      %v1422 = vunpack.c.l.b16 %v438
      %v1423 = vunpack.c.l.b16 %v439
      %v1424 = vunpack.c.h.b16 %v439
      %v1425 = vunpack.c.l.b16 %v440
      %v1426 = vunpack.c.h.b16 %v440
      %v1427 = vunpack.c.l.b16 %v441
      %v1428 = vunpack.c.h.b16 %v441
      %v1429 = vunpack.c.l.b16 %v442
      %v1430 = vunpack.c.h.b16 %v442
      %v1431 = vunpack.c.l.b16 %v443
      %v1432 = vunpack.c.l.b16 %v444
      %v1433 = vunpack.c.h.b16 %v444
      %v1434 = vunpack.c.l.b16 %v445
      %v1435 = vunpack.c.h.b16 %v445
      %v1436 = vunpack.c.l.b16 %v446
      %v1437 = vunpack.c.h.b16 %v446
      %v1438 = vunpack.c.l.b16 %v447
      %v1439 = vunpack.c.h.b16 %v447
      %v1440 = vunpack.c.l.b16 %v448
      %v1441 = vunpack.c.l.b16 %v449
      %v1442 = vunpack.c.h.b16 %v449
      %v1443 = vunpack.c.l.b16 %v450
      %v1444 = vunpack.c.h.b16 %v450
      %v1445 = vunpack.c.l.b16 %v451
      %v1446 = vunpack.c.h.b16 %v451
      %v1447 = vunpack.c.l.b16 %v452
      %v1448 = vunpack.c.h.b16 %v452
      %v1449 = vunpack.c.l.b16 %v453
      %v1450 = vunpack.c.l.b16 %v454
      %v1451 = vunpack.c.h.b16 %v454
      %v1452 = vunpack.c.l.b16 %v455
      %v1453 = vunpack.c.h.b16 %v455
      %v1454 = vunpack.c.l.b16 %v456
      %v1455 = vunpack.c.h.b16 %v456
      %v1456 = vunpack.c.l.b16 %v457
      %v1457 = vunpack.c.h.b16 %v457
      %v1458 = vunpack.c.l.b16 %v458
      %v1459 = vunpack.c.l.b16 %v459
      %v1460 = vunpack.c.h.b16 %v459
      %v1461 = vunpack.c.l.b16 %v460
      %v1462 = vunpack.c.h.b16 %v460
      %v1463 = vunpack.c.l.b16 %v461
      %v1464 = vunpack.c.h.b16 %v461
      %v1465 = vunpack.c.l.b16 %v462
      %v1466 = vunpack.c.h.b16 %v462
      %v1467 = vunpack.c.l.b16 %v463
      %v1468 = vunpack.c.l.b16 %v464
      %v1469 = vunpack.c.h.b16 %v464
      %v1470 = vunpack.c.l.b16 %v465
      %v1471 = vunpack.c.h.b16 %v465
      %v1472 = vunpack.c.l.b16 %v466
      %v1473 = vunpack.c.h.b16 %v466
      %v1474 = vunpack.c.l.b16 %v467
      %v1475 = vunpack.c.h.b16 %v467
      %v1476 = vunpack.c.l.b16 %v468
      %v1477 = vunpack.c.l.b16 %v469
      %v1478 = vunpack.c.h.b16 %v469
      %v1479 = vunpack.c.l.b16 %v470
      %v1480 = vunpack.c.h.b16 %v470
      %v1481 = vunpack.c.l.b16 %v471
      %v1482 = vunpack.c.h.b16 %v471
      %v1483 = vunpack.c.l.b16 %v472
      %v1484 = vunpack.c.h.b16 %v472
      %v1485 = vunpack.c.l.b16 %v473
      %v1486 = vunpack.c.l.b16 %v474
      %v1487 = vunpack.c.h.b16 %v474
      %v1488 = vunpack.c.l.b16 %v475
      %v1489 = vunpack.c.h.b16 %v475
      %v1490 = vunpack.c.l.b16 %v476
      %v1491 = vunpack.c.h.b16 %v476
      %v1492 = vunpack.c.l.b16 %v477
      %v1493 = vunpack.c.h.b16 %v477
      %v1494 = vunpack.c.l.b16 %v478
      %v1495 = vunpack.c.l.b16 %v479
      %v1496 = vunpack.c.h.b16 %v479
      %v1497 = vunpack.c.l.b16 %v480
      %v1498 = vunpack.c.h.b16 %v480
      %v1499 = vunpack.c.l.b16 %v481
      %v1500 = vunpack.c.h.b16 %v481
      %v1501 = vunpack.c.l.b16 %v482
      %v1502 = vunpack.c.h.b16 %v482
      %v1503 = vunpack.c.l.b16 %v483
      %v1504 = vunpack.c.l.b16 %v484
      %v1505 = vunpack.c.h.b16 %v484
      %v1506 = vunpack.c.l.b16 %v485
      %v1507 = vunpack.c.h.b16 %v485
      %v1508 = vunpack.c.l.b16 %v486
      %v1509 = vunpack.c.h.b16 %v486
      %v1510 = vunpack.c.l.b16 %v487
      %v1511 = vunpack.c.h.b16 %v487
      %v1512 = vunpack.c.l.b16 %v488
      %v1513 = vunpack.c.l.b16 %v489
      %v1514 = vunpack.c.h.b16 %v489
      %v1515 = vunpack.c.l.b16 %v490
      %v1516 = vunpack.c.h.b16 %v490
      %v1517 = vunpack.c.l.b16 %v491
      %v1518 = vunpack.c.h.b16 %v491
      %v1519 = vunpack.c.l.b16 %v492
      %v1520 = vunpack.c.h.b16 %v492
      %v1521 = vunpack.c.l.b16 %v493
      %v1522 = vunpack.c.l.b16 %v494
      %v1523 = vunpack.c.h.b16 %v494
      %v1524 = vunpack.c.l.b16 %v495
      %v1525 = vunpack.c.h.b16 %v495
      %v1526 = vunpack.c.l.b16 %v496
      %v1527 = vunpack.c.h.b16 %v496
      %v1528 = vunpack.c.l.b16 %v497
      %v1529 = vunpack.c.h.b16 %v497
      %v1530 = vunpack.c.l.b16 %v498
      %v1531 = vunpack.c.l.b16 %v499
      %v1532 = vunpack.c.h.b16 %v499
      %v1533 = vunpack.c.l.b16 %v500
      %v1534 = vunpack.c.h.b16 %v500
      %v1535 = vunpack.c.l.b16 %v501
      %v1536 = vunpack.c.h.b16 %v501
      %v1537 = vunpack.c.l.b16 %v502
      %v1538 = vunpack.c.h.b16 %v502
      %v1539 = vunpack.c.l.b16 %v503
      %v1540 = vunpack.c.l.b16 %v504
      %v1541 = vunpack.c.h.b16 %v504
      %v1542 = vunpack.c.l.b16 %v505
      %v1543 = vunpack.c.h.b16 %v505
      %v1544 = vunpack.c.l.b16 %v506
      %v1545 = vunpack.c.h.b16 %v506
      %v1546 = vunpack.c.l.b16 %v507
      %v1547 = vunpack.c.h.b16 %v507
      %v1548 = vunpack.c.l.b16 %v508
      %v1549 = vpack.c.b16 %v982, %v973
      %v1550 = vpack.c.b16 %v983, %v974
      %v1551 = vpack.c.b16 %v984, %v975
      %v1552 = vpack.c.b16 %v985, %v976
      %v1553 = vpack.c.b16 %v986, %v977
      %v1554 = vpack.c.b16 %v987, %v978
      %v1555 = vpack.c.b16 %v988, %v979
      %v1556 = vpack.c.b16 %v989, %v980
      %v1557 = vpack.c.b16 %v990, %v981
      %v1558 = vpack.c.b16 %v1000, %v991
      %v1559 = vpack.c.b16 %v1001, %v992
      %v1560 = vpack.c.b16 %v1002, %v993
      %v1561 = vpack.c.b16 %v1003, %v994
      %v1562 = vpack.c.b16 %v1004, %v995
      %v1563 = vpack.c.b16 %v1005, %v996
      %v1564 = vpack.c.b16 %v1006, %v997
      %v1565 = vpack.c.b16 %v1007, %v998
      %v1566 = vpack.c.b16 %v1008, %v999
      %v1567 = vpack.c.b16 %v1018, %v1009
      %v1568 = vpack.c.b16 %v1019, %v1010
      %v1569 = vpack.c.b16 %v1020, %v1011
      %v1570 = vpack.c.b16 %v1021, %v1012
      %v1571 = vpack.c.b16 %v1022, %v1013
      %v1572 = vpack.c.b16 %v1023, %v1014
      %v1573 = vpack.c.b16 %v1024, %v1015
      %v1574 = vpack.c.b16 %v1025, %v1016
      %v1575 = vpack.c.b16 %v1026, %v1017
      %v1576 = vpack.c.b16 %v1036, %v1027
      %v1577 = vpack.c.b16 %v1037, %v1028
      %v1578 = vpack.c.b16 %v1038, %v1029
      %v1579 = vpack.c.b16 %v1039, %v1030
      %v1580 = vpack.c.b16 %v1040, %v1031
      %v1581 = vpack.c.b16 %v1041, %v1032
      %v1582 = vpack.c.b16 %v1042, %v1033
      %v1583 = vpack.c.b16 %v1043, %v1034
      %v1584 = vpack.c.b16 %v1044, %v1035
      %v1585 = vpack.c.b16 %v1054, %v1045
      %v1586 = vpack.c.b16 %v1055, %v1046
      %v1587 = vpack.c.b16 %v1056, %v1047
      %v1588 = vpack.c.b16 %v1057, %v1048
      %v1589 = vpack.c.b16 %v1058, %v1049
      %v1590 = vpack.c.b16 %v1059, %v1050
      %v1591 = vpack.c.b16 %v1060, %v1051
      %v1592 = vpack.c.b16 %v1061, %v1052
      %v1593 = vpack.c.b16 %v1062, %v1053
      %v1594 = vpack.c.b16 %v1072, %v1063
      %v1595 = vpack.c.b16 %v1073, %v1064
      %v1596 = vpack.c.b16 %v1074, %v1065
      %v1597 = vpack.c.b16 %v1075, %v1066
      %v1598 = vpack.c.b16 %v1076, %v1067
      %v1599 = vpack.c.b16 %v1077, %v1068
      %v1600 = vpack.c.b16 %v1078, %v1069
      %v1601 = vpack.c.b16 %v1079, %v1070
      %v1602 = vpack.c.b16 %v1080, %v1071
      %v1603 = vpack.c.b16 %v1090, %v1081
      %v1604 = vpack.c.b16 %v1091, %v1082
      %v1605 = vpack.c.b16 %v1092, %v1083
      %v1606 = vpack.c.b16 %v1093, %v1084
      %v1607 = vpack.c.b16 %v1094, %v1085
      %v1608 = vpack.c.b16 %v1095, %v1086
      %v1609 = vpack.c.b16 %v1096, %v1087
      %v1610 = vpack.c.b16 %v1097, %v1088
      %v1611 = vpack.c.b16 %v1098, %v1089
      %v1612 = vpack.c.b16 %v1108, %v1099
      %v1613 = vpack.c.b16 %v1109, %v1100
      %v1614 = vpack.c.b16 %v1110, %v1101
      %v1615 = vpack.c.b16 %v1111, %v1102
      %v1616 = vpack.c.b16 %v1112, %v1103
      %v1617 = vpack.c.b16 %v1113, %v1104
      %v1618 = vpack.c.b16 %v1114, %v1105
      %v1619 = vpack.c.b16 %v1115, %v1106
      %v1620 = vpack.c.b16 %v1116, %v1107
      %v1621 = vpack.c.b16 %v1126, %v1117
      %v1622 = vpack.c.b16 %v1127, %v1118
      %v1623 = vpack.c.b16 %v1128, %v1119
      %v1624 = vpack.c.b16 %v1129, %v1120
      %v1625 = vpack.c.b16 %v1130, %v1121
      %v1626 = vpack.c.b16 %v1131, %v1122
      %v1627 = vpack.c.b16 %v1132, %v1123
      %v1628 = vpack.c.b16 %v1133, %v1124
      %v1629 = vpack.c.b16 %v1134, %v1125
      %v1630 = vpack.c.b16 %v1144, %v1135
      %v1631 = vpack.c.b16 %v1145, %v1136
      %v1632 = vpack.c.b16 %v1146, %v1137
      %v1633 = vpack.c.b16 %v1147, %v1138
      %v1634 = vpack.c.b16 %v1148, %v1139
      %v1635 = vpack.c.b16 %v1149, %v1140
      %v1636 = vpack.c.b16 %v1150, %v1141
      %v1637 = vpack.c.b16 %v1151, %v1142
      %v1638 = vpack.c.b16 %v1152, %v1143
      %v1639 = vpack.c.b16 %v1162, %v1153
      %v1640 = vpack.c.b16 %v1163, %v1154
      %v1641 = vpack.c.b16 %v1164, %v1155
      %v1642 = vpack.c.b16 %v1165, %v1156
      %v1643 = vpack.c.b16 %v1166, %v1157
      %v1644 = vpack.c.b16 %v1167, %v1158
      %v1645 = vpack.c.b16 %v1168, %v1159
      %v1646 = vpack.c.b16 %v1169, %v1160
      %v1647 = vpack.c.b16 %v1170, %v1161
      %v1648 = vpack.c.b16 %v1180, %v1171
      %v1649 = vpack.c.b16 %v1181, %v1172
      %v1650 = vpack.c.b16 %v1182, %v1173
      %v1651 = vpack.c.b16 %v1183, %v1174
      %v1652 = vpack.c.b16 %v1184, %v1175
      %v1653 = vpack.c.b16 %v1185, %v1176
      %v1654 = vpack.c.b16 %v1186, %v1177
      %v1655 = vpack.c.b16 %v1187, %v1178
      %v1656 = vpack.c.b16 %v1188, %v1179
      %v1657 = vpack.c.b16 %v1198, %v1189
      %v1658 = vpack.c.b16 %v1199, %v1190
      %v1659 = vpack.c.b16 %v1200, %v1191
      %v1660 = vpack.c.b16 %v1201, %v1192
      %v1661 = vpack.c.b16 %v1202, %v1193
      %v1662 = vpack.c.b16 %v1203, %v1194
      %v1663 = vpack.c.b16 %v1204, %v1195
      %v1664 = vpack.c.b16 %v1205, %v1196
      %v1665 = vpack.c.b16 %v1206, %v1197
      %v1666 = vpack.c.b16 %v1216, %v1207
      %v1667 = vpack.c.b16 %v1217, %v1208
      %v1668 = vpack.c.b16 %v1218, %v1209
      %v1669 = vpack.c.b16 %v1219, %v1210
      %v1670 = vpack.c.b16 %v1220, %v1211
      %v1671 = vpack.c.b16 %v1221, %v1212
      %v1672 = vpack.c.b16 %v1222, %v1213
      %v1673 = vpack.c.b16 %v1223, %v1214
      %v1674 = vpack.c.b16 %v1224, %v1215
      %v1675 = vpack.c.b16 %v1234, %v1225
      %v1676 = vpack.c.b16 %v1235, %v1226
      %v1677 = vpack.c.b16 %v1236, %v1227
      %v1678 = vpack.c.b16 %v1237, %v1228
      %v1679 = vpack.c.b16 %v1238, %v1229
      %v1680 = vpack.c.b16 %v1239, %v1230
      %v1681 = vpack.c.b16 %v1240, %v1231
      %v1682 = vpack.c.b16 %v1241, %v1232
      %v1683 = vpack.c.b16 %v1242, %v1233
      %v1684 = vpack.c.b16 %v1252, %v1243
      %v1685 = vpack.c.b16 %v1253, %v1244
      %v1686 = vpack.c.b16 %v1254, %v1245
      %v1687 = vpack.c.b16 %v1255, %v1246
      %v1688 = vpack.c.b16 %v1256, %v1247
      %v1689 = vpack.c.b16 %v1257, %v1248
      %v1690 = vpack.c.b16 %v1258, %v1249
      %v1691 = vpack.c.b16 %v1259, %v1250
      %v1692 = vpack.c.b16 %v1260, %v1251
      %v1693 = vpack.c.b16 %v1270, %v1261
      %v1694 = vpack.c.b16 %v1271, %v1262
      %v1695 = vpack.c.b16 %v1272, %v1263
      %v1696 = vpack.c.b16 %v1273, %v1264
      %v1697 = vpack.c.b16 %v1274, %v1265
      %v1698 = vpack.c.b16 %v1275, %v1266
      %v1699 = vpack.c.b16 %v1276, %v1267
      %v1700 = vpack.c.b16 %v1277, %v1268
      %v1701 = vpack.c.b16 %v1278, %v1269
      %v1702 = vpack.c.b16 %v1288, %v1279
      %v1703 = vpack.c.b16 %v1289, %v1280
      %v1704 = vpack.c.b16 %v1290, %v1281
      %v1705 = vpack.c.b16 %v1291, %v1282
      %v1706 = vpack.c.b16 %v1292, %v1283
      %v1707 = vpack.c.b16 %v1293, %v1284
      %v1708 = vpack.c.b16 %v1294, %v1285
      %v1709 = vpack.c.b16 %v1295, %v1286
      %v1710 = vpack.c.b16 %v1296, %v1287
      %v1711 = vpack.c.b16 %v1306, %v1297
      %v1712 = vpack.c.b16 %v1307, %v1298
      %v1713 = vpack.c.b16 %v1308, %v1299
      %v1714 = vpack.c.b16 %v1309, %v1300
      %v1715 = vpack.c.b16 %v1310, %v1301
      %v1716 = vpack.c.b16 %v1311, %v1302
      %v1717 = vpack.c.b16 %v1312, %v1303
      %v1718 = vpack.c.b16 %v1313, %v1304
      %v1719 = vpack.c.b16 %v1314, %v1305
      %v1720 = vpack.c.b16 %v1324, %v1315
      %v1721 = vpack.c.b16 %v1325, %v1316
      %v1722 = vpack.c.b16 %v1326, %v1317
      %v1723 = vpack.c.b16 %v1327, %v1318
      %v1724 = vpack.c.b16 %v1328, %v1319
      %v1725 = vpack.c.b16 %v1329, %v1320
      %v1726 = vpack.c.b16 %v1330, %v1321
      %v1727 = vpack.c.b16 %v1331, %v1322
      %v1728 = vpack.c.b16 %v1332, %v1323
      %v1729 = vpack.c.b16 %v1342, %v1333
      %v1730 = vpack.c.b16 %v1343, %v1334
      %v1731 = vpack.c.b16 %v1344, %v1335
      %v1732 = vpack.c.b16 %v1345, %v1336
      %v1733 = vpack.c.b16 %v1346, %v1337
      %v1734 = vpack.c.b16 %v1347, %v1338
      %v1735 = vpack.c.b16 %v1348, %v1339
      %v1736 = vpack.c.b16 %v1349, %v1340
      %v1737 = vpack.c.b16 %v1350, %v1341
      %v1738 = vpack.c.b16 %v1360, %v1351
      %v1739 = vpack.c.b16 %v1361, %v1352
      %v1740 = vpack.c.b16 %v1362, %v1353
      %v1741 = vpack.c.b16 %v1363, %v1354
      %v1742 = vpack.c.b16 %v1364, %v1355
      %v1743 = vpack.c.b16 %v1365, %v1356
      %v1744 = vpack.c.b16 %v1366, %v1357
      %v1745 = vpack.c.b16 %v1367, %v1358
      %v1746 = vpack.c.b16 %v1368, %v1359
      %v1747 = vpack.c.b16 %v1378, %v1369
      %v1748 = vpack.c.b16 %v1379, %v1370
      %v1749 = vpack.c.b16 %v1380, %v1371
      %v1750 = vpack.c.b16 %v1381, %v1372
      %v1751 = vpack.c.b16 %v1382, %v1373
      %v1752 = vpack.c.b16 %v1383, %v1374
      %v1753 = vpack.c.b16 %v1384, %v1375
      %v1754 = vpack.c.b16 %v1385, %v1376
      %v1755 = vpack.c.b16 %v1386, %v1377
      %v1756 = vpack.c.b16 %v1396, %v1387
      %v1757 = vpack.c.b16 %v1397, %v1388
      %v1758 = vpack.c.b16 %v1398, %v1389
      %v1759 = vpack.c.b16 %v1399, %v1390
      %v1760 = vpack.c.b16 %v1400, %v1391
      %v1761 = vpack.c.b16 %v1401, %v1392
      %v1762 = vpack.c.b16 %v1402, %v1393
      %v1763 = vpack.c.b16 %v1403, %v1394
      %v1764 = vpack.c.b16 %v1404, %v1395
      %v1765 = vpack.c.b16 %v1414, %v1405
      %v1766 = vpack.c.b16 %v1415, %v1406
      %v1767 = vpack.c.b16 %v1416, %v1407
      %v1768 = vpack.c.b16 %v1417, %v1408
      %v1769 = vpack.c.b16 %v1418, %v1409
      %v1770 = vpack.c.b16 %v1419, %v1410
      %v1771 = vpack.c.b16 %v1420, %v1411
      %v1772 = vpack.c.b16 %v1421, %v1412
      %v1773 = vpack.c.b16 %v1422, %v1413
      %v1774 = vpack.c.b16 %v1432, %v1423
      %v1775 = vpack.c.b16 %v1433, %v1424
      %v1776 = vpack.c.b16 %v1434, %v1425
      %v1777 = vpack.c.b16 %v1435, %v1426
      %v1778 = vpack.c.b16 %v1436, %v1427
      %v1779 = vpack.c.b16 %v1437, %v1428
      %v1780 = vpack.c.b16 %v1438, %v1429
      %v1781 = vpack.c.b16 %v1439, %v1430
      %v1782 = vpack.c.b16 %v1440, %v1431
      %v1783 = vpack.c.b16 %v1450, %v1441
      %v1784 = vpack.c.b16 %v1451, %v1442
      %v1785 = vpack.c.b16 %v1452, %v1443
      %v1786 = vpack.c.b16 %v1453, %v1444
      %v1787 = vpack.c.b16 %v1454, %v1445
      %v1788 = vpack.c.b16 %v1455, %v1446
      %v1789 = vpack.c.b16 %v1456, %v1447
      %v1790 = vpack.c.b16 %v1457, %v1448
      %v1791 = vpack.c.b16 %v1458, %v1449
      %v1792 = vpack.c.b16 %v1468, %v1459
      %v1793 = vpack.c.b16 %v1469, %v1460
      %v1794 = vpack.c.b16 %v1470, %v1461
      %v1795 = vpack.c.b16 %v1471, %v1462
      %v1796 = vpack.c.b16 %v1472, %v1463
      %v1797 = vpack.c.b16 %v1473, %v1464
      %v1798 = vpack.c.b16 %v1474, %v1465
      %v1799 = vpack.c.b16 %v1475, %v1466
      %v1800 = vpack.c.b16 %v1476, %v1467
      %v1801 = vpack.c.b16 %v1486, %v1477
      %v1802 = vpack.c.b16 %v1487, %v1478
      %v1803 = vpack.c.b16 %v1488, %v1479
      %v1804 = vpack.c.b16 %v1489, %v1480
      %v1805 = vpack.c.b16 %v1490, %v1481
      %v1806 = vpack.c.b16 %v1491, %v1482
      %v1807 = vpack.c.b16 %v1492, %v1483
      %v1808 = vpack.c.b16 %v1493, %v1484
      %v1809 = vpack.c.b16 %v1494, %v1485
      %v1810 = vpack.c.b16 %v1504, %v1495
      %v1811 = vpack.c.b16 %v1505, %v1496
      %v1812 = vpack.c.b16 %v1506, %v1497
      %v1813 = vpack.c.b16 %v1507, %v1498
      %v1814 = vpack.c.b16 %v1508, %v1499
      %v1815 = vpack.c.b16 %v1509, %v1500
      %v1816 = vpack.c.b16 %v1510, %v1501
      %v1817 = vpack.c.b16 %v1511, %v1502
      %v1818 = vpack.c.b16 %v1512, %v1503
      %v1819 = vpack.c.b16 %v1522, %v1513
      %v1820 = vpack.c.b16 %v1523, %v1514
      %v1821 = vpack.c.b16 %v1524, %v1515
      %v1822 = vpack.c.b16 %v1525, %v1516
      %v1823 = vpack.c.b16 %v1526, %v1517
      %v1824 = vpack.c.b16 %v1527, %v1518
      %v1825 = vpack.c.b16 %v1528, %v1519
      %v1826 = vpack.c.b16 %v1529, %v1520
      %v1827 = vpack.c.b16 %v1530, %v1521
      %v1828 = vpack.c.b16 %v1540, %v1531
      %v1829 = vpack.c.b16 %v1541, %v1532
      %v1830 = vpack.c.b16 %v1542, %v1533
      %v1831 = vpack.c.b16 %v1543, %v1534
      %v1832 = vpack.c.b16 %v1544, %v1535
      %v1833 = vpack.c.b16 %v1545, %v1536
      %v1834 = vpack.c.b16 %v1546, %v1537
      %v1835 = vpack.c.b16 %v1547, %v1538
      %v1836 = vpack.c.b16 %v1548, %v1539
      %v2269 = vunpack.c.l.b16 %v509
      %v2270 = vunpack.c.l.b16 %v510
      %v2271 = vunpack.c.l.b16 %v511
      %v2272 = vunpack.c.l.b16 %v512
      %v2273 = vunpack.c.l.b16 %v513
      %v2274 = vunpack.c.l.b16 %v514
      %v2275 = vunpack.c.l.b16 %v515
      %v2276 = vunpack.c.l.b16 %v516
      %v2277 = vunpack.c.l.b16 %v517
      %v2278 = vunpack.c.l.b16 %v518
      %v2279 = vunpack.c.l.b16 %v519
      %v2280 = vunpack.c.l.b16 %v520
      %v2281 = vunpack.c.l.b16 %v521
      %v2282 = vunpack.c.l.b16 %v522
      %v2283 = vunpack.c.l.b16 %v523
      %v2284 = vunpack.c.l.b16 %v524
      %v2285 = vunpack.c.l.b16 %v525
      %v2286 = vunpack.c.l.b16 %v526
      %v2287 = vunpack.c.l.b16 %v527
      %v2288 = vunpack.c.l.b16 %v528
      %v2289 = vunpack.c.l.b16 %v529
      %v2290 = vunpack.c.l.b16 %v530
      %v2291 = vunpack.c.l.b16 %v531
      %v2292 = vunpack.c.l.b16 %v532
      %v2293 = vunpack.c.l.b16 %v533
      %v2294 = vunpack.c.l.b16 %v534
      %v2295 = vunpack.c.l.b16 %v535
      %v2296 = vunpack.c.l.b16 %v536
      %v2297 = vunpack.c.l.b16 %v537
      %v2298 = vunpack.c.l.b16 %v538
      %v2299 = vunpack.c.l.b16 %v539
      %v2300 = vunpack.c.l.b16 %v540
      %v2301 = vunpack.c.l.b16 %v541
      %v2302 = vunpack.c.l.b16 %v542
      %v2303 = vunpack.c.l.b16 %v543
      %v2304 = vunpack.c.l.b16 %v544
      %v2305 = vunpack.c.l.b16 %v545
      %v2306 = vunpack.c.l.b16 %v546
      %v2307 = vunpack.c.l.b16 %v547
      %v2308 = vunpack.c.l.b16 %v548
      %v2309 = vunpack.c.l.b16 %v549
      %v2310 = vunpack.c.l.b16 %v550
      %v2311 = vunpack.c.l.b16 %v551
      %v2312 = vunpack.c.l.b16 %v552
      %v2313 = vunpack.c.l.b16 %v553
      %v2314 = vunpack.c.l.b16 %v554
      %v2315 = vunpack.c.l.b16 %v555
      %v2316 = vunpack.c.l.b16 %v556
      %v2317 = vunpack.c.l.b16 %v557
      %v2318 = vunpack.c.l.b16 %v558
      %v2319 = vunpack.c.l.b16 %v559
      %v2320 = vunpack.c.l.b16 %v560
      %v2321 = vunpack.c.l.b16 %v561
      %v2322 = vunpack.c.l.b16 %v562
      %v2323 = vunpack.c.l.b16 %v563
      %v2324 = vunpack.c.l.b16 %v564
      %v2325 = vunpack.c.l.b16 %v565
      %v2326 = vunpack.c.l.b16 %v566
      %v2327 = vunpack.c.l.b16 %v567
      %v2328 = vunpack.c.l.b16 %v568
      %v2329 = vunpack.c.l.b16 %v569
      %v2330 = vunpack.c.l.b16 %v570
      %v2331 = vunpack.c.l.b16 %v571
      %v2332 = vunpack.c.l.b16 %v572
      %v2333 = vunpack.c.l.b16 %v573
      %v2334 = vunpack.c.l.b16 %v574
      %v2335 = vunpack.c.l.b16 %v575
      %v2336 = vunpack.c.l.b16 %v576
      %v2337 = vunpack.c.l.b16 %v577
      %v2338 = vunpack.c.l.b16 %v578
      %v2339 = vunpack.c.l.b16 %v579
      %v2340 = vunpack.c.l.b16 %v580
      %v2341 = vunpack.c.l.b16 %v581
      %v2342 = vunpack.c.l.b16 %v582
      %v2343 = vunpack.c.l.b16 %v583
      %v2344 = vunpack.c.l.b16 %v584
      %v2345 = vunpack.c.l.b16 %v585
      %v2346 = vunpack.c.l.b16 %v586
      %v2347 = vunpack.c.l.b16 %v587
      %v2348 = vunpack.c.l.b16 %v588
      %v2349 = vunpack.c.l.b16 %v589
      %v2350 = vunpack.c.l.b16 %v590
      %v2351 = vunpack.c.l.b16 %v591
      %v2352 = vunpack.c.l.b16 %v592
      %v2353 = vunpack.c.l.b16 %v593
      %v2354 = vunpack.c.l.b16 %v594
      %v2355 = vunpack.c.l.b16 %v595
      %v2356 = vunpack.c.l.b16 %v596
      %v2357 = vunpack.c.l.b16 %v597
      %v2358 = vunpack.c.l.b16 %v598
      %v2359 = vunpack.c.l.b16 %v599
      %v2360 = vunpack.c.l.b16 %v600
      %v2361 = vunpack.c.l.b16 %v601
      %v2362 = vunpack.c.l.b16 %v602
      %v2363 = vunpack.c.l.b16 %v603
      %v2364 = vunpack.c.l.b16 %v604
      %v2365 = vunpack.c.l.b16 %v605
      %v2366 = vunpack.c.l.b16 %v606
      %v2367 = vunpack.c.l.b16 %v607
      %v2368 = vunpack.c.l.b16 %v608
      %v2369 = vunpack.c.l.b16 %v609
      %v2370 = vunpack.c.l.b16 %v610
      %v2371 = vunpack.c.l.b16 %v611
      %v2372 = vunpack.c.l.b16 %v612
      %v2373 = vunpack.c.l.b16 %v613
      %v2374 = vunpack.c.l.b16 %v614
      %v2375 = vunpack.c.l.b16 %v615
      %v2376 = vunpack.c.l.b16 %v616
      %v2377 = vunpack.c.l.b16 %v617
      %v2378 = vunpack.c.l.b16 %v618
      %v2379 = vunpack.c.l.b16 %v619
      %v2380 = vunpack.c.l.b16 %v620
      %v2381 = vunpack.c.l.b16 %v621
      %v2382 = vunpack.c.l.b16 %v622
      %v2383 = vunpack.c.l.b16 %v623
      %v2384 = vunpack.c.l.b16 %v624
      %v2385 = vunpack.c.l.b16 %v625
      %v2386 = vunpack.c.l.b16 %v626
      %v2387 = vunpack.c.l.b16 %v627
      %v2388 = vunpack.c.l.b16 %v628
      %v2389 = vunpack.c.l.b16 %v629
      %v2390 = vunpack.c.l.b16 %v630
      %v2391 = vunpack.c.l.b16 %v631
      %v2392 = vunpack.c.l.b16 %v632
      %v2393 = vunpack.c.l.b16 %v633
      %v2394 = vunpack.c.l.b16 %v634
      %v2395 = vunpack.c.l.b16 %v635
      %v2396 = vunpack.c.l.b16 %v636
      %v2397 = vunpack.c.l.b16 %v637
      %v2398 = vunpack.c.l.b16 %v638
      %v2399 = vunpack.c.l.b16 %v639
      %v2400 = vunpack.c.l.b16 %v640
      %v2401 = vunpack.c.l.b16 %v641
      %v2402 = vunpack.c.l.b16 %v642
      %v2403 = vunpack.c.l.b16 %v643
      %v2404 = vunpack.c.l.b16 %v644
      %v2405 = vunpack.c.l.b16 %v645
      %v2406 = vunpack.c.l.b16 %v646
      %v2407 = vunpack.c.l.b16 %v647
      %v2408 = vunpack.c.l.b16 %v648
      %v2409 = vunpack.c.l.b16 %v649
      %v2410 = vunpack.c.l.b16 %v650
      %v2411 = vunpack.c.l.b16 %v651
      %v2412 = vunpack.c.l.b16 %v652
      %v2413 = vpack.c.b16 %v2270, %v2269
      %v2414 = vpack.c.b16 %v2272, %v2271
      %v2415 = vpack.c.b16 %v2274, %v2273
      %v2416 = vpack.c.b16 %v2276, %v2275
      %v2417 = vpack.c.b16 %v2278, %v2277
      %v2418 = vpack.c.b16 %v2280, %v2279
      %v2419 = vpack.c.b16 %v2282, %v2281
      %v2420 = vpack.c.b16 %v2284, %v2283
      %v2421 = vpack.c.b16 %v2286, %v2285
      %v2422 = vpack.c.b16 %v2288, %v2287
      %v2423 = vpack.c.b16 %v2290, %v2289
      %v2424 = vpack.c.b16 %v2292, %v2291
      %v2425 = vpack.c.b16 %v2294, %v2293
      %v2426 = vpack.c.b16 %v2296, %v2295
      %v2427 = vpack.c.b16 %v2298, %v2297
      %v2428 = vpack.c.b16 %v2300, %v2299
      %v2429 = vpack.c.b16 %v2302, %v2301
      %v2430 = vpack.c.b16 %v2304, %v2303
      %v2431 = vpack.c.b16 %v2306, %v2305
      %v2432 = vpack.c.b16 %v2308, %v2307
      %v2433 = vpack.c.b16 %v2310, %v2309
      %v2434 = vpack.c.b16 %v2312, %v2311
      %v2435 = vpack.c.b16 %v2314, %v2313
      %v2436 = vpack.c.b16 %v2316, %v2315
      %v2437 = vpack.c.b16 %v2318, %v2317
      %v2438 = vpack.c.b16 %v2320, %v2319
      %v2439 = vpack.c.b16 %v2322, %v2321
      %v2440 = vpack.c.b16 %v2324, %v2323
      %v2441 = vpack.c.b16 %v2326, %v2325
      %v2442 = vpack.c.b16 %v2328, %v2327
      %v2443 = vpack.c.b16 %v2330, %v2329
      %v2444 = vpack.c.b16 %v2332, %v2331
      %v2445 = vpack.c.b16 %v2334, %v2333
      %v2446 = vpack.c.b16 %v2336, %v2335
      %v2447 = vpack.c.b16 %v2338, %v2337
      %v2448 = vpack.c.b16 %v2340, %v2339
      %v2449 = vpack.c.b16 %v2342, %v2341
      %v2450 = vpack.c.b16 %v2344, %v2343
      %v2451 = vpack.c.b16 %v2346, %v2345
      %v2452 = vpack.c.b16 %v2348, %v2347
      %v2453 = vpack.c.b16 %v2350, %v2349
      %v2454 = vpack.c.b16 %v2352, %v2351
      %v2455 = vpack.c.b16 %v2354, %v2353
      %v2456 = vpack.c.b16 %v2356, %v2355
      %v2457 = vpack.c.b16 %v2358, %v2357
      %v2458 = vpack.c.b16 %v2360, %v2359
      %v2459 = vpack.c.b16 %v2362, %v2361
      %v2460 = vpack.c.b16 %v2364, %v2363
      %v2461 = vpack.c.b16 %v2366, %v2365
      %v2462 = vpack.c.b16 %v2368, %v2367
      %v2463 = vpack.c.b16 %v2370, %v2369
      %v2464 = vpack.c.b16 %v2372, %v2371
      %v2465 = vpack.c.b16 %v2374, %v2373
      %v2466 = vpack.c.b16 %v2376, %v2375
      %v2467 = vpack.c.b16 %v2378, %v2377
      %v2468 = vpack.c.b16 %v2380, %v2379
      %v2469 = vpack.c.b16 %v2382, %v2381
      %v2470 = vpack.c.b16 %v2384, %v2383
      %v2471 = vpack.c.b16 %v2386, %v2385
      %v2472 = vpack.c.b16 %v2388, %v2387
      %v2473 = vpack.c.b16 %v2390, %v2389
      %v2474 = vpack.c.b16 %v2392, %v2391
      %v2475 = vpack.c.b16 %v2394, %v2393
      %v2476 = vpack.c.b16 %v2396, %v2395
      %v2477 = vpack.c.b16 %v2398, %v2397
      %v2478 = vpack.c.b16 %v2400, %v2399
      %v2479 = vpack.c.b16 %v2402, %v2401
      %v2480 = vpack.c.b16 %v2404, %v2403
      %v2481 = vpack.c.b16 %v2406, %v2405
      %v2482 = vpack.c.b16 %v2408, %v2407
      %v2483 = vpack.c.b16 %v2410, %v2409
      %v2484 = vpack.c.b16 %v2412, %v2411
      %2557 = vmatprep.subr.bf16.mxu0 0
      %2558 = vmatpush1.bf16.msra.mxu0 %v2420
      %2559 = vmatprep.subr.bf16.mxu0 0
      %2560 = vmatpush1.bf16.msra.mxu0 %v2419
      %2561 = vmatprep.subr.bf16.mxu0 0
      %2562 = vmatpush1.bf16.msra.mxu0 %v2418
      %2563 = vmatprep.subr.bf16.mxu0 0
      %2564 = vmatpush1.bf16.msra.mxu0 %v2417
      %2565 = vmatprep.subr.bf16.mxu0 0
      %2566 = vmatpush1.bf16.msra.mxu0 %v2416
      %2567 = vmatprep.subr.bf16.mxu0 0
      %2568 = vmatpush1.bf16.msra.mxu0 %v2415
      %2569 = vmatprep.subr.bf16.mxu0 0
      %2570 = vmatpush1.bf16.msra.mxu0 %v2414
      %2571 = vmatprep.subr.bf16.mxu0 0
      %2572 = vmatpush1.bf16.msra.mxu0 %v2413
      %2573 = vmatprep.subr.bf16.mxu0 0
      %2574 = vmatpush2.bf16.msra.mxu0 %v2428
      %2575 = vmatprep.subr.bf16.mxu0 0
      %2576 = vmatpush2.bf16.msra.mxu0 %v2427
      %2577 = vmatprep.subr.bf16.mxu0 0
      %2578 = vmatpush2.bf16.msra.mxu0 %v2426
      %2579 = vmatprep.subr.bf16.mxu0 0
      %2580 = vmatpush2.bf16.msra.mxu0 %v2425
      %2581 = vmatprep.subr.bf16.mxu0 0
      %2582 = vmatpush2.bf16.msra.mxu0 %v2424
      %2583 = vmatprep.subr.bf16.mxu0 0
      %2584 = vmatpush2.bf16.msra.mxu0 %v2423
      %2585 = vmatprep.subr.bf16.mxu0 0
      %2586 = vmatpush2.bf16.msra.mxu0 %v2422
      %2587 = vmatprep.subr.bf16.mxu0 0
      %2588 = vmatpush2.bf16.msra.mxu0 %v2421
      %2589 = vmatprep.mubr.bf16.mxu0 %v1550
      %2590 = vmatmul.mubr.bf16.gmra.mxu0 %v1549
      %v2591 = vpop.f32.mrf.mxu0
      %v2592 = vadd.f32 0.0, %v2591
      %v2593 = vpop.f32.mrf.mxu0
      %v2594 = vpop.f32.mrf.mxu0
      %v2595 = vadd.f32 0.0, %v2594
      %v2596 = vpop.f32.mrf.mxu0
      %2597 = vmatprep.mubr.bf16.mxu0 %v1559
      %2598 = vmatmul.mubr.bf16.gmra.mxu0 %v1558
      %v2599 = vpop.f32.mrf.mxu0
      %v2600 = vadd.f32 0.0, %v2599
      %v2601 = vpop.f32.mrf.mxu0
      %v2602 = vpop.f32.mrf.mxu0
      %v2603 = vadd.f32 0.0, %v2602
      %v2604 = vpop.f32.mrf.mxu0
      %2605 = vmatprep.mubr.bf16.mxu0 %v1568
      %2606 = vmatmul.mubr.bf16.gmra.mxu0 %v1567
      %v2607 = vpop.f32.mrf.mxu0
      %v2608 = vadd.f32 0.0, %v2607
      %v2609 = vpop.f32.mrf.mxu0
      %v2610 = vpop.f32.mrf.mxu0
      %v2611 = vadd.f32 0.0, %v2610
      %v2612 = vpop.f32.mrf.mxu0
      %2613 = vmatprep.mubr.bf16.mxu0 %v1577
      %2614 = vmatmul.mubr.bf16.gmra.mxu0 %v1576
      %v2615 = vpop.f32.mrf.mxu0
      %v2616 = vadd.f32 0.0, %v2615
      %v2617 = vpop.f32.mrf.mxu0
      %v2618 = vpop.f32.mrf.mxu0
      %v2619 = vadd.f32 0.0, %v2618
      %v2620 = vpop.f32.mrf.mxu0
      %2621 = vmatprep.mubr.bf16.mxu0 %v1586
      %2622 = vmatmul.mubr.bf16.gmra.mxu0 %v1585
      %v2623 = vpop.f32.mrf.mxu0
      %v2624 = vadd.f32 0.0, %v2623
      %v2625 = vpop.f32.mrf.mxu0
      %v2626 = vpop.f32.mrf.mxu0
      %v2627 = vadd.f32 0.0, %v2626
      %v2628 = vpop.f32.mrf.mxu0
      %2629 = vmatprep.mubr.bf16.mxu0 %v1595
      %2630 = vmatmul.mubr.bf16.gmra.mxu0 %v1594
      %v2631 = vpop.f32.mrf.mxu0
      %v2632 = vadd.f32 0.0, %v2631
      %v2633 = vpop.f32.mrf.mxu0
      %v2634 = vpop.f32.mrf.mxu0
      %v2635 = vadd.f32 0.0, %v2634
      %v2636 = vpop.f32.mrf.mxu0
      %2637 = vmatprep.mubr.bf16.mxu0 %v1604
      %2638 = vmatmul.mubr.bf16.gmra.mxu0 %v1603
      %v2639 = vpop.f32.mrf.mxu0
      %v2640 = vadd.f32 0.0, %v2639
      %v2641 = vpop.f32.mrf.mxu0
      %v2642 = vpop.f32.mrf.mxu0
      %v2643 = vadd.f32 0.0, %v2642
      %v2644 = vpop.f32.mrf.mxu0
      %2645 = vmatprep.mubr.bf16.mxu0 %v1613
      %2646 = vmatmul.mubr.bf16.gmra.mxu0 %v1612
      %v2647 = vpop.f32.mrf.mxu0
      %v2648 = vadd.f32 0.0, %v2647
      %v2649 = vpop.f32.mrf.mxu0
      %v2650 = vpop.f32.mrf.mxu0
      %v2651 = vadd.f32 0.0, %v2650
      %v2652 = vpop.f32.mrf.mxu0
      %2653 = vmatprep.mubr.bf16.mxu0 %v1622
      %2654 = vmatmul.mubr.bf16.gmra.mxu0 %v1621
      %v2655 = vpop.f32.mrf.mxu0
      %v2656 = vadd.f32 0.0, %v2655
      %v2657 = vpop.f32.mrf.mxu0
      %v2658 = vpop.f32.mrf.mxu0
      %v2659 = vadd.f32 0.0, %v2658
      %v2660 = vpop.f32.mrf.mxu0
      %2661 = vmatprep.mubr.bf16.mxu0 %v1631
      %2662 = vmatmul.mubr.bf16.gmra.mxu0 %v1630
      %v2663 = vpop.f32.mrf.mxu0
      %v2664 = vadd.f32 0.0, %v2663
      %v2665 = vpop.f32.mrf.mxu0
      %v2666 = vpop.f32.mrf.mxu0
      %v2667 = vadd.f32 0.0, %v2666
      %v2668 = vpop.f32.mrf.mxu0
      %2669 = vmatprep.mubr.bf16.mxu0 %v1640
      %2670 = vmatmul.mubr.bf16.gmra.mxu0 %v1639
      %v2671 = vpop.f32.mrf.mxu0
      %v2672 = vadd.f32 0.0, %v2671
      %v2673 = vpop.f32.mrf.mxu0
      %v2674 = vpop.f32.mrf.mxu0
      %v2675 = vadd.f32 0.0, %v2674
      %v2676 = vpop.f32.mrf.mxu0
      %2677 = vmatprep.mubr.bf16.mxu0 %v1649
      %2678 = vmatmul.mubr.bf16.gmra.mxu0 %v1648
      %v2679 = vpop.f32.mrf.mxu0
      %v2680 = vadd.f32 0.0, %v2679
      %v2681 = vpop.f32.mrf.mxu0
      %v2682 = vpop.f32.mrf.mxu0
      %v2683 = vadd.f32 0.0, %v2682
      %v2684 = vpop.f32.mrf.mxu0
      %2685 = vmatprep.mubr.bf16.mxu0 %v1658
      %2686 = vmatmul.mubr.bf16.gmra.mxu0 %v1657
      %v2687 = vpop.f32.mrf.mxu0
      %v2688 = vadd.f32 0.0, %v2687
      %v2689 = vpop.f32.mrf.mxu0
      %v2690 = vpop.f32.mrf.mxu0
      %v2691 = vadd.f32 0.0, %v2690
      %v2692 = vpop.f32.mrf.mxu0
      %2693 = vmatprep.mubr.bf16.mxu0 %v1667
      %2694 = vmatmul.mubr.bf16.gmra.mxu0 %v1666
      %v2695 = vpop.f32.mrf.mxu0
      %v2696 = vadd.f32 0.0, %v2695
      %v2697 = vpop.f32.mrf.mxu0
      %v2698 = vpop.f32.mrf.mxu0
      %v2699 = vadd.f32 0.0, %v2698
      %v2700 = vpop.f32.mrf.mxu0
      %2701 = vmatprep.mubr.bf16.mxu0 %v1676
      %2702 = vmatmul.mubr.bf16.gmra.mxu0 %v1675
      %v2703 = vpop.f32.mrf.mxu0
      %v2704 = vadd.f32 0.0, %v2703
      %v2705 = vpop.f32.mrf.mxu0
      %v2706 = vpop.f32.mrf.mxu0
      %v2707 = vadd.f32 0.0, %v2706
      %v2708 = vpop.f32.mrf.mxu0
      %2709 = vmatprep.mubr.bf16.mxu0 %v1685
      %2710 = vmatmul.mubr.bf16.gmra.mxu0 %v1684
      %v2711 = vpop.f32.mrf.mxu0
      %v2712 = vadd.f32 0.0, %v2711
      %v2713 = vpop.f32.mrf.mxu0
      %v2714 = vpop.f32.mrf.mxu0
      %v2715 = vadd.f32 0.0, %v2714
      %v2716 = vpop.f32.mrf.mxu0
      %2717 = vmatprep.mubr.bf16.mxu0 %v1694
      %2718 = vmatmul.mubr.bf16.gmra.mxu0 %v1693
      %v2719 = vpop.f32.mrf.mxu0
      %v2720 = vadd.f32 0.0, %v2719
      %v2721 = vpop.f32.mrf.mxu0
      %v2722 = vpop.f32.mrf.mxu0
      %v2723 = vadd.f32 0.0, %v2722
      %v2724 = vpop.f32.mrf.mxu0
      %2725 = vmatprep.mubr.bf16.mxu0 %v1703
      %2726 = vmatmul.mubr.bf16.gmra.mxu0 %v1702
      %v2727 = vpop.f32.mrf.mxu0
      %v2728 = vadd.f32 0.0, %v2727
      %v2729 = vpop.f32.mrf.mxu0
      %v2730 = vpop.f32.mrf.mxu0
      %v2731 = vadd.f32 0.0, %v2730
      %v2732 = vpop.f32.mrf.mxu0
      %2733 = vmatprep.mubr.bf16.mxu0 %v1712
      %2734 = vmatmul.mubr.bf16.gmra.mxu0 %v1711
      %v2735 = vpop.f32.mrf.mxu0
      %v2736 = vadd.f32 0.0, %v2735
      %v2737 = vpop.f32.mrf.mxu0
      %v2738 = vpop.f32.mrf.mxu0
      %v2739 = vadd.f32 0.0, %v2738
      %v2740 = vpop.f32.mrf.mxu0
      %2741 = vmatprep.mubr.bf16.mxu0 %v1721
      %2742 = vmatmul.mubr.bf16.gmra.mxu0 %v1720
      %v2743 = vpop.f32.mrf.mxu0
      %v2744 = vadd.f32 0.0, %v2743
      %v2745 = vpop.f32.mrf.mxu0
      %v2746 = vpop.f32.mrf.mxu0
      %v2747 = vadd.f32 0.0, %v2746
      %v2748 = vpop.f32.mrf.mxu0
      %2749 = vmatprep.mubr.bf16.mxu0 %v1730
      %2750 = vmatmul.mubr.bf16.gmra.mxu0 %v1729
      %v2751 = vpop.f32.mrf.mxu0
      %v2752 = vadd.f32 0.0, %v2751
      %v2753 = vpop.f32.mrf.mxu0
      %v2754 = vpop.f32.mrf.mxu0
      %v2755 = vadd.f32 0.0, %v2754
      %v2756 = vpop.f32.mrf.mxu0
      %2757 = vmatprep.mubr.bf16.mxu0 %v1739
      %2758 = vmatmul.mubr.bf16.gmra.mxu0 %v1738
      %v2759 = vpop.f32.mrf.mxu0
      %v2760 = vadd.f32 0.0, %v2759
      %v2761 = vpop.f32.mrf.mxu0
      %v2762 = vpop.f32.mrf.mxu0
      %v2763 = vadd.f32 0.0, %v2762
      %v2764 = vpop.f32.mrf.mxu0
      %2765 = vmatprep.mubr.bf16.mxu0 %v1748
      %2766 = vmatmul.mubr.bf16.gmra.mxu0 %v1747
      %v2767 = vpop.f32.mrf.mxu0
      %v2768 = vadd.f32 0.0, %v2767
      %v2769 = vpop.f32.mrf.mxu0
      %v2770 = vpop.f32.mrf.mxu0
      %v2771 = vadd.f32 0.0, %v2770
      %v2772 = vpop.f32.mrf.mxu0
      %2773 = vmatprep.mubr.bf16.mxu0 %v1757
      %2774 = vmatmul.mubr.bf16.gmra.mxu0 %v1756
      %v2775 = vpop.f32.mrf.mxu0
      %v2776 = vadd.f32 0.0, %v2775
      %v2777 = vpop.f32.mrf.mxu0
      %v2778 = vpop.f32.mrf.mxu0
      %v2779 = vadd.f32 0.0, %v2778
      %v2780 = vpop.f32.mrf.mxu0
      %2781 = vmatprep.mubr.bf16.mxu0 %v1766
      %2782 = vmatmul.mubr.bf16.gmra.mxu0 %v1765
      %v2783 = vpop.f32.mrf.mxu0
      %v2784 = vadd.f32 0.0, %v2783
      %v2785 = vpop.f32.mrf.mxu0
      %v2786 = vpop.f32.mrf.mxu0
      %v2787 = vadd.f32 0.0, %v2786
      %v2788 = vpop.f32.mrf.mxu0
      %2789 = vmatprep.mubr.bf16.mxu0 %v1775
      %2790 = vmatmul.mubr.bf16.gmra.mxu0 %v1774
      %v2791 = vpop.f32.mrf.mxu0
      %v2792 = vadd.f32 0.0, %v2791
      %v2793 = vpop.f32.mrf.mxu0
      %v2794 = vpop.f32.mrf.mxu0
      %v2795 = vadd.f32 0.0, %v2794
      %v2796 = vpop.f32.mrf.mxu0
      %2797 = vmatprep.mubr.bf16.mxu0 %v1784
      %2798 = vmatmul.mubr.bf16.gmra.mxu0 %v1783
      %v2799 = vpop.f32.mrf.mxu0
      %v2800 = vadd.f32 0.0, %v2799
      %v2801 = vpop.f32.mrf.mxu0
      %v2802 = vpop.f32.mrf.mxu0
      %v2803 = vadd.f32 0.0, %v2802
      %v2804 = vpop.f32.mrf.mxu0
      %2805 = vmatprep.mubr.bf16.mxu0 %v1793
      %2806 = vmatmul.mubr.bf16.gmra.mxu0 %v1792
      %v2807 = vpop.f32.mrf.mxu0
      %v2808 = vadd.f32 0.0, %v2807
      %v2809 = vpop.f32.mrf.mxu0
      %v2810 = vpop.f32.mrf.mxu0
      %v2811 = vadd.f32 0.0, %v2810
      %v2812 = vpop.f32.mrf.mxu0
      %2813 = vmatprep.mubr.bf16.mxu0 %v1802
      %2814 = vmatmul.mubr.bf16.gmra.mxu0 %v1801
      %v2815 = vpop.f32.mrf.mxu0
      %v2816 = vadd.f32 0.0, %v2815
      %v2817 = vpop.f32.mrf.mxu0
      %v2818 = vpop.f32.mrf.mxu0
      %v2819 = vadd.f32 0.0, %v2818
      %v2820 = vpop.f32.mrf.mxu0
      %2821 = vmatprep.mubr.bf16.mxu0 %v1811
      %2822 = vmatmul.mubr.bf16.gmra.mxu0 %v1810
      %v2823 = vpop.f32.mrf.mxu0
      %v2824 = vadd.f32 0.0, %v2823
      %v2825 = vpop.f32.mrf.mxu0
      %v2826 = vpop.f32.mrf.mxu0
      %v2827 = vadd.f32 0.0, %v2826
      %v2828 = vpop.f32.mrf.mxu0
      %2829 = vmatprep.mubr.bf16.mxu0 %v1820
      %2830 = vmatmul.mubr.bf16.gmra.mxu0 %v1819
      %v2831 = vpop.f32.mrf.mxu0
      %v2832 = vadd.f32 0.0, %v2831
      %v2833 = vpop.f32.mrf.mxu0
      %v2834 = vpop.f32.mrf.mxu0
      %v2835 = vadd.f32 0.0, %v2834
      %v2836 = vpop.f32.mrf.mxu0
      %2837 = vmatprep.mubr.bf16.mxu0 %v1829
      %2838 = vmatmul.mubr.bf16.gmra.mxu0 %v1828
      %v2839 = vpop.f32.mrf.mxu0
      %v2840 = vadd.f32 0.0, %v2839
      %v2841 = vpop.f32.mrf.mxu0
      %v2842 = vpop.f32.mrf.mxu0
      %v2843 = vadd.f32 0.0, %v2842
      %v2844 = vpop.f32.mrf.mxu0
      %2845 = vdwg.mxu0
      %2846 = vmatprep.subr.bf16.mxu0 0
      %2847 = vmatpush1.bf16.msra.mxu0 %v2436
      %2848 = vmatprep.subr.bf16.mxu0 0
      %2849 = vmatpush1.bf16.msra.mxu0 %v2435
      %2850 = vmatprep.subr.bf16.mxu0 0
      %2851 = vmatpush1.bf16.msra.mxu0 %v2434
      %2852 = vmatprep.subr.bf16.mxu0 0
      %2853 = vmatpush1.bf16.msra.mxu0 %v2433
      %2854 = vmatprep.subr.bf16.mxu0 0
      %2855 = vmatpush1.bf16.msra.mxu0 %v2432
      %2856 = vmatprep.subr.bf16.mxu0 0
      %2857 = vmatpush1.bf16.msra.mxu0 %v2431
      %2858 = vmatprep.subr.bf16.mxu0 0
      %2859 = vmatpush1.bf16.msra.mxu0 %v2430
      %2860 = vmatprep.subr.bf16.mxu0 0
      %2861 = vmatpush1.bf16.msra.mxu0 %v2429
      %2862 = vmatprep.subr.bf16.mxu0 0
      %2863 = vmatpush2.bf16.msra.mxu0 %v2444
      %2864 = vmatprep.subr.bf16.mxu0 0
      %2865 = vmatpush2.bf16.msra.mxu0 %v2443
      %2866 = vmatprep.subr.bf16.mxu0 0
      %2867 = vmatpush2.bf16.msra.mxu0 %v2442
      %2868 = vmatprep.subr.bf16.mxu0 0
      %2869 = vmatpush2.bf16.msra.mxu0 %v2441
      %2870 = vmatprep.subr.bf16.mxu0 0
      %2871 = vmatpush2.bf16.msra.mxu0 %v2440
      %2872 = vmatprep.subr.bf16.mxu0 0
      %2873 = vmatpush2.bf16.msra.mxu0 %v2439
      %2874 = vmatprep.subr.bf16.mxu0 0
      %2875 = vmatpush2.bf16.msra.mxu0 %v2438
      %2876 = vmatprep.subr.bf16.mxu0 0
      %2877 = vmatpush2.bf16.msra.mxu0 %v2437
      %2878 = vmatprep.mubr.bf16.mxu0 %v1552
      %2879 = vmatmul.mubr.bf16.gmra.mxu0 %v1551
      %v2880 = vpop.f32.mrf.mxu0
      %v2881 = vadd.f32 %v2592, %v2880
      %v2882 = vpop.f32.mrf.mxu0
      %v2883 = vpop.f32.mrf.mxu0
      %v2884 = vadd.f32 %v2595, %v2883
      %v2885 = vpop.f32.mrf.mxu0
      %2886 = vmatprep.mubr.bf16.mxu0 %v1561
      %2887 = vmatmul.mubr.bf16.gmra.mxu0 %v1560
      %v2888 = vpop.f32.mrf.mxu0
      %v2889 = vadd.f32 %v2600, %v2888
      %v2890 = vpop.f32.mrf.mxu0
      %v2891 = vpop.f32.mrf.mxu0
      %v2892 = vadd.f32 %v2603, %v2891
      %v2893 = vpop.f32.mrf.mxu0
      %2894 = vmatprep.mubr.bf16.mxu0 %v1570
      %2895 = vmatmul.mubr.bf16.gmra.mxu0 %v1569
      %v2896 = vpop.f32.mrf.mxu0
      %v2897 = vadd.f32 %v2608, %v2896
      %v2898 = vpop.f32.mrf.mxu0
      %v2899 = vpop.f32.mrf.mxu0
      %v2900 = vadd.f32 %v2611, %v2899
      %v2901 = vpop.f32.mrf.mxu0
      %2902 = vmatprep.mubr.bf16.mxu0 %v1579
      %2903 = vmatmul.mubr.bf16.gmra.mxu0 %v1578
      %v2904 = vpop.f32.mrf.mxu0
      %v2905 = vadd.f32 %v2616, %v2904
      %v2906 = vpop.f32.mrf.mxu0
      %v2907 = vpop.f32.mrf.mxu0
      %v2908 = vadd.f32 %v2619, %v2907
      %v2909 = vpop.f32.mrf.mxu0
      %2910 = vmatprep.mubr.bf16.mxu0 %v1588
      %2911 = vmatmul.mubr.bf16.gmra.mxu0 %v1587
      %v2912 = vpop.f32.mrf.mxu0
      %v2913 = vadd.f32 %v2624, %v2912
      %v2914 = vpop.f32.mrf.mxu0
      %v2915 = vpop.f32.mrf.mxu0
      %v2916 = vadd.f32 %v2627, %v2915
      %v2917 = vpop.f32.mrf.mxu0
      %2918 = vmatprep.mubr.bf16.mxu0 %v1597
      %2919 = vmatmul.mubr.bf16.gmra.mxu0 %v1596
      %v2920 = vpop.f32.mrf.mxu0
      %v2921 = vadd.f32 %v2632, %v2920
      %v2922 = vpop.f32.mrf.mxu0
      %v2923 = vpop.f32.mrf.mxu0
      %v2924 = vadd.f32 %v2635, %v2923
      %v2925 = vpop.f32.mrf.mxu0
      %2926 = vmatprep.mubr.bf16.mxu0 %v1606
      %2927 = vmatmul.mubr.bf16.gmra.mxu0 %v1605
      %v2928 = vpop.f32.mrf.mxu0
      %v2929 = vadd.f32 %v2640, %v2928
      %v2930 = vpop.f32.mrf.mxu0
      %v2931 = vpop.f32.mrf.mxu0
      %v2932 = vadd.f32 %v2643, %v2931
      %v2933 = vpop.f32.mrf.mxu0
      %2934 = vmatprep.mubr.bf16.mxu0 %v1615
      %2935 = vmatmul.mubr.bf16.gmra.mxu0 %v1614
      %v2936 = vpop.f32.mrf.mxu0
      %v2937 = vadd.f32 %v2648, %v2936
      %v2938 = vpop.f32.mrf.mxu0
      %v2939 = vpop.f32.mrf.mxu0
      %v2940 = vadd.f32 %v2651, %v2939
      %v2941 = vpop.f32.mrf.mxu0
      %2942 = vmatprep.mubr.bf16.mxu0 %v1624
      %2943 = vmatmul.mubr.bf16.gmra.mxu0 %v1623
      %v2944 = vpop.f32.mrf.mxu0
      %v2945 = vadd.f32 %v2656, %v2944
      %v2946 = vpop.f32.mrf.mxu0
      %v2947 = vpop.f32.mrf.mxu0
      %v2948 = vadd.f32 %v2659, %v2947
      %v2949 = vpop.f32.mrf.mxu0
      %2950 = vmatprep.mubr.bf16.mxu0 %v1633
      %2951 = vmatmul.mubr.bf16.gmra.mxu0 %v1632
      %v2952 = vpop.f32.mrf.mxu0
      %v2953 = vadd.f32 %v2664, %v2952
      %v2954 = vpop.f32.mrf.mxu0
      %v2955 = vpop.f32.mrf.mxu0
      %v2956 = vadd.f32 %v2667, %v2955
      %v2957 = vpop.f32.mrf.mxu0
      %2958 = vmatprep.mubr.bf16.mxu0 %v1642
      %2959 = vmatmul.mubr.bf16.gmra.mxu0 %v1641
      %v2960 = vpop.f32.mrf.mxu0
      %v2961 = vadd.f32 %v2672, %v2960
      %v2962 = vpop.f32.mrf.mxu0
      %v2963 = vpop.f32.mrf.mxu0
      %v2964 = vadd.f32 %v2675, %v2963
      %v2965 = vpop.f32.mrf.mxu0
      %2966 = vmatprep.mubr.bf16.mxu0 %v1651
      %2967 = vmatmul.mubr.bf16.gmra.mxu0 %v1650
      %v2968 = vpop.f32.mrf.mxu0
      %v2969 = vadd.f32 %v2680, %v2968
      %v2970 = vpop.f32.mrf.mxu0
      %v2971 = vpop.f32.mrf.mxu0
      %v2972 = vadd.f32 %v2683, %v2971
      %v2973 = vpop.f32.mrf.mxu0
      %2974 = vmatprep.mubr.bf16.mxu0 %v1660
      %2975 = vmatmul.mubr.bf16.gmra.mxu0 %v1659
      %v2976 = vpop.f32.mrf.mxu0
      %v2977 = vadd.f32 %v2688, %v2976
      %v2978 = vpop.f32.mrf.mxu0
      %v2979 = vpop.f32.mrf.mxu0
      %v2980 = vadd.f32 %v2691, %v2979
      %v2981 = vpop.f32.mrf.mxu0
      %2982 = vmatprep.mubr.bf16.mxu0 %v1669
      %2983 = vmatmul.mubr.bf16.gmra.mxu0 %v1668
      %v2984 = vpop.f32.mrf.mxu0
      %v2985 = vadd.f32 %v2696, %v2984
      %v2986 = vpop.f32.mrf.mxu0
      %v2987 = vpop.f32.mrf.mxu0
      %v2988 = vadd.f32 %v2699, %v2987
      %v2989 = vpop.f32.mrf.mxu0
      %2990 = vmatprep.mubr.bf16.mxu0 %v1678
      %2991 = vmatmul.mubr.bf16.gmra.mxu0 %v1677
      %v2992 = vpop.f32.mrf.mxu0
      %v2993 = vadd.f32 %v2704, %v2992
      %v2994 = vpop.f32.mrf.mxu0
      %v2995 = vpop.f32.mrf.mxu0
      %v2996 = vadd.f32 %v2707, %v2995
      %v2997 = vpop.f32.mrf.mxu0
      %2998 = vmatprep.mubr.bf16.mxu0 %v1687
      %2999 = vmatmul.mubr.bf16.gmra.mxu0 %v1686
      %v3000 = vpop.f32.mrf.mxu0
      %v3001 = vadd.f32 %v2712, %v3000
      %v3002 = vpop.f32.mrf.mxu0
      %v3003 = vpop.f32.mrf.mxu0
      %v3004 = vadd.f32 %v2715, %v3003
      %v3005 = vpop.f32.mrf.mxu0
      %3006 = vmatprep.mubr.bf16.mxu0 %v1696
      %3007 = vmatmul.mubr.bf16.gmra.mxu0 %v1695
      %v3008 = vpop.f32.mrf.mxu0
      %v3009 = vadd.f32 %v2720, %v3008
      %v3010 = vpop.f32.mrf.mxu0
      %v3011 = vpop.f32.mrf.mxu0
      %v3012 = vadd.f32 %v2723, %v3011
      %v3013 = vpop.f32.mrf.mxu0
      %3014 = vmatprep.mubr.bf16.mxu0 %v1705
      %3015 = vmatmul.mubr.bf16.gmra.mxu0 %v1704
      %v3016 = vpop.f32.mrf.mxu0
      %v3017 = vadd.f32 %v2728, %v3016
      %v3018 = vpop.f32.mrf.mxu0
      %v3019 = vpop.f32.mrf.mxu0
      %v3020 = vadd.f32 %v2731, %v3019
      %v3021 = vpop.f32.mrf.mxu0
      %3022 = vmatprep.mubr.bf16.mxu0 %v1714
      %3023 = vmatmul.mubr.bf16.gmra.mxu0 %v1713
      %v3024 = vpop.f32.mrf.mxu0
      %v3025 = vadd.f32 %v2736, %v3024
      %v3026 = vpop.f32.mrf.mxu0
      %v3027 = vpop.f32.mrf.mxu0
      %v3028 = vadd.f32 %v2739, %v3027
      %v3029 = vpop.f32.mrf.mxu0
      %3030 = vmatprep.mubr.bf16.mxu0 %v1723
      %3031 = vmatmul.mubr.bf16.gmra.mxu0 %v1722
      %v3032 = vpop.f32.mrf.mxu0
      %v3033 = vadd.f32 %v2744, %v3032
      %v3034 = vpop.f32.mrf.mxu0
      %v3035 = vpop.f32.mrf.mxu0
      %v3036 = vadd.f32 %v2747, %v3035
      %v3037 = vpop.f32.mrf.mxu0
      %3038 = vmatprep.mubr.bf16.mxu0 %v1732
      %3039 = vmatmul.mubr.bf16.gmra.mxu0 %v1731
      %v3040 = vpop.f32.mrf.mxu0
      %v3041 = vadd.f32 %v2752, %v3040
      %v3042 = vpop.f32.mrf.mxu0
      %v3043 = vpop.f32.mrf.mxu0
      %v3044 = vadd.f32 %v2755, %v3043
      %v3045 = vpop.f32.mrf.mxu0
      %3046 = vmatprep.mubr.bf16.mxu0 %v1741
      %3047 = vmatmul.mubr.bf16.gmra.mxu0 %v1740
      %v3048 = vpop.f32.mrf.mxu0
      %v3049 = vadd.f32 %v2760, %v3048
      %v3050 = vpop.f32.mrf.mxu0
      %v3051 = vpop.f32.mrf.mxu0
      %v3052 = vadd.f32 %v2763, %v3051
      %v3053 = vpop.f32.mrf.mxu0
      %3054 = vmatprep.mubr.bf16.mxu0 %v1750
      %3055 = vmatmul.mubr.bf16.gmra.mxu0 %v1749
      %v3056 = vpop.f32.mrf.mxu0
      %v3057 = vadd.f32 %v2768, %v3056
      %v3058 = vpop.f32.mrf.mxu0
      %v3059 = vpop.f32.mrf.mxu0
      %v3060 = vadd.f32 %v2771, %v3059
      %v3061 = vpop.f32.mrf.mxu0
      %3062 = vmatprep.mubr.bf16.mxu0 %v1759
      %3063 = vmatmul.mubr.bf16.gmra.mxu0 %v1758
      %v3064 = vpop.f32.mrf.mxu0
      %v3065 = vadd.f32 %v2776, %v3064
      %v3066 = vpop.f32.mrf.mxu0
      %v3067 = vpop.f32.mrf.mxu0
      %v3068 = vadd.f32 %v2779, %v3067
      %v3069 = vpop.f32.mrf.mxu0
      %3070 = vmatprep.mubr.bf16.mxu0 %v1768
      %3071 = vmatmul.mubr.bf16.gmra.mxu0 %v1767
      %v3072 = vpop.f32.mrf.mxu0
      %v3073 = vadd.f32 %v2784, %v3072
      %v3074 = vpop.f32.mrf.mxu0
      %v3075 = vpop.f32.mrf.mxu0
      %v3076 = vadd.f32 %v2787, %v3075
      %v3077 = vpop.f32.mrf.mxu0
      %3078 = vmatprep.mubr.bf16.mxu0 %v1777
      %3079 = vmatmul.mubr.bf16.gmra.mxu0 %v1776
      %v3080 = vpop.f32.mrf.mxu0
      %v3081 = vadd.f32 %v2792, %v3080
      %v3082 = vpop.f32.mrf.mxu0
      %v3083 = vpop.f32.mrf.mxu0
      %v3084 = vadd.f32 %v2795, %v3083
      %v3085 = vpop.f32.mrf.mxu0
      %3086 = vmatprep.mubr.bf16.mxu0 %v1786
      %3087 = vmatmul.mubr.bf16.gmra.mxu0 %v1785
      %v3088 = vpop.f32.mrf.mxu0
      %v3089 = vadd.f32 %v2800, %v3088
      %v3090 = vpop.f32.mrf.mxu0
      %v3091 = vpop.f32.mrf.mxu0
      %v3092 = vadd.f32 %v2803, %v3091
      %v3093 = vpop.f32.mrf.mxu0
      %3094 = vmatprep.mubr.bf16.mxu0 %v1795
      %3095 = vmatmul.mubr.bf16.gmra.mxu0 %v1794
      %v3096 = vpop.f32.mrf.mxu0
      %v3097 = vadd.f32 %v2808, %v3096
      %v3098 = vpop.f32.mrf.mxu0
      %v3099 = vpop.f32.mrf.mxu0
      %v3100 = vadd.f32 %v2811, %v3099
      %v3101 = vpop.f32.mrf.mxu0
      %3102 = vmatprep.mubr.bf16.mxu0 %v1804
      %3103 = vmatmul.mubr.bf16.gmra.mxu0 %v1803
      %v3104 = vpop.f32.mrf.mxu0
      %v3105 = vadd.f32 %v2816, %v3104
      %v3106 = vpop.f32.mrf.mxu0
      %v3107 = vpop.f32.mrf.mxu0
      %v3108 = vadd.f32 %v2819, %v3107
      %v3109 = vpop.f32.mrf.mxu0
      %3110 = vmatprep.mubr.bf16.mxu0 %v1813
      %3111 = vmatmul.mubr.bf16.gmra.mxu0 %v1812
      %v3112 = vpop.f32.mrf.mxu0
      %v3113 = vadd.f32 %v2824, %v3112
      %v3114 = vpop.f32.mrf.mxu0
      %v3115 = vpop.f32.mrf.mxu0
      %v3116 = vadd.f32 %v2827, %v3115
      %v3117 = vpop.f32.mrf.mxu0
      %3118 = vmatprep.mubr.bf16.mxu0 %v1822
      %3119 = vmatmul.mubr.bf16.gmra.mxu0 %v1821
      %v3120 = vpop.f32.mrf.mxu0
      %v3121 = vadd.f32 %v2832, %v3120
      %v3122 = vpop.f32.mrf.mxu0
      %v3123 = vpop.f32.mrf.mxu0
      %v3124 = vadd.f32 %v2835, %v3123
      %v3125 = vpop.f32.mrf.mxu0
      %3126 = vmatprep.mubr.bf16.mxu0 %v1831
      %3127 = vmatmul.mubr.bf16.gmra.mxu0 %v1830
      %v3128 = vpop.f32.mrf.mxu0
      %v3129 = vadd.f32 %v2840, %v3128
      %v3130 = vpop.f32.mrf.mxu0
      %v3131 = vpop.f32.mrf.mxu0
      %v3132 = vadd.f32 %v2843, %v3131
      %v3133 = vpop.f32.mrf.mxu0
      %3134 = vdwg.mxu0
      %3135 = vmatprep.subr.bf16.mxu0 0
      %3136 = vmatpush1.bf16.msra.mxu0 %v2452
      %3137 = vmatprep.subr.bf16.mxu0 0
      %3138 = vmatpush1.bf16.msra.mxu0 %v2451
      %3139 = vmatprep.subr.bf16.mxu0 0
      %3140 = vmatpush1.bf16.msra.mxu0 %v2450
      %3141 = vmatprep.subr.bf16.mxu0 0
      %3142 = vmatpush1.bf16.msra.mxu0 %v2449
      %3143 = vmatprep.subr.bf16.mxu0 0
      %3144 = vmatpush1.bf16.msra.mxu0 %v2448
      %3145 = vmatprep.subr.bf16.mxu0 0
      %3146 = vmatpush1.bf16.msra.mxu0 %v2447
      %3147 = vmatprep.subr.bf16.mxu0 0
      %3148 = vmatpush1.bf16.msra.mxu0 %v2446
      %3149 = vmatprep.subr.bf16.mxu0 0
      %3150 = vmatpush1.bf16.msra.mxu0 %v2445
      %3151 = vmatprep.subr.bf16.mxu0 0
      %3152 = vmatpush2.bf16.msra.mxu0 %v2460
      %3153 = vmatprep.subr.bf16.mxu0 0
      %3154 = vmatpush2.bf16.msra.mxu0 %v2459
      %3155 = vmatprep.subr.bf16.mxu0 0
      %3156 = vmatpush2.bf16.msra.mxu0 %v2458
      %3157 = vmatprep.subr.bf16.mxu0 0
      %3158 = vmatpush2.bf16.msra.mxu0 %v2457
      %3159 = vmatprep.subr.bf16.mxu0 0
      %3160 = vmatpush2.bf16.msra.mxu0 %v2456
      %3161 = vmatprep.subr.bf16.mxu0 0
      %3162 = vmatpush2.bf16.msra.mxu0 %v2455
      %3163 = vmatprep.subr.bf16.mxu0 0
      %3164 = vmatpush2.bf16.msra.mxu0 %v2454
      %3165 = vmatprep.subr.bf16.mxu0 0
      %3166 = vmatpush2.bf16.msra.mxu0 %v2453
      %3167 = vmatprep.mubr.bf16.mxu0 %v1554
      %3168 = vmatmul.mubr.bf16.gmra.mxu0 %v1553
      %v3169 = vpop.f32.mrf.mxu0
      %v3170 = vadd.f32 %v2881, %v3169
      %v3171 = vpop.f32.mrf.mxu0
      %v3172 = vpop.f32.mrf.mxu0
      %v3173 = vadd.f32 %v2884, %v3172
      %v3174 = vpop.f32.mrf.mxu0
      %3175 = vmatprep.mubr.bf16.mxu0 %v1563
      %3176 = vmatmul.mubr.bf16.gmra.mxu0 %v1562
      %v3177 = vpop.f32.mrf.mxu0
      %v3178 = vadd.f32 %v2889, %v3177
      %v3179 = vpop.f32.mrf.mxu0
      %v3180 = vpop.f32.mrf.mxu0
      %v3181 = vadd.f32 %v2892, %v3180
      %v3182 = vpop.f32.mrf.mxu0
      %3183 = vmatprep.mubr.bf16.mxu0 %v1572
      %3184 = vmatmul.mubr.bf16.gmra.mxu0 %v1571
      %v3185 = vpop.f32.mrf.mxu0
      %v3186 = vadd.f32 %v2897, %v3185
      %v3187 = vpop.f32.mrf.mxu0
      %v3188 = vpop.f32.mrf.mxu0
      %v3189 = vadd.f32 %v2900, %v3188
      %v3190 = vpop.f32.mrf.mxu0
      %3191 = vmatprep.mubr.bf16.mxu0 %v1581
      %3192 = vmatmul.mubr.bf16.gmra.mxu0 %v1580
      %v3193 = vpop.f32.mrf.mxu0
      %v3194 = vadd.f32 %v2905, %v3193
      %v3195 = vpop.f32.mrf.mxu0
      %v3196 = vpop.f32.mrf.mxu0
      %v3197 = vadd.f32 %v2908, %v3196
      %v3198 = vpop.f32.mrf.mxu0
      %3199 = vmatprep.mubr.bf16.mxu0 %v1590
      %3200 = vmatmul.mubr.bf16.gmra.mxu0 %v1589
      %v3201 = vpop.f32.mrf.mxu0
      %v3202 = vadd.f32 %v2913, %v3201
      %v3203 = vpop.f32.mrf.mxu0
      %v3204 = vpop.f32.mrf.mxu0
      %v3205 = vadd.f32 %v2916, %v3204
      %v3206 = vpop.f32.mrf.mxu0
      %3207 = vmatprep.mubr.bf16.mxu0 %v1599
      %3208 = vmatmul.mubr.bf16.gmra.mxu0 %v1598
      %v3209 = vpop.f32.mrf.mxu0
      %v3210 = vadd.f32 %v2921, %v3209
      %v3211 = vpop.f32.mrf.mxu0
      %v3212 = vpop.f32.mrf.mxu0
      %v3213 = vadd.f32 %v2924, %v3212
      %v3214 = vpop.f32.mrf.mxu0
      %3215 = vmatprep.mubr.bf16.mxu0 %v1608
      %3216 = vmatmul.mubr.bf16.gmra.mxu0 %v1607
      %v3217 = vpop.f32.mrf.mxu0
      %v3218 = vadd.f32 %v2929, %v3217
      %v3219 = vpop.f32.mrf.mxu0
      %v3220 = vpop.f32.mrf.mxu0
      %v3221 = vadd.f32 %v2932, %v3220
      %v3222 = vpop.f32.mrf.mxu0
      %3223 = vmatprep.mubr.bf16.mxu0 %v1617
      %3224 = vmatmul.mubr.bf16.gmra.mxu0 %v1616
      %v3225 = vpop.f32.mrf.mxu0
      %v3226 = vadd.f32 %v2937, %v3225
      %v3227 = vpop.f32.mrf.mxu0
      %v3228 = vpop.f32.mrf.mxu0
      %v3229 = vadd.f32 %v2940, %v3228
      %v3230 = vpop.f32.mrf.mxu0
      %3231 = vmatprep.mubr.bf16.mxu0 %v1626
      %3232 = vmatmul.mubr.bf16.gmra.mxu0 %v1625
      %v3233 = vpop.f32.mrf.mxu0
      %v3234 = vadd.f32 %v2945, %v3233
      %v3235 = vpop.f32.mrf.mxu0
      %v3236 = vpop.f32.mrf.mxu0
      %v3237 = vadd.f32 %v2948, %v3236
      %v3238 = vpop.f32.mrf.mxu0
      %3239 = vmatprep.mubr.bf16.mxu0 %v1635
      %3240 = vmatmul.mubr.bf16.gmra.mxu0 %v1634
      %v3241 = vpop.f32.mrf.mxu0
      %v3242 = vadd.f32 %v2953, %v3241
      %v3243 = vpop.f32.mrf.mxu0
      %v3244 = vpop.f32.mrf.mxu0
      %v3245 = vadd.f32 %v2956, %v3244
      %v3246 = vpop.f32.mrf.mxu0
      %3247 = vmatprep.mubr.bf16.mxu0 %v1644
      %3248 = vmatmul.mubr.bf16.gmra.mxu0 %v1643
      %v3249 = vpop.f32.mrf.mxu0
      %v3250 = vadd.f32 %v2961, %v3249
      %v3251 = vpop.f32.mrf.mxu0
      %v3252 = vpop.f32.mrf.mxu0
      %v3253 = vadd.f32 %v2964, %v3252
      %v3254 = vpop.f32.mrf.mxu0
      %3255 = vmatprep.mubr.bf16.mxu0 %v1653
      %3256 = vmatmul.mubr.bf16.gmra.mxu0 %v1652
      %v3257 = vpop.f32.mrf.mxu0
      %v3258 = vadd.f32 %v2969, %v3257
      %v3259 = vpop.f32.mrf.mxu0
      %v3260 = vpop.f32.mrf.mxu0
      %v3261 = vadd.f32 %v2972, %v3260
      %v3262 = vpop.f32.mrf.mxu0
      %3263 = vmatprep.mubr.bf16.mxu0 %v1662
      %3264 = vmatmul.mubr.bf16.gmra.mxu0 %v1661
      %v3265 = vpop.f32.mrf.mxu0
      %v3266 = vadd.f32 %v2977, %v3265
      %v3267 = vpop.f32.mrf.mxu0
      %v3268 = vpop.f32.mrf.mxu0
      %v3269 = vadd.f32 %v2980, %v3268
      %v3270 = vpop.f32.mrf.mxu0
      %3271 = vmatprep.mubr.bf16.mxu0 %v1671
      %3272 = vmatmul.mubr.bf16.gmra.mxu0 %v1670
      %v3273 = vpop.f32.mrf.mxu0
      %v3274 = vadd.f32 %v2985, %v3273
      %v3275 = vpop.f32.mrf.mxu0
      %v3276 = vpop.f32.mrf.mxu0
      %v3277 = vadd.f32 %v2988, %v3276
      %v3278 = vpop.f32.mrf.mxu0
      %3279 = vmatprep.mubr.bf16.mxu0 %v1680
      %3280 = vmatmul.mubr.bf16.gmra.mxu0 %v1679
      %v3281 = vpop.f32.mrf.mxu0
      %v3282 = vadd.f32 %v2993, %v3281
      %v3283 = vpop.f32.mrf.mxu0
      %v3284 = vpop.f32.mrf.mxu0
      %v3285 = vadd.f32 %v2996, %v3284
      %v3286 = vpop.f32.mrf.mxu0
      %3287 = vmatprep.mubr.bf16.mxu0 %v1689
      %3288 = vmatmul.mubr.bf16.gmra.mxu0 %v1688
      %v3289 = vpop.f32.mrf.mxu0
      %v3290 = vadd.f32 %v3001, %v3289
      %v3291 = vpop.f32.mrf.mxu0
      %v3292 = vpop.f32.mrf.mxu0
      %v3293 = vadd.f32 %v3004, %v3292
      %v3294 = vpop.f32.mrf.mxu0
      %3295 = vmatprep.mubr.bf16.mxu0 %v1698
      %3296 = vmatmul.mubr.bf16.gmra.mxu0 %v1697
      %v3297 = vpop.f32.mrf.mxu0
      %v3298 = vadd.f32 %v3009, %v3297
      %v3299 = vpop.f32.mrf.mxu0
      %v3300 = vpop.f32.mrf.mxu0
      %v3301 = vadd.f32 %v3012, %v3300
      %v3302 = vpop.f32.mrf.mxu0
      %3303 = vmatprep.mubr.bf16.mxu0 %v1707
      %3304 = vmatmul.mubr.bf16.gmra.mxu0 %v1706
      %v3305 = vpop.f32.mrf.mxu0
      %v3306 = vadd.f32 %v3017, %v3305
      %v3307 = vpop.f32.mrf.mxu0
      %v3308 = vpop.f32.mrf.mxu0
      %v3309 = vadd.f32 %v3020, %v3308
      %v3310 = vpop.f32.mrf.mxu0
      %3311 = vmatprep.mubr.bf16.mxu0 %v1716
      %3312 = vmatmul.mubr.bf16.gmra.mxu0 %v1715
      %v3313 = vpop.f32.mrf.mxu0
      %v3314 = vadd.f32 %v3025, %v3313
      %v3315 = vpop.f32.mrf.mxu0
      %v3316 = vpop.f32.mrf.mxu0
      %v3317 = vadd.f32 %v3028, %v3316
      %v3318 = vpop.f32.mrf.mxu0
      %3319 = vmatprep.mubr.bf16.mxu0 %v1725
      %3320 = vmatmul.mubr.bf16.gmra.mxu0 %v1724
      %v3321 = vpop.f32.mrf.mxu0
      %v3322 = vadd.f32 %v3033, %v3321
      %v3323 = vpop.f32.mrf.mxu0
      %v3324 = vpop.f32.mrf.mxu0
      %v3325 = vadd.f32 %v3036, %v3324
      %v3326 = vpop.f32.mrf.mxu0
      %3327 = vmatprep.mubr.bf16.mxu0 %v1734
      %3328 = vmatmul.mubr.bf16.gmra.mxu0 %v1733
      %v3329 = vpop.f32.mrf.mxu0
      %v3330 = vadd.f32 %v3041, %v3329
      %v3331 = vpop.f32.mrf.mxu0
      %v3332 = vpop.f32.mrf.mxu0
      %v3333 = vadd.f32 %v3044, %v3332
      %v3334 = vpop.f32.mrf.mxu0
      %3335 = vmatprep.mubr.bf16.mxu0 %v1743
      %3336 = vmatmul.mubr.bf16.gmra.mxu0 %v1742
      %v3337 = vpop.f32.mrf.mxu0
      %v3338 = vadd.f32 %v3049, %v3337
      %v3339 = vpop.f32.mrf.mxu0
      %v3340 = vpop.f32.mrf.mxu0
      %v3341 = vadd.f32 %v3052, %v3340
      %v3342 = vpop.f32.mrf.mxu0
      %3343 = vmatprep.mubr.bf16.mxu0 %v1752
      %3344 = vmatmul.mubr.bf16.gmra.mxu0 %v1751
      %v3345 = vpop.f32.mrf.mxu0
      %v3346 = vadd.f32 %v3057, %v3345
      %v3347 = vpop.f32.mrf.mxu0
      %v3348 = vpop.f32.mrf.mxu0
      %v3349 = vadd.f32 %v3060, %v3348
      %v3350 = vpop.f32.mrf.mxu0
      %3351 = vmatprep.mubr.bf16.mxu0 %v1761
      %3352 = vmatmul.mubr.bf16.gmra.mxu0 %v1760
      %v3353 = vpop.f32.mrf.mxu0
      %v3354 = vadd.f32 %v3065, %v3353
      %v3355 = vpop.f32.mrf.mxu0
      %v3356 = vpop.f32.mrf.mxu0
      %v3357 = vadd.f32 %v3068, %v3356
      %v3358 = vpop.f32.mrf.mxu0
      %3359 = vmatprep.mubr.bf16.mxu0 %v1770
      %3360 = vmatmul.mubr.bf16.gmra.mxu0 %v1769
      %v3361 = vpop.f32.mrf.mxu0
      %v3362 = vadd.f32 %v3073, %v3361
      %v3363 = vpop.f32.mrf.mxu0
      %v3364 = vpop.f32.mrf.mxu0
      %v3365 = vadd.f32 %v3076, %v3364
      %v3366 = vpop.f32.mrf.mxu0
      %3367 = vmatprep.mubr.bf16.mxu0 %v1779
      %3368 = vmatmul.mubr.bf16.gmra.mxu0 %v1778
      %v3369 = vpop.f32.mrf.mxu0
      %v3370 = vadd.f32 %v3081, %v3369
      %v3371 = vpop.f32.mrf.mxu0
      %v3372 = vpop.f32.mrf.mxu0
      %v3373 = vadd.f32 %v3084, %v3372
      %v3374 = vpop.f32.mrf.mxu0
      %3375 = vmatprep.mubr.bf16.mxu0 %v1788
      %3376 = vmatmul.mubr.bf16.gmra.mxu0 %v1787
      %v3377 = vpop.f32.mrf.mxu0
      %v3378 = vadd.f32 %v3089, %v3377
      %v3379 = vpop.f32.mrf.mxu0
      %v3380 = vpop.f32.mrf.mxu0
      %v3381 = vadd.f32 %v3092, %v3380
      %v3382 = vpop.f32.mrf.mxu0
      %3383 = vmatprep.mubr.bf16.mxu0 %v1797
      %3384 = vmatmul.mubr.bf16.gmra.mxu0 %v1796
      %v3385 = vpop.f32.mrf.mxu0
      %v3386 = vadd.f32 %v3097, %v3385
      %v3387 = vpop.f32.mrf.mxu0
      %v3388 = vpop.f32.mrf.mxu0
      %v3389 = vadd.f32 %v3100, %v3388
      %v3390 = vpop.f32.mrf.mxu0
      %3391 = vmatprep.mubr.bf16.mxu0 %v1806
      %3392 = vmatmul.mubr.bf16.gmra.mxu0 %v1805
      %v3393 = vpop.f32.mrf.mxu0
      %v3394 = vadd.f32 %v3105, %v3393
      %v3395 = vpop.f32.mrf.mxu0
      %v3396 = vpop.f32.mrf.mxu0
      %v3397 = vadd.f32 %v3108, %v3396
      %v3398 = vpop.f32.mrf.mxu0
      %3399 = vmatprep.mubr.bf16.mxu0 %v1815
      %3400 = vmatmul.mubr.bf16.gmra.mxu0 %v1814
      %v3401 = vpop.f32.mrf.mxu0
      %v3402 = vadd.f32 %v3113, %v3401
      %v3403 = vpop.f32.mrf.mxu0
      %v3404 = vpop.f32.mrf.mxu0
      %v3405 = vadd.f32 %v3116, %v3404
      %v3406 = vpop.f32.mrf.mxu0
      %3407 = vmatprep.mubr.bf16.mxu0 %v1824
      %3408 = vmatmul.mubr.bf16.gmra.mxu0 %v1823
      %v3409 = vpop.f32.mrf.mxu0
      %v3410 = vadd.f32 %v3121, %v3409
      %v3411 = vpop.f32.mrf.mxu0
      %v3412 = vpop.f32.mrf.mxu0
      %v3413 = vadd.f32 %v3124, %v3412
      %v3414 = vpop.f32.mrf.mxu0
      %3415 = vmatprep.mubr.bf16.mxu0 %v1833
      %3416 = vmatmul.mubr.bf16.gmra.mxu0 %v1832
      %v3417 = vpop.f32.mrf.mxu0
      %v3418 = vadd.f32 %v3129, %v3417
      %v3419 = vpop.f32.mrf.mxu0
      %v3420 = vpop.f32.mrf.mxu0
      %v3421 = vadd.f32 %v3132, %v3420
      %v3422 = vpop.f32.mrf.mxu0
      %3423 = vdwg.mxu0
      %3424 = vmatprep.subr.bf16.mxu0 0
      %3425 = vmatpush1.bf16.msra.mxu0 %v2468
      %3426 = vmatprep.subr.bf16.mxu0 0
      %3427 = vmatpush1.bf16.msra.mxu0 %v2467
      %3428 = vmatprep.subr.bf16.mxu0 0
      %3429 = vmatpush1.bf16.msra.mxu0 %v2466
      %3430 = vmatprep.subr.bf16.mxu0 0
      %3431 = vmatpush1.bf16.msra.mxu0 %v2465
      %3432 = vmatprep.subr.bf16.mxu0 0
      %3433 = vmatpush1.bf16.msra.mxu0 %v2464
      %3434 = vmatprep.subr.bf16.mxu0 0
      %3435 = vmatpush1.bf16.msra.mxu0 %v2463
      %3436 = vmatprep.subr.bf16.mxu0 0
      %3437 = vmatpush1.bf16.msra.mxu0 %v2462
      %3438 = vmatprep.subr.bf16.mxu0 0
      %3439 = vmatpush1.bf16.msra.mxu0 %v2461
      %3440 = vmatprep.subr.bf16.mxu0 0
      %3441 = vmatpush2.bf16.msra.mxu0 %v2476
      %3442 = vmatprep.subr.bf16.mxu0 0
      %3443 = vmatpush2.bf16.msra.mxu0 %v2475
      %3444 = vmatprep.subr.bf16.mxu0 0
      %3445 = vmatpush2.bf16.msra.mxu0 %v2474
      %3446 = vmatprep.subr.bf16.mxu0 0
      %3447 = vmatpush2.bf16.msra.mxu0 %v2473
      %3448 = vmatprep.subr.bf16.mxu0 0
      %3449 = vmatpush2.bf16.msra.mxu0 %v2472
      %3450 = vmatprep.subr.bf16.mxu0 0
      %3451 = vmatpush2.bf16.msra.mxu0 %v2471
      %3452 = vmatprep.subr.bf16.mxu0 0
      %3453 = vmatpush2.bf16.msra.mxu0 %v2470
      %3454 = vmatprep.subr.bf16.mxu0 0
      %3455 = vmatpush2.bf16.msra.mxu0 %v2469
      %3456 = vmatprep.mubr.bf16.mxu0 %v1556
      %3457 = vmatmul.mubr.bf16.gmra.mxu0 %v1555
      %v3458 = vpop.f32.mrf.mxu0
      %v3459 = vadd.f32 %v3170, %v3458
      %v3460 = vpop.f32.mrf.mxu0
      %v3461 = vpop.f32.mrf.mxu0
      %v3462 = vadd.f32 %v3173, %v3461
      %v3463 = vpop.f32.mrf.mxu0
      %3464 = vmatprep.mubr.bf16.mxu0 %v1565
      %3465 = vmatmul.mubr.bf16.gmra.mxu0 %v1564
      %v3466 = vpop.f32.mrf.mxu0
      %v3467 = vadd.f32 %v3178, %v3466
      %v3468 = vpop.f32.mrf.mxu0
      %v3469 = vpop.f32.mrf.mxu0
      %v3470 = vadd.f32 %v3181, %v3469
      %v3471 = vpop.f32.mrf.mxu0
      %3472 = vmatprep.mubr.bf16.mxu0 %v1574
      %3473 = vmatmul.mubr.bf16.gmra.mxu0 %v1573
      %v3474 = vpop.f32.mrf.mxu0
      %v3475 = vadd.f32 %v3186, %v3474
      %v3476 = vpop.f32.mrf.mxu0
      %v3477 = vpop.f32.mrf.mxu0
      %v3478 = vadd.f32 %v3189, %v3477
      %v3479 = vpop.f32.mrf.mxu0
      %3480 = vmatprep.mubr.bf16.mxu0 %v1583
      %3481 = vmatmul.mubr.bf16.gmra.mxu0 %v1582
      %v3482 = vpop.f32.mrf.mxu0
      %v3483 = vadd.f32 %v3194, %v3482
      %v3484 = vpop.f32.mrf.mxu0
      %v3485 = vpop.f32.mrf.mxu0
      %v3486 = vadd.f32 %v3197, %v3485
      %v3487 = vpop.f32.mrf.mxu0
      %3488 = vmatprep.mubr.bf16.mxu0 %v1592
      %3489 = vmatmul.mubr.bf16.gmra.mxu0 %v1591
      %v3490 = vpop.f32.mrf.mxu0
      %v3491 = vadd.f32 %v3202, %v3490
      %v3492 = vpop.f32.mrf.mxu0
      %v3493 = vpop.f32.mrf.mxu0
      %v3494 = vadd.f32 %v3205, %v3493
      %v3495 = vpop.f32.mrf.mxu0
      %3496 = vmatprep.mubr.bf16.mxu0 %v1601
      %3497 = vmatmul.mubr.bf16.gmra.mxu0 %v1600
      %v3498 = vpop.f32.mrf.mxu0
      %v3499 = vadd.f32 %v3210, %v3498
      %v3500 = vpop.f32.mrf.mxu0
      %v3501 = vpop.f32.mrf.mxu0
      %v3502 = vadd.f32 %v3213, %v3501
      %v3503 = vpop.f32.mrf.mxu0
      %3504 = vmatprep.mubr.bf16.mxu0 %v1610
      %3505 = vmatmul.mubr.bf16.gmra.mxu0 %v1609
      %v3506 = vpop.f32.mrf.mxu0
      %v3507 = vadd.f32 %v3218, %v3506
      %v3508 = vpop.f32.mrf.mxu0
      %v3509 = vpop.f32.mrf.mxu0
      %v3510 = vadd.f32 %v3221, %v3509
      %v3511 = vpop.f32.mrf.mxu0
      %3512 = vmatprep.mubr.bf16.mxu0 %v1619
      %3513 = vmatmul.mubr.bf16.gmra.mxu0 %v1618
      %v3514 = vpop.f32.mrf.mxu0
      %v3515 = vadd.f32 %v3226, %v3514
      %v3516 = vpop.f32.mrf.mxu0
      %v3517 = vpop.f32.mrf.mxu0
      %v3518 = vadd.f32 %v3229, %v3517
      %v3519 = vpop.f32.mrf.mxu0
      %3520 = vmatprep.mubr.bf16.mxu0 %v1628
      %3521 = vmatmul.mubr.bf16.gmra.mxu0 %v1627
      %v3522 = vpop.f32.mrf.mxu0
      %v3523 = vadd.f32 %v3234, %v3522
      %v3524 = vpop.f32.mrf.mxu0
      %v3525 = vpop.f32.mrf.mxu0
      %v3526 = vadd.f32 %v3237, %v3525
      %v3527 = vpop.f32.mrf.mxu0
      %3528 = vmatprep.mubr.bf16.mxu0 %v1637
      %3529 = vmatmul.mubr.bf16.gmra.mxu0 %v1636
      %v3530 = vpop.f32.mrf.mxu0
      %v3531 = vadd.f32 %v3242, %v3530
      %v3532 = vpop.f32.mrf.mxu0
      %v3533 = vpop.f32.mrf.mxu0
      %v3534 = vadd.f32 %v3245, %v3533
      %v3535 = vpop.f32.mrf.mxu0
      %3536 = vmatprep.mubr.bf16.mxu0 %v1646
      %3537 = vmatmul.mubr.bf16.gmra.mxu0 %v1645
      %v3538 = vpop.f32.mrf.mxu0
      %v3539 = vadd.f32 %v3250, %v3538
      %v3540 = vpop.f32.mrf.mxu0
      %v3541 = vpop.f32.mrf.mxu0
      %v3542 = vadd.f32 %v3253, %v3541
      %v3543 = vpop.f32.mrf.mxu0
      %3544 = vmatprep.mubr.bf16.mxu0 %v1655
      %3545 = vmatmul.mubr.bf16.gmra.mxu0 %v1654
      %v3546 = vpop.f32.mrf.mxu0
      %v3547 = vadd.f32 %v3258, %v3546
      %v3548 = vpop.f32.mrf.mxu0
      %v3549 = vpop.f32.mrf.mxu0
      %v3550 = vadd.f32 %v3261, %v3549
      %v3551 = vpop.f32.mrf.mxu0
      %3552 = vmatprep.mubr.bf16.mxu0 %v1664
      %3553 = vmatmul.mubr.bf16.gmra.mxu0 %v1663
      %v3554 = vpop.f32.mrf.mxu0
      %v3555 = vadd.f32 %v3266, %v3554
      %v3556 = vpop.f32.mrf.mxu0
      %v3557 = vpop.f32.mrf.mxu0
      %v3558 = vadd.f32 %v3269, %v3557
      %v3559 = vpop.f32.mrf.mxu0
      %3560 = vmatprep.mubr.bf16.mxu0 %v1673
      %3561 = vmatmul.mubr.bf16.gmra.mxu0 %v1672
      %v3562 = vpop.f32.mrf.mxu0
      %v3563 = vadd.f32 %v3274, %v3562
      %v3564 = vpop.f32.mrf.mxu0
      %v3565 = vpop.f32.mrf.mxu0
      %v3566 = vadd.f32 %v3277, %v3565
      %v3567 = vpop.f32.mrf.mxu0
      %3568 = vmatprep.mubr.bf16.mxu0 %v1682
      %3569 = vmatmul.mubr.bf16.gmra.mxu0 %v1681
      %v3570 = vpop.f32.mrf.mxu0
      %v3571 = vadd.f32 %v3282, %v3570
      %v3572 = vpop.f32.mrf.mxu0
      %v3573 = vpop.f32.mrf.mxu0
      %v3574 = vadd.f32 %v3285, %v3573
      %v3575 = vpop.f32.mrf.mxu0
      %3576 = vmatprep.mubr.bf16.mxu0 %v1691
      %3577 = vmatmul.mubr.bf16.gmra.mxu0 %v1690
      %v3578 = vpop.f32.mrf.mxu0
      %v3579 = vadd.f32 %v3290, %v3578
      %v3580 = vpop.f32.mrf.mxu0
      %v3581 = vpop.f32.mrf.mxu0
      %v3582 = vadd.f32 %v3293, %v3581
      %v3583 = vpop.f32.mrf.mxu0
      %3584 = vmatprep.mubr.bf16.mxu0 %v1700
      %3585 = vmatmul.mubr.bf16.gmra.mxu0 %v1699
      %v3586 = vpop.f32.mrf.mxu0
      %v3587 = vadd.f32 %v3298, %v3586
      %v3588 = vpop.f32.mrf.mxu0
      %v3589 = vpop.f32.mrf.mxu0
      %v3590 = vadd.f32 %v3301, %v3589
      %v3591 = vpop.f32.mrf.mxu0
      %3592 = vmatprep.mubr.bf16.mxu0 %v1709
      %3593 = vmatmul.mubr.bf16.gmra.mxu0 %v1708
      %v3594 = vpop.f32.mrf.mxu0
      %v3595 = vadd.f32 %v3306, %v3594
      %v3596 = vpop.f32.mrf.mxu0
      %v3597 = vpop.f32.mrf.mxu0
      %v3598 = vadd.f32 %v3309, %v3597
      %v3599 = vpop.f32.mrf.mxu0
      %3600 = vmatprep.mubr.bf16.mxu0 %v1718
      %3601 = vmatmul.mubr.bf16.gmra.mxu0 %v1717
      %v3602 = vpop.f32.mrf.mxu0
      %v3603 = vadd.f32 %v3314, %v3602
      %v3604 = vpop.f32.mrf.mxu0
      %v3605 = vpop.f32.mrf.mxu0
      %v3606 = vadd.f32 %v3317, %v3605
      %v3607 = vpop.f32.mrf.mxu0
      %3608 = vmatprep.mubr.bf16.mxu0 %v1727
      %3609 = vmatmul.mubr.bf16.gmra.mxu0 %v1726
      %v3610 = vpop.f32.mrf.mxu0
      %v3611 = vadd.f32 %v3322, %v3610
      %v3612 = vpop.f32.mrf.mxu0
      %v3613 = vpop.f32.mrf.mxu0
      %v3614 = vadd.f32 %v3325, %v3613
      %v3615 = vpop.f32.mrf.mxu0
      %3616 = vmatprep.mubr.bf16.mxu0 %v1736
      %3617 = vmatmul.mubr.bf16.gmra.mxu0 %v1735
      %v3618 = vpop.f32.mrf.mxu0
      %v3619 = vadd.f32 %v3330, %v3618
      %v3620 = vpop.f32.mrf.mxu0
      %v3621 = vpop.f32.mrf.mxu0
      %v3622 = vadd.f32 %v3333, %v3621
      %v3623 = vpop.f32.mrf.mxu0
      %3624 = vmatprep.mubr.bf16.mxu0 %v1745
      %3625 = vmatmul.mubr.bf16.gmra.mxu0 %v1744
      %v3626 = vpop.f32.mrf.mxu0
      %v3627 = vadd.f32 %v3338, %v3626
      %v3628 = vpop.f32.mrf.mxu0
      %v3629 = vpop.f32.mrf.mxu0
      %v3630 = vadd.f32 %v3341, %v3629
      %v3631 = vpop.f32.mrf.mxu0
      %3632 = vmatprep.mubr.bf16.mxu0 %v1754
      %3633 = vmatmul.mubr.bf16.gmra.mxu0 %v1753
      %v3634 = vpop.f32.mrf.mxu0
      %v3635 = vadd.f32 %v3346, %v3634
      %v3636 = vpop.f32.mrf.mxu0
      %v3637 = vpop.f32.mrf.mxu0
      %v3638 = vadd.f32 %v3349, %v3637
      %v3639 = vpop.f32.mrf.mxu0
      %3640 = vmatprep.mubr.bf16.mxu0 %v1763
      %3641 = vmatmul.mubr.bf16.gmra.mxu0 %v1762
      %v3642 = vpop.f32.mrf.mxu0
      %v3643 = vadd.f32 %v3354, %v3642
      %v3644 = vpop.f32.mrf.mxu0
      %v3645 = vpop.f32.mrf.mxu0
      %v3646 = vadd.f32 %v3357, %v3645
      %v3647 = vpop.f32.mrf.mxu0
      %3648 = vmatprep.mubr.bf16.mxu0 %v1772
      %3649 = vmatmul.mubr.bf16.gmra.mxu0 %v1771
      %v3650 = vpop.f32.mrf.mxu0
      %v3651 = vadd.f32 %v3362, %v3650
      %v3652 = vpop.f32.mrf.mxu0
      %v3653 = vpop.f32.mrf.mxu0
      %v3654 = vadd.f32 %v3365, %v3653
      %v3655 = vpop.f32.mrf.mxu0
      %3656 = vmatprep.mubr.bf16.mxu0 %v1781
      %3657 = vmatmul.mubr.bf16.gmra.mxu0 %v1780
      %v3658 = vpop.f32.mrf.mxu0
      %v3659 = vadd.f32 %v3370, %v3658
      %v3660 = vpop.f32.mrf.mxu0
      %v3661 = vpop.f32.mrf.mxu0
      %v3662 = vadd.f32 %v3373, %v3661
      %v3663 = vpop.f32.mrf.mxu0
      %3664 = vmatprep.mubr.bf16.mxu0 %v1790
      %3665 = vmatmul.mubr.bf16.gmra.mxu0 %v1789
      %v3666 = vpop.f32.mrf.mxu0
      %v3667 = vadd.f32 %v3378, %v3666
      %v3668 = vpop.f32.mrf.mxu0
      %v3669 = vpop.f32.mrf.mxu0
      %v3670 = vadd.f32 %v3381, %v3669
      %v3671 = vpop.f32.mrf.mxu0
      %3672 = vmatprep.mubr.bf16.mxu0 %v1799
      %3673 = vmatmul.mubr.bf16.gmra.mxu0 %v1798
      %v3674 = vpop.f32.mrf.mxu0
      %v3675 = vadd.f32 %v3386, %v3674
      %v3676 = vpop.f32.mrf.mxu0
      %v3677 = vpop.f32.mrf.mxu0
      %v3678 = vadd.f32 %v3389, %v3677
      %v3679 = vpop.f32.mrf.mxu0
      %3680 = vmatprep.mubr.bf16.mxu0 %v1808
      %3681 = vmatmul.mubr.bf16.gmra.mxu0 %v1807
      %v3682 = vpop.f32.mrf.mxu0
      %v3683 = vadd.f32 %v3394, %v3682
      %v3684 = vpop.f32.mrf.mxu0
      %v3685 = vpop.f32.mrf.mxu0
      %v3686 = vadd.f32 %v3397, %v3685
      %v3687 = vpop.f32.mrf.mxu0
      %3688 = vmatprep.mubr.bf16.mxu0 %v1817
      %3689 = vmatmul.mubr.bf16.gmra.mxu0 %v1816
      %v3690 = vpop.f32.mrf.mxu0
      %v3691 = vadd.f32 %v3402, %v3690
      %v3692 = vpop.f32.mrf.mxu0
      %v3693 = vpop.f32.mrf.mxu0
      %v3694 = vadd.f32 %v3405, %v3693
      %v3695 = vpop.f32.mrf.mxu0
      %3696 = vmatprep.mubr.bf16.mxu0 %v1826
      %3697 = vmatmul.mubr.bf16.gmra.mxu0 %v1825
      %v3698 = vpop.f32.mrf.mxu0
      %v3699 = vadd.f32 %v3410, %v3698
      %v3700 = vpop.f32.mrf.mxu0
      %v3701 = vpop.f32.mrf.mxu0
      %v3702 = vadd.f32 %v3413, %v3701
      %v3703 = vpop.f32.mrf.mxu0
      %3704 = vmatprep.mubr.bf16.mxu0 %v1835
      %3705 = vmatmul.mubr.bf16.gmra.mxu0 %v1834
      %v3706 = vpop.f32.mrf.mxu0
      %v3707 = vadd.f32 %v3418, %v3706
      %v3708 = vpop.f32.mrf.mxu0
      %v3709 = vpop.f32.mrf.mxu0
      %v3710 = vadd.f32 %v3421, %v3709
      %v3711 = vpop.f32.mrf.mxu0
      %3712 = vdwg.mxu0
      %3713 = vmatprep.subr.bf16.mxu0 0
      %3714 = vmatpush1.bf16.msra.mxu0 %v2484
      %3715 = vmatprep.subr.bf16.mxu0 0
      %3716 = vmatpush1.bf16.msra.mxu0 %v2483
      %3717 = vmatprep.subr.bf16.mxu0 0
      %3718 = vmatpush1.bf16.msra.mxu0 %v2482
      %3719 = vmatprep.subr.bf16.mxu0 0
      %3720 = vmatpush1.bf16.msra.mxu0 %v2481
      %3721 = vmatprep.subr.bf16.mxu0 0
      %3722 = vmatpush1.bf16.msra.mxu0 %v2480
      %3723 = vmatprep.subr.bf16.mxu0 0
      %3724 = vmatpush1.bf16.msra.mxu0 %v2479
      %3725 = vmatprep.subr.bf16.mxu0 0
      %3726 = vmatpush1.bf16.msra.mxu0 %v2478
      %3727 = vmatprep.subr.bf16.mxu0 0
      %3728 = vmatpush1.bf16.msra.mxu0 %v2477
      %3729 = vmatprep.subr.bf16.mxu0 0
      %3730 = vmatpush2.bf16.msra.mxu0 0
      %3731 = vmatprep.subr.bf16.mxu0 0
      %3732 = vmatpush2.bf16.msra.mxu0 0
      %3733 = vmatprep.subr.bf16.mxu0 0
      %3734 = vmatpush2.bf16.msra.mxu0 0
      %3735 = vmatprep.subr.bf16.mxu0 0
      %3736 = vmatpush2.bf16.msra.mxu0 0
      %3737 = vmatprep.subr.bf16.mxu0 0
      %3738 = vmatpush2.bf16.msra.mxu0 0
      %3739 = vmatprep.subr.bf16.mxu0 0
      %3740 = vmatpush2.bf16.msra.mxu0 0
      %3741 = vmatprep.subr.bf16.mxu0 0
      %3742 = vmatpush2.bf16.msra.mxu0 0
      %3743 = vmatprep.subr.bf16.mxu0 0
      %3744 = vmatpush2.bf16.msra.mxu0 0
      %3745 = vmatprep.mubr.bf16.mxu0 0
      %3746 = vmatmul.mubr.bf16.gmra.mxu0 %v1557
      %v3747 = vpop.f32.mrf.mxu0
      %v3748 = vadd.f32 %v3459, %v3747
      %v3749 = vpop.f32.mrf.mxu0
      %v3750 = vpop.f32.mrf.mxu0
      %v3751 = vadd.f32 %v3462, %v3750
      %v3752 = vpop.f32.mrf.mxu0
      %3753 = vmatprep.mubr.bf16.mxu0 0
      %3754 = vmatmul.mubr.bf16.gmra.mxu0 %v1566
      %v3755 = vpop.f32.mrf.mxu0
      %v3756 = vadd.f32 %v3467, %v3755
      %v3757 = vpop.f32.mrf.mxu0
      %v3758 = vpop.f32.mrf.mxu0
      %v3759 = vadd.f32 %v3470, %v3758
      %v3760 = vpop.f32.mrf.mxu0
      %3761 = vmatprep.mubr.bf16.mxu0 0
      %3762 = vmatmul.mubr.bf16.gmra.mxu0 %v1575
      %v3763 = vpop.f32.mrf.mxu0
      %v3764 = vadd.f32 %v3475, %v3763
      %v3765 = vpop.f32.mrf.mxu0
      %v3766 = vpop.f32.mrf.mxu0
      %v3767 = vadd.f32 %v3478, %v3766
      %v3768 = vpop.f32.mrf.mxu0
      %3769 = vmatprep.mubr.bf16.mxu0 0
      %3770 = vmatmul.mubr.bf16.gmra.mxu0 %v1584
      %v3771 = vpop.f32.mrf.mxu0
      %v3772 = vadd.f32 %v3483, %v3771
      %v3773 = vpop.f32.mrf.mxu0
      %v3774 = vpop.f32.mrf.mxu0
      %v3775 = vadd.f32 %v3486, %v3774
      %v3776 = vpop.f32.mrf.mxu0
      %3777 = vmatprep.mubr.bf16.mxu0 0
      %3778 = vmatmul.mubr.bf16.gmra.mxu0 %v1593
      %v3779 = vpop.f32.mrf.mxu0
      %v3780 = vadd.f32 %v3491, %v3779
      %v3781 = vpop.f32.mrf.mxu0
      %v3782 = vpop.f32.mrf.mxu0
      %v3783 = vadd.f32 %v3494, %v3782
      %v3784 = vpop.f32.mrf.mxu0
      %3785 = vmatprep.mubr.bf16.mxu0 0
      %3786 = vmatmul.mubr.bf16.gmra.mxu0 %v1602
      %v3787 = vpop.f32.mrf.mxu0
      %v3788 = vadd.f32 %v3499, %v3787
      %v3789 = vpop.f32.mrf.mxu0
      %v3790 = vpop.f32.mrf.mxu0
      %v3791 = vadd.f32 %v3502, %v3790
      %v3792 = vpop.f32.mrf.mxu0
      %3793 = vmatprep.mubr.bf16.mxu0 0
      %3794 = vmatmul.mubr.bf16.gmra.mxu0 %v1611
      %v3795 = vpop.f32.mrf.mxu0
      %v3796 = vadd.f32 %v3507, %v3795
      %v3797 = vpop.f32.mrf.mxu0
      %v3798 = vpop.f32.mrf.mxu0
      %v3799 = vadd.f32 %v3510, %v3798
      %v3800 = vpop.f32.mrf.mxu0
      %3801 = vmatprep.mubr.bf16.mxu0 0
      %3802 = vmatmul.mubr.bf16.gmra.mxu0 %v1620
      %v3803 = vpop.f32.mrf.mxu0
      %v3804 = vadd.f32 %v3515, %v3803
      %v3805 = vpop.f32.mrf.mxu0
      %v3806 = vpop.f32.mrf.mxu0
      %v3807 = vadd.f32 %v3518, %v3806
      %v3808 = vpop.f32.mrf.mxu0
      %3809 = vmatprep.mubr.bf16.mxu0 0
      %3810 = vmatmul.mubr.bf16.gmra.mxu0 %v1629
      %v3811 = vpop.f32.mrf.mxu0
      %v3812 = vadd.f32 %v3523, %v3811
      %v3813 = vpop.f32.mrf.mxu0
      %v3814 = vpop.f32.mrf.mxu0
      %v3815 = vadd.f32 %v3526, %v3814
      %v3816 = vpop.f32.mrf.mxu0
      %3817 = vmatprep.mubr.bf16.mxu0 0
      %3818 = vmatmul.mubr.bf16.gmra.mxu0 %v1638
      %v3819 = vpop.f32.mrf.mxu0
      %v3820 = vadd.f32 %v3531, %v3819
      %v3821 = vpop.f32.mrf.mxu0
      %v3822 = vpop.f32.mrf.mxu0
      %v3823 = vadd.f32 %v3534, %v3822
      %v3824 = vpop.f32.mrf.mxu0
      %3825 = vmatprep.mubr.bf16.mxu0 0
      %3826 = vmatmul.mubr.bf16.gmra.mxu0 %v1647
      %v3827 = vpop.f32.mrf.mxu0
      %v3828 = vadd.f32 %v3539, %v3827
      %v3829 = vpop.f32.mrf.mxu0
      %v3830 = vpop.f32.mrf.mxu0
      %v3831 = vadd.f32 %v3542, %v3830
      %v3832 = vpop.f32.mrf.mxu0
      %3833 = vmatprep.mubr.bf16.mxu0 0
      %3834 = vmatmul.mubr.bf16.gmra.mxu0 %v1656
      %v3835 = vpop.f32.mrf.mxu0
      %v3836 = vadd.f32 %v3547, %v3835
      %v3837 = vpop.f32.mrf.mxu0
      %v3838 = vpop.f32.mrf.mxu0
      %v3839 = vadd.f32 %v3550, %v3838
      %v3840 = vpop.f32.mrf.mxu0
      %3841 = vmatprep.mubr.bf16.mxu0 0
      %3842 = vmatmul.mubr.bf16.gmra.mxu0 %v1665
      %v3843 = vpop.f32.mrf.mxu0
      %v3844 = vadd.f32 %v3555, %v3843
      %v3845 = vpop.f32.mrf.mxu0
      %v3846 = vpop.f32.mrf.mxu0
      %v3847 = vadd.f32 %v3558, %v3846
      %v3848 = vpop.f32.mrf.mxu0
      %3849 = vmatprep.mubr.bf16.mxu0 0
      %3850 = vmatmul.mubr.bf16.gmra.mxu0 %v1674
      %v3851 = vpop.f32.mrf.mxu0
      %v3852 = vadd.f32 %v3563, %v3851
      %v3853 = vpop.f32.mrf.mxu0
      %v3854 = vpop.f32.mrf.mxu0
      %v3855 = vadd.f32 %v3566, %v3854
      %v3856 = vpop.f32.mrf.mxu0
      %3857 = vmatprep.mubr.bf16.mxu0 0
      %3858 = vmatmul.mubr.bf16.gmra.mxu0 %v1683
      %v3859 = vpop.f32.mrf.mxu0
      %v3860 = vadd.f32 %v3571, %v3859
      %v3861 = vpop.f32.mrf.mxu0
      %v3862 = vpop.f32.mrf.mxu0
      %v3863 = vadd.f32 %v3574, %v3862
      %v3864 = vpop.f32.mrf.mxu0
      %3865 = vmatprep.mubr.bf16.mxu0 0
      %3866 = vmatmul.mubr.bf16.gmra.mxu0 %v1692
      %v3867 = vpop.f32.mrf.mxu0
      %v3868 = vadd.f32 %v3579, %v3867
      %v3869 = vpop.f32.mrf.mxu0
      %v3870 = vpop.f32.mrf.mxu0
      %v3871 = vadd.f32 %v3582, %v3870
      %v3872 = vpop.f32.mrf.mxu0
      %3873 = vmatprep.mubr.bf16.mxu0 0
      %3874 = vmatmul.mubr.bf16.gmra.mxu0 %v1701
      %v3875 = vpop.f32.mrf.mxu0
      %v3876 = vadd.f32 %v3587, %v3875
      %v3877 = vpop.f32.mrf.mxu0
      %v3878 = vpop.f32.mrf.mxu0
      %v3879 = vadd.f32 %v3590, %v3878
      %v3880 = vpop.f32.mrf.mxu0
      %3881 = vmatprep.mubr.bf16.mxu0 0
      %3882 = vmatmul.mubr.bf16.gmra.mxu0 %v1710
      %v3883 = vpop.f32.mrf.mxu0
      %v3884 = vadd.f32 %v3595, %v3883
      %v3885 = vpop.f32.mrf.mxu0
      %v3886 = vpop.f32.mrf.mxu0
      %v3887 = vadd.f32 %v3598, %v3886
      %v3888 = vpop.f32.mrf.mxu0
      %3889 = vmatprep.mubr.bf16.mxu0 0
      %3890 = vmatmul.mubr.bf16.gmra.mxu0 %v1719
      %v3891 = vpop.f32.mrf.mxu0
      %v3892 = vadd.f32 %v3603, %v3891
      %v3893 = vpop.f32.mrf.mxu0
      %v3894 = vpop.f32.mrf.mxu0
      %v3895 = vadd.f32 %v3606, %v3894
      %v3896 = vpop.f32.mrf.mxu0
      %3897 = vmatprep.mubr.bf16.mxu0 0
      %3898 = vmatmul.mubr.bf16.gmra.mxu0 %v1728
      %v3899 = vpop.f32.mrf.mxu0
      %v3900 = vadd.f32 %v3611, %v3899
      %v3901 = vpop.f32.mrf.mxu0
      %v3902 = vpop.f32.mrf.mxu0
      %v3903 = vadd.f32 %v3614, %v3902
      %v3904 = vpop.f32.mrf.mxu0
      %3905 = vmatprep.mubr.bf16.mxu0 0
      %3906 = vmatmul.mubr.bf16.gmra.mxu0 %v1737
      %v3907 = vpop.f32.mrf.mxu0
      %v3908 = vadd.f32 %v3619, %v3907
      %v3909 = vpop.f32.mrf.mxu0
      %v3910 = vpop.f32.mrf.mxu0
      %v3911 = vadd.f32 %v3622, %v3910
      %v3912 = vpop.f32.mrf.mxu0
      %3913 = vmatprep.mubr.bf16.mxu0 0
      %3914 = vmatmul.mubr.bf16.gmra.mxu0 %v1746
      %v3915 = vpop.f32.mrf.mxu0
      %v3916 = vadd.f32 %v3627, %v3915
      %v3917 = vpop.f32.mrf.mxu0
      %v3918 = vpop.f32.mrf.mxu0
      %v3919 = vadd.f32 %v3630, %v3918
      %v3920 = vpop.f32.mrf.mxu0
      %3921 = vmatprep.mubr.bf16.mxu0 0
      %3922 = vmatmul.mubr.bf16.gmra.mxu0 %v1755
      %v3923 = vpop.f32.mrf.mxu0
      %v3924 = vadd.f32 %v3635, %v3923
      %v3925 = vpop.f32.mrf.mxu0
      %v3926 = vpop.f32.mrf.mxu0
      %v3927 = vadd.f32 %v3638, %v3926
      %v3928 = vpop.f32.mrf.mxu0
      %3929 = vmatprep.mubr.bf16.mxu0 0
      %3930 = vmatmul.mubr.bf16.gmra.mxu0 %v1764
      %v3931 = vpop.f32.mrf.mxu0
      %v3932 = vadd.f32 %v3643, %v3931
      %v3933 = vpop.f32.mrf.mxu0
      %v3934 = vpop.f32.mrf.mxu0
      %v3935 = vadd.f32 %v3646, %v3934
      %v3936 = vpop.f32.mrf.mxu0
      %3937 = vmatprep.mubr.bf16.mxu0 0
      %3938 = vmatmul.mubr.bf16.gmra.mxu0 %v1773
      %v3939 = vpop.f32.mrf.mxu0
      %v3940 = vadd.f32 %v3651, %v3939
      %v3941 = vpop.f32.mrf.mxu0
      %v3942 = vpop.f32.mrf.mxu0
      %v3943 = vadd.f32 %v3654, %v3942
      %v3944 = vpop.f32.mrf.mxu0
      %3945 = vmatprep.mubr.bf16.mxu0 0
      %3946 = vmatmul.mubr.bf16.gmra.mxu0 %v1782
      %v3947 = vpop.f32.mrf.mxu0
      %v3948 = vadd.f32 %v3659, %v3947
      %v3949 = vpop.f32.mrf.mxu0
      %v3950 = vpop.f32.mrf.mxu0
      %v3951 = vadd.f32 %v3662, %v3950
      %v3952 = vpop.f32.mrf.mxu0
      %3953 = vmatprep.mubr.bf16.mxu0 0
      %3954 = vmatmul.mubr.bf16.gmra.mxu0 %v1791
      %v3955 = vpop.f32.mrf.mxu0
      %v3956 = vadd.f32 %v3667, %v3955
      %v3957 = vpop.f32.mrf.mxu0
      %v3958 = vpop.f32.mrf.mxu0
      %v3959 = vadd.f32 %v3670, %v3958
      %v3960 = vpop.f32.mrf.mxu0
      %3961 = vmatprep.mubr.bf16.mxu0 0
      %3962 = vmatmul.mubr.bf16.gmra.mxu0 %v1800
      %v3963 = vpop.f32.mrf.mxu0
      %v3964 = vadd.f32 %v3675, %v3963
      %v3965 = vpop.f32.mrf.mxu0
      %v3966 = vpop.f32.mrf.mxu0
      %v3967 = vadd.f32 %v3678, %v3966
      %v3968 = vpop.f32.mrf.mxu0
      %3969 = vmatprep.mubr.bf16.mxu0 0
      %3970 = vmatmul.mubr.bf16.gmra.mxu0 %v1809
      %v3971 = vpop.f32.mrf.mxu0
      %v3972 = vadd.f32 %v3683, %v3971
      %v3973 = vpop.f32.mrf.mxu0
      %v3974 = vpop.f32.mrf.mxu0
      %v3975 = vadd.f32 %v3686, %v3974
      %v3976 = vpop.f32.mrf.mxu0
      %3977 = vmatprep.mubr.bf16.mxu0 0
      %3978 = vmatmul.mubr.bf16.gmra.mxu0 %v1818
      %v3979 = vpop.f32.mrf.mxu0
      %v3980 = vadd.f32 %v3691, %v3979
      %v3981 = vpop.f32.mrf.mxu0
      %v3982 = vpop.f32.mrf.mxu0
      %v3983 = vadd.f32 %v3694, %v3982
      %v3984 = vpop.f32.mrf.mxu0
      %3985 = vmatprep.mubr.bf16.mxu0 0
      %3986 = vmatmul.mubr.bf16.gmra.mxu0 %v1827
      %v3987 = vpop.f32.mrf.mxu0
      %v3988 = vadd.f32 %v3699, %v3987
      %v3989 = vpop.f32.mrf.mxu0
      %v3990 = vpop.f32.mrf.mxu0
      %v3991 = vadd.f32 %v3702, %v3990
      %v3992 = vpop.f32.mrf.mxu0
      %3993 = vmatprep.mubr.bf16.mxu0 0
      %3994 = vmatmul.mubr.bf16.gmra.mxu0 %v1836
      %v3995 = vpop.f32.mrf.mxu0
      %v3996 = vadd.f32 %v3707, %v3995
      %v3997 = vpop.f32.mrf.mxu0
      %v3998 = vpop.f32.mrf.mxu0
      %v3999 = vadd.f32 %v3710, %v3998
      %v4000 = vpop.f32.mrf.mxu0
      %4001 = vdwg.mxu0
      %s4002 = smul.u32 %s15, 512
      %s4003 = scalar_lea.vmem [#allocation2], %s4002
      %4004 = vst [vmem:[%s4003] sm:$0xff] %v3748
      %4005 = vst [vmem:[%s4003 + $0x8] sm:$0xff] %v3751
      %4006 = vst [vmem:[%s4003 + $0x10] sm:$0xff] %v3756
      %4007 = vst [vmem:[%s4003 + $0x18] sm:$0xff] %v3759
      %4008 = vst [vmem:[%s4003 + $0x20] sm:$0xff] %v3764
      %4009 = vst [vmem:[%s4003 + $0x28] sm:$0xff] %v3767
      %4010 = vst [vmem:[%s4003 + $0x30] sm:$0xff] %v3772
      %4011 = vst [vmem:[%s4003 + $0x38] sm:$0xff] %v3775
      %4012 = vst [vmem:[%s4003 + $0x40] sm:$0xff] %v3780
      %4013 = vst [vmem:[%s4003 + $0x48] sm:$0xff] %v3783
      %4014 = vst [vmem:[%s4003 + $0x50] sm:$0xff] %v3788
      %4015 = vst [vmem:[%s4003 + $0x58] sm:$0xff] %v3791
      %4016 = vst [vmem:[%s4003 + $0x60] sm:$0xff] %v3796
      %4017 = vst [vmem:[%s4003 + $0x68] sm:$0xff] %v3799
      %4018 = vst [vmem:[%s4003 + $0x70] sm:$0xff] %v3804
      %4019 = vst [vmem:[%s4003 + $0x78] sm:$0xff] %v3807
      %4020 = vst [vmem:[%s4003 + $0x80] sm:$0xff] %v3812
      %4021 = vst [vmem:[%s4003 + $0x88] sm:$0xff] %v3815
      %4022 = vst [vmem:[%s4003 + $0x90] sm:$0xff] %v3820
      %4023 = vst [vmem:[%s4003 + $0x98] sm:$0xff] %v3823
      %4024 = vst [vmem:[%s4003 + $0xa0] sm:$0xff] %v3828
      %4025 = vst [vmem:[%s4003 + $0xa8] sm:$0xff] %v3831
      %4026 = vst [vmem:[%s4003 + $0xb0] sm:$0xff] %v3836
      %4027 = vst [vmem:[%s4003 + $0xb8] sm:$0xff] %v3839
      %4028 = vst [vmem:[%s4003 + $0xc0] sm:$0xff] %v3844
      %4029 = vst [vmem:[%s4003 + $0xc8] sm:$0xff] %v3847
      %4030 = vst [vmem:[%s4003 + $0xd0] sm:$0xff] %v3852
      %4031 = vst [vmem:[%s4003 + $0xd8] sm:$0xff] %v3855
      %4032 = vst [vmem:[%s4003 + $0xe0] sm:$0xff] %v3860
      %4033 = vst [vmem:[%s4003 + $0xe8] sm:$0xff] %v3863
      %4034 = vst [vmem:[%s4003 + $0xf0] sm:$0xff] %v3868
      %4035 = vst [vmem:[%s4003 + $0xf8] sm:$0xff] %v3871
      %4036 = vst [vmem:[%s4003 + $0x100] sm:$0xff] %v3876
      %4037 = vst [vmem:[%s4003 + $0x108] sm:$0xff] %v3879
      %4038 = vst [vmem:[%s4003 + $0x110] sm:$0xff] %v3884
      %4039 = vst [vmem:[%s4003 + $0x118] sm:$0xff] %v3887
      %4040 = vst [vmem:[%s4003 + $0x120] sm:$0xff] %v3892
      %4041 = vst [vmem:[%s4003 + $0x128] sm:$0xff] %v3895
      %4042 = vst [vmem:[%s4003 + $0x130] sm:$0xff] %v3900
      %4043 = vst [vmem:[%s4003 + $0x138] sm:$0xff] %v3903
      %4044 = vst [vmem:[%s4003 + $0x140] sm:$0xff] %v3908
      %4045 = vst [vmem:[%s4003 + $0x148] sm:$0xff] %v3911
      %4046 = vst [vmem:[%s4003 + $0x150] sm:$0xff] %v3916
      %4047 = vst [vmem:[%s4003 + $0x158] sm:$0xff] %v3919
      %4048 = vst [vmem:[%s4003 + $0x160] sm:$0xff] %v3924
      %4049 = vst [vmem:[%s4003 + $0x168] sm:$0xff] %v3927
      %4050 = vst [vmem:[%s4003 + $0x170] sm:$0xff] %v3932
      %4051 = vst [vmem:[%s4003 + $0x178] sm:$0xff] %v3935
      %4052 = vst [vmem:[%s4003 + $0x180] sm:$0xff] %v3940
      %4053 = vst [vmem:[%s4003 + $0x188] sm:$0xff] %v3943
      %4054 = vst [vmem:[%s4003 + $0x190] sm:$0xff] %v3948
      %4055 = vst [vmem:[%s4003 + $0x198] sm:$0xff] %v3951
      %4056 = vst [vmem:[%s4003 + $0x1a0] sm:$0xff] %v3956
      %4057 = vst [vmem:[%s4003 + $0x1a8] sm:$0xff] %v3959
      %4058 = vst [vmem:[%s4003 + $0x1b0] sm:$0xff] %v3964
      %4059 = vst [vmem:[%s4003 + $0x1b8] sm:$0xff] %v3967
      %4060 = vst [vmem:[%s4003 + $0x1c0] sm:$0xff] %v3972
      %4061 = vst [vmem:[%s4003 + $0x1c8] sm:$0xff] %v3975
      %4062 = vst [vmem:[%s4003 + $0x1d0] sm:$0xff] %v3980
      %4063 = vst [vmem:[%s4003 + $0x1d8] sm:$0xff] %v3983
      %4064 = vst [vmem:[%s4003 + $0x1e0] sm:$0xff] %v3988
      %4065 = vst [vmem:[%s4003 + $0x1e8] sm:$0xff] %v3991
      %4066 = vst [vmem:[%s4003 + $0x1f0] sm:$0xff] %v3996
      %4067 = vst [vmem:[%s4003 + $0x1f8] sm:$0xff] %v3999
      %p4068 = scmp.eq.s32.totalorder %s15, 0
      // Predicated region
      $region37: #{resnet_small_forward.9} parent=35 // pred_check
        %p4069 = pneg %p4068
      $region38: #{resnet_small_forward.9} parent=35 // pred_check_branch
        %4071 = sbr.rel (%p4069) target = $region40
      $region39: #{resnet_small_forward.9} parent=35 // pred_region
        %4072 = vst [vmem:[#allocation3] sm:$0x1] 0.0
        %4073 = vst [vmem:[#allocation4] sm:$0x1] 0.0
      $region40: #{resnet_small_forward.9} parent=35 // pred_fallthru
        _
      %v4074 = vld [vmem:[#allocation3] sm:$0x1]
      %v4075 = vadd.f32 %v3748, %v3751
      %v4076 = vadd.f32 %v4075, %v3756
      %v4077 = vadd.f32 %v4076, %v3759
      %v4078 = vadd.f32 %v4077, %v3764
      %v4079 = vadd.f32 %v4078, %v3767
      %v4080 = vadd.f32 %v4079, %v3772
      %v4081 = vadd.f32 %v4080, %v3775
      %v4082 = vadd.f32 %v4081, %v3780
      %v4083 = vadd.f32 %v4082, %v3783
      %v4084 = vadd.f32 %v4083, %v3788
      %v4085 = vadd.f32 %v4084, %v3791
      %v4086 = vadd.f32 %v4085, %v3796
      %v4087 = vadd.f32 %v4086, %v3799
      %v4088 = vadd.f32 %v4087, %v3804
      %v4089 = vadd.f32 %v4088, %v3807
      %v4090 = vadd.f32 %v4089, %v3812
      %v4091 = vadd.f32 %v4090, %v3815
      %v4092 = vadd.f32 %v4091, %v3820
      %v4093 = vadd.f32 %v4092, %v3823
      %v4094 = vadd.f32 %v4093, %v3828
      %v4095 = vadd.f32 %v4094, %v3831
      %v4096 = vadd.f32 %v4095, %v3836
      %v4097 = vadd.f32 %v4096, %v3839
      %v4098 = vadd.f32 %v4097, %v3844
      %v4099 = vadd.f32 %v4098, %v3847
      %v4100 = vadd.f32 %v4099, %v3852
      %v4101 = vadd.f32 %v4100, %v3855
      %v4102 = vadd.f32 %v4101, %v3860
      %v4103 = vadd.f32 %v4102, %v3863
      %v4104 = vadd.f32 %v4103, %v3868
      %v4105 = vadd.f32 %v4104, %v3871
      %v4106 = vadd.f32 %v4105, %v3876
      %v4107 = vadd.f32 %v4106, %v3879
      %v4108 = vadd.f32 %v4107, %v3884
      %v4109 = vadd.f32 %v4108, %v3887
      %v4110 = vadd.f32 %v4109, %v3892
      %v4111 = vadd.f32 %v4110, %v3895
      %v4112 = vadd.f32 %v4111, %v3900
      %v4113 = vadd.f32 %v4112, %v3903
      %v4114 = vadd.f32 %v4113, %v3908
      %v4115 = vadd.f32 %v4114, %v3911
      %v4116 = vadd.f32 %v4115, %v3916
      %v4117 = vadd.f32 %v4116, %v3919
      %v4118 = vadd.f32 %v4117, %v3924
      %v4119 = vadd.f32 %v4118, %v3927
      %v4120 = vadd.f32 %v4119, %v3932
      %v4121 = vadd.f32 %v4120, %v3935
      %v4122 = vadd.f32 %v4121, %v3940
      %v4123 = vadd.f32 %v4122, %v3943
      %v4124 = vadd.f32 %v4123, %v3948
      %v4125 = vadd.f32 %v4124, %v3951
      %v4126 = vadd.f32 %v4125, %v3956
      %v4127 = vadd.f32 %v4126, %v3959
      %v4128 = vadd.f32 %v4127, %v3964
      %v4129 = vadd.f32 %v4128, %v3967
      %v4130 = vadd.f32 %v4129, %v3972
      %v4131 = vadd.f32 %v4130, %v3975
      %v4132 = vadd.f32 %v4131, %v3980
      %v4133 = vadd.f32 %v4132, %v3983
      %v4134 = vadd.f32 %v4133, %v3988
      %v4135 = vadd.f32 %v4134, %v3991
      %v4136 = vadd.f32 %v4135, %v3996
      %v4137 = vadd.f32 %v4136, %v3999
      %v4138 = vrot.slane %v4137, 4
      %v4139 = vadd.f32 %v4137, %v4138
      %v4140 = vrot.slane %v4139, 2
      %v4141 = vadd.f32 %v4139, %v4140
      %v4142 = vrot.slane %v4141, 1
      %v4143 = vadd.f32 %v4141, %v4142
      %v4144 = vadd.f32 %v4074, %v4143
      %4145 = vst [vmem:[#allocation3] sm:$0x1] %v4144
      %v4146 = vld [vmem:[#allocation4] sm:$0x1]
      %v4147 = vmul.f32 %v3748, %v3748
      %v4148 = vmul.f32 %v3751, %v3751
      %v4149 = vmul.f32 %v3756, %v3756
      %v4150 = vmul.f32 %v3759, %v3759
      %v4151 = vmul.f32 %v3764, %v3764
      %v4152 = vmul.f32 %v3767, %v3767
      %v4153 = vmul.f32 %v3772, %v3772
      %v4154 = vmul.f32 %v3775, %v3775
      %v4155 = vmul.f32 %v3780, %v3780
      %v4156 = vmul.f32 %v3783, %v3783
      %v4157 = vmul.f32 %v3788, %v3788
      %v4158 = vmul.f32 %v3791, %v3791
      %v4159 = vmul.f32 %v3796, %v3796
      %v4160 = vmul.f32 %v3799, %v3799
      %v4161 = vmul.f32 %v3804, %v3804
      %v4162 = vmul.f32 %v3807, %v3807
      %v4163 = vmul.f32 %v3812, %v3812
      %v4164 = vmul.f32 %v3815, %v3815
      %v4165 = vmul.f32 %v3820, %v3820
      %v4166 = vmul.f32 %v3823, %v3823
      %v4167 = vmul.f32 %v3828, %v3828
      %v4168 = vmul.f32 %v3831, %v3831
      %v4169 = vmul.f32 %v3836, %v3836
      %v4170 = vmul.f32 %v3839, %v3839
      %v4171 = vmul.f32 %v3844, %v3844
      %v4172 = vmul.f32 %v3847, %v3847
      %v4173 = vmul.f32 %v3852, %v3852
      %v4174 = vmul.f32 %v3855, %v3855
      %v4175 = vmul.f32 %v3860, %v3860
      %v4176 = vmul.f32 %v3863, %v3863
      %v4177 = vmul.f32 %v3868, %v3868
      %v4178 = vmul.f32 %v3871, %v3871
      %v4179 = vmul.f32 %v3876, %v3876
      %v4180 = vmul.f32 %v3879, %v3879
      %v4181 = vmul.f32 %v3884, %v3884
      %v4182 = vmul.f32 %v3887, %v3887
      %v4183 = vmul.f32 %v3892, %v3892
      %v4184 = vmul.f32 %v3895, %v3895
      %v4185 = vmul.f32 %v3900, %v3900
      %v4186 = vmul.f32 %v3903, %v3903
      %v4187 = vmul.f32 %v3908, %v3908
      %v4188 = vmul.f32 %v3911, %v3911
      %v4189 = vmul.f32 %v3916, %v3916
      %v4190 = vmul.f32 %v3919, %v3919
      %v4191 = vmul.f32 %v3924, %v3924
      %v4192 = vmul.f32 %v3927, %v3927
      %v4193 = vmul.f32 %v3932, %v3932
      %v4194 = vmul.f32 %v3935, %v3935
      %v4195 = vmul.f32 %v3940, %v3940
      %v4196 = vmul.f32 %v3943, %v3943
      %v4197 = vmul.f32 %v3948, %v3948
      %v4198 = vmul.f32 %v3951, %v3951
      %v4199 = vmul.f32 %v3956, %v3956
      %v4200 = vmul.f32 %v3959, %v3959
      %v4201 = vmul.f32 %v3964, %v3964
      %v4202 = vmul.f32 %v3967, %v3967
      %v4203 = vmul.f32 %v3972, %v3972
      %v4204 = vmul.f32 %v3975, %v3975
      %v4205 = vmul.f32 %v3980, %v3980
      %v4206 = vmul.f32 %v3983, %v3983
      %v4207 = vmul.f32 %v3988, %v3988
      %v4208 = vmul.f32 %v3991, %v3991
      %v4209 = vmul.f32 %v3996, %v3996
      %v4210 = vmul.f32 %v3999, %v3999
      %v4211 = vadd.f32 %v4147, %v4148
      %v4212 = vadd.f32 %v4211, %v4149
      %v4213 = vadd.f32 %v4212, %v4150
      %v4214 = vadd.f32 %v4213, %v4151
      %v4215 = vadd.f32 %v4214, %v4152
      %v4216 = vadd.f32 %v4215, %v4153
      %v4217 = vadd.f32 %v4216, %v4154
      %v4218 = vadd.f32 %v4217, %v4155
      %v4219 = vadd.f32 %v4218, %v4156
      %v4220 = vadd.f32 %v4219, %v4157
      %v4221 = vadd.f32 %v4220, %v4158
      %v4222 = vadd.f32 %v4221, %v4159
      %v4223 = vadd.f32 %v4222, %v4160
      %v4224 = vadd.f32 %v4223, %v4161
      %v4225 = vadd.f32 %v4224, %v4162
      %v4226 = vadd.f32 %v4225, %v4163
      %v4227 = vadd.f32 %v4226, %v4164
      %v4228 = vadd.f32 %v4227, %v4165
      %v4229 = vadd.f32 %v4228, %v4166
      %v4230 = vadd.f32 %v4229, %v4167
      %v4231 = vadd.f32 %v4230, %v4168
      %v4232 = vadd.f32 %v4231, %v4169
      %v4233 = vadd.f32 %v4232, %v4170
      %v4234 = vadd.f32 %v4233, %v4171
      %v4235 = vadd.f32 %v4234, %v4172
      %v4236 = vadd.f32 %v4235, %v4173
      %v4237 = vadd.f32 %v4236, %v4174
      %v4238 = vadd.f32 %v4237, %v4175
      %v4239 = vadd.f32 %v4238, %v4176
      %v4240 = vadd.f32 %v4239, %v4177
      %v4241 = vadd.f32 %v4240, %v4178
      %v4242 = vadd.f32 %v4241, %v4179
      %v4243 = vadd.f32 %v4242, %v4180
      %v4244 = vadd.f32 %v4243, %v4181
      %v4245 = vadd.f32 %v4244, %v4182
      %v4246 = vadd.f32 %v4245, %v4183
      %v4247 = vadd.f32 %v4246, %v4184
      %v4248 = vadd.f32 %v4247, %v4185
      %v4249 = vadd.f32 %v4248, %v4186
      %v4250 = vadd.f32 %v4249, %v4187
      %v4251 = vadd.f32 %v4250, %v4188
      %v4252 = vadd.f32 %v4251, %v4189
      %v4253 = vadd.f32 %v4252, %v4190
      %v4254 = vadd.f32 %v4253, %v4191
      %v4255 = vadd.f32 %v4254, %v4192
      %v4256 = vadd.f32 %v4255, %v4193
      %v4257 = vadd.f32 %v4256, %v4194
      %v4258 = vadd.f32 %v4257, %v4195
      %v4259 = vadd.f32 %v4258, %v4196
      %v4260 = vadd.f32 %v4259, %v4197
      %v4261 = vadd.f32 %v4260, %v4198
      %v4262 = vadd.f32 %v4261, %v4199
      %v4263 = vadd.f32 %v4262, %v4200
      %v4264 = vadd.f32 %v4263, %v4201
      %v4265 = vadd.f32 %v4264, %v4202
      %v4266 = vadd.f32 %v4265, %v4203
      %v4267 = vadd.f32 %v4266, %v4204
      %v4268 = vadd.f32 %v4267, %v4205
      %v4269 = vadd.f32 %v4268, %v4206
      %v4270 = vadd.f32 %v4269, %v4207
      %v4271 = vadd.f32 %v4270, %v4208
      %v4272 = vadd.f32 %v4271, %v4209
      %v4273 = vadd.f32 %v4272, %v4210
      %v4274 = vrot.slane %v4273, 4
      %v4275 = vadd.f32 %v4273, %v4274
      %v4276 = vrot.slane %v4275, 2
      %v4277 = vadd.f32 %v4275, %v4276
      %v4278 = vrot.slane %v4277, 1
      %v4279 = vadd.f32 %v4277, %v4278
      %v4280 = vadd.f32 %v4146, %v4279
      %4281 = vst [vmem:[#allocation4] sm:$0x1] %v4280
      %p4282 = scmp.eq.s32.totalorder %s15, 1
      // Predicated region
      $region41: #{resnet_small_forward.9} parent=35 // pred_check
        %p4283 = pneg %p4282
      $region42: #{resnet_small_forward.9} parent=35 // pred_check_branch
        %4285 = sbr.rel (%p4283) target = $region44
      $region43: #{resnet_small_forward.9} parent=35 // pred_region
        %v4286 = vld [vmem:[#allocation3] sm:$0x1]
        %v4287 = vmul.f32 %v4286, 0.0009765625
        %v4288 = vld [vmem:[#allocation4] sm:$0x1]
        %v4289 = vmul.f32 %v4288, 0.0009765625
        %v4290 = vmul.f32 %v4287, %v4287
        %v4291 = vsub.f32 %v4289, %v4290
        %v4292 = vmax.f32 %v4291, 0.0
        %v4293 = vld [vmem:[%s2] sm:$0x1]
        %v4294 = vadd.f32 %v4292, 1e-05
        %v4295 = vrsqrt.pop %v4294
        %v4296 = vmul.f32 %v4293, %v4295
        %v4297 = vld [vmem:[%s3] sm:$0x1]
        %v4298 = vmul.f32 %v4287, %v4296
        %v4299 = vsub.f32 %v4297, %v4298
        %v4300 = vld [vmem:[#allocation2] sm:$0xff]
        %v4301 = vld [vmem:[#allocation2 + $0x8] sm:$0xff]
        %v4302 = vld [vmem:[#allocation2 + $0x10] sm:$0xff]
        %v4303 = vld [vmem:[#allocation2 + $0x18] sm:$0xff]
        %v4304 = vld [vmem:[#allocation2 + $0x20] sm:$0xff]
        %v4305 = vld [vmem:[#allocation2 + $0x28] sm:$0xff]
        %v4306 = vld [vmem:[#allocation2 + $0x30] sm:$0xff]
        %v4307 = vld [vmem:[#allocation2 + $0x38] sm:$0xff]
        %v4308 = vld [vmem:[#allocation2 + $0x40] sm:$0xff]
        %v4309 = vld [vmem:[#allocation2 + $0x48] sm:$0xff]
        %v4310 = vld [vmem:[#allocation2 + $0x50] sm:$0xff]
        %v4311 = vld [vmem:[#allocation2 + $0x58] sm:$0xff]
        %v4312 = vld [vmem:[#allocation2 + $0x60] sm:$0xff]
        %v4313 = vld [vmem:[#allocation2 + $0x68] sm:$0xff]
        %v4314 = vld [vmem:[#allocation2 + $0x70] sm:$0xff]
        %v4315 = vld [vmem:[#allocation2 + $0x78] sm:$0xff]
        %v4316 = vld [vmem:[#allocation2 + $0x80] sm:$0xff]
        %v4317 = vld [vmem:[#allocation2 + $0x88] sm:$0xff]
        %v4318 = vld [vmem:[#allocation2 + $0x90] sm:$0xff]
        %v4319 = vld [vmem:[#allocation2 + $0x98] sm:$0xff]
        %v4320 = vld [vmem:[#allocation2 + $0xa0] sm:$0xff]
        %v4321 = vld [vmem:[#allocation2 + $0xa8] sm:$0xff]
        %v4322 = vld [vmem:[#allocation2 + $0xb0] sm:$0xff]
        %v4323 = vld [vmem:[#allocation2 + $0xb8] sm:$0xff]
        %v4324 = vld [vmem:[#allocation2 + $0xc0] sm:$0xff]
        %v4325 = vld [vmem:[#allocation2 + $0xc8] sm:$0xff]
        %v4326 = vld [vmem:[#allocation2 + $0xd0] sm:$0xff]
        %v4327 = vld [vmem:[#allocation2 + $0xd8] sm:$0xff]
        %v4328 = vld [vmem:[#allocation2 + $0xe0] sm:$0xff]
        %v4329 = vld [vmem:[#allocation2 + $0xe8] sm:$0xff]
        %v4330 = vld [vmem:[#allocation2 + $0xf0] sm:$0xff]
        %v4331 = vld [vmem:[#allocation2 + $0xf8] sm:$0xff]
        %v4332 = vld [vmem:[#allocation2 + $0x100] sm:$0xff]
        %v4333 = vld [vmem:[#allocation2 + $0x108] sm:$0xff]
        %v4334 = vld [vmem:[#allocation2 + $0x110] sm:$0xff]
        %v4335 = vld [vmem:[#allocation2 + $0x118] sm:$0xff]
        %v4336 = vld [vmem:[#allocation2 + $0x120] sm:$0xff]
        %v4337 = vld [vmem:[#allocation2 + $0x128] sm:$0xff]
        %v4338 = vld [vmem:[#allocation2 + $0x130] sm:$0xff]
        %v4339 = vld [vmem:[#allocation2 + $0x138] sm:$0xff]
        %v4340 = vld [vmem:[#allocation2 + $0x140] sm:$0xff]
        %v4341 = vld [vmem:[#allocation2 + $0x148] sm:$0xff]
        %v4342 = vld [vmem:[#allocation2 + $0x150] sm:$0xff]
        %v4343 = vld [vmem:[#allocation2 + $0x158] sm:$0xff]
        %v4344 = vld [vmem:[#allocation2 + $0x160] sm:$0xff]
        %v4345 = vld [vmem:[#allocation2 + $0x168] sm:$0xff]
        %v4346 = vld [vmem:[#allocation2 + $0x170] sm:$0xff]
        %v4347 = vld [vmem:[#allocation2 + $0x178] sm:$0xff]
        %v4348 = vld [vmem:[#allocation2 + $0x180] sm:$0xff]
        %v4349 = vld [vmem:[#allocation2 + $0x188] sm:$0xff]
        %v4350 = vld [vmem:[#allocation2 + $0x190] sm:$0xff]
        %v4351 = vld [vmem:[#allocation2 + $0x198] sm:$0xff]
        %v4352 = vld [vmem:[#allocation2 + $0x1a0] sm:$0xff]
        %v4353 = vld [vmem:[#allocation2 + $0x1a8] sm:$0xff]
        %v4354 = vld [vmem:[#allocation2 + $0x1b0] sm:$0xff]
        %v4355 = vld [vmem:[#allocation2 + $0x1b8] sm:$0xff]
        %v4356 = vld [vmem:[#allocation2 + $0x1c0] sm:$0xff]
        %v4357 = vld [vmem:[#allocation2 + $0x1c8] sm:$0xff]
        %v4358 = vld [vmem:[#allocation2 + $0x1d0] sm:$0xff]
        %v4359 = vld [vmem:[#allocation2 + $0x1d8] sm:$0xff]
        %v4360 = vld [vmem:[#allocation2 + $0x1e0] sm:$0xff]
        %v4361 = vld [vmem:[#allocation2 + $0x1e8] sm:$0xff]
        %v4362 = vld [vmem:[#allocation2 + $0x1f0] sm:$0xff]
        %v4363 = vld [vmem:[#allocation2 + $0x1f8] sm:$0xff]
        %v4364 = vld [vmem:[#allocation2 + $0x200] sm:$0xff]
        %v4365 = vld [vmem:[#allocation2 + $0x208] sm:$0xff]
        %v4366 = vld [vmem:[#allocation2 + $0x210] sm:$0xff]
        %v4367 = vld [vmem:[#allocation2 + $0x218] sm:$0xff]
        %v4368 = vld [vmem:[#allocation2 + $0x220] sm:$0xff]
        %v4369 = vld [vmem:[#allocation2 + $0x228] sm:$0xff]
        %v4370 = vld [vmem:[#allocation2 + $0x230] sm:$0xff]
        %v4371 = vld [vmem:[#allocation2 + $0x238] sm:$0xff]
        %v4372 = vld [vmem:[#allocation2 + $0x240] sm:$0xff]
        %v4373 = vld [vmem:[#allocation2 + $0x248] sm:$0xff]
        %v4374 = vld [vmem:[#allocation2 + $0x250] sm:$0xff]
        %v4375 = vld [vmem:[#allocation2 + $0x258] sm:$0xff]
        %v4376 = vld [vmem:[#allocation2 + $0x260] sm:$0xff]
        %v4377 = vld [vmem:[#allocation2 + $0x268] sm:$0xff]
        %v4378 = vld [vmem:[#allocation2 + $0x270] sm:$0xff]
        %v4379 = vld [vmem:[#allocation2 + $0x278] sm:$0xff]
        %v4380 = vld [vmem:[#allocation2 + $0x280] sm:$0xff]
        %v4381 = vld [vmem:[#allocation2 + $0x288] sm:$0xff]
        %v4382 = vld [vmem:[#allocation2 + $0x290] sm:$0xff]
        %v4383 = vld [vmem:[#allocation2 + $0x298] sm:$0xff]
        %v4384 = vld [vmem:[#allocation2 + $0x2a0] sm:$0xff]
        %v4385 = vld [vmem:[#allocation2 + $0x2a8] sm:$0xff]
        %v4386 = vld [vmem:[#allocation2 + $0x2b0] sm:$0xff]
        %v4387 = vld [vmem:[#allocation2 + $0x2b8] sm:$0xff]
        %v4388 = vld [vmem:[#allocation2 + $0x2c0] sm:$0xff]
        %v4389 = vld [vmem:[#allocation2 + $0x2c8] sm:$0xff]
        %v4390 = vld [vmem:[#allocation2 + $0x2d0] sm:$0xff]
        %v4391 = vld [vmem:[#allocation2 + $0x2d8] sm:$0xff]
        %v4392 = vld [vmem:[#allocation2 + $0x2e0] sm:$0xff]
        %v4393 = vld [vmem:[#allocation2 + $0x2e8] sm:$0xff]
        %v4394 = vld [vmem:[#allocation2 + $0x2f0] sm:$0xff]
        %v4395 = vld [vmem:[#allocation2 + $0x2f8] sm:$0xff]
        %v4396 = vld [vmem:[#allocation2 + $0x300] sm:$0xff]
        %v4397 = vld [vmem:[#allocation2 + $0x308] sm:$0xff]
        %v4398 = vld [vmem:[#allocation2 + $0x310] sm:$0xff]
        %v4399 = vld [vmem:[#allocation2 + $0x318] sm:$0xff]
        %v4400 = vld [vmem:[#allocation2 + $0x320] sm:$0xff]
        %v4401 = vld [vmem:[#allocation2 + $0x328] sm:$0xff]
        %v4402 = vld [vmem:[#allocation2 + $0x330] sm:$0xff]
        %v4403 = vld [vmem:[#allocation2 + $0x338] sm:$0xff]
        %v4404 = vld [vmem:[#allocation2 + $0x340] sm:$0xff]
        %v4405 = vld [vmem:[#allocation2 + $0x348] sm:$0xff]
        %v4406 = vld [vmem:[#allocation2 + $0x350] sm:$0xff]
        %v4407 = vld [vmem:[#allocation2 + $0x358] sm:$0xff]
        %v4408 = vld [vmem:[#allocation2 + $0x360] sm:$0xff]
        %v4409 = vld [vmem:[#allocation2 + $0x368] sm:$0xff]
        %v4410 = vld [vmem:[#allocation2 + $0x370] sm:$0xff]
        %v4411 = vld [vmem:[#allocation2 + $0x378] sm:$0xff]
        %v4412 = vld [vmem:[#allocation2 + $0x380] sm:$0xff]
        %v4413 = vld [vmem:[#allocation2 + $0x388] sm:$0xff]
        %v4414 = vld [vmem:[#allocation2 + $0x390] sm:$0xff]
        %v4415 = vld [vmem:[#allocation2 + $0x398] sm:$0xff]
        %v4416 = vld [vmem:[#allocation2 + $0x3a0] sm:$0xff]
        %v4417 = vld [vmem:[#allocation2 + $0x3a8] sm:$0xff]
        %v4418 = vld [vmem:[#allocation2 + $0x3b0] sm:$0xff]
        %v4419 = vld [vmem:[#allocation2 + $0x3b8] sm:$0xff]
        %v4420 = vld [vmem:[#allocation2 + $0x3c0] sm:$0xff]
        %v4421 = vld [vmem:[#allocation2 + $0x3c8] sm:$0xff]
        %v4422 = vld [vmem:[#allocation2 + $0x3d0] sm:$0xff]
        %v4423 = vld [vmem:[#allocation2 + $0x3d8] sm:$0xff]
        %v4424 = vld [vmem:[#allocation2 + $0x3e0] sm:$0xff]
        %v4425 = vld [vmem:[#allocation2 + $0x3e8] sm:$0xff]
        %v4426 = vld [vmem:[#allocation2 + $0x3f0] sm:$0xff]
        %v4427 = vld [vmem:[#allocation2 + $0x3f8] sm:$0xff]
        %v4429 = vlaneseq
        %v4430 = vshrl.u32 %v4429, 7
        %v4431 = vsub.s32 0, %v4430
        %v4432 = vrot.slane %v4296, %v4431
        %v4434 = vmul.f32 %v4300, %v4432
        %v4435 = vmul.f32 %v4301, %v4432
        %v4436 = vmul.f32 %v4302, %v4432
        %v4437 = vmul.f32 %v4303, %v4432
        %v4438 = vmul.f32 %v4304, %v4432
        %v4439 = vmul.f32 %v4305, %v4432
        %v4440 = vmul.f32 %v4306, %v4432
        %v4441 = vmul.f32 %v4307, %v4432
        %v4442 = vmul.f32 %v4308, %v4432
        %v4443 = vmul.f32 %v4309, %v4432
        %v4444 = vmul.f32 %v4310, %v4432
        %v4445 = vmul.f32 %v4311, %v4432
        %v4446 = vmul.f32 %v4312, %v4432
        %v4447 = vmul.f32 %v4313, %v4432
        %v4448 = vmul.f32 %v4314, %v4432
        %v4449 = vmul.f32 %v4315, %v4432
        %v4450 = vmul.f32 %v4316, %v4432
        %v4451 = vmul.f32 %v4317, %v4432
        %v4452 = vmul.f32 %v4318, %v4432
        %v4453 = vmul.f32 %v4319, %v4432
        %v4454 = vmul.f32 %v4320, %v4432
        %v4455 = vmul.f32 %v4321, %v4432
        %v4456 = vmul.f32 %v4322, %v4432
        %v4457 = vmul.f32 %v4323, %v4432
        %v4458 = vmul.f32 %v4324, %v4432
        %v4459 = vmul.f32 %v4325, %v4432
        %v4460 = vmul.f32 %v4326, %v4432
        %v4461 = vmul.f32 %v4327, %v4432
        %v4462 = vmul.f32 %v4328, %v4432
        %v4463 = vmul.f32 %v4329, %v4432
        %v4464 = vmul.f32 %v4330, %v4432
        %v4465 = vmul.f32 %v4331, %v4432
        %v4466 = vmul.f32 %v4332, %v4432
        %v4467 = vmul.f32 %v4333, %v4432
        %v4468 = vmul.f32 %v4334, %v4432
        %v4469 = vmul.f32 %v4335, %v4432
        %v4470 = vmul.f32 %v4336, %v4432
        %v4471 = vmul.f32 %v4337, %v4432
        %v4472 = vmul.f32 %v4338, %v4432
        %v4473 = vmul.f32 %v4339, %v4432
        %v4474 = vmul.f32 %v4340, %v4432
        %v4475 = vmul.f32 %v4341, %v4432
        %v4476 = vmul.f32 %v4342, %v4432
        %v4477 = vmul.f32 %v4343, %v4432
        %v4478 = vmul.f32 %v4344, %v4432
        %v4479 = vmul.f32 %v4345, %v4432
        %v4480 = vmul.f32 %v4346, %v4432
        %v4481 = vmul.f32 %v4347, %v4432
        %v4482 = vmul.f32 %v4348, %v4432
        %v4483 = vmul.f32 %v4349, %v4432
        %v4484 = vmul.f32 %v4350, %v4432
        %v4485 = vmul.f32 %v4351, %v4432
        %v4486 = vmul.f32 %v4352, %v4432
        %v4487 = vmul.f32 %v4353, %v4432
        %v4488 = vmul.f32 %v4354, %v4432
        %v4489 = vmul.f32 %v4355, %v4432
        %v4490 = vmul.f32 %v4356, %v4432
        %v4491 = vmul.f32 %v4357, %v4432
        %v4492 = vmul.f32 %v4358, %v4432
        %v4493 = vmul.f32 %v4359, %v4432
        %v4494 = vmul.f32 %v4360, %v4432
        %v4495 = vmul.f32 %v4361, %v4432
        %v4496 = vmul.f32 %v4362, %v4432
        %v4497 = vmul.f32 %v4363, %v4432
        %v4498 = vmul.f32 %v4364, %v4432
        %v4499 = vmul.f32 %v4365, %v4432
        %v4500 = vmul.f32 %v4366, %v4432
        %v4501 = vmul.f32 %v4367, %v4432
        %v4502 = vmul.f32 %v4368, %v4432
        %v4503 = vmul.f32 %v4369, %v4432
        %v4504 = vmul.f32 %v4370, %v4432
        %v4505 = vmul.f32 %v4371, %v4432
        %v4506 = vmul.f32 %v4372, %v4432
        %v4507 = vmul.f32 %v4373, %v4432
        %v4508 = vmul.f32 %v4374, %v4432
        %v4509 = vmul.f32 %v4375, %v4432
        %v4510 = vmul.f32 %v4376, %v4432
        %v4511 = vmul.f32 %v4377, %v4432
        %v4512 = vmul.f32 %v4378, %v4432
        %v4513 = vmul.f32 %v4379, %v4432
        %v4514 = vmul.f32 %v4380, %v4432
        %v4515 = vmul.f32 %v4381, %v4432
        %v4516 = vmul.f32 %v4382, %v4432
        %v4517 = vmul.f32 %v4383, %v4432
        %v4518 = vmul.f32 %v4384, %v4432
        %v4519 = vmul.f32 %v4385, %v4432
        %v4520 = vmul.f32 %v4386, %v4432
        %v4521 = vmul.f32 %v4387, %v4432
        %v4522 = vmul.f32 %v4388, %v4432
        %v4523 = vmul.f32 %v4389, %v4432
        %v4524 = vmul.f32 %v4390, %v4432
        %v4525 = vmul.f32 %v4391, %v4432
        %v4526 = vmul.f32 %v4392, %v4432
        %v4527 = vmul.f32 %v4393, %v4432
        %v4528 = vmul.f32 %v4394, %v4432
        %v4529 = vmul.f32 %v4395, %v4432
        %v4530 = vmul.f32 %v4396, %v4432
        %v4531 = vmul.f32 %v4397, %v4432
        %v4532 = vmul.f32 %v4398, %v4432
        %v4533 = vmul.f32 %v4399, %v4432
        %v4534 = vmul.f32 %v4400, %v4432
        %v4535 = vmul.f32 %v4401, %v4432
        %v4536 = vmul.f32 %v4402, %v4432
        %v4537 = vmul.f32 %v4403, %v4432
        %v4538 = vmul.f32 %v4404, %v4432
        %v4539 = vmul.f32 %v4405, %v4432
        %v4540 = vmul.f32 %v4406, %v4432
        %v4541 = vmul.f32 %v4407, %v4432
        %v4542 = vmul.f32 %v4408, %v4432
        %v4543 = vmul.f32 %v4409, %v4432
        %v4544 = vmul.f32 %v4410, %v4432
        %v4545 = vmul.f32 %v4411, %v4432
        %v4546 = vmul.f32 %v4412, %v4432
        %v4547 = vmul.f32 %v4413, %v4432
        %v4548 = vmul.f32 %v4414, %v4432
        %v4549 = vmul.f32 %v4415, %v4432
        %v4550 = vmul.f32 %v4416, %v4432
        %v4551 = vmul.f32 %v4417, %v4432
        %v4552 = vmul.f32 %v4418, %v4432
        %v4553 = vmul.f32 %v4419, %v4432
        %v4554 = vmul.f32 %v4420, %v4432
        %v4555 = vmul.f32 %v4421, %v4432
        %v4556 = vmul.f32 %v4422, %v4432
        %v4557 = vmul.f32 %v4423, %v4432
        %v4558 = vmul.f32 %v4424, %v4432
        %v4559 = vmul.f32 %v4425, %v4432
        %v4560 = vmul.f32 %v4426, %v4432
        %v4561 = vmul.f32 %v4427, %v4432
        %v4563 = vlaneseq
        %v4564 = vshrl.u32 %v4563, 7
        %v4565 = vsub.s32 0, %v4564
        %v4566 = vrot.slane %v4299, %v4565
        %v4568 = vadd.f32 %v4434, %v4566
        %v4569 = vadd.f32 %v4435, %v4566
        %v4570 = vadd.f32 %v4436, %v4566
        %v4571 = vadd.f32 %v4437, %v4566
        %v4572 = vadd.f32 %v4438, %v4566
        %v4573 = vadd.f32 %v4439, %v4566
        %v4574 = vadd.f32 %v4440, %v4566
        %v4575 = vadd.f32 %v4441, %v4566
        %v4576 = vadd.f32 %v4442, %v4566
        %v4577 = vadd.f32 %v4443, %v4566
        %v4578 = vadd.f32 %v4444, %v4566
        %v4579 = vadd.f32 %v4445, %v4566
        %v4580 = vadd.f32 %v4446, %v4566
        %v4581 = vadd.f32 %v4447, %v4566
        %v4582 = vadd.f32 %v4448, %v4566
        %v4583 = vadd.f32 %v4449, %v4566
        %v4584 = vadd.f32 %v4450, %v4566
        %v4585 = vadd.f32 %v4451, %v4566
        %v4586 = vadd.f32 %v4452, %v4566
        %v4587 = vadd.f32 %v4453, %v4566
        %v4588 = vadd.f32 %v4454, %v4566
        %v4589 = vadd.f32 %v4455, %v4566
        %v4590 = vadd.f32 %v4456, %v4566
        %v4591 = vadd.f32 %v4457, %v4566
        %v4592 = vadd.f32 %v4458, %v4566
        %v4593 = vadd.f32 %v4459, %v4566
        %v4594 = vadd.f32 %v4460, %v4566
        %v4595 = vadd.f32 %v4461, %v4566
        %v4596 = vadd.f32 %v4462, %v4566
        %v4597 = vadd.f32 %v4463, %v4566
        %v4598 = vadd.f32 %v4464, %v4566
        %v4599 = vadd.f32 %v4465, %v4566
        %v4600 = vadd.f32 %v4466, %v4566
        %v4601 = vadd.f32 %v4467, %v4566
        %v4602 = vadd.f32 %v4468, %v4566
        %v4603 = vadd.f32 %v4469, %v4566
        %v4604 = vadd.f32 %v4470, %v4566
        %v4605 = vadd.f32 %v4471, %v4566
        %v4606 = vadd.f32 %v4472, %v4566
        %v4607 = vadd.f32 %v4473, %v4566
        %v4608 = vadd.f32 %v4474, %v4566
        %v4609 = vadd.f32 %v4475, %v4566
        %v4610 = vadd.f32 %v4476, %v4566
        %v4611 = vadd.f32 %v4477, %v4566
        %v4612 = vadd.f32 %v4478, %v4566
        %v4613 = vadd.f32 %v4479, %v4566
        %v4614 = vadd.f32 %v4480, %v4566
        %v4615 = vadd.f32 %v4481, %v4566
        %v4616 = vadd.f32 %v4482, %v4566
        %v4617 = vadd.f32 %v4483, %v4566
        %v4618 = vadd.f32 %v4484, %v4566
        %v4619 = vadd.f32 %v4485, %v4566
        %v4620 = vadd.f32 %v4486, %v4566
        %v4621 = vadd.f32 %v4487, %v4566
        %v4622 = vadd.f32 %v4488, %v4566
        %v4623 = vadd.f32 %v4489, %v4566
        %v4624 = vadd.f32 %v4490, %v4566
        %v4625 = vadd.f32 %v4491, %v4566
        %v4626 = vadd.f32 %v4492, %v4566
        %v4627 = vadd.f32 %v4493, %v4566
        %v4628 = vadd.f32 %v4494, %v4566
        %v4629 = vadd.f32 %v4495, %v4566
        %v4630 = vadd.f32 %v4496, %v4566
        %v4631 = vadd.f32 %v4497, %v4566
        %v4632 = vadd.f32 %v4498, %v4566
        %v4633 = vadd.f32 %v4499, %v4566
        %v4634 = vadd.f32 %v4500, %v4566
        %v4635 = vadd.f32 %v4501, %v4566
        %v4636 = vadd.f32 %v4502, %v4566
        %v4637 = vadd.f32 %v4503, %v4566
        %v4638 = vadd.f32 %v4504, %v4566
        %v4639 = vadd.f32 %v4505, %v4566
        %v4640 = vadd.f32 %v4506, %v4566
        %v4641 = vadd.f32 %v4507, %v4566
        %v4642 = vadd.f32 %v4508, %v4566
        %v4643 = vadd.f32 %v4509, %v4566
        %v4644 = vadd.f32 %v4510, %v4566
        %v4645 = vadd.f32 %v4511, %v4566
        %v4646 = vadd.f32 %v4512, %v4566
        %v4647 = vadd.f32 %v4513, %v4566
        %v4648 = vadd.f32 %v4514, %v4566
        %v4649 = vadd.f32 %v4515, %v4566
        %v4650 = vadd.f32 %v4516, %v4566
        %v4651 = vadd.f32 %v4517, %v4566
        %v4652 = vadd.f32 %v4518, %v4566
        %v4653 = vadd.f32 %v4519, %v4566
        %v4654 = vadd.f32 %v4520, %v4566
        %v4655 = vadd.f32 %v4521, %v4566
        %v4656 = vadd.f32 %v4522, %v4566
        %v4657 = vadd.f32 %v4523, %v4566
        %v4658 = vadd.f32 %v4524, %v4566
        %v4659 = vadd.f32 %v4525, %v4566
        %v4660 = vadd.f32 %v4526, %v4566
        %v4661 = vadd.f32 %v4527, %v4566
        %v4662 = vadd.f32 %v4528, %v4566
        %v4663 = vadd.f32 %v4529, %v4566
        %v4664 = vadd.f32 %v4530, %v4566
        %v4665 = vadd.f32 %v4531, %v4566
        %v4666 = vadd.f32 %v4532, %v4566
        %v4667 = vadd.f32 %v4533, %v4566
        %v4668 = vadd.f32 %v4534, %v4566
        %v4669 = vadd.f32 %v4535, %v4566
        %v4670 = vadd.f32 %v4536, %v4566
        %v4671 = vadd.f32 %v4537, %v4566
        %v4672 = vadd.f32 %v4538, %v4566
        %v4673 = vadd.f32 %v4539, %v4566
        %v4674 = vadd.f32 %v4540, %v4566
        %v4675 = vadd.f32 %v4541, %v4566
        %v4676 = vadd.f32 %v4542, %v4566
        %v4677 = vadd.f32 %v4543, %v4566
        %v4678 = vadd.f32 %v4544, %v4566
        %v4679 = vadd.f32 %v4545, %v4566
        %v4680 = vadd.f32 %v4546, %v4566
        %v4681 = vadd.f32 %v4547, %v4566
        %v4682 = vadd.f32 %v4548, %v4566
        %v4683 = vadd.f32 %v4549, %v4566
        %v4684 = vadd.f32 %v4550, %v4566
        %v4685 = vadd.f32 %v4551, %v4566
        %v4686 = vadd.f32 %v4552, %v4566
        %v4687 = vadd.f32 %v4553, %v4566
        %v4688 = vadd.f32 %v4554, %v4566
        %v4689 = vadd.f32 %v4555, %v4566
        %v4690 = vadd.f32 %v4556, %v4566
        %v4691 = vadd.f32 %v4557, %v4566
        %v4692 = vadd.f32 %v4558, %v4566
        %v4693 = vadd.f32 %v4559, %v4566
        %v4694 = vadd.f32 %v4560, %v4566
        %v4695 = vadd.f32 %v4561, %v4566
        %v4696 = vmax.f32 %v4568, 0.0
        %v4697 = vmax.f32 %v4569, 0.0
        %v4698 = vmax.f32 %v4570, 0.0
        %v4699 = vmax.f32 %v4571, 0.0
        %v4700 = vmax.f32 %v4572, 0.0
        %v4701 = vmax.f32 %v4573, 0.0
        %v4702 = vmax.f32 %v4574, 0.0
        %v4703 = vmax.f32 %v4575, 0.0
        %v4704 = vmax.f32 %v4576, 0.0
        %v4705 = vmax.f32 %v4577, 0.0
        %v4706 = vmax.f32 %v4578, 0.0
        %v4707 = vmax.f32 %v4579, 0.0
        %v4708 = vmax.f32 %v4580, 0.0
        %v4709 = vmax.f32 %v4581, 0.0
        %v4710 = vmax.f32 %v4582, 0.0
        %v4711 = vmax.f32 %v4583, 0.0
        %v4712 = vmax.f32 %v4584, 0.0
        %v4713 = vmax.f32 %v4585, 0.0
        %v4714 = vmax.f32 %v4586, 0.0
        %v4715 = vmax.f32 %v4587, 0.0
        %v4716 = vmax.f32 %v4588, 0.0
        %v4717 = vmax.f32 %v4589, 0.0
        %v4718 = vmax.f32 %v4590, 0.0
        %v4719 = vmax.f32 %v4591, 0.0
        %v4720 = vmax.f32 %v4592, 0.0
        %v4721 = vmax.f32 %v4593, 0.0
        %v4722 = vmax.f32 %v4594, 0.0
        %v4723 = vmax.f32 %v4595, 0.0
        %v4724 = vmax.f32 %v4596, 0.0
        %v4725 = vmax.f32 %v4597, 0.0
        %v4726 = vmax.f32 %v4598, 0.0
        %v4727 = vmax.f32 %v4599, 0.0
        %v4728 = vmax.f32 %v4600, 0.0
        %v4729 = vmax.f32 %v4601, 0.0
        %v4730 = vmax.f32 %v4602, 0.0
        %v4731 = vmax.f32 %v4603, 0.0
        %v4732 = vmax.f32 %v4604, 0.0
        %v4733 = vmax.f32 %v4605, 0.0
        %v4734 = vmax.f32 %v4606, 0.0
        %v4735 = vmax.f32 %v4607, 0.0
        %v4736 = vmax.f32 %v4608, 0.0
        %v4737 = vmax.f32 %v4609, 0.0
        %v4738 = vmax.f32 %v4610, 0.0
        %v4739 = vmax.f32 %v4611, 0.0
        %v4740 = vmax.f32 %v4612, 0.0
        %v4741 = vmax.f32 %v4613, 0.0
        %v4742 = vmax.f32 %v4614, 0.0
        %v4743 = vmax.f32 %v4615, 0.0
        %v4744 = vmax.f32 %v4616, 0.0
        %v4745 = vmax.f32 %v4617, 0.0
        %v4746 = vmax.f32 %v4618, 0.0
        %v4747 = vmax.f32 %v4619, 0.0
        %v4748 = vmax.f32 %v4620, 0.0
        %v4749 = vmax.f32 %v4621, 0.0
        %v4750 = vmax.f32 %v4622, 0.0
        %v4751 = vmax.f32 %v4623, 0.0
        %v4752 = vmax.f32 %v4624, 0.0
        %v4753 = vmax.f32 %v4625, 0.0
        %v4754 = vmax.f32 %v4626, 0.0
        %v4755 = vmax.f32 %v4627, 0.0
        %v4756 = vmax.f32 %v4628, 0.0
        %v4757 = vmax.f32 %v4629, 0.0
        %v4758 = vmax.f32 %v4630, 0.0
        %v4759 = vmax.f32 %v4631, 0.0
        %v4760 = vmax.f32 %v4632, 0.0
        %v4761 = vmax.f32 %v4633, 0.0
        %v4762 = vmax.f32 %v4634, 0.0
        %v4763 = vmax.f32 %v4635, 0.0
        %v4764 = vmax.f32 %v4636, 0.0
        %v4765 = vmax.f32 %v4637, 0.0
        %v4766 = vmax.f32 %v4638, 0.0
        %v4767 = vmax.f32 %v4639, 0.0
        %v4768 = vmax.f32 %v4640, 0.0
        %v4769 = vmax.f32 %v4641, 0.0
        %v4770 = vmax.f32 %v4642, 0.0
        %v4771 = vmax.f32 %v4643, 0.0
        %v4772 = vmax.f32 %v4644, 0.0
        %v4773 = vmax.f32 %v4645, 0.0
        %v4774 = vmax.f32 %v4646, 0.0
        %v4775 = vmax.f32 %v4647, 0.0
        %v4776 = vmax.f32 %v4648, 0.0
        %v4777 = vmax.f32 %v4649, 0.0
        %v4778 = vmax.f32 %v4650, 0.0
        %v4779 = vmax.f32 %v4651, 0.0
        %v4780 = vmax.f32 %v4652, 0.0
        %v4781 = vmax.f32 %v4653, 0.0
        %v4782 = vmax.f32 %v4654, 0.0
        %v4783 = vmax.f32 %v4655, 0.0
        %v4784 = vmax.f32 %v4656, 0.0
        %v4785 = vmax.f32 %v4657, 0.0
        %v4786 = vmax.f32 %v4658, 0.0
        %v4787 = vmax.f32 %v4659, 0.0
        %v4788 = vmax.f32 %v4660, 0.0
        %v4789 = vmax.f32 %v4661, 0.0
        %v4790 = vmax.f32 %v4662, 0.0
        %v4791 = vmax.f32 %v4663, 0.0
        %v4792 = vmax.f32 %v4664, 0.0
        %v4793 = vmax.f32 %v4665, 0.0
        %v4794 = vmax.f32 %v4666, 0.0
        %v4795 = vmax.f32 %v4667, 0.0
        %v4796 = vmax.f32 %v4668, 0.0
        %v4797 = vmax.f32 %v4669, 0.0
        %v4798 = vmax.f32 %v4670, 0.0
        %v4799 = vmax.f32 %v4671, 0.0
        %v4800 = vmax.f32 %v4672, 0.0
        %v4801 = vmax.f32 %v4673, 0.0
        %v4802 = vmax.f32 %v4674, 0.0
        %v4803 = vmax.f32 %v4675, 0.0
        %v4804 = vmax.f32 %v4676, 0.0
        %v4805 = vmax.f32 %v4677, 0.0
        %v4806 = vmax.f32 %v4678, 0.0
        %v4807 = vmax.f32 %v4679, 0.0
        %v4808 = vmax.f32 %v4680, 0.0
        %v4809 = vmax.f32 %v4681, 0.0
        %v4810 = vmax.f32 %v4682, 0.0
        %v4811 = vmax.f32 %v4683, 0.0
        %v4812 = vmax.f32 %v4684, 0.0
        %v4813 = vmax.f32 %v4685, 0.0
        %v4814 = vmax.f32 %v4686, 0.0
        %v4815 = vmax.f32 %v4687, 0.0
        %v4816 = vmax.f32 %v4688, 0.0
        %v4817 = vmax.f32 %v4689, 0.0
        %v4818 = vmax.f32 %v4690, 0.0
        %v4819 = vmax.f32 %v4691, 0.0
        %v4820 = vmax.f32 %v4692, 0.0
        %v4821 = vmax.f32 %v4693, 0.0
        %v4822 = vmax.f32 %v4694, 0.0
        %v4823 = vmax.f32 %v4695, 0.0
        %v4824 = vpack.c.bf16 %v4697, %v4696
        %v4825 = vpack.c.bf16 %v4699, %v4698
        %v4826 = vpack.c.bf16 %v4701, %v4700
        %v4827 = vpack.c.bf16 %v4703, %v4702
        %v4828 = vpack.c.bf16 %v4705, %v4704
        %v4829 = vpack.c.bf16 %v4707, %v4706
        %v4830 = vpack.c.bf16 %v4709, %v4708
        %v4831 = vpack.c.bf16 %v4711, %v4710
        %v4832 = vpack.c.bf16 %v4713, %v4712
        %v4833 = vpack.c.bf16 %v4715, %v4714
        %v4834 = vpack.c.bf16 %v4717, %v4716
        %v4835 = vpack.c.bf16 %v4719, %v4718
        %v4836 = vpack.c.bf16 %v4721, %v4720
        %v4837 = vpack.c.bf16 %v4723, %v4722
        %v4838 = vpack.c.bf16 %v4725, %v4724
        %v4839 = vpack.c.bf16 %v4727, %v4726
        %v4840 = vpack.c.bf16 %v4729, %v4728
        %v4841 = vpack.c.bf16 %v4731, %v4730
        %v4842 = vpack.c.bf16 %v4733, %v4732
        %v4843 = vpack.c.bf16 %v4735, %v4734
        %v4844 = vpack.c.bf16 %v4737, %v4736
        %v4845 = vpack.c.bf16 %v4739, %v4738
        %v4846 = vpack.c.bf16 %v4741, %v4740
        %v4847 = vpack.c.bf16 %v4743, %v4742
        %v4848 = vpack.c.bf16 %v4745, %v4744
        %v4849 = vpack.c.bf16 %v4747, %v4746
        %v4850 = vpack.c.bf16 %v4749, %v4748
        %v4851 = vpack.c.bf16 %v4751, %v4750
        %v4852 = vpack.c.bf16 %v4753, %v4752
        %v4853 = vpack.c.bf16 %v4755, %v4754
        %v4854 = vpack.c.bf16 %v4757, %v4756
        %v4855 = vpack.c.bf16 %v4759, %v4758
        %v4856 = vpack.c.bf16 %v4761, %v4760
        %v4857 = vpack.c.bf16 %v4763, %v4762
        %v4858 = vpack.c.bf16 %v4765, %v4764
        %v4859 = vpack.c.bf16 %v4767, %v4766
        %v4860 = vpack.c.bf16 %v4769, %v4768
        %v4861 = vpack.c.bf16 %v4771, %v4770
        %v4862 = vpack.c.bf16 %v4773, %v4772
        %v4863 = vpack.c.bf16 %v4775, %v4774
        %v4864 = vpack.c.bf16 %v4777, %v4776
        %v4865 = vpack.c.bf16 %v4779, %v4778
        %v4866 = vpack.c.bf16 %v4781, %v4780
        %v4867 = vpack.c.bf16 %v4783, %v4782
        %v4868 = vpack.c.bf16 %v4785, %v4784
        %v4869 = vpack.c.bf16 %v4787, %v4786
        %v4870 = vpack.c.bf16 %v4789, %v4788
        %v4871 = vpack.c.bf16 %v4791, %v4790
        %v4872 = vpack.c.bf16 %v4793, %v4792
        %v4873 = vpack.c.bf16 %v4795, %v4794
        %v4874 = vpack.c.bf16 %v4797, %v4796
        %v4875 = vpack.c.bf16 %v4799, %v4798
        %v4876 = vpack.c.bf16 %v4801, %v4800
        %v4877 = vpack.c.bf16 %v4803, %v4802
        %v4878 = vpack.c.bf16 %v4805, %v4804
        %v4879 = vpack.c.bf16 %v4807, %v4806
        %v4880 = vpack.c.bf16 %v4809, %v4808
        %v4881 = vpack.c.bf16 %v4811, %v4810
        %v4882 = vpack.c.bf16 %v4813, %v4812
        %v4883 = vpack.c.bf16 %v4815, %v4814
        %v4884 = vpack.c.bf16 %v4817, %v4816
        %v4885 = vpack.c.bf16 %v4819, %v4818
        %v4886 = vpack.c.bf16 %v4821, %v4820
        %v4887 = vpack.c.bf16 %v4823, %v4822
        %v4952 = vunpack.c.l.b16 %v4824
        %v4953 = vunpack.c.h.b16 %v4824
        %v4954 = vunpack.c.l.b16 %v4825
        %v4955 = vunpack.c.h.b16 %v4825
        %v4956 = vunpack.c.l.b16 %v4826
        %v4957 = vunpack.c.h.b16 %v4826
        %v4958 = vunpack.c.l.b16 %v4827
        %v4959 = vunpack.c.h.b16 %v4827
        %v4960 = vunpack.c.l.b16 %v4828
        %v4961 = vunpack.c.h.b16 %v4828
        %v4962 = vunpack.c.l.b16 %v4829
        %v4963 = vunpack.c.h.b16 %v4829
        %v4964 = vunpack.c.l.b16 %v4830
        %v4965 = vunpack.c.h.b16 %v4830
        %v4966 = vunpack.c.l.b16 %v4831
        %v4967 = vunpack.c.h.b16 %v4831
        %v4968 = vunpack.c.l.b16 %v4832
        %v4969 = vunpack.c.h.b16 %v4832
        %v4970 = vunpack.c.l.b16 %v4833
        %v4971 = vunpack.c.h.b16 %v4833
        %v4972 = vunpack.c.l.b16 %v4834
        %v4973 = vunpack.c.h.b16 %v4834
        %v4974 = vunpack.c.l.b16 %v4835
        %v4975 = vunpack.c.h.b16 %v4835
        %v4976 = vunpack.c.l.b16 %v4836
        %v4977 = vunpack.c.h.b16 %v4836
        %v4978 = vunpack.c.l.b16 %v4837
        %v4979 = vunpack.c.h.b16 %v4837
        %v4980 = vunpack.c.l.b16 %v4838
        %v4981 = vunpack.c.h.b16 %v4838
        %v4982 = vunpack.c.l.b16 %v4839
        %v4983 = vunpack.c.h.b16 %v4839
        %v4984 = vunpack.c.l.b16 %v4840
        %v4985 = vunpack.c.h.b16 %v4840
        %v4986 = vunpack.c.l.b16 %v4841
        %v4987 = vunpack.c.h.b16 %v4841
        %v4988 = vunpack.c.l.b16 %v4842
        %v4989 = vunpack.c.h.b16 %v4842
        %v4990 = vunpack.c.l.b16 %v4843
        %v4991 = vunpack.c.h.b16 %v4843
        %v4992 = vunpack.c.l.b16 %v4844
        %v4993 = vunpack.c.h.b16 %v4844
        %v4994 = vunpack.c.l.b16 %v4845
        %v4995 = vunpack.c.h.b16 %v4845
        %v4996 = vunpack.c.l.b16 %v4846
        %v4997 = vunpack.c.h.b16 %v4846
        %v4998 = vunpack.c.l.b16 %v4847
        %v4999 = vunpack.c.h.b16 %v4847
        %v5000 = vunpack.c.l.b16 %v4848
        %v5001 = vunpack.c.h.b16 %v4848
        %v5002 = vunpack.c.l.b16 %v4849
        %v5003 = vunpack.c.h.b16 %v4849
        %v5004 = vunpack.c.l.b16 %v4850
        %v5005 = vunpack.c.h.b16 %v4850
        %v5006 = vunpack.c.l.b16 %v4851
        %v5007 = vunpack.c.h.b16 %v4851
        %v5008 = vunpack.c.l.b16 %v4852
        %v5009 = vunpack.c.h.b16 %v4852
        %v5010 = vunpack.c.l.b16 %v4853
        %v5011 = vunpack.c.h.b16 %v4853
        %v5012 = vunpack.c.l.b16 %v4854
        %v5013 = vunpack.c.h.b16 %v4854
        %v5014 = vunpack.c.l.b16 %v4855
        %v5015 = vunpack.c.h.b16 %v4855
        %v5016 = vunpack.c.l.b16 %v4856
        %v5017 = vunpack.c.h.b16 %v4856
        %v5018 = vunpack.c.l.b16 %v4857
        %v5019 = vunpack.c.h.b16 %v4857
        %v5020 = vunpack.c.l.b16 %v4858
        %v5021 = vunpack.c.h.b16 %v4858
        %v5022 = vunpack.c.l.b16 %v4859
        %v5023 = vunpack.c.h.b16 %v4859
        %v5024 = vunpack.c.l.b16 %v4860
        %v5025 = vunpack.c.h.b16 %v4860
        %v5026 = vunpack.c.l.b16 %v4861
        %v5027 = vunpack.c.h.b16 %v4861
        %v5028 = vunpack.c.l.b16 %v4862
        %v5029 = vunpack.c.h.b16 %v4862
        %v5030 = vunpack.c.l.b16 %v4863
        %v5031 = vunpack.c.h.b16 %v4863
        %v5032 = vunpack.c.l.b16 %v4864
        %v5033 = vunpack.c.h.b16 %v4864
        %v5034 = vunpack.c.l.b16 %v4865
        %v5035 = vunpack.c.h.b16 %v4865
        %v5036 = vunpack.c.l.b16 %v4866
        %v5037 = vunpack.c.h.b16 %v4866
        %v5038 = vunpack.c.l.b16 %v4867
        %v5039 = vunpack.c.h.b16 %v4867
        %v5040 = vunpack.c.l.b16 %v4868
        %v5041 = vunpack.c.h.b16 %v4868
        %v5042 = vunpack.c.l.b16 %v4869
        %v5043 = vunpack.c.h.b16 %v4869
        %v5044 = vunpack.c.l.b16 %v4870
        %v5045 = vunpack.c.h.b16 %v4870
        %v5046 = vunpack.c.l.b16 %v4871
        %v5047 = vunpack.c.h.b16 %v4871
        %v5048 = vunpack.c.l.b16 %v4872
        %v5049 = vunpack.c.h.b16 %v4872
        %v5050 = vunpack.c.l.b16 %v4873
        %v5051 = vunpack.c.h.b16 %v4873
        %v5052 = vunpack.c.l.b16 %v4874
        %v5053 = vunpack.c.h.b16 %v4874
        %v5054 = vunpack.c.l.b16 %v4875
        %v5055 = vunpack.c.h.b16 %v4875
        %v5056 = vunpack.c.l.b16 %v4876
        %v5057 = vunpack.c.h.b16 %v4876
        %v5058 = vunpack.c.l.b16 %v4877
        %v5059 = vunpack.c.h.b16 %v4877
        %v5060 = vunpack.c.l.b16 %v4878
        %v5061 = vunpack.c.h.b16 %v4878
        %v5062 = vunpack.c.l.b16 %v4879
        %v5063 = vunpack.c.h.b16 %v4879
        %v5064 = vunpack.c.l.b16 %v4880
        %v5065 = vunpack.c.h.b16 %v4880
        %v5066 = vunpack.c.l.b16 %v4881
        %v5067 = vunpack.c.h.b16 %v4881
        %v5068 = vunpack.c.l.b16 %v4882
        %v5069 = vunpack.c.h.b16 %v4882
        %v5070 = vunpack.c.l.b16 %v4883
        %v5071 = vunpack.c.h.b16 %v4883
        %v5072 = vunpack.c.l.b16 %v4884
        %v5073 = vunpack.c.h.b16 %v4884
        %v5074 = vunpack.c.l.b16 %v4885
        %v5075 = vunpack.c.h.b16 %v4885
        %v5076 = vunpack.c.l.b16 %v4886
        %v5077 = vunpack.c.h.b16 %v4886
        %v5078 = vunpack.c.l.b16 %v4887
        %v5079 = vunpack.c.h.b16 %v4887
        %v5080 = vpack.c.b16 %v4952, %v4952
        %v5081 = vpack.c.b16 %v4953, %v4953
        %v5082 = vpack.c.b16 %v4954, %v4954
        %v5083 = vpack.c.b16 %v4955, %v4955
        %v5084 = vpack.c.b16 %v4956, %v4956
        %v5085 = vpack.c.b16 %v4957, %v4957
        %v5086 = vpack.c.b16 %v4958, %v4958
        %v5087 = vpack.c.b16 %v4959, %v4959
        %v5088 = vpack.c.b16 %v4960, %v4960
        %v5089 = vpack.c.b16 %v4961, %v4961
        %v5090 = vpack.c.b16 %v4962, %v4962
        %v5091 = vpack.c.b16 %v4963, %v4963
        %v5092 = vpack.c.b16 %v4964, %v4964
        %v5093 = vpack.c.b16 %v4965, %v4965
        %v5094 = vpack.c.b16 %v4966, %v4966
        %v5095 = vpack.c.b16 %v4967, %v4967
        %v5096 = vpack.c.b16 %v4968, %v4968
        %v5097 = vpack.c.b16 %v4969, %v4969
        %v5098 = vpack.c.b16 %v4970, %v4970
        %v5099 = vpack.c.b16 %v4971, %v4971
        %v5100 = vpack.c.b16 %v4972, %v4972
        %v5101 = vpack.c.b16 %v4973, %v4973
        %v5102 = vpack.c.b16 %v4974, %v4974
        %v5103 = vpack.c.b16 %v4975, %v4975
        %v5104 = vpack.c.b16 %v4976, %v4976
        %v5105 = vpack.c.b16 %v4977, %v4977
        %v5106 = vpack.c.b16 %v4978, %v4978
        %v5107 = vpack.c.b16 %v4979, %v4979
        %v5108 = vpack.c.b16 %v4980, %v4980
        %v5109 = vpack.c.b16 %v4981, %v4981
        %v5110 = vpack.c.b16 %v4982, %v4982
        %v5111 = vpack.c.b16 %v4983, %v4983
        %v5112 = vpack.c.b16 %v4984, %v4984
        %v5113 = vpack.c.b16 %v4985, %v4985
        %v5114 = vpack.c.b16 %v4986, %v4986
        %v5115 = vpack.c.b16 %v4987, %v4987
        %v5116 = vpack.c.b16 %v4988, %v4988
        %v5117 = vpack.c.b16 %v4989, %v4989
        %v5118 = vpack.c.b16 %v4990, %v4990
        %v5119 = vpack.c.b16 %v4991, %v4991
        %v5120 = vpack.c.b16 %v4992, %v4992
        %v5121 = vpack.c.b16 %v4993, %v4993
        %v5122 = vpack.c.b16 %v4994, %v4994
        %v5123 = vpack.c.b16 %v4995, %v4995
        %v5124 = vpack.c.b16 %v4996, %v4996
        %v5125 = vpack.c.b16 %v4997, %v4997
        %v5126 = vpack.c.b16 %v4998, %v4998
        %v5127 = vpack.c.b16 %v4999, %v4999
        %v5128 = vpack.c.b16 %v5000, %v5000
        %v5129 = vpack.c.b16 %v5001, %v5001
        %v5130 = vpack.c.b16 %v5002, %v5002
        %v5131 = vpack.c.b16 %v5003, %v5003
        %v5132 = vpack.c.b16 %v5004, %v5004
        %v5133 = vpack.c.b16 %v5005, %v5005
        %v5134 = vpack.c.b16 %v5006, %v5006
        %v5135 = vpack.c.b16 %v5007, %v5007
        %v5136 = vpack.c.b16 %v5008, %v5008
        %v5137 = vpack.c.b16 %v5009, %v5009
        %v5138 = vpack.c.b16 %v5010, %v5010
        %v5139 = vpack.c.b16 %v5011, %v5011
        %v5140 = vpack.c.b16 %v5012, %v5012
        %v5141 = vpack.c.b16 %v5013, %v5013
        %v5142 = vpack.c.b16 %v5014, %v5014
        %v5143 = vpack.c.b16 %v5015, %v5015
        %v5144 = vpack.c.b16 %v5016, %v5016
        %v5145 = vpack.c.b16 %v5017, %v5017
        %v5146 = vpack.c.b16 %v5018, %v5018
        %v5147 = vpack.c.b16 %v5019, %v5019
        %v5148 = vpack.c.b16 %v5020, %v5020
        %v5149 = vpack.c.b16 %v5021, %v5021
        %v5150 = vpack.c.b16 %v5022, %v5022
        %v5151 = vpack.c.b16 %v5023, %v5023
        %v5152 = vpack.c.b16 %v5024, %v5024
        %v5153 = vpack.c.b16 %v5025, %v5025
        %v5154 = vpack.c.b16 %v5026, %v5026
        %v5155 = vpack.c.b16 %v5027, %v5027
        %v5156 = vpack.c.b16 %v5028, %v5028
        %v5157 = vpack.c.b16 %v5029, %v5029
        %v5158 = vpack.c.b16 %v5030, %v5030
        %v5159 = vpack.c.b16 %v5031, %v5031
        %v5160 = vpack.c.b16 %v5032, %v5032
        %v5161 = vpack.c.b16 %v5033, %v5033
        %v5162 = vpack.c.b16 %v5034, %v5034
        %v5163 = vpack.c.b16 %v5035, %v5035
        %v5164 = vpack.c.b16 %v5036, %v5036
        %v5165 = vpack.c.b16 %v5037, %v5037
        %v5166 = vpack.c.b16 %v5038, %v5038
        %v5167 = vpack.c.b16 %v5039, %v5039
        %v5168 = vpack.c.b16 %v5040, %v5040
        %v5169 = vpack.c.b16 %v5041, %v5041
        %v5170 = vpack.c.b16 %v5042, %v5042
        %v5171 = vpack.c.b16 %v5043, %v5043
        %v5172 = vpack.c.b16 %v5044, %v5044
        %v5173 = vpack.c.b16 %v5045, %v5045
        %v5174 = vpack.c.b16 %v5046, %v5046
        %v5175 = vpack.c.b16 %v5047, %v5047
        %v5176 = vpack.c.b16 %v5048, %v5048
        %v5177 = vpack.c.b16 %v5049, %v5049
        %v5178 = vpack.c.b16 %v5050, %v5050
        %v5179 = vpack.c.b16 %v5051, %v5051
        %v5180 = vpack.c.b16 %v5052, %v5052
        %v5181 = vpack.c.b16 %v5053, %v5053
        %v5182 = vpack.c.b16 %v5054, %v5054
        %v5183 = vpack.c.b16 %v5055, %v5055
        %v5184 = vpack.c.b16 %v5056, %v5056
        %v5185 = vpack.c.b16 %v5057, %v5057
        %v5186 = vpack.c.b16 %v5058, %v5058
        %v5187 = vpack.c.b16 %v5059, %v5059
        %v5188 = vpack.c.b16 %v5060, %v5060
        %v5189 = vpack.c.b16 %v5061, %v5061
        %v5190 = vpack.c.b16 %v5062, %v5062
        %v5191 = vpack.c.b16 %v5063, %v5063
        %v5192 = vpack.c.b16 %v5064, %v5064
        %v5193 = vpack.c.b16 %v5065, %v5065
        %v5194 = vpack.c.b16 %v5066, %v5066
        %v5195 = vpack.c.b16 %v5067, %v5067
        %v5196 = vpack.c.b16 %v5068, %v5068
        %v5197 = vpack.c.b16 %v5069, %v5069
        %v5198 = vpack.c.b16 %v5070, %v5070
        %v5199 = vpack.c.b16 %v5071, %v5071
        %v5200 = vpack.c.b16 %v5072, %v5072
        %v5201 = vpack.c.b16 %v5073, %v5073
        %v5202 = vpack.c.b16 %v5074, %v5074
        %v5203 = vpack.c.b16 %v5075, %v5075
        %v5204 = vpack.c.b16 %v5076, %v5076
        %v5205 = vpack.c.b16 %v5077, %v5077
        %v5206 = vpack.c.b16 %v5078, %v5078
        %v5207 = vpack.c.b16 %v5079, %v5079
        %5336 = vst [vmem:[%s4] sm:$0xf] %v5080
        %5337 = vst [vmem:[%s4 + $0x4] sm:$0xf] %v5081
        %5338 = vst [vmem:[%s4 + $0x8] sm:$0xf] %v5082
        %5339 = vst [vmem:[%s4 + $0xc] sm:$0xf] %v5083
        %5340 = vst [vmem:[%s4 + $0x10] sm:$0xf] %v5084
        %5341 = vst [vmem:[%s4 + $0x14] sm:$0xf] %v5085
        %5342 = vst [vmem:[%s4 + $0x18] sm:$0xf] %v5086
        %5343 = vst [vmem:[%s4 + $0x1c] sm:$0xf] %v5087
        %5344 = vst [vmem:[%s4 + $0x20] sm:$0xf] %v5088
        %5345 = vst [vmem:[%s4 + $0x24] sm:$0xf] %v5089
        %5346 = vst [vmem:[%s4 + $0x28] sm:$0xf] %v5090
        %5347 = vst [vmem:[%s4 + $0x2c] sm:$0xf] %v5091
        %5348 = vst [vmem:[%s4 + $0x30] sm:$0xf] %v5092
        %5349 = vst [vmem:[%s4 + $0x34] sm:$0xf] %v5093
        %5350 = vst [vmem:[%s4 + $0x38] sm:$0xf] %v5094
        %5351 = vst [vmem:[%s4 + $0x3c] sm:$0xf] %v5095
        %5352 = vst [vmem:[%s4 + $0x40] sm:$0xf] %v5096
        %5353 = vst [vmem:[%s4 + $0x44] sm:$0xf] %v5097
        %5354 = vst [vmem:[%s4 + $0x48] sm:$0xf] %v5098
        %5355 = vst [vmem:[%s4 + $0x4c] sm:$0xf] %v5099
        %5356 = vst [vmem:[%s4 + $0x50] sm:$0xf] %v5100
        %5357 = vst [vmem:[%s4 + $0x54] sm:$0xf] %v5101
        %5358 = vst [vmem:[%s4 + $0x58] sm:$0xf] %v5102
        %5359 = vst [vmem:[%s4 + $0x5c] sm:$0xf] %v5103
        %5360 = vst [vmem:[%s4 + $0x60] sm:$0xf] %v5104
        %5361 = vst [vmem:[%s4 + $0x64] sm:$0xf] %v5105
        %5362 = vst [vmem:[%s4 + $0x68] sm:$0xf] %v5106
        %5363 = vst [vmem:[%s4 + $0x6c] sm:$0xf] %v5107
        %5364 = vst [vmem:[%s4 + $0x70] sm:$0xf] %v5108
        %5365 = vst [vmem:[%s4 + $0x74] sm:$0xf] %v5109
        %5366 = vst [vmem:[%s4 + $0x78] sm:$0xf] %v5110
        %5367 = vst [vmem:[%s4 + $0x7c] sm:$0xf] %v5111
        %5368 = vst [vmem:[%s4 + $0x80] sm:$0xf] %v5112
        %5369 = vst [vmem:[%s4 + $0x84] sm:$0xf] %v5113
        %5370 = vst [vmem:[%s4 + $0x88] sm:$0xf] %v5114
        %5371 = vst [vmem:[%s4 + $0x8c] sm:$0xf] %v5115
        %5372 = vst [vmem:[%s4 + $0x90] sm:$0xf] %v5116
        %5373 = vst [vmem:[%s4 + $0x94] sm:$0xf] %v5117
        %5374 = vst [vmem:[%s4 + $0x98] sm:$0xf] %v5118
        %5375 = vst [vmem:[%s4 + $0x9c] sm:$0xf] %v5119
        %5376 = vst [vmem:[%s4 + $0xa0] sm:$0xf] %v5120
        %5377 = vst [vmem:[%s4 + $0xa4] sm:$0xf] %v5121
        %5378 = vst [vmem:[%s4 + $0xa8] sm:$0xf] %v5122
        %5379 = vst [vmem:[%s4 + $0xac] sm:$0xf] %v5123
        %5380 = vst [vmem:[%s4 + $0xb0] sm:$0xf] %v5124
        %5381 = vst [vmem:[%s4 + $0xb4] sm:$0xf] %v5125
        %5382 = vst [vmem:[%s4 + $0xb8] sm:$0xf] %v5126
        %5383 = vst [vmem:[%s4 + $0xbc] sm:$0xf] %v5127
        %5384 = vst [vmem:[%s4 + $0xc0] sm:$0xf] %v5128
        %5385 = vst [vmem:[%s4 + $0xc4] sm:$0xf] %v5129
        %5386 = vst [vmem:[%s4 + $0xc8] sm:$0xf] %v5130
        %5387 = vst [vmem:[%s4 + $0xcc] sm:$0xf] %v5131
        %5388 = vst [vmem:[%s4 + $0xd0] sm:$0xf] %v5132
        %5389 = vst [vmem:[%s4 + $0xd4] sm:$0xf] %v5133
        %5390 = vst [vmem:[%s4 + $0xd8] sm:$0xf] %v5134
        %5391 = vst [vmem:[%s4 + $0xdc] sm:$0xf] %v5135
        %5392 = vst [vmem:[%s4 + $0xe0] sm:$0xf] %v5136
        %5393 = vst [vmem:[%s4 + $0xe4] sm:$0xf] %v5137
        %5394 = vst [vmem:[%s4 + $0xe8] sm:$0xf] %v5138
        %5395 = vst [vmem:[%s4 + $0xec] sm:$0xf] %v5139
        %5396 = vst [vmem:[%s4 + $0xf0] sm:$0xf] %v5140
        %5397 = vst [vmem:[%s4 + $0xf4] sm:$0xf] %v5141
        %5398 = vst [vmem:[%s4 + $0xf8] sm:$0xf] %v5142
        %5399 = vst [vmem:[%s4 + $0xfc] sm:$0xf] %v5143
        %5400 = vst [vmem:[%s4 + $0x100] sm:$0xf] %v5144
        %5401 = vst [vmem:[%s4 + $0x104] sm:$0xf] %v5145
        %5402 = vst [vmem:[%s4 + $0x108] sm:$0xf] %v5146
        %5403 = vst [vmem:[%s4 + $0x10c] sm:$0xf] %v5147
        %5404 = vst [vmem:[%s4 + $0x110] sm:$0xf] %v5148
        %5405 = vst [vmem:[%s4 + $0x114] sm:$0xf] %v5149
        %5406 = vst [vmem:[%s4 + $0x118] sm:$0xf] %v5150
        %5407 = vst [vmem:[%s4 + $0x11c] sm:$0xf] %v5151
        %5408 = vst [vmem:[%s4 + $0x120] sm:$0xf] %v5152
        %5409 = vst [vmem:[%s4 + $0x124] sm:$0xf] %v5153
        %5410 = vst [vmem:[%s4 + $0x128] sm:$0xf] %v5154
        %5411 = vst [vmem:[%s4 + $0x12c] sm:$0xf] %v5155
        %5412 = vst [vmem:[%s4 + $0x130] sm:$0xf] %v5156
        %5413 = vst [vmem:[%s4 + $0x134] sm:$0xf] %v5157
        %5414 = vst [vmem:[%s4 + $0x138] sm:$0xf] %v5158
        %5415 = vst [vmem:[%s4 + $0x13c] sm:$0xf] %v5159
        %5416 = vst [vmem:[%s4 + $0x140] sm:$0xf] %v5160
        %5417 = vst [vmem:[%s4 + $0x144] sm:$0xf] %v5161
        %5418 = vst [vmem:[%s4 + $0x148] sm:$0xf] %v5162
        %5419 = vst [vmem:[%s4 + $0x14c] sm:$0xf] %v5163
        %5420 = vst [vmem:[%s4 + $0x150] sm:$0xf] %v5164
        %5421 = vst [vmem:[%s4 + $0x154] sm:$0xf] %v5165
        %5422 = vst [vmem:[%s4 + $0x158] sm:$0xf] %v5166
        %5423 = vst [vmem:[%s4 + $0x15c] sm:$0xf] %v5167
        %5424 = vst [vmem:[%s4 + $0x160] sm:$0xf] %v5168
        %5425 = vst [vmem:[%s4 + $0x164] sm:$0xf] %v5169
        %5426 = vst [vmem:[%s4 + $0x168] sm:$0xf] %v5170
        %5427 = vst [vmem:[%s4 + $0x16c] sm:$0xf] %v5171
        %5428 = vst [vmem:[%s4 + $0x170] sm:$0xf] %v5172
        %5429 = vst [vmem:[%s4 + $0x174] sm:$0xf] %v5173
        %5430 = vst [vmem:[%s4 + $0x178] sm:$0xf] %v5174
        %5431 = vst [vmem:[%s4 + $0x17c] sm:$0xf] %v5175
        %5432 = vst [vmem:[%s4 + $0x180] sm:$0xf] %v5176
        %5433 = vst [vmem:[%s4 + $0x184] sm:$0xf] %v5177
        %5434 = vst [vmem:[%s4 + $0x188] sm:$0xf] %v5178
        %5435 = vst [vmem:[%s4 + $0x18c] sm:$0xf] %v5179
        %5436 = vst [vmem:[%s4 + $0x190] sm:$0xf] %v5180
        %5437 = vst [vmem:[%s4 + $0x194] sm:$0xf] %v5181
        %5438 = vst [vmem:[%s4 + $0x198] sm:$0xf] %v5182
        %5439 = vst [vmem:[%s4 + $0x19c] sm:$0xf] %v5183
        %5440 = vst [vmem:[%s4 + $0x1a0] sm:$0xf] %v5184
        %5441 = vst [vmem:[%s4 + $0x1a4] sm:$0xf] %v5185
        %5442 = vst [vmem:[%s4 + $0x1a8] sm:$0xf] %v5186
        %5443 = vst [vmem:[%s4 + $0x1ac] sm:$0xf] %v5187
        %5444 = vst [vmem:[%s4 + $0x1b0] sm:$0xf] %v5188
        %5445 = vst [vmem:[%s4 + $0x1b4] sm:$0xf] %v5189
        %5446 = vst [vmem:[%s4 + $0x1b8] sm:$0xf] %v5190
        %5447 = vst [vmem:[%s4 + $0x1bc] sm:$0xf] %v5191
        %5448 = vst [vmem:[%s4 + $0x1c0] sm:$0xf] %v5192
        %5449 = vst [vmem:[%s4 + $0x1c4] sm:$0xf] %v5193
        %5450 = vst [vmem:[%s4 + $0x1c8] sm:$0xf] %v5194
        %5451 = vst [vmem:[%s4 + $0x1cc] sm:$0xf] %v5195
        %5452 = vst [vmem:[%s4 + $0x1d0] sm:$0xf] %v5196
        %5453 = vst [vmem:[%s4 + $0x1d4] sm:$0xf] %v5197
        %5454 = vst [vmem:[%s4 + $0x1d8] sm:$0xf] %v5198
        %5455 = vst [vmem:[%s4 + $0x1dc] sm:$0xf] %v5199
        %5456 = vst [vmem:[%s4 + $0x1e0] sm:$0xf] %v5200
        %5457 = vst [vmem:[%s4 + $0x1e4] sm:$0xf] %v5201
        %5458 = vst [vmem:[%s4 + $0x1e8] sm:$0xf] %v5202
        %5459 = vst [vmem:[%s4 + $0x1ec] sm:$0xf] %v5203
        %5460 = vst [vmem:[%s4 + $0x1f0] sm:$0xf] %v5204
        %5461 = vst [vmem:[%s4 + $0x1f4] sm:$0xf] %v5205
        %5462 = vst [vmem:[%s4 + $0x1f8] sm:$0xf] %v5206
        %5463 = vst [vmem:[%s4 + $0x1fc] sm:$0xf] %v5207
      $region44: #{resnet_small_forward.9} parent=35 // pred_fallthru
        _
      // Predicated region
      $region45: #{resnet_small_forward.9} parent=35 // pred_check
        %p5464 = pneg %p117
      $region46: #{resnet_small_forward.9} parent=35 // pred_check_branch
        %5466 = sbr.rel (%p5464) target = $region48
      $region47: #{resnet_small_forward.9} parent=35 // pred_region
        _
      $region48: #{resnet_small_forward.9} parent=35 // pred_fallthru
        _
      // Predicated region
      $region49: #{resnet_small_forward.9} parent=35 // pred_check
        %p5467 = pneg %p117
      $region50: #{resnet_small_forward.9} parent=35 // pred_check_branch
        %5469 = sbr.rel (%p5467) target = $region52
      $region51: #{resnet_small_forward.9} parent=35 // pred_region
        _
      $region52: #{resnet_small_forward.9} parent=35 // pred_fallthru
        _
    $region36: #{resnet_small_forward.9} parent=5 // pred_fallthru
      _
    %p5470 = scmp.le.s32.totalorder 2, %s10
    // Predicated region
    $region53: #{resnet_small_forward.9} parent=5 // pred_check
      %p5471 = pneg %p5470
    $region54: #{resnet_small_forward.9} parent=5 // pred_check_branch
      %5473 = sbr.rel (%p5471) target = $region56
    $region55: #{resnet_small_forward.9} parent=5 // pred_region
      %s5474 = ssub.s32 %s10, 2
    $region56: #{resnet_small_forward.9} parent=5 // pred_fallthru
      _
  $region6: #{resnet_small_forward.9} parent=0 // loop_footer
    %s14 = sadd.s32 1, %s10
  $region7: #{resnet_small_forward.9} parent=0 // loop_footer_branch
    %9 = sbr.rel target = $region3
  $region8: #{resnet_small_forward.9} parent=0 // loop_exit
    _

// kernel: resnet_small_forward.11
$region0: #{resnet_small_forward.11}
  #allocation0 [shape = 'u32[]', space=smem, size = 0x4, offset = 0x4, fixed_abs, tag = 'smem constant byte address 0x4 - core index']
  #allocation1 [shape = 'u32[144,128]{1,0:T(1,128)}', space=vmem, size = 0x12000, scoped, tag = 'internal scratch']
  #allocation2 [shape = 'f32[128,128]{1,0:T(8,128)}', space=vmem, size = 0x10000, scoped, tag = 'scratch operand']
  #allocation3 [shape = 'f32[1,128]{1,0:T(1,128)}', space=vmem, size = 0x200, scoped, tag = 'scratch operand']
  #allocation4 [shape = 'f32[1,128]{1,0:T(1,128)}', space=vmem, size = 0x200, scoped, tag = 'scratch operand']
  %s0 = inlined_call_operand.vmem [shape: bf16[128,512], index: 0, kind: input, shape index: {}]
  %s1 = inlined_call_operand.vmem [shape: bf16[512,128], index: 1, kind: input, shape index: {}]
  %s2 = inlined_call_operand.vmem [shape: f32[1,128], index: 2, kind: input, shape index: {}]
  %s3 = inlined_call_operand.vmem [shape: f32[1,128], index: 3, kind: input, shape index: {}]
  %s4 = inlined_call_operand.vmem [shape: bf16[128,128], index: 4, kind: output, shape index: {}]
  %s5 = sld [smem:[#allocation0]]
  $region34: #{resnet_small_forward.11} parent=0
    _
  %s7 = ssub.s32 1, %s5
  %s8 = scalar_select 0, %s7, %s5
  // Predicated region
  $region2: #{resnet_small_forward.11} parent=0 // pred_check
    _
  $region3: #{resnet_small_forward.11} parent=0 // pred_check_branch
    %10 = sbr.rel (0) target = $region5
  $region4: #{resnet_small_forward.11} parent=0 // pred_region
    _
  $region5: #{resnet_small_forward.11} parent=0 // pred_fallthru
    _
  // Predicated region
  $region6: #{resnet_small_forward.11} parent=0 // pred_check
    _
  $region7: #{resnet_small_forward.11} parent=0 // pred_check_branch
    %12 = sbr.rel (0) target = $region9
  $region8: #{resnet_small_forward.11} parent=0 // pred_region
    _
  $region9: #{resnet_small_forward.11} parent=0 // pred_fallthru
    _
  // Predicated region
  $region10: #{resnet_small_forward.11} parent=0 // pred_check
    _
  $region11: #{resnet_small_forward.11} parent=0 // pred_check_branch
    %14 = sbr.rel (0) target = $region13
  $region12: #{resnet_small_forward.11} parent=0 // pred_region
    _
  $region13: #{resnet_small_forward.11} parent=0 // pred_fallthru
    _
  // Predicated region
  $region14: #{resnet_small_forward.11} parent=0 // pred_check
    _
  $region15: #{resnet_small_forward.11} parent=0 // pred_check_branch
    %16 = sbr.rel (0) target = $region17
  $region16: #{resnet_small_forward.11} parent=0 // pred_region
    _
  $region17: #{resnet_small_forward.11} parent=0 // pred_fallthru
    _
  %v18 = vld [vmem:[%s0] sm:$0xff]
  %v19 = vld [vmem:[%s0 + $0x8] sm:$0xff]
  %v20 = vld [vmem:[%s0 + $0x10] sm:$0xff]
  %v21 = vld [vmem:[%s0 + $0x18] sm:$0xff]
  %v22 = vld [vmem:[%s0 + $0x20] sm:$0xff]
  %v23 = vld [vmem:[%s0 + $0x28] sm:$0xff]
  %v24 = vld [vmem:[%s0 + $0x30] sm:$0xff]
  %v25 = vld [vmem:[%s0 + $0x38] sm:$0xff]
  %v26 = vld [vmem:[%s0 + $0x40] sm:$0xff]
  %v27 = vld [vmem:[%s0 + $0x48] sm:$0xff]
  %v28 = vld [vmem:[%s0 + $0x50] sm:$0xff]
  %v29 = vld [vmem:[%s0 + $0x58] sm:$0xff]
  %v30 = vld [vmem:[%s0 + $0x60] sm:$0xff]
  %v31 = vld [vmem:[%s0 + $0x68] sm:$0xff]
  %v32 = vld [vmem:[%s0 + $0x70] sm:$0xff]
  %v33 = vld [vmem:[%s0 + $0x78] sm:$0xff]
  %v34 = vld [vmem:[%s0 + $0x80] sm:$0xff]
  %v35 = vld [vmem:[%s0 + $0x88] sm:$0xff]
  %v36 = vld [vmem:[%s0 + $0x90] sm:$0xff]
  %v37 = vld [vmem:[%s0 + $0x98] sm:$0xff]
  %v38 = vld [vmem:[%s0 + $0xa0] sm:$0xff]
  %v39 = vld [vmem:[%s0 + $0xa8] sm:$0xff]
  %v40 = vld [vmem:[%s0 + $0xb0] sm:$0xff]
  %v41 = vld [vmem:[%s0 + $0xb8] sm:$0xff]
  %v42 = vld [vmem:[%s0 + $0xc0] sm:$0xff]
  %v43 = vld [vmem:[%s0 + $0xc8] sm:$0xff]
  %v44 = vld [vmem:[%s0 + $0xd0] sm:$0xff]
  %v45 = vld [vmem:[%s0 + $0xd8] sm:$0xff]
  %v46 = vld [vmem:[%s0 + $0xe0] sm:$0xff]
  %v47 = vld [vmem:[%s0 + $0xe8] sm:$0xff]
  %v48 = vld [vmem:[%s0 + $0xf0] sm:$0xff]
  %v49 = vld [vmem:[%s0 + $0xf8] sm:$0xff]
  %v50 = vld [vmem:[%s1] sm:$0xf]
  %v51 = vld [vmem:[%s1 + $0x4] sm:$0xf]
  %v52 = vld [vmem:[%s1 + $0x8] sm:$0xf]
  %v53 = vld [vmem:[%s1 + $0xc] sm:$0xf]
  %v54 = vld [vmem:[%s1 + $0x10] sm:$0xf]
  %v55 = vld [vmem:[%s1 + $0x14] sm:$0xf]
  %v56 = vld [vmem:[%s1 + $0x18] sm:$0xf]
  %v57 = vld [vmem:[%s1 + $0x1c] sm:$0xf]
  %v58 = vld [vmem:[%s1 + $0x20] sm:$0xf]
  %v59 = vld [vmem:[%s1 + $0x24] sm:$0xf]
  %v60 = vld [vmem:[%s1 + $0x28] sm:$0xf]
  %v61 = vld [vmem:[%s1 + $0x2c] sm:$0xf]
  %v62 = vld [vmem:[%s1 + $0x30] sm:$0xf]
  %v63 = vld [vmem:[%s1 + $0x34] sm:$0xf]
  %v64 = vld [vmem:[%s1 + $0x38] sm:$0xf]
  %v65 = vld [vmem:[%s1 + $0x3c] sm:$0xf]
  %v66 = vld [vmem:[%s1 + $0x40] sm:$0xf]
  %v67 = vld [vmem:[%s1 + $0x44] sm:$0xf]
  %v68 = vld [vmem:[%s1 + $0x48] sm:$0xf]
  %v69 = vld [vmem:[%s1 + $0x4c] sm:$0xf]
  %v70 = vld [vmem:[%s1 + $0x50] sm:$0xf]
  %v71 = vld [vmem:[%s1 + $0x54] sm:$0xf]
  %v72 = vld [vmem:[%s1 + $0x58] sm:$0xf]
  %v73 = vld [vmem:[%s1 + $0x5c] sm:$0xf]
  %v74 = vld [vmem:[%s1 + $0x60] sm:$0xf]
  %v75 = vld [vmem:[%s1 + $0x64] sm:$0xf]
  %v76 = vld [vmem:[%s1 + $0x68] sm:$0xf]
  %v77 = vld [vmem:[%s1 + $0x6c] sm:$0xf]
  %v78 = vld [vmem:[%s1 + $0x70] sm:$0xf]
  %v79 = vld [vmem:[%s1 + $0x74] sm:$0xf]
  %v80 = vld [vmem:[%s1 + $0x78] sm:$0xf]
  %v81 = vld [vmem:[%s1 + $0x7c] sm:$0xf]
  %v82 = vld [vmem:[%s1 + $0x80] sm:$0xf]
  %v83 = vld [vmem:[%s1 + $0x84] sm:$0xf]
  %v84 = vld [vmem:[%s1 + $0x88] sm:$0xf]
  %v85 = vld [vmem:[%s1 + $0x8c] sm:$0xf]
  %v86 = vld [vmem:[%s1 + $0x90] sm:$0xf]
  %v87 = vld [vmem:[%s1 + $0x94] sm:$0xf]
  %v88 = vld [vmem:[%s1 + $0x98] sm:$0xf]
  %v89 = vld [vmem:[%s1 + $0x9c] sm:$0xf]
  %v90 = vld [vmem:[%s1 + $0xa0] sm:$0xf]
  %v91 = vld [vmem:[%s1 + $0xa4] sm:$0xf]
  %v92 = vld [vmem:[%s1 + $0xa8] sm:$0xf]
  %v93 = vld [vmem:[%s1 + $0xac] sm:$0xf]
  %v94 = vld [vmem:[%s1 + $0xb0] sm:$0xf]
  %v95 = vld [vmem:[%s1 + $0xb4] sm:$0xf]
  %v96 = vld [vmem:[%s1 + $0xb8] sm:$0xf]
  %v97 = vld [vmem:[%s1 + $0xbc] sm:$0xf]
  %v98 = vld [vmem:[%s1 + $0xc0] sm:$0xf]
  %v99 = vld [vmem:[%s1 + $0xc4] sm:$0xf]
  %v100 = vld [vmem:[%s1 + $0xc8] sm:$0xf]
  %v101 = vld [vmem:[%s1 + $0xcc] sm:$0xf]
  %v102 = vld [vmem:[%s1 + $0xd0] sm:$0xf]
  %v103 = vld [vmem:[%s1 + $0xd4] sm:$0xf]
  %v104 = vld [vmem:[%s1 + $0xd8] sm:$0xf]
  %v105 = vld [vmem:[%s1 + $0xdc] sm:$0xf]
  %v106 = vld [vmem:[%s1 + $0xe0] sm:$0xf]
  %v107 = vld [vmem:[%s1 + $0xe4] sm:$0xf]
  %v108 = vld [vmem:[%s1 + $0xe8] sm:$0xf]
  %v109 = vld [vmem:[%s1 + $0xec] sm:$0xf]
  %v110 = vld [vmem:[%s1 + $0xf0] sm:$0xf]
  %v111 = vld [vmem:[%s1 + $0xf4] sm:$0xf]
  %v112 = vld [vmem:[%s1 + $0xf8] sm:$0xf]
  %v113 = vld [vmem:[%s1 + $0xfc] sm:$0xf]
  %v146 = vunpack.c.l.b16 %v18
  %v147 = vunpack.c.h.b16 %v18
  %v148 = vunpack.c.l.b16 %v19
  %v149 = vunpack.c.h.b16 %v19
  %v150 = vunpack.c.l.b16 %v20
  %v151 = vunpack.c.h.b16 %v20
  %v152 = vunpack.c.l.b16 %v21
  %v153 = vunpack.c.h.b16 %v21
  %v154 = vunpack.c.l.b16 %v22
  %v155 = vunpack.c.h.b16 %v22
  %v156 = vunpack.c.l.b16 %v23
  %v157 = vunpack.c.h.b16 %v23
  %v158 = vunpack.c.l.b16 %v24
  %v159 = vunpack.c.h.b16 %v24
  %v160 = vunpack.c.l.b16 %v25
  %v161 = vunpack.c.h.b16 %v25
  %v162 = vunpack.c.l.b16 %v26
  %v163 = vunpack.c.h.b16 %v26
  %v164 = vunpack.c.l.b16 %v27
  %v165 = vunpack.c.h.b16 %v27
  %v166 = vunpack.c.l.b16 %v28
  %v167 = vunpack.c.h.b16 %v28
  %v168 = vunpack.c.l.b16 %v29
  %v169 = vunpack.c.h.b16 %v29
  %v170 = vunpack.c.l.b16 %v30
  %v171 = vunpack.c.h.b16 %v30
  %v172 = vunpack.c.l.b16 %v31
  %v173 = vunpack.c.h.b16 %v31
  %v174 = vunpack.c.l.b16 %v32
  %v175 = vunpack.c.h.b16 %v32
  %v176 = vunpack.c.l.b16 %v33
  %v177 = vunpack.c.h.b16 %v33
  %v178 = vunpack.c.l.b16 %v34
  %v179 = vunpack.c.h.b16 %v34
  %v180 = vunpack.c.l.b16 %v35
  %v181 = vunpack.c.h.b16 %v35
  %v182 = vunpack.c.l.b16 %v36
  %v183 = vunpack.c.h.b16 %v36
  %v184 = vunpack.c.l.b16 %v37
  %v185 = vunpack.c.h.b16 %v37
  %v186 = vunpack.c.l.b16 %v38
  %v187 = vunpack.c.h.b16 %v38
  %v188 = vunpack.c.l.b16 %v39
  %v189 = vunpack.c.h.b16 %v39
  %v190 = vunpack.c.l.b16 %v40
  %v191 = vunpack.c.h.b16 %v40
  %v192 = vunpack.c.l.b16 %v41
  %v193 = vunpack.c.h.b16 %v41
  %v194 = vunpack.c.l.b16 %v42
  %v195 = vunpack.c.h.b16 %v42
  %v196 = vunpack.c.l.b16 %v43
  %v197 = vunpack.c.h.b16 %v43
  %v198 = vunpack.c.l.b16 %v44
  %v199 = vunpack.c.h.b16 %v44
  %v200 = vunpack.c.l.b16 %v45
  %v201 = vunpack.c.h.b16 %v45
  %v202 = vunpack.c.l.b16 %v46
  %v203 = vunpack.c.h.b16 %v46
  %v204 = vunpack.c.l.b16 %v47
  %v205 = vunpack.c.h.b16 %v47
  %v206 = vunpack.c.l.b16 %v48
  %v207 = vunpack.c.h.b16 %v48
  %v208 = vunpack.c.l.b16 %v49
  %v209 = vunpack.c.h.b16 %v49
  %v210 = vpack.c.b16 %v150, %v146
  %v211 = vpack.c.b16 %v151, %v147
  %v212 = vpack.c.b16 %v152, %v148
  %v213 = vpack.c.b16 %v153, %v149
  %v214 = vpack.c.b16 %v158, %v154
  %v215 = vpack.c.b16 %v159, %v155
  %v216 = vpack.c.b16 %v160, %v156
  %v217 = vpack.c.b16 %v161, %v157
  %v218 = vpack.c.b16 %v166, %v162
  %v219 = vpack.c.b16 %v167, %v163
  %v220 = vpack.c.b16 %v168, %v164
  %v221 = vpack.c.b16 %v169, %v165
  %v222 = vpack.c.b16 %v174, %v170
  %v223 = vpack.c.b16 %v175, %v171
  %v224 = vpack.c.b16 %v176, %v172
  %v225 = vpack.c.b16 %v177, %v173
  %v226 = vpack.c.b16 %v182, %v178
  %v227 = vpack.c.b16 %v183, %v179
  %v228 = vpack.c.b16 %v184, %v180
  %v229 = vpack.c.b16 %v185, %v181
  %v230 = vpack.c.b16 %v190, %v186
  %v231 = vpack.c.b16 %v191, %v187
  %v232 = vpack.c.b16 %v192, %v188
  %v233 = vpack.c.b16 %v193, %v189
  %v234 = vpack.c.b16 %v198, %v194
  %v235 = vpack.c.b16 %v199, %v195
  %v236 = vpack.c.b16 %v200, %v196
  %v237 = vpack.c.b16 %v201, %v197
  %v238 = vpack.c.b16 %v206, %v202
  %v239 = vpack.c.b16 %v207, %v203
  %v240 = vpack.c.b16 %v208, %v204
  %v241 = vpack.c.b16 %v209, %v205
  %v338 = vunpack.c.l.b16 %v50
  %v339 = vunpack.c.l.b16 %v51
  %v340 = vunpack.c.l.b16 %v52
  %v341 = vunpack.c.l.b16 %v53
  %v342 = vunpack.c.l.b16 %v54
  %v343 = vunpack.c.l.b16 %v55
  %v344 = vunpack.c.l.b16 %v56
  %v345 = vunpack.c.l.b16 %v57
  %v346 = vunpack.c.l.b16 %v58
  %v347 = vunpack.c.l.b16 %v59
  %v348 = vunpack.c.l.b16 %v60
  %v349 = vunpack.c.l.b16 %v61
  %v350 = vunpack.c.l.b16 %v62
  %v351 = vunpack.c.l.b16 %v63
  %v352 = vunpack.c.l.b16 %v64
  %v353 = vunpack.c.l.b16 %v65
  %v354 = vunpack.c.l.b16 %v66
  %v355 = vunpack.c.l.b16 %v67
  %v356 = vunpack.c.l.b16 %v68
  %v357 = vunpack.c.l.b16 %v69
  %v358 = vunpack.c.l.b16 %v70
  %v359 = vunpack.c.l.b16 %v71
  %v360 = vunpack.c.l.b16 %v72
  %v361 = vunpack.c.l.b16 %v73
  %v362 = vunpack.c.l.b16 %v74
  %v363 = vunpack.c.l.b16 %v75
  %v364 = vunpack.c.l.b16 %v76
  %v365 = vunpack.c.l.b16 %v77
  %v366 = vunpack.c.l.b16 %v78
  %v367 = vunpack.c.l.b16 %v79
  %v368 = vunpack.c.l.b16 %v80
  %v369 = vunpack.c.l.b16 %v81
  %v370 = vunpack.c.l.b16 %v82
  %v371 = vunpack.c.l.b16 %v83
  %v372 = vunpack.c.l.b16 %v84
  %v373 = vunpack.c.l.b16 %v85
  %v374 = vunpack.c.l.b16 %v86
  %v375 = vunpack.c.l.b16 %v87
  %v376 = vunpack.c.l.b16 %v88
  %v377 = vunpack.c.l.b16 %v89
  %v378 = vunpack.c.l.b16 %v90
  %v379 = vunpack.c.l.b16 %v91
  %v380 = vunpack.c.l.b16 %v92
  %v381 = vunpack.c.l.b16 %v93
  %v382 = vunpack.c.l.b16 %v94
  %v383 = vunpack.c.l.b16 %v95
  %v384 = vunpack.c.l.b16 %v96
  %v385 = vunpack.c.l.b16 %v97
  %v386 = vunpack.c.l.b16 %v98
  %v387 = vunpack.c.l.b16 %v99
  %v388 = vunpack.c.l.b16 %v100
  %v389 = vunpack.c.l.b16 %v101
  %v390 = vunpack.c.l.b16 %v102
  %v391 = vunpack.c.l.b16 %v103
  %v392 = vunpack.c.l.b16 %v104
  %v393 = vunpack.c.l.b16 %v105
  %v394 = vunpack.c.l.b16 %v106
  %v395 = vunpack.c.l.b16 %v107
  %v396 = vunpack.c.l.b16 %v108
  %v397 = vunpack.c.l.b16 %v109
  %v398 = vunpack.c.l.b16 %v110
  %v399 = vunpack.c.l.b16 %v111
  %v400 = vunpack.c.l.b16 %v112
  %v401 = vunpack.c.l.b16 %v113
  %v402 = vpack.c.b16 %v339, %v338
  %v403 = vpack.c.b16 %v341, %v340
  %v404 = vpack.c.b16 %v343, %v342
  %v405 = vpack.c.b16 %v345, %v344
  %v406 = vpack.c.b16 %v347, %v346
  %v407 = vpack.c.b16 %v349, %v348
  %v408 = vpack.c.b16 %v351, %v350
  %v409 = vpack.c.b16 %v353, %v352
  %v410 = vpack.c.b16 %v355, %v354
  %v411 = vpack.c.b16 %v357, %v356
  %v412 = vpack.c.b16 %v359, %v358
  %v413 = vpack.c.b16 %v361, %v360
  %v414 = vpack.c.b16 %v363, %v362
  %v415 = vpack.c.b16 %v365, %v364
  %v416 = vpack.c.b16 %v367, %v366
  %v417 = vpack.c.b16 %v369, %v368
  %v418 = vpack.c.b16 %v371, %v370
  %v419 = vpack.c.b16 %v373, %v372
  %v420 = vpack.c.b16 %v375, %v374
  %v421 = vpack.c.b16 %v377, %v376
  %v422 = vpack.c.b16 %v379, %v378
  %v423 = vpack.c.b16 %v381, %v380
  %v424 = vpack.c.b16 %v383, %v382
  %v425 = vpack.c.b16 %v385, %v384
  %v426 = vpack.c.b16 %v387, %v386
  %v427 = vpack.c.b16 %v389, %v388
  %v428 = vpack.c.b16 %v391, %v390
  %v429 = vpack.c.b16 %v393, %v392
  %v430 = vpack.c.b16 %v395, %v394
  %v431 = vpack.c.b16 %v397, %v396
  %v432 = vpack.c.b16 %v399, %v398
  %v433 = vpack.c.b16 %v401, %v400
  %466 = vmatprep.subr.bf16.mxu0 0
  %467 = vmatpush1.bf16.msra.mxu0 %v409
  %468 = vmatprep.subr.bf16.mxu0 0
  %469 = vmatpush1.bf16.msra.mxu0 %v408
  %470 = vmatprep.subr.bf16.mxu0 0
  %471 = vmatpush1.bf16.msra.mxu0 %v407
  %472 = vmatprep.subr.bf16.mxu0 0
  %473 = vmatpush1.bf16.msra.mxu0 %v406
  %474 = vmatprep.subr.bf16.mxu0 0
  %475 = vmatpush1.bf16.msra.mxu0 %v405
  %476 = vmatprep.subr.bf16.mxu0 0
  %477 = vmatpush1.bf16.msra.mxu0 %v404
  %478 = vmatprep.subr.bf16.mxu0 0
  %479 = vmatpush1.bf16.msra.mxu0 %v403
  %480 = vmatprep.subr.bf16.mxu0 0
  %481 = vmatpush1.bf16.msra.mxu0 %v402
  %482 = vmatprep.subr.bf16.mxu0 0
  %483 = vmatpush2.bf16.msra.mxu0 %v417
  %484 = vmatprep.subr.bf16.mxu0 0
  %485 = vmatpush2.bf16.msra.mxu0 %v416
  %486 = vmatprep.subr.bf16.mxu0 0
  %487 = vmatpush2.bf16.msra.mxu0 %v415
  %488 = vmatprep.subr.bf16.mxu0 0
  %489 = vmatpush2.bf16.msra.mxu0 %v414
  %490 = vmatprep.subr.bf16.mxu0 0
  %491 = vmatpush2.bf16.msra.mxu0 %v413
  %492 = vmatprep.subr.bf16.mxu0 0
  %493 = vmatpush2.bf16.msra.mxu0 %v412
  %494 = vmatprep.subr.bf16.mxu0 0
  %495 = vmatpush2.bf16.msra.mxu0 %v411
  %496 = vmatprep.subr.bf16.mxu0 0
  %497 = vmatpush2.bf16.msra.mxu0 %v410
  %498 = vmatprep.mubr.bf16.mxu0 %v211
  %499 = vmatmul.mubr.bf16.gmra.mxu0 %v210
  %v500 = vpop.f32.mrf.mxu0
  %v501 = vadd.f32 0.0, %v500
  %v502 = vpop.f32.mrf.mxu0
  %v503 = vpop.f32.mrf.mxu0
  %v504 = vadd.f32 0.0, %v503
  %v505 = vpop.f32.mrf.mxu0
  %506 = vmatprep.mubr.bf16.mxu0 %v215
  %507 = vmatmul.mubr.bf16.gmra.mxu0 %v214
  %v508 = vpop.f32.mrf.mxu0
  %v509 = vadd.f32 0.0, %v508
  %v510 = vpop.f32.mrf.mxu0
  %v511 = vpop.f32.mrf.mxu0
  %v512 = vadd.f32 0.0, %v511
  %v513 = vpop.f32.mrf.mxu0
  %514 = vmatprep.mubr.bf16.mxu0 %v219
  %515 = vmatmul.mubr.bf16.gmra.mxu0 %v218
  %v516 = vpop.f32.mrf.mxu0
  %v517 = vadd.f32 0.0, %v516
  %v518 = vpop.f32.mrf.mxu0
  %v519 = vpop.f32.mrf.mxu0
  %v520 = vadd.f32 0.0, %v519
  %v521 = vpop.f32.mrf.mxu0
  %522 = vmatprep.mubr.bf16.mxu0 %v223
  %523 = vmatmul.mubr.bf16.gmra.mxu0 %v222
  %v524 = vpop.f32.mrf.mxu0
  %v525 = vadd.f32 0.0, %v524
  %v526 = vpop.f32.mrf.mxu0
  %v527 = vpop.f32.mrf.mxu0
  %v528 = vadd.f32 0.0, %v527
  %v529 = vpop.f32.mrf.mxu0
  %530 = vmatprep.mubr.bf16.mxu0 %v227
  %531 = vmatmul.mubr.bf16.gmra.mxu0 %v226
  %v532 = vpop.f32.mrf.mxu0
  %v533 = vadd.f32 0.0, %v532
  %v534 = vpop.f32.mrf.mxu0
  %v535 = vpop.f32.mrf.mxu0
  %v536 = vadd.f32 0.0, %v535
  %v537 = vpop.f32.mrf.mxu0
  %538 = vmatprep.mubr.bf16.mxu0 %v231
  %539 = vmatmul.mubr.bf16.gmra.mxu0 %v230
  %v540 = vpop.f32.mrf.mxu0
  %v541 = vadd.f32 0.0, %v540
  %v542 = vpop.f32.mrf.mxu0
  %v543 = vpop.f32.mrf.mxu0
  %v544 = vadd.f32 0.0, %v543
  %v545 = vpop.f32.mrf.mxu0
  %546 = vmatprep.mubr.bf16.mxu0 %v235
  %547 = vmatmul.mubr.bf16.gmra.mxu0 %v234
  %v548 = vpop.f32.mrf.mxu0
  %v549 = vadd.f32 0.0, %v548
  %v550 = vpop.f32.mrf.mxu0
  %v551 = vpop.f32.mrf.mxu0
  %v552 = vadd.f32 0.0, %v551
  %v553 = vpop.f32.mrf.mxu0
  %554 = vmatprep.mubr.bf16.mxu0 %v239
  %555 = vmatmul.mubr.bf16.gmra.mxu0 %v238
  %v556 = vpop.f32.mrf.mxu0
  %v557 = vadd.f32 0.0, %v556
  %v558 = vpop.f32.mrf.mxu0
  %v559 = vpop.f32.mrf.mxu0
  %v560 = vadd.f32 0.0, %v559
  %v561 = vpop.f32.mrf.mxu0
  %562 = vdwg.mxu0
  %563 = vmatprep.subr.bf16.mxu0 0
  %564 = vmatpush1.bf16.msra.mxu0 %v425
  %565 = vmatprep.subr.bf16.mxu0 0
  %566 = vmatpush1.bf16.msra.mxu0 %v424
  %567 = vmatprep.subr.bf16.mxu0 0
  %568 = vmatpush1.bf16.msra.mxu0 %v423
  %569 = vmatprep.subr.bf16.mxu0 0
  %570 = vmatpush1.bf16.msra.mxu0 %v422
  %571 = vmatprep.subr.bf16.mxu0 0
  %572 = vmatpush1.bf16.msra.mxu0 %v421
  %573 = vmatprep.subr.bf16.mxu0 0
  %574 = vmatpush1.bf16.msra.mxu0 %v420
  %575 = vmatprep.subr.bf16.mxu0 0
  %576 = vmatpush1.bf16.msra.mxu0 %v419
  %577 = vmatprep.subr.bf16.mxu0 0
  %578 = vmatpush1.bf16.msra.mxu0 %v418
  %579 = vmatprep.subr.bf16.mxu0 0
  %580 = vmatpush2.bf16.msra.mxu0 %v433
  %581 = vmatprep.subr.bf16.mxu0 0
  %582 = vmatpush2.bf16.msra.mxu0 %v432
  %583 = vmatprep.subr.bf16.mxu0 0
  %584 = vmatpush2.bf16.msra.mxu0 %v431
  %585 = vmatprep.subr.bf16.mxu0 0
  %586 = vmatpush2.bf16.msra.mxu0 %v430
  %587 = vmatprep.subr.bf16.mxu0 0
  %588 = vmatpush2.bf16.msra.mxu0 %v429
  %589 = vmatprep.subr.bf16.mxu0 0
  %590 = vmatpush2.bf16.msra.mxu0 %v428
  %591 = vmatprep.subr.bf16.mxu0 0
  %592 = vmatpush2.bf16.msra.mxu0 %v427
  %593 = vmatprep.subr.bf16.mxu0 0
  %594 = vmatpush2.bf16.msra.mxu0 %v426
  %595 = vmatprep.mubr.bf16.mxu0 %v213
  %596 = vmatmul.mubr.bf16.gmra.mxu0 %v212
  %v597 = vpop.f32.mrf.mxu0
  %v598 = vadd.f32 %v501, %v597
  %v599 = vpop.f32.mrf.mxu0
  %v600 = vpop.f32.mrf.mxu0
  %v601 = vadd.f32 %v504, %v600
  %v602 = vpop.f32.mrf.mxu0
  %603 = vmatprep.mubr.bf16.mxu0 %v217
  %604 = vmatmul.mubr.bf16.gmra.mxu0 %v216
  %v605 = vpop.f32.mrf.mxu0
  %v606 = vadd.f32 %v509, %v605
  %v607 = vpop.f32.mrf.mxu0
  %v608 = vpop.f32.mrf.mxu0
  %v609 = vadd.f32 %v512, %v608
  %v610 = vpop.f32.mrf.mxu0
  %611 = vmatprep.mubr.bf16.mxu0 %v221
  %612 = vmatmul.mubr.bf16.gmra.mxu0 %v220
  %v613 = vpop.f32.mrf.mxu0
  %v614 = vadd.f32 %v517, %v613
  %v615 = vpop.f32.mrf.mxu0
  %v616 = vpop.f32.mrf.mxu0
  %v617 = vadd.f32 %v520, %v616
  %v618 = vpop.f32.mrf.mxu0
  %619 = vmatprep.mubr.bf16.mxu0 %v225
  %620 = vmatmul.mubr.bf16.gmra.mxu0 %v224
  %v621 = vpop.f32.mrf.mxu0
  %v622 = vadd.f32 %v525, %v621
  %v623 = vpop.f32.mrf.mxu0
  %v624 = vpop.f32.mrf.mxu0
  %v625 = vadd.f32 %v528, %v624
  %v626 = vpop.f32.mrf.mxu0
  %627 = vmatprep.mubr.bf16.mxu0 %v229
  %628 = vmatmul.mubr.bf16.gmra.mxu0 %v228
  %v629 = vpop.f32.mrf.mxu0
  %v630 = vadd.f32 %v533, %v629
  %v631 = vpop.f32.mrf.mxu0
  %v632 = vpop.f32.mrf.mxu0
  %v633 = vadd.f32 %v536, %v632
  %v634 = vpop.f32.mrf.mxu0
  %635 = vmatprep.mubr.bf16.mxu0 %v233
  %636 = vmatmul.mubr.bf16.gmra.mxu0 %v232
  %v637 = vpop.f32.mrf.mxu0
  %v638 = vadd.f32 %v541, %v637
  %v639 = vpop.f32.mrf.mxu0
  %v640 = vpop.f32.mrf.mxu0
  %v641 = vadd.f32 %v544, %v640
  %v642 = vpop.f32.mrf.mxu0
  %643 = vmatprep.mubr.bf16.mxu0 %v237
  %644 = vmatmul.mubr.bf16.gmra.mxu0 %v236
  %v645 = vpop.f32.mrf.mxu0
  %v646 = vadd.f32 %v549, %v645
  %v647 = vpop.f32.mrf.mxu0
  %v648 = vpop.f32.mrf.mxu0
  %v649 = vadd.f32 %v552, %v648
  %v650 = vpop.f32.mrf.mxu0
  %651 = vmatprep.mubr.bf16.mxu0 %v241
  %652 = vmatmul.mubr.bf16.gmra.mxu0 %v240
  %v653 = vpop.f32.mrf.mxu0
  %v654 = vadd.f32 %v557, %v653
  %v655 = vpop.f32.mrf.mxu0
  %v656 = vpop.f32.mrf.mxu0
  %v657 = vadd.f32 %v560, %v656
  %v658 = vpop.f32.mrf.mxu0
  %659 = vdwg.mxu0
  %s660 = smul.u32 0, 128
  %s661 = scalar_lea.vmem [#allocation2], %s660
  %662 = vst [vmem:[%s661] sm:$0xff] %v598
  %663 = vst [vmem:[%s661 + $0x8] sm:$0xff] %v601
  %664 = vst [vmem:[%s661 + $0x10] sm:$0xff] %v606
  %665 = vst [vmem:[%s661 + $0x18] sm:$0xff] %v609
  %666 = vst [vmem:[%s661 + $0x20] sm:$0xff] %v614
  %667 = vst [vmem:[%s661 + $0x28] sm:$0xff] %v617
  %668 = vst [vmem:[%s661 + $0x30] sm:$0xff] %v622
  %669 = vst [vmem:[%s661 + $0x38] sm:$0xff] %v625
  %670 = vst [vmem:[%s661 + $0x40] sm:$0xff] %v630
  %671 = vst [vmem:[%s661 + $0x48] sm:$0xff] %v633
  %672 = vst [vmem:[%s661 + $0x50] sm:$0xff] %v638
  %673 = vst [vmem:[%s661 + $0x58] sm:$0xff] %v641
  %674 = vst [vmem:[%s661 + $0x60] sm:$0xff] %v646
  %675 = vst [vmem:[%s661 + $0x68] sm:$0xff] %v649
  %676 = vst [vmem:[%s661 + $0x70] sm:$0xff] %v654
  %677 = vst [vmem:[%s661 + $0x78] sm:$0xff] %v657
  %p678 = scmp.eq.s32.totalorder 0, 0
  // Predicated region
  $region18: #{resnet_small_forward.11} parent=0 // pred_check
    %p679 = pneg %p678
  $region19: #{resnet_small_forward.11} parent=0 // pred_check_branch
    %681 = sbr.rel (%p679) target = $region21
  $region20: #{resnet_small_forward.11} parent=0 // pred_region
    %682 = vst [vmem:[#allocation3] sm:$0x1] 0.0
    %683 = vst [vmem:[#allocation4] sm:$0x1] 0.0
  $region21: #{resnet_small_forward.11} parent=0 // pred_fallthru
    _
  %v684 = vld [vmem:[#allocation3] sm:$0x1]
  %v685 = vadd.f32 %v598, %v601
  %v686 = vadd.f32 %v685, %v606
  %v687 = vadd.f32 %v686, %v609
  %v688 = vadd.f32 %v687, %v614
  %v689 = vadd.f32 %v688, %v617
  %v690 = vadd.f32 %v689, %v622
  %v691 = vadd.f32 %v690, %v625
  %v692 = vadd.f32 %v691, %v630
  %v693 = vadd.f32 %v692, %v633
  %v694 = vadd.f32 %v693, %v638
  %v695 = vadd.f32 %v694, %v641
  %v696 = vadd.f32 %v695, %v646
  %v697 = vadd.f32 %v696, %v649
  %v698 = vadd.f32 %v697, %v654
  %v699 = vadd.f32 %v698, %v657
  %v700 = vrot.slane %v699, 4
  %v701 = vadd.f32 %v699, %v700
  %v702 = vrot.slane %v701, 2
  %v703 = vadd.f32 %v701, %v702
  %v704 = vrot.slane %v703, 1
  %v705 = vadd.f32 %v703, %v704
  %v706 = vadd.f32 %v684, %v705
  %707 = vst [vmem:[#allocation3] sm:$0x1] %v706
  %v708 = vld [vmem:[#allocation4] sm:$0x1]
  %v709 = vmul.f32 %v598, %v598
  %v710 = vmul.f32 %v601, %v601
  %v711 = vmul.f32 %v606, %v606
  %v712 = vmul.f32 %v609, %v609
  %v713 = vmul.f32 %v614, %v614
  %v714 = vmul.f32 %v617, %v617
  %v715 = vmul.f32 %v622, %v622
  %v716 = vmul.f32 %v625, %v625
  %v717 = vmul.f32 %v630, %v630
  %v718 = vmul.f32 %v633, %v633
  %v719 = vmul.f32 %v638, %v638
  %v720 = vmul.f32 %v641, %v641
  %v721 = vmul.f32 %v646, %v646
  %v722 = vmul.f32 %v649, %v649
  %v723 = vmul.f32 %v654, %v654
  %v724 = vmul.f32 %v657, %v657
  %v725 = vadd.f32 %v709, %v710
  %v726 = vadd.f32 %v725, %v711
  %v727 = vadd.f32 %v726, %v712
  %v728 = vadd.f32 %v727, %v713
  %v729 = vadd.f32 %v728, %v714
  %v730 = vadd.f32 %v729, %v715
  %v731 = vadd.f32 %v730, %v716
  %v732 = vadd.f32 %v731, %v717
  %v733 = vadd.f32 %v732, %v718
  %v734 = vadd.f32 %v733, %v719
  %v735 = vadd.f32 %v734, %v720
  %v736 = vadd.f32 %v735, %v721
  %v737 = vadd.f32 %v736, %v722
  %v738 = vadd.f32 %v737, %v723
  %v739 = vadd.f32 %v738, %v724
  %v740 = vrot.slane %v739, 4
  %v741 = vadd.f32 %v739, %v740
  %v742 = vrot.slane %v741, 2
  %v743 = vadd.f32 %v741, %v742
  %v744 = vrot.slane %v743, 1
  %v745 = vadd.f32 %v743, %v744
  %v746 = vadd.f32 %v708, %v745
  %747 = vst [vmem:[#allocation4] sm:$0x1] %v746
  // Predicated region
  $region22: #{resnet_small_forward.11} parent=0 // pred_check
    %p748 = pneg %p678
  $region23: #{resnet_small_forward.11} parent=0 // pred_check_branch
    %750 = sbr.rel (%p748) target = $region25
  $region24: #{resnet_small_forward.11} parent=0 // pred_region
    %v751 = vld [vmem:[#allocation3] sm:$0x1]
    %v752 = vmul.f32 %v751, 0.0078125
    %v753 = vld [vmem:[#allocation4] sm:$0x1]
    %v754 = vmul.f32 %v753, 0.0078125
    %v755 = vmul.f32 %v752, %v752
    %v756 = vsub.f32 %v754, %v755
    %v757 = vmax.f32 %v756, 0.0
    %v758 = vld [vmem:[%s2] sm:$0x1]
    %v759 = vadd.f32 %v757, 1e-05
    %v760 = vrsqrt.pop %v759
    %v761 = vmul.f32 %v758, %v760
    %v762 = vld [vmem:[%s3] sm:$0x1]
    %v763 = vmul.f32 %v752, %v761
    %v764 = vsub.f32 %v762, %v763
    %v765 = vld [vmem:[#allocation2] sm:$0xff]
    %v766 = vld [vmem:[#allocation2 + $0x8] sm:$0xff]
    %v767 = vld [vmem:[#allocation2 + $0x10] sm:$0xff]
    %v768 = vld [vmem:[#allocation2 + $0x18] sm:$0xff]
    %v769 = vld [vmem:[#allocation2 + $0x20] sm:$0xff]
    %v770 = vld [vmem:[#allocation2 + $0x28] sm:$0xff]
    %v771 = vld [vmem:[#allocation2 + $0x30] sm:$0xff]
    %v772 = vld [vmem:[#allocation2 + $0x38] sm:$0xff]
    %v773 = vld [vmem:[#allocation2 + $0x40] sm:$0xff]
    %v774 = vld [vmem:[#allocation2 + $0x48] sm:$0xff]
    %v775 = vld [vmem:[#allocation2 + $0x50] sm:$0xff]
    %v776 = vld [vmem:[#allocation2 + $0x58] sm:$0xff]
    %v777 = vld [vmem:[#allocation2 + $0x60] sm:$0xff]
    %v778 = vld [vmem:[#allocation2 + $0x68] sm:$0xff]
    %v779 = vld [vmem:[#allocation2 + $0x70] sm:$0xff]
    %v780 = vld [vmem:[#allocation2 + $0x78] sm:$0xff]
    %v782 = vlaneseq
    %v783 = vshrl.u32 %v782, 7
    %v784 = vsub.s32 0, %v783
    %v785 = vrot.slane %v761, %v784
    %v787 = vmul.f32 %v765, %v785
    %v788 = vmul.f32 %v766, %v785
    %v789 = vmul.f32 %v767, %v785
    %v790 = vmul.f32 %v768, %v785
    %v791 = vmul.f32 %v769, %v785
    %v792 = vmul.f32 %v770, %v785
    %v793 = vmul.f32 %v771, %v785
    %v794 = vmul.f32 %v772, %v785
    %v795 = vmul.f32 %v773, %v785
    %v796 = vmul.f32 %v774, %v785
    %v797 = vmul.f32 %v775, %v785
    %v798 = vmul.f32 %v776, %v785
    %v799 = vmul.f32 %v777, %v785
    %v800 = vmul.f32 %v778, %v785
    %v801 = vmul.f32 %v779, %v785
    %v802 = vmul.f32 %v780, %v785
    %v804 = vlaneseq
    %v805 = vshrl.u32 %v804, 7
    %v806 = vsub.s32 0, %v805
    %v807 = vrot.slane %v764, %v806
    %v809 = vadd.f32 %v787, %v807
    %v810 = vadd.f32 %v788, %v807
    %v811 = vadd.f32 %v789, %v807
    %v812 = vadd.f32 %v790, %v807
    %v813 = vadd.f32 %v791, %v807
    %v814 = vadd.f32 %v792, %v807
    %v815 = vadd.f32 %v793, %v807
    %v816 = vadd.f32 %v794, %v807
    %v817 = vadd.f32 %v795, %v807
    %v818 = vadd.f32 %v796, %v807
    %v819 = vadd.f32 %v797, %v807
    %v820 = vadd.f32 %v798, %v807
    %v821 = vadd.f32 %v799, %v807
    %v822 = vadd.f32 %v800, %v807
    %v823 = vadd.f32 %v801, %v807
    %v824 = vadd.f32 %v802, %v807
    %v825 = vmax.f32 %v809, 0.0
    %v826 = vmax.f32 %v810, 0.0
    %v827 = vmax.f32 %v811, 0.0
    %v828 = vmax.f32 %v812, 0.0
    %v829 = vmax.f32 %v813, 0.0
    %v830 = vmax.f32 %v814, 0.0
    %v831 = vmax.f32 %v815, 0.0
    %v832 = vmax.f32 %v816, 0.0
    %v833 = vmax.f32 %v817, 0.0
    %v834 = vmax.f32 %v818, 0.0
    %v835 = vmax.f32 %v819, 0.0
    %v836 = vmax.f32 %v820, 0.0
    %v837 = vmax.f32 %v821, 0.0
    %v838 = vmax.f32 %v822, 0.0
    %v839 = vmax.f32 %v823, 0.0
    %v840 = vmax.f32 %v824, 0.0
    %v841 = vpack.c.bf16 %v826, %v825
    %v842 = vpack.c.bf16 %v828, %v827
    %v843 = vpack.c.bf16 %v830, %v829
    %v844 = vpack.c.bf16 %v832, %v831
    %v845 = vpack.c.bf16 %v834, %v833
    %v846 = vpack.c.bf16 %v836, %v835
    %v847 = vpack.c.bf16 %v838, %v837
    %v848 = vpack.c.bf16 %v840, %v839
    %v857 = vunpack.c.l.b16 %v841
    %v858 = vunpack.c.h.b16 %v841
    %v859 = vunpack.c.l.b16 %v842
    %v860 = vunpack.c.h.b16 %v842
    %v861 = vunpack.c.l.b16 %v843
    %v862 = vunpack.c.h.b16 %v843
    %v863 = vunpack.c.l.b16 %v844
    %v864 = vunpack.c.h.b16 %v844
    %v865 = vunpack.c.l.b16 %v845
    %v866 = vunpack.c.h.b16 %v845
    %v867 = vunpack.c.l.b16 %v846
    %v868 = vunpack.c.h.b16 %v846
    %v869 = vunpack.c.l.b16 %v847
    %v870 = vunpack.c.h.b16 %v847
    %v871 = vunpack.c.l.b16 %v848
    %v872 = vunpack.c.h.b16 %v848
    %v873 = vpack.c.b16 %v857, %v857
    %v874 = vpack.c.b16 %v858, %v858
    %v875 = vpack.c.b16 %v859, %v859
    %v876 = vpack.c.b16 %v860, %v860
    %v877 = vpack.c.b16 %v861, %v861
    %v878 = vpack.c.b16 %v862, %v862
    %v879 = vpack.c.b16 %v863, %v863
    %v880 = vpack.c.b16 %v864, %v864
    %v881 = vpack.c.b16 %v865, %v865
    %v882 = vpack.c.b16 %v866, %v866
    %v883 = vpack.c.b16 %v867, %v867
    %v884 = vpack.c.b16 %v868, %v868
    %v885 = vpack.c.b16 %v869, %v869
    %v886 = vpack.c.b16 %v870, %v870
    %v887 = vpack.c.b16 %v871, %v871
    %v888 = vpack.c.b16 %v872, %v872
    %905 = vst [vmem:[%s4] sm:$0xf] %v873
    %906 = vst [vmem:[%s4 + $0x4] sm:$0xf] %v874
    %907 = vst [vmem:[%s4 + $0x8] sm:$0xf] %v875
    %908 = vst [vmem:[%s4 + $0xc] sm:$0xf] %v876
    %909 = vst [vmem:[%s4 + $0x10] sm:$0xf] %v877
    %910 = vst [vmem:[%s4 + $0x14] sm:$0xf] %v878
    %911 = vst [vmem:[%s4 + $0x18] sm:$0xf] %v879
    %912 = vst [vmem:[%s4 + $0x1c] sm:$0xf] %v880
    %913 = vst [vmem:[%s4 + $0x20] sm:$0xf] %v881
    %914 = vst [vmem:[%s4 + $0x24] sm:$0xf] %v882
    %915 = vst [vmem:[%s4 + $0x28] sm:$0xf] %v883
    %916 = vst [vmem:[%s4 + $0x2c] sm:$0xf] %v884
    %917 = vst [vmem:[%s4 + $0x30] sm:$0xf] %v885
    %918 = vst [vmem:[%s4 + $0x34] sm:$0xf] %v886
    %919 = vst [vmem:[%s4 + $0x38] sm:$0xf] %v887
    %920 = vst [vmem:[%s4 + $0x3c] sm:$0xf] %v888
  $region25: #{resnet_small_forward.11} parent=0 // pred_fallthru
    _
  // Predicated region
  $region26: #{resnet_small_forward.11} parent=0 // pred_check
    _
  $region27: #{resnet_small_forward.11} parent=0 // pred_check_branch
    %922 = sbr.rel (0) target = $region29
  $region28: #{resnet_small_forward.11} parent=0 // pred_region
    _
  $region29: #{resnet_small_forward.11} parent=0 // pred_fallthru
    _
  // Predicated region
  $region30: #{resnet_small_forward.11} parent=0 // pred_check
    _
  $region31: #{resnet_small_forward.11} parent=0 // pred_check_branch
    %924 = sbr.rel (0) target = $region33
  $region32: #{resnet_small_forward.11} parent=0 // pred_region
    _
  $region33: #{resnet_small_forward.11} parent=0 // pred_fallthru
    _

// kernel: resnet_small_forward.12
$region0: #{resnet_small_forward.12}
  #allocation0 [shape = 'u32[]', space=smem, size = 0x4, offset = 0x4, fixed_abs, tag = 'smem constant byte address 0x4 - core index']
  #allocation1 [shape = 'u32[144,128]{1,0:T(1,128)}', space=vmem, size = 0x12000, scoped, tag = 'internal scratch']
  #allocation2 [shape = 'f32[128,128]{1,0:T(8,128)}', space=vmem, size = 0x10000, scoped, tag = 'scratch operand']
  #allocation3 [shape = 'f32[1,128]{1,0:T(1,128)}', space=vmem, size = 0x200, scoped, tag = 'scratch operand']
  #allocation4 [shape = 'f32[1,128]{1,0:T(1,128)}', space=vmem, size = 0x200, scoped, tag = 'scratch operand']
  %s0 = inlined_call_operand.vmem [shape: bf16[128,128], index: 0, kind: input, shape index: {}]
  %s1 = inlined_call_operand.vmem [shape: bf16[128,128], index: 1, kind: input, shape index: {}]
  %s2 = inlined_call_operand.vmem [shape: f32[1,128], index: 2, kind: input, shape index: {}]
  %s3 = inlined_call_operand.vmem [shape: f32[1,128], index: 3, kind: input, shape index: {}]
  %s4 = inlined_call_operand.vmem [shape: bf16[128,128], index: 4, kind: output, shape index: {}]
  %s5 = sld [smem:[#allocation0]]
  $region34: #{resnet_small_forward.12} parent=0
    _
  %s7 = ssub.s32 1, %s5
  %s8 = scalar_select 0, %s7, %s5
  // Predicated region
  $region2: #{resnet_small_forward.12} parent=0 // pred_check
    _
  $region3: #{resnet_small_forward.12} parent=0 // pred_check_branch
    %10 = sbr.rel (0) target = $region5
  $region4: #{resnet_small_forward.12} parent=0 // pred_region
    _
  $region5: #{resnet_small_forward.12} parent=0 // pred_fallthru
    _
  // Predicated region
  $region6: #{resnet_small_forward.12} parent=0 // pred_check
    _
  $region7: #{resnet_small_forward.12} parent=0 // pred_check_branch
    %12 = sbr.rel (0) target = $region9
  $region8: #{resnet_small_forward.12} parent=0 // pred_region
    _
  $region9: #{resnet_small_forward.12} parent=0 // pred_fallthru
    _
  // Predicated region
  $region10: #{resnet_small_forward.12} parent=0 // pred_check
    _
  $region11: #{resnet_small_forward.12} parent=0 // pred_check_branch
    %14 = sbr.rel (0) target = $region13
  $region12: #{resnet_small_forward.12} parent=0 // pred_region
    _
  $region13: #{resnet_small_forward.12} parent=0 // pred_fallthru
    _
  // Predicated region
  $region14: #{resnet_small_forward.12} parent=0 // pred_check
    _
  $region15: #{resnet_small_forward.12} parent=0 // pred_check_branch
    %16 = sbr.rel (0) target = $region17
  $region16: #{resnet_small_forward.12} parent=0 // pred_region
    _
  $region17: #{resnet_small_forward.12} parent=0 // pred_fallthru
    _
  %v18 = vld [vmem:[%s0] sm:$0xf]
  %v19 = vld [vmem:[%s0 + $0x4] sm:$0xf]
  %v20 = vld [vmem:[%s0 + $0x8] sm:$0xf]
  %v21 = vld [vmem:[%s0 + $0xc] sm:$0xf]
  %v22 = vld [vmem:[%s0 + $0x10] sm:$0xf]
  %v23 = vld [vmem:[%s0 + $0x14] sm:$0xf]
  %v24 = vld [vmem:[%s0 + $0x18] sm:$0xf]
  %v25 = vld [vmem:[%s0 + $0x1c] sm:$0xf]
  %v26 = vld [vmem:[%s0 + $0x20] sm:$0xf]
  %v27 = vld [vmem:[%s0 + $0x24] sm:$0xf]
  %v28 = vld [vmem:[%s0 + $0x28] sm:$0xf]
  %v29 = vld [vmem:[%s0 + $0x2c] sm:$0xf]
  %v30 = vld [vmem:[%s0 + $0x30] sm:$0xf]
  %v31 = vld [vmem:[%s0 + $0x34] sm:$0xf]
  %v32 = vld [vmem:[%s0 + $0x38] sm:$0xf]
  %v33 = vld [vmem:[%s0 + $0x3c] sm:$0xf]
  %v34 = vld [vmem:[%s1] sm:$0xf]
  %v35 = vld [vmem:[%s1 + $0x4] sm:$0xf]
  %v36 = vld [vmem:[%s1 + $0x8] sm:$0xf]
  %v37 = vld [vmem:[%s1 + $0xc] sm:$0xf]
  %v38 = vld [vmem:[%s1 + $0x10] sm:$0xf]
  %v39 = vld [vmem:[%s1 + $0x14] sm:$0xf]
  %v40 = vld [vmem:[%s1 + $0x18] sm:$0xf]
  %v41 = vld [vmem:[%s1 + $0x1c] sm:$0xf]
  %v42 = vld [vmem:[%s1 + $0x20] sm:$0xf]
  %v43 = vld [vmem:[%s1 + $0x24] sm:$0xf]
  %v44 = vld [vmem:[%s1 + $0x28] sm:$0xf]
  %v45 = vld [vmem:[%s1 + $0x2c] sm:$0xf]
  %v46 = vld [vmem:[%s1 + $0x30] sm:$0xf]
  %v47 = vld [vmem:[%s1 + $0x34] sm:$0xf]
  %v48 = vld [vmem:[%s1 + $0x38] sm:$0xf]
  %v49 = vld [vmem:[%s1 + $0x3c] sm:$0xf]
  %v66 = vunpack.c.l.b16 %v18
  %v67 = vunpack.c.l.b16 %v19
  %v68 = vunpack.c.l.b16 %v20
  %v69 = vunpack.c.l.b16 %v21
  %v70 = vunpack.c.l.b16 %v22
  %v71 = vunpack.c.l.b16 %v23
  %v72 = vunpack.c.l.b16 %v24
  %v73 = vunpack.c.l.b16 %v25
  %v74 = vunpack.c.l.b16 %v26
  %v75 = vunpack.c.l.b16 %v27
  %v76 = vunpack.c.l.b16 %v28
  %v77 = vunpack.c.l.b16 %v29
  %v78 = vunpack.c.l.b16 %v30
  %v79 = vunpack.c.l.b16 %v31
  %v80 = vunpack.c.l.b16 %v32
  %v81 = vunpack.c.l.b16 %v33
  %v82 = vpack.c.b16 %v67, %v66
  %v83 = vpack.c.b16 %v69, %v68
  %v84 = vpack.c.b16 %v71, %v70
  %v85 = vpack.c.b16 %v73, %v72
  %v86 = vpack.c.b16 %v75, %v74
  %v87 = vpack.c.b16 %v77, %v76
  %v88 = vpack.c.b16 %v79, %v78
  %v89 = vpack.c.b16 %v81, %v80
  %v114 = vunpack.c.l.b16 %v34
  %v115 = vunpack.c.l.b16 %v35
  %v116 = vunpack.c.l.b16 %v36
  %v117 = vunpack.c.l.b16 %v37
  %v118 = vunpack.c.l.b16 %v38
  %v119 = vunpack.c.l.b16 %v39
  %v120 = vunpack.c.l.b16 %v40
  %v121 = vunpack.c.l.b16 %v41
  %v122 = vunpack.c.l.b16 %v42
  %v123 = vunpack.c.l.b16 %v43
  %v124 = vunpack.c.l.b16 %v44
  %v125 = vunpack.c.l.b16 %v45
  %v126 = vunpack.c.l.b16 %v46
  %v127 = vunpack.c.l.b16 %v47
  %v128 = vunpack.c.l.b16 %v48
  %v129 = vunpack.c.l.b16 %v49
  %v130 = vpack.c.b16 %v115, %v114
  %v131 = vpack.c.b16 %v117, %v116
  %v132 = vpack.c.b16 %v119, %v118
  %v133 = vpack.c.b16 %v121, %v120
  %v134 = vpack.c.b16 %v123, %v122
  %v135 = vpack.c.b16 %v125, %v124
  %v136 = vpack.c.b16 %v127, %v126
  %v137 = vpack.c.b16 %v129, %v128
  %146 = vmatprep.subr.bf16.mxu0 0
  %147 = vmatpush1.bf16.msra.mxu0 %v137
  %148 = vmatprep.subr.bf16.mxu0 0
  %149 = vmatpush1.bf16.msra.mxu0 %v136
  %150 = vmatprep.subr.bf16.mxu0 0
  %151 = vmatpush1.bf16.msra.mxu0 %v135
  %152 = vmatprep.subr.bf16.mxu0 0
  %153 = vmatpush1.bf16.msra.mxu0 %v134
  %154 = vmatprep.subr.bf16.mxu0 0
  %155 = vmatpush1.bf16.msra.mxu0 %v133
  %156 = vmatprep.subr.bf16.mxu0 0
  %157 = vmatpush1.bf16.msra.mxu0 %v132
  %158 = vmatprep.subr.bf16.mxu0 0
  %159 = vmatpush1.bf16.msra.mxu0 %v131
  %160 = vmatprep.subr.bf16.mxu0 0
  %161 = vmatpush1.bf16.msra.mxu0 %v130
  %162 = vmatprep.subr.bf16.mxu0 0
  %163 = vmatpush2.bf16.msra.mxu0 0
  %164 = vmatprep.subr.bf16.mxu0 0
  %165 = vmatpush2.bf16.msra.mxu0 0
  %166 = vmatprep.subr.bf16.mxu0 0
  %167 = vmatpush2.bf16.msra.mxu0 0
  %168 = vmatprep.subr.bf16.mxu0 0
  %169 = vmatpush2.bf16.msra.mxu0 0
  %170 = vmatprep.subr.bf16.mxu0 0
  %171 = vmatpush2.bf16.msra.mxu0 0
  %172 = vmatprep.subr.bf16.mxu0 0
  %173 = vmatpush2.bf16.msra.mxu0 0
  %174 = vmatprep.subr.bf16.mxu0 0
  %175 = vmatpush2.bf16.msra.mxu0 0
  %176 = vmatprep.subr.bf16.mxu0 0
  %177 = vmatpush2.bf16.msra.mxu0 0
  %178 = vmatprep.mubr.bf16.mxu0 0
  %179 = vmatmul.mubr.bf16.gmra.mxu0 %v82
  %v180 = vpop.f32.mrf.mxu0
  %v181 = vadd.f32 0.0, %v180
  %v182 = vpop.f32.mrf.mxu0
  %v183 = vpop.f32.mrf.mxu0
  %v184 = vadd.f32 0.0, %v183
  %v185 = vpop.f32.mrf.mxu0
  %186 = vmatprep.mubr.bf16.mxu0 0
  %187 = vmatmul.mubr.bf16.gmra.mxu0 %v83
  %v188 = vpop.f32.mrf.mxu0
  %v189 = vadd.f32 0.0, %v188
  %v190 = vpop.f32.mrf.mxu0
  %v191 = vpop.f32.mrf.mxu0
  %v192 = vadd.f32 0.0, %v191
  %v193 = vpop.f32.mrf.mxu0
  %194 = vmatprep.mubr.bf16.mxu0 0
  %195 = vmatmul.mubr.bf16.gmra.mxu0 %v84
  %v196 = vpop.f32.mrf.mxu0
  %v197 = vadd.f32 0.0, %v196
  %v198 = vpop.f32.mrf.mxu0
  %v199 = vpop.f32.mrf.mxu0
  %v200 = vadd.f32 0.0, %v199
  %v201 = vpop.f32.mrf.mxu0
  %202 = vmatprep.mubr.bf16.mxu0 0
  %203 = vmatmul.mubr.bf16.gmra.mxu0 %v85
  %v204 = vpop.f32.mrf.mxu0
  %v205 = vadd.f32 0.0, %v204
  %v206 = vpop.f32.mrf.mxu0
  %v207 = vpop.f32.mrf.mxu0
  %v208 = vadd.f32 0.0, %v207
  %v209 = vpop.f32.mrf.mxu0
  %210 = vmatprep.mubr.bf16.mxu0 0
  %211 = vmatmul.mubr.bf16.gmra.mxu0 %v86
  %v212 = vpop.f32.mrf.mxu0
  %v213 = vadd.f32 0.0, %v212
  %v214 = vpop.f32.mrf.mxu0
  %v215 = vpop.f32.mrf.mxu0
  %v216 = vadd.f32 0.0, %v215
  %v217 = vpop.f32.mrf.mxu0
  %218 = vmatprep.mubr.bf16.mxu0 0
  %219 = vmatmul.mubr.bf16.gmra.mxu0 %v87
  %v220 = vpop.f32.mrf.mxu0
  %v221 = vadd.f32 0.0, %v220
  %v222 = vpop.f32.mrf.mxu0
  %v223 = vpop.f32.mrf.mxu0
  %v224 = vadd.f32 0.0, %v223
  %v225 = vpop.f32.mrf.mxu0
  %226 = vmatprep.mubr.bf16.mxu0 0
  %227 = vmatmul.mubr.bf16.gmra.mxu0 %v88
  %v228 = vpop.f32.mrf.mxu0
  %v229 = vadd.f32 0.0, %v228
  %v230 = vpop.f32.mrf.mxu0
  %v231 = vpop.f32.mrf.mxu0
  %v232 = vadd.f32 0.0, %v231
  %v233 = vpop.f32.mrf.mxu0
  %234 = vmatprep.mubr.bf16.mxu0 0
  %235 = vmatmul.mubr.bf16.gmra.mxu0 %v89
  %v236 = vpop.f32.mrf.mxu0
  %v237 = vadd.f32 0.0, %v236
  %v238 = vpop.f32.mrf.mxu0
  %v239 = vpop.f32.mrf.mxu0
  %v240 = vadd.f32 0.0, %v239
  %v241 = vpop.f32.mrf.mxu0
  %242 = vdwg.mxu0
  %s243 = smul.u32 0, 128
  %s244 = scalar_lea.vmem [#allocation2], %s243
  %245 = vst [vmem:[%s244] sm:$0xff] %v181
  %246 = vst [vmem:[%s244 + $0x8] sm:$0xff] %v184
  %247 = vst [vmem:[%s244 + $0x10] sm:$0xff] %v189
  %248 = vst [vmem:[%s244 + $0x18] sm:$0xff] %v192
  %249 = vst [vmem:[%s244 + $0x20] sm:$0xff] %v197
  %250 = vst [vmem:[%s244 + $0x28] sm:$0xff] %v200
  %251 = vst [vmem:[%s244 + $0x30] sm:$0xff] %v205
  %252 = vst [vmem:[%s244 + $0x38] sm:$0xff] %v208
  %253 = vst [vmem:[%s244 + $0x40] sm:$0xff] %v213
  %254 = vst [vmem:[%s244 + $0x48] sm:$0xff] %v216
  %255 = vst [vmem:[%s244 + $0x50] sm:$0xff] %v221
  %256 = vst [vmem:[%s244 + $0x58] sm:$0xff] %v224
  %257 = vst [vmem:[%s244 + $0x60] sm:$0xff] %v229
  %258 = vst [vmem:[%s244 + $0x68] sm:$0xff] %v232
  %259 = vst [vmem:[%s244 + $0x70] sm:$0xff] %v237
  %260 = vst [vmem:[%s244 + $0x78] sm:$0xff] %v240
  %p261 = scmp.eq.s32.totalorder 0, 0
  // Predicated region
  $region18: #{resnet_small_forward.12} parent=0 // pred_check
    %p262 = pneg %p261
  $region19: #{resnet_small_forward.12} parent=0 // pred_check_branch
    %264 = sbr.rel (%p262) target = $region21
  $region20: #{resnet_small_forward.12} parent=0 // pred_region
    %265 = vst [vmem:[#allocation3] sm:$0x1] 0.0
    %266 = vst [vmem:[#allocation4] sm:$0x1] 0.0
  $region21: #{resnet_small_forward.12} parent=0 // pred_fallthru
    _
  %v267 = vld [vmem:[#allocation3] sm:$0x1]
  %v268 = vadd.f32 %v181, %v184
  %v269 = vadd.f32 %v268, %v189
  %v270 = vadd.f32 %v269, %v192
  %v271 = vadd.f32 %v270, %v197
  %v272 = vadd.f32 %v271, %v200
  %v273 = vadd.f32 %v272, %v205
  %v274 = vadd.f32 %v273, %v208
  %v275 = vadd.f32 %v274, %v213
  %v276 = vadd.f32 %v275, %v216
  %v277 = vadd.f32 %v276, %v221
  %v278 = vadd.f32 %v277, %v224
  %v279 = vadd.f32 %v278, %v229
  %v280 = vadd.f32 %v279, %v232
  %v281 = vadd.f32 %v280, %v237
  %v282 = vadd.f32 %v281, %v240
  %v283 = vrot.slane %v282, 4
  %v284 = vadd.f32 %v282, %v283
  %v285 = vrot.slane %v284, 2
  %v286 = vadd.f32 %v284, %v285
  %v287 = vrot.slane %v286, 1
  %v288 = vadd.f32 %v286, %v287
  %v289 = vadd.f32 %v267, %v288
  %290 = vst [vmem:[#allocation3] sm:$0x1] %v289
  %v291 = vld [vmem:[#allocation4] sm:$0x1]
  %v292 = vmul.f32 %v181, %v181
  %v293 = vmul.f32 %v184, %v184
  %v294 = vmul.f32 %v189, %v189
  %v295 = vmul.f32 %v192, %v192
  %v296 = vmul.f32 %v197, %v197
  %v297 = vmul.f32 %v200, %v200
  %v298 = vmul.f32 %v205, %v205
  %v299 = vmul.f32 %v208, %v208
  %v300 = vmul.f32 %v213, %v213
  %v301 = vmul.f32 %v216, %v216
  %v302 = vmul.f32 %v221, %v221
  %v303 = vmul.f32 %v224, %v224
  %v304 = vmul.f32 %v229, %v229
  %v305 = vmul.f32 %v232, %v232
  %v306 = vmul.f32 %v237, %v237
  %v307 = vmul.f32 %v240, %v240
  %v308 = vadd.f32 %v292, %v293
  %v309 = vadd.f32 %v308, %v294
  %v310 = vadd.f32 %v309, %v295
  %v311 = vadd.f32 %v310, %v296
  %v312 = vadd.f32 %v311, %v297
  %v313 = vadd.f32 %v312, %v298
  %v314 = vadd.f32 %v313, %v299
  %v315 = vadd.f32 %v314, %v300
  %v316 = vadd.f32 %v315, %v301
  %v317 = vadd.f32 %v316, %v302
  %v318 = vadd.f32 %v317, %v303
  %v319 = vadd.f32 %v318, %v304
  %v320 = vadd.f32 %v319, %v305
  %v321 = vadd.f32 %v320, %v306
  %v322 = vadd.f32 %v321, %v307
  %v323 = vrot.slane %v322, 4
  %v324 = vadd.f32 %v322, %v323
  %v325 = vrot.slane %v324, 2
  %v326 = vadd.f32 %v324, %v325
  %v327 = vrot.slane %v326, 1
  %v328 = vadd.f32 %v326, %v327
  %v329 = vadd.f32 %v291, %v328
  %330 = vst [vmem:[#allocation4] sm:$0x1] %v329
  // Predicated region
  $region22: #{resnet_small_forward.12} parent=0 // pred_check
    %p331 = pneg %p261
  $region23: #{resnet_small_forward.12} parent=0 // pred_check_branch
    %333 = sbr.rel (%p331) target = $region25
  $region24: #{resnet_small_forward.12} parent=0 // pred_region
    %v334 = vld [vmem:[#allocation3] sm:$0x1]
    %v335 = vmul.f32 %v334, 0.0078125
    %v336 = vld [vmem:[#allocation4] sm:$0x1]
    %v337 = vmul.f32 %v336, 0.0078125
    %v338 = vmul.f32 %v335, %v335
    %v339 = vsub.f32 %v337, %v338
    %v340 = vmax.f32 %v339, 0.0
    %v341 = vld [vmem:[%s2] sm:$0x1]
    %v342 = vadd.f32 %v340, 1e-05
    %v343 = vrsqrt.pop %v342
    %v344 = vmul.f32 %v341, %v343
    %v345 = vld [vmem:[%s3] sm:$0x1]
    %v346 = vmul.f32 %v335, %v344
    %v347 = vsub.f32 %v345, %v346
    %v348 = vld [vmem:[#allocation2] sm:$0xff]
    %v349 = vld [vmem:[#allocation2 + $0x8] sm:$0xff]
    %v350 = vld [vmem:[#allocation2 + $0x10] sm:$0xff]
    %v351 = vld [vmem:[#allocation2 + $0x18] sm:$0xff]
    %v352 = vld [vmem:[#allocation2 + $0x20] sm:$0xff]
    %v353 = vld [vmem:[#allocation2 + $0x28] sm:$0xff]
    %v354 = vld [vmem:[#allocation2 + $0x30] sm:$0xff]
    %v355 = vld [vmem:[#allocation2 + $0x38] sm:$0xff]
    %v356 = vld [vmem:[#allocation2 + $0x40] sm:$0xff]
    %v357 = vld [vmem:[#allocation2 + $0x48] sm:$0xff]
    %v358 = vld [vmem:[#allocation2 + $0x50] sm:$0xff]
    %v359 = vld [vmem:[#allocation2 + $0x58] sm:$0xff]
    %v360 = vld [vmem:[#allocation2 + $0x60] sm:$0xff]
    %v361 = vld [vmem:[#allocation2 + $0x68] sm:$0xff]
    %v362 = vld [vmem:[#allocation2 + $0x70] sm:$0xff]
    %v363 = vld [vmem:[#allocation2 + $0x78] sm:$0xff]
    %v365 = vlaneseq
    %v366 = vshrl.u32 %v365, 7
    %v367 = vsub.s32 0, %v366
    %v368 = vrot.slane %v344, %v367
    %v370 = vmul.f32 %v348, %v368
    %v371 = vmul.f32 %v349, %v368
    %v372 = vmul.f32 %v350, %v368
    %v373 = vmul.f32 %v351, %v368
    %v374 = vmul.f32 %v352, %v368
    %v375 = vmul.f32 %v353, %v368
    %v376 = vmul.f32 %v354, %v368
    %v377 = vmul.f32 %v355, %v368
    %v378 = vmul.f32 %v356, %v368
    %v379 = vmul.f32 %v357, %v368
    %v380 = vmul.f32 %v358, %v368
    %v381 = vmul.f32 %v359, %v368
    %v382 = vmul.f32 %v360, %v368
    %v383 = vmul.f32 %v361, %v368
    %v384 = vmul.f32 %v362, %v368
    %v385 = vmul.f32 %v363, %v368
    %v387 = vlaneseq
    %v388 = vshrl.u32 %v387, 7
    %v389 = vsub.s32 0, %v388
    %v390 = vrot.slane %v347, %v389
    %v392 = vadd.f32 %v370, %v390
    %v393 = vadd.f32 %v371, %v390
    %v394 = vadd.f32 %v372, %v390
    %v395 = vadd.f32 %v373, %v390
    %v396 = vadd.f32 %v374, %v390
    %v397 = vadd.f32 %v375, %v390
    %v398 = vadd.f32 %v376, %v390
    %v399 = vadd.f32 %v377, %v390
    %v400 = vadd.f32 %v378, %v390
    %v401 = vadd.f32 %v379, %v390
    %v402 = vadd.f32 %v380, %v390
    %v403 = vadd.f32 %v381, %v390
    %v404 = vadd.f32 %v382, %v390
    %v405 = vadd.f32 %v383, %v390
    %v406 = vadd.f32 %v384, %v390
    %v407 = vadd.f32 %v385, %v390
    %v408 = vpack.c.bf16 %v393, %v392
    %v409 = vpack.c.bf16 %v395, %v394
    %v410 = vpack.c.bf16 %v397, %v396
    %v411 = vpack.c.bf16 %v399, %v398
    %v412 = vpack.c.bf16 %v401, %v400
    %v413 = vpack.c.bf16 %v403, %v402
    %v414 = vpack.c.bf16 %v405, %v404
    %v415 = vpack.c.bf16 %v407, %v406
    %v424 = vunpack.c.l.b16 %v408
    %v425 = vunpack.c.h.b16 %v408
    %v426 = vunpack.c.l.b16 %v409
    %v427 = vunpack.c.h.b16 %v409
    %v428 = vunpack.c.l.b16 %v410
    %v429 = vunpack.c.h.b16 %v410
    %v430 = vunpack.c.l.b16 %v411
    %v431 = vunpack.c.h.b16 %v411
    %v432 = vunpack.c.l.b16 %v412
    %v433 = vunpack.c.h.b16 %v412
    %v434 = vunpack.c.l.b16 %v413
    %v435 = vunpack.c.h.b16 %v413
    %v436 = vunpack.c.l.b16 %v414
    %v437 = vunpack.c.h.b16 %v414
    %v438 = vunpack.c.l.b16 %v415
    %v439 = vunpack.c.h.b16 %v415
    %v440 = vpack.c.b16 %v424, %v424
    %v441 = vpack.c.b16 %v425, %v425
    %v442 = vpack.c.b16 %v426, %v426
    %v443 = vpack.c.b16 %v427, %v427
    %v444 = vpack.c.b16 %v428, %v428
    %v445 = vpack.c.b16 %v429, %v429
    %v446 = vpack.c.b16 %v430, %v430
    %v447 = vpack.c.b16 %v431, %v431
    %v448 = vpack.c.b16 %v432, %v432
    %v449 = vpack.c.b16 %v433, %v433
    %v450 = vpack.c.b16 %v434, %v434
    %v451 = vpack.c.b16 %v435, %v435
    %v452 = vpack.c.b16 %v436, %v436
    %v453 = vpack.c.b16 %v437, %v437
    %v454 = vpack.c.b16 %v438, %v438
    %v455 = vpack.c.b16 %v439, %v439
    %472 = vst [vmem:[%s4] sm:$0xf] %v440
    %473 = vst [vmem:[%s4 + $0x4] sm:$0xf] %v441
    %474 = vst [vmem:[%s4 + $0x8] sm:$0xf] %v442
    %475 = vst [vmem:[%s4 + $0xc] sm:$0xf] %v443
    %476 = vst [vmem:[%s4 + $0x10] sm:$0xf] %v444
    %477 = vst [vmem:[%s4 + $0x14] sm:$0xf] %v445
    %478 = vst [vmem:[%s4 + $0x18] sm:$0xf] %v446
    %479 = vst [vmem:[%s4 + $0x1c] sm:$0xf] %v447
    %480 = vst [vmem:[%s4 + $0x20] sm:$0xf] %v448
    %481 = vst [vmem:[%s4 + $0x24] sm:$0xf] %v449
    %482 = vst [vmem:[%s4 + $0x28] sm:$0xf] %v450
    %483 = vst [vmem:[%s4 + $0x2c] sm:$0xf] %v451
    %484 = vst [vmem:[%s4 + $0x30] sm:$0xf] %v452
    %485 = vst [vmem:[%s4 + $0x34] sm:$0xf] %v453
    %486 = vst [vmem:[%s4 + $0x38] sm:$0xf] %v454
    %487 = vst [vmem:[%s4 + $0x3c] sm:$0xf] %v455
  $region25: #{resnet_small_forward.12} parent=0 // pred_fallthru
    _
  // Predicated region
  $region26: #{resnet_small_forward.12} parent=0 // pred_check
    _
  $region27: #{resnet_small_forward.12} parent=0 // pred_check_branch
    %489 = sbr.rel (0) target = $region29
  $region28: #{resnet_small_forward.12} parent=0 // pred_region
    _
  $region29: #{resnet_small_forward.12} parent=0 // pred_fallthru
    _
  // Predicated region
  $region30: #{resnet_small_forward.12} parent=0 // pred_check
    _
  $region31: #{resnet_small_forward.12} parent=0 // pred_check_branch
    %491 = sbr.rel (0) target = $region33
  $region32: #{resnet_small_forward.12} parent=0 // pred_region
    _
  $region33: #{resnet_small_forward.12} parent=0 // pred_fallthru
    _

// kernel: resnet_small_forward.13
$region0: #{resnet_small_forward.13}
  #allocation0 [shape = 'u32[]', space=smem, size = 0x4, offset = 0x4, fixed_abs, tag = 'smem constant byte address 0x4 - core index']
  #allocation1 [shape = 'u32[144,128]{1,0:T(1,128)}', space=vmem, size = 0x12000, scoped, tag = 'internal scratch']
  #allocation2 [shape = 'f32[128,128]{1,0:T(8,128)}', space=vmem, size = 0x10000, scoped, tag = 'scratch operand']
  #allocation3 [shape = 'f32[1,128]{1,0:T(1,128)}', space=vmem, size = 0x200, scoped, tag = 'scratch operand']
  #allocation4 [shape = 'f32[1,128]{1,0:T(1,128)}', space=vmem, size = 0x200, scoped, tag = 'scratch operand']
  %s0 = inlined_call_operand.vmem [shape: bf16[128,896], index: 0, kind: input, shape index: {}]
  %s1 = inlined_call_operand.vmem [shape: bf16[896,128], index: 1, kind: input, shape index: {}]
  %s2 = inlined_call_operand.vmem [shape: f32[1,128], index: 2, kind: input, shape index: {}]
  %s3 = inlined_call_operand.vmem [shape: f32[1,128], index: 3, kind: input, shape index: {}]
  %s4 = inlined_call_operand.vmem [shape: bf16[128,128], index: 4, kind: input, shape index: {}]
  %s5 = inlined_call_operand.vmem [shape: bf16[128,128], index: 5, kind: output, shape index: {}]
  %s6 = sld [smem:[#allocation0]]
  $region38: #{resnet_small_forward.13} parent=0
    _
  %s8 = ssub.s32 1, %s6
  %s9 = scalar_select 0, %s8, %s6
  // Predicated region
  $region2: #{resnet_small_forward.13} parent=0 // pred_check
    _
  $region3: #{resnet_small_forward.13} parent=0 // pred_check_branch
    %11 = sbr.rel (0) target = $region5
  $region4: #{resnet_small_forward.13} parent=0 // pred_region
    _
  $region5: #{resnet_small_forward.13} parent=0 // pred_fallthru
    _
  // Predicated region
  $region6: #{resnet_small_forward.13} parent=0 // pred_check
    _
  $region7: #{resnet_small_forward.13} parent=0 // pred_check_branch
    %13 = sbr.rel (0) target = $region9
  $region8: #{resnet_small_forward.13} parent=0 // pred_region
    _
  $region9: #{resnet_small_forward.13} parent=0 // pred_fallthru
    _
  // Predicated region
  $region10: #{resnet_small_forward.13} parent=0 // pred_check
    _
  $region11: #{resnet_small_forward.13} parent=0 // pred_check_branch
    %15 = sbr.rel (0) target = $region13
  $region12: #{resnet_small_forward.13} parent=0 // pred_region
    _
  $region13: #{resnet_small_forward.13} parent=0 // pred_fallthru
    _
  // Predicated region
  $region14: #{resnet_small_forward.13} parent=0 // pred_check
    _
  $region15: #{resnet_small_forward.13} parent=0 // pred_check_branch
    %17 = sbr.rel (0) target = $region17
  $region16: #{resnet_small_forward.13} parent=0 // pred_region
    _
  $region17: #{resnet_small_forward.13} parent=0 // pred_fallthru
    _
  // Predicated region
  $region18: #{resnet_small_forward.13} parent=0 // pred_check
    _
  $region19: #{resnet_small_forward.13} parent=0 // pred_check_branch
    %19 = sbr.rel (0) target = $region21
  $region20: #{resnet_small_forward.13} parent=0 // pred_region
    _
  $region21: #{resnet_small_forward.13} parent=0 // pred_fallthru
    _
  %v21 = vld [vmem:[%s0] sm:$0xff]
  %v22 = vld [vmem:[%s0 + $0x8] sm:$0xff]
  %v23 = vld [vmem:[%s0 + $0x10] sm:$0xff]
  %v24 = vld [vmem:[%s0 + $0x18] sm:$0xf]
  %v25 = vld [vmem:[%s0 + $0x1c] sm:$0xff]
  %v26 = vld [vmem:[%s0 + $0x24] sm:$0xff]
  %v27 = vld [vmem:[%s0 + $0x2c] sm:$0xff]
  %v28 = vld [vmem:[%s0 + $0x34] sm:$0xf]
  %v29 = vld [vmem:[%s0 + $0x38] sm:$0xff]
  %v30 = vld [vmem:[%s0 + $0x40] sm:$0xff]
  %v31 = vld [vmem:[%s0 + $0x48] sm:$0xff]
  %v32 = vld [vmem:[%s0 + $0x50] sm:$0xf]
  %v33 = vld [vmem:[%s0 + $0x54] sm:$0xff]
  %v34 = vld [vmem:[%s0 + $0x5c] sm:$0xff]
  %v35 = vld [vmem:[%s0 + $0x64] sm:$0xff]
  %v36 = vld [vmem:[%s0 + $0x6c] sm:$0xf]
  %v37 = vld [vmem:[%s0 + $0x70] sm:$0xff]
  %v38 = vld [vmem:[%s0 + $0x78] sm:$0xff]
  %v39 = vld [vmem:[%s0 + $0x80] sm:$0xff]
  %v40 = vld [vmem:[%s0 + $0x88] sm:$0xf]
  %v41 = vld [vmem:[%s0 + $0x8c] sm:$0xff]
  %v42 = vld [vmem:[%s0 + $0x94] sm:$0xff]
  %v43 = vld [vmem:[%s0 + $0x9c] sm:$0xff]
  %v44 = vld [vmem:[%s0 + $0xa4] sm:$0xf]
  %v45 = vld [vmem:[%s0 + $0xa8] sm:$0xff]
  %v46 = vld [vmem:[%s0 + $0xb0] sm:$0xff]
  %v47 = vld [vmem:[%s0 + $0xb8] sm:$0xff]
  %v48 = vld [vmem:[%s0 + $0xc0] sm:$0xf]
  %v49 = vld [vmem:[%s0 + $0xc4] sm:$0xff]
  %v50 = vld [vmem:[%s0 + $0xcc] sm:$0xff]
  %v51 = vld [vmem:[%s0 + $0xd4] sm:$0xff]
  %v52 = vld [vmem:[%s0 + $0xdc] sm:$0xf]
  %v53 = vld [vmem:[%s0 + $0xe0] sm:$0xff]
  %v54 = vld [vmem:[%s0 + $0xe8] sm:$0xff]
  %v55 = vld [vmem:[%s0 + $0xf0] sm:$0xff]
  %v56 = vld [vmem:[%s0 + $0xf8] sm:$0xf]
  %v57 = vld [vmem:[%s0 + $0xfc] sm:$0xff]
  %v58 = vld [vmem:[%s0 + $0x104] sm:$0xff]
  %v59 = vld [vmem:[%s0 + $0x10c] sm:$0xff]
  %v60 = vld [vmem:[%s0 + $0x114] sm:$0xf]
  %v61 = vld [vmem:[%s0 + $0x118] sm:$0xff]
  %v62 = vld [vmem:[%s0 + $0x120] sm:$0xff]
  %v63 = vld [vmem:[%s0 + $0x128] sm:$0xff]
  %v64 = vld [vmem:[%s0 + $0x130] sm:$0xf]
  %v65 = vld [vmem:[%s0 + $0x134] sm:$0xff]
  %v66 = vld [vmem:[%s0 + $0x13c] sm:$0xff]
  %v67 = vld [vmem:[%s0 + $0x144] sm:$0xff]
  %v68 = vld [vmem:[%s0 + $0x14c] sm:$0xf]
  %v69 = vld [vmem:[%s0 + $0x150] sm:$0xff]
  %v70 = vld [vmem:[%s0 + $0x158] sm:$0xff]
  %v71 = vld [vmem:[%s0 + $0x160] sm:$0xff]
  %v72 = vld [vmem:[%s0 + $0x168] sm:$0xf]
  %v73 = vld [vmem:[%s0 + $0x16c] sm:$0xff]
  %v74 = vld [vmem:[%s0 + $0x174] sm:$0xff]
  %v75 = vld [vmem:[%s0 + $0x17c] sm:$0xff]
  %v76 = vld [vmem:[%s0 + $0x184] sm:$0xf]
  %v77 = vld [vmem:[%s0 + $0x188] sm:$0xff]
  %v78 = vld [vmem:[%s0 + $0x190] sm:$0xff]
  %v79 = vld [vmem:[%s0 + $0x198] sm:$0xff]
  %v80 = vld [vmem:[%s0 + $0x1a0] sm:$0xf]
  %v81 = vld [vmem:[%s0 + $0x1a4] sm:$0xff]
  %v82 = vld [vmem:[%s0 + $0x1ac] sm:$0xff]
  %v83 = vld [vmem:[%s0 + $0x1b4] sm:$0xff]
  %v84 = vld [vmem:[%s0 + $0x1bc] sm:$0xf]
  %v85 = vld [vmem:[%s1] sm:$0xf]
  %v86 = vld [vmem:[%s1 + $0x4] sm:$0xf]
  %v87 = vld [vmem:[%s1 + $0x8] sm:$0xf]
  %v88 = vld [vmem:[%s1 + $0xc] sm:$0xf]
  %v89 = vld [vmem:[%s1 + $0x10] sm:$0xf]
  %v90 = vld [vmem:[%s1 + $0x14] sm:$0xf]
  %v91 = vld [vmem:[%s1 + $0x18] sm:$0xf]
  %v92 = vld [vmem:[%s1 + $0x1c] sm:$0xf]
  %v93 = vld [vmem:[%s1 + $0x20] sm:$0xf]
  %v94 = vld [vmem:[%s1 + $0x24] sm:$0xf]
  %v95 = vld [vmem:[%s1 + $0x28] sm:$0xf]
  %v96 = vld [vmem:[%s1 + $0x2c] sm:$0xf]
  %v97 = vld [vmem:[%s1 + $0x30] sm:$0xf]
  %v98 = vld [vmem:[%s1 + $0x34] sm:$0xf]
  %v99 = vld [vmem:[%s1 + $0x38] sm:$0xf]
  %v100 = vld [vmem:[%s1 + $0x3c] sm:$0xf]
  %v101 = vld [vmem:[%s1 + $0x40] sm:$0xf]
  %v102 = vld [vmem:[%s1 + $0x44] sm:$0xf]
  %v103 = vld [vmem:[%s1 + $0x48] sm:$0xf]
  %v104 = vld [vmem:[%s1 + $0x4c] sm:$0xf]
  %v105 = vld [vmem:[%s1 + $0x50] sm:$0xf]
  %v106 = vld [vmem:[%s1 + $0x54] sm:$0xf]
  %v107 = vld [vmem:[%s1 + $0x58] sm:$0xf]
  %v108 = vld [vmem:[%s1 + $0x5c] sm:$0xf]
  %v109 = vld [vmem:[%s1 + $0x60] sm:$0xf]
  %v110 = vld [vmem:[%s1 + $0x64] sm:$0xf]
  %v111 = vld [vmem:[%s1 + $0x68] sm:$0xf]
  %v112 = vld [vmem:[%s1 + $0x6c] sm:$0xf]
  %v113 = vld [vmem:[%s1 + $0x70] sm:$0xf]
  %v114 = vld [vmem:[%s1 + $0x74] sm:$0xf]
  %v115 = vld [vmem:[%s1 + $0x78] sm:$0xf]
  %v116 = vld [vmem:[%s1 + $0x7c] sm:$0xf]
  %v117 = vld [vmem:[%s1 + $0x80] sm:$0xf]
  %v118 = vld [vmem:[%s1 + $0x84] sm:$0xf]
  %v119 = vld [vmem:[%s1 + $0x88] sm:$0xf]
  %v120 = vld [vmem:[%s1 + $0x8c] sm:$0xf]
  %v121 = vld [vmem:[%s1 + $0x90] sm:$0xf]
  %v122 = vld [vmem:[%s1 + $0x94] sm:$0xf]
  %v123 = vld [vmem:[%s1 + $0x98] sm:$0xf]
  %v124 = vld [vmem:[%s1 + $0x9c] sm:$0xf]
  %v125 = vld [vmem:[%s1 + $0xa0] sm:$0xf]
  %v126 = vld [vmem:[%s1 + $0xa4] sm:$0xf]
  %v127 = vld [vmem:[%s1 + $0xa8] sm:$0xf]
  %v128 = vld [vmem:[%s1 + $0xac] sm:$0xf]
  %v129 = vld [vmem:[%s1 + $0xb0] sm:$0xf]
  %v130 = vld [vmem:[%s1 + $0xb4] sm:$0xf]
  %v131 = vld [vmem:[%s1 + $0xb8] sm:$0xf]
  %v132 = vld [vmem:[%s1 + $0xbc] sm:$0xf]
  %v133 = vld [vmem:[%s1 + $0xc0] sm:$0xf]
  %v134 = vld [vmem:[%s1 + $0xc4] sm:$0xf]
  %v135 = vld [vmem:[%s1 + $0xc8] sm:$0xf]
  %v136 = vld [vmem:[%s1 + $0xcc] sm:$0xf]
  %v137 = vld [vmem:[%s1 + $0xd0] sm:$0xf]
  %v138 = vld [vmem:[%s1 + $0xd4] sm:$0xf]
  %v139 = vld [vmem:[%s1 + $0xd8] sm:$0xf]
  %v140 = vld [vmem:[%s1 + $0xdc] sm:$0xf]
  %v141 = vld [vmem:[%s1 + $0xe0] sm:$0xf]
  %v142 = vld [vmem:[%s1 + $0xe4] sm:$0xf]
  %v143 = vld [vmem:[%s1 + $0xe8] sm:$0xf]
  %v144 = vld [vmem:[%s1 + $0xec] sm:$0xf]
  %v145 = vld [vmem:[%s1 + $0xf0] sm:$0xf]
  %v146 = vld [vmem:[%s1 + $0xf4] sm:$0xf]
  %v147 = vld [vmem:[%s1 + $0xf8] sm:$0xf]
  %v148 = vld [vmem:[%s1 + $0xfc] sm:$0xf]
  %v149 = vld [vmem:[%s1 + $0x100] sm:$0xf]
  %v150 = vld [vmem:[%s1 + $0x104] sm:$0xf]
  %v151 = vld [vmem:[%s1 + $0x108] sm:$0xf]
  %v152 = vld [vmem:[%s1 + $0x10c] sm:$0xf]
  %v153 = vld [vmem:[%s1 + $0x110] sm:$0xf]
  %v154 = vld [vmem:[%s1 + $0x114] sm:$0xf]
  %v155 = vld [vmem:[%s1 + $0x118] sm:$0xf]
  %v156 = vld [vmem:[%s1 + $0x11c] sm:$0xf]
  %v157 = vld [vmem:[%s1 + $0x120] sm:$0xf]
  %v158 = vld [vmem:[%s1 + $0x124] sm:$0xf]
  %v159 = vld [vmem:[%s1 + $0x128] sm:$0xf]
  %v160 = vld [vmem:[%s1 + $0x12c] sm:$0xf]
  %v161 = vld [vmem:[%s1 + $0x130] sm:$0xf]
  %v162 = vld [vmem:[%s1 + $0x134] sm:$0xf]
  %v163 = vld [vmem:[%s1 + $0x138] sm:$0xf]
  %v164 = vld [vmem:[%s1 + $0x13c] sm:$0xf]
  %v165 = vld [vmem:[%s1 + $0x140] sm:$0xf]
  %v166 = vld [vmem:[%s1 + $0x144] sm:$0xf]
  %v167 = vld [vmem:[%s1 + $0x148] sm:$0xf]
  %v168 = vld [vmem:[%s1 + $0x14c] sm:$0xf]
  %v169 = vld [vmem:[%s1 + $0x150] sm:$0xf]
  %v170 = vld [vmem:[%s1 + $0x154] sm:$0xf]
  %v171 = vld [vmem:[%s1 + $0x158] sm:$0xf]
  %v172 = vld [vmem:[%s1 + $0x15c] sm:$0xf]
  %v173 = vld [vmem:[%s1 + $0x160] sm:$0xf]
  %v174 = vld [vmem:[%s1 + $0x164] sm:$0xf]
  %v175 = vld [vmem:[%s1 + $0x168] sm:$0xf]
  %v176 = vld [vmem:[%s1 + $0x16c] sm:$0xf]
  %v177 = vld [vmem:[%s1 + $0x170] sm:$0xf]
  %v178 = vld [vmem:[%s1 + $0x174] sm:$0xf]
  %v179 = vld [vmem:[%s1 + $0x178] sm:$0xf]
  %v180 = vld [vmem:[%s1 + $0x17c] sm:$0xf]
  %v181 = vld [vmem:[%s1 + $0x180] sm:$0xf]
  %v182 = vld [vmem:[%s1 + $0x184] sm:$0xf]
  %v183 = vld [vmem:[%s1 + $0x188] sm:$0xf]
  %v184 = vld [vmem:[%s1 + $0x18c] sm:$0xf]
  %v185 = vld [vmem:[%s1 + $0x190] sm:$0xf]
  %v186 = vld [vmem:[%s1 + $0x194] sm:$0xf]
  %v187 = vld [vmem:[%s1 + $0x198] sm:$0xf]
  %v188 = vld [vmem:[%s1 + $0x19c] sm:$0xf]
  %v189 = vld [vmem:[%s1 + $0x1a0] sm:$0xf]
  %v190 = vld [vmem:[%s1 + $0x1a4] sm:$0xf]
  %v191 = vld [vmem:[%s1 + $0x1a8] sm:$0xf]
  %v192 = vld [vmem:[%s1 + $0x1ac] sm:$0xf]
  %v193 = vld [vmem:[%s1 + $0x1b0] sm:$0xf]
  %v194 = vld [vmem:[%s1 + $0x1b4] sm:$0xf]
  %v195 = vld [vmem:[%s1 + $0x1b8] sm:$0xf]
  %v196 = vld [vmem:[%s1 + $0x1bc] sm:$0xf]
  %v261 = vunpack.c.l.b16 %v21
  %v262 = vunpack.c.h.b16 %v21
  %v263 = vunpack.c.l.b16 %v22
  %v264 = vunpack.c.h.b16 %v22
  %v265 = vunpack.c.l.b16 %v23
  %v266 = vunpack.c.h.b16 %v23
  %v267 = vunpack.c.l.b16 %v24
  %v268 = vunpack.c.l.b16 %v25
  %v269 = vunpack.c.h.b16 %v25
  %v270 = vunpack.c.l.b16 %v26
  %v271 = vunpack.c.h.b16 %v26
  %v272 = vunpack.c.l.b16 %v27
  %v273 = vunpack.c.h.b16 %v27
  %v274 = vunpack.c.l.b16 %v28
  %v275 = vunpack.c.l.b16 %v29
  %v276 = vunpack.c.h.b16 %v29
  %v277 = vunpack.c.l.b16 %v30
  %v278 = vunpack.c.h.b16 %v30
  %v279 = vunpack.c.l.b16 %v31
  %v280 = vunpack.c.h.b16 %v31
  %v281 = vunpack.c.l.b16 %v32
  %v282 = vunpack.c.l.b16 %v33
  %v283 = vunpack.c.h.b16 %v33
  %v284 = vunpack.c.l.b16 %v34
  %v285 = vunpack.c.h.b16 %v34
  %v286 = vunpack.c.l.b16 %v35
  %v287 = vunpack.c.h.b16 %v35
  %v288 = vunpack.c.l.b16 %v36
  %v289 = vunpack.c.l.b16 %v37
  %v290 = vunpack.c.h.b16 %v37
  %v291 = vunpack.c.l.b16 %v38
  %v292 = vunpack.c.h.b16 %v38
  %v293 = vunpack.c.l.b16 %v39
  %v294 = vunpack.c.h.b16 %v39
  %v295 = vunpack.c.l.b16 %v40
  %v296 = vunpack.c.l.b16 %v41
  %v297 = vunpack.c.h.b16 %v41
  %v298 = vunpack.c.l.b16 %v42
  %v299 = vunpack.c.h.b16 %v42
  %v300 = vunpack.c.l.b16 %v43
  %v301 = vunpack.c.h.b16 %v43
  %v302 = vunpack.c.l.b16 %v44
  %v303 = vunpack.c.l.b16 %v45
  %v304 = vunpack.c.h.b16 %v45
  %v305 = vunpack.c.l.b16 %v46
  %v306 = vunpack.c.h.b16 %v46
  %v307 = vunpack.c.l.b16 %v47
  %v308 = vunpack.c.h.b16 %v47
  %v309 = vunpack.c.l.b16 %v48
  %v310 = vunpack.c.l.b16 %v49
  %v311 = vunpack.c.h.b16 %v49
  %v312 = vunpack.c.l.b16 %v50
  %v313 = vunpack.c.h.b16 %v50
  %v314 = vunpack.c.l.b16 %v51
  %v315 = vunpack.c.h.b16 %v51
  %v316 = vunpack.c.l.b16 %v52
  %v317 = vunpack.c.l.b16 %v53
  %v318 = vunpack.c.h.b16 %v53
  %v319 = vunpack.c.l.b16 %v54
  %v320 = vunpack.c.h.b16 %v54
  %v321 = vunpack.c.l.b16 %v55
  %v322 = vunpack.c.h.b16 %v55
  %v323 = vunpack.c.l.b16 %v56
  %v324 = vunpack.c.l.b16 %v57
  %v325 = vunpack.c.h.b16 %v57
  %v326 = vunpack.c.l.b16 %v58
  %v327 = vunpack.c.h.b16 %v58
  %v328 = vunpack.c.l.b16 %v59
  %v329 = vunpack.c.h.b16 %v59
  %v330 = vunpack.c.l.b16 %v60
  %v331 = vunpack.c.l.b16 %v61
  %v332 = vunpack.c.h.b16 %v61
  %v333 = vunpack.c.l.b16 %v62
  %v334 = vunpack.c.h.b16 %v62
  %v335 = vunpack.c.l.b16 %v63
  %v336 = vunpack.c.h.b16 %v63
  %v337 = vunpack.c.l.b16 %v64
  %v338 = vunpack.c.l.b16 %v65
  %v339 = vunpack.c.h.b16 %v65
  %v340 = vunpack.c.l.b16 %v66
  %v341 = vunpack.c.h.b16 %v66
  %v342 = vunpack.c.l.b16 %v67
  %v343 = vunpack.c.h.b16 %v67
  %v344 = vunpack.c.l.b16 %v68
  %v345 = vunpack.c.l.b16 %v69
  %v346 = vunpack.c.h.b16 %v69
  %v347 = vunpack.c.l.b16 %v70
  %v348 = vunpack.c.h.b16 %v70
  %v349 = vunpack.c.l.b16 %v71
  %v350 = vunpack.c.h.b16 %v71
  %v351 = vunpack.c.l.b16 %v72
  %v352 = vunpack.c.l.b16 %v73
  %v353 = vunpack.c.h.b16 %v73
  %v354 = vunpack.c.l.b16 %v74
  %v355 = vunpack.c.h.b16 %v74
  %v356 = vunpack.c.l.b16 %v75
  %v357 = vunpack.c.h.b16 %v75
  %v358 = vunpack.c.l.b16 %v76
  %v359 = vunpack.c.l.b16 %v77
  %v360 = vunpack.c.h.b16 %v77
  %v361 = vunpack.c.l.b16 %v78
  %v362 = vunpack.c.h.b16 %v78
  %v363 = vunpack.c.l.b16 %v79
  %v364 = vunpack.c.h.b16 %v79
  %v365 = vunpack.c.l.b16 %v80
  %v366 = vunpack.c.l.b16 %v81
  %v367 = vunpack.c.h.b16 %v81
  %v368 = vunpack.c.l.b16 %v82
  %v369 = vunpack.c.h.b16 %v82
  %v370 = vunpack.c.l.b16 %v83
  %v371 = vunpack.c.h.b16 %v83
  %v372 = vunpack.c.l.b16 %v84
  %v373 = vpack.c.b16 %v268, %v261
  %v374 = vpack.c.b16 %v269, %v262
  %v375 = vpack.c.b16 %v270, %v263
  %v376 = vpack.c.b16 %v271, %v264
  %v377 = vpack.c.b16 %v272, %v265
  %v378 = vpack.c.b16 %v273, %v266
  %v379 = vpack.c.b16 %v274, %v267
  %v380 = vpack.c.b16 %v282, %v275
  %v381 = vpack.c.b16 %v283, %v276
  %v382 = vpack.c.b16 %v284, %v277
  %v383 = vpack.c.b16 %v285, %v278
  %v384 = vpack.c.b16 %v286, %v279
  %v385 = vpack.c.b16 %v287, %v280
  %v386 = vpack.c.b16 %v288, %v281
  %v387 = vpack.c.b16 %v296, %v289
  %v388 = vpack.c.b16 %v297, %v290
  %v389 = vpack.c.b16 %v298, %v291
  %v390 = vpack.c.b16 %v299, %v292
  %v391 = vpack.c.b16 %v300, %v293
  %v392 = vpack.c.b16 %v301, %v294
  %v393 = vpack.c.b16 %v302, %v295
  %v394 = vpack.c.b16 %v310, %v303
  %v395 = vpack.c.b16 %v311, %v304
  %v396 = vpack.c.b16 %v312, %v305
  %v397 = vpack.c.b16 %v313, %v306
  %v398 = vpack.c.b16 %v314, %v307
  %v399 = vpack.c.b16 %v315, %v308
  %v400 = vpack.c.b16 %v316, %v309
  %v401 = vpack.c.b16 %v324, %v317
  %v402 = vpack.c.b16 %v325, %v318
  %v403 = vpack.c.b16 %v326, %v319
  %v404 = vpack.c.b16 %v327, %v320
  %v405 = vpack.c.b16 %v328, %v321
  %v406 = vpack.c.b16 %v329, %v322
  %v407 = vpack.c.b16 %v330, %v323
  %v408 = vpack.c.b16 %v338, %v331
  %v409 = vpack.c.b16 %v339, %v332
  %v410 = vpack.c.b16 %v340, %v333
  %v411 = vpack.c.b16 %v341, %v334
  %v412 = vpack.c.b16 %v342, %v335
  %v413 = vpack.c.b16 %v343, %v336
  %v414 = vpack.c.b16 %v344, %v337
  %v415 = vpack.c.b16 %v352, %v345
  %v416 = vpack.c.b16 %v353, %v346
  %v417 = vpack.c.b16 %v354, %v347
  %v418 = vpack.c.b16 %v355, %v348
  %v419 = vpack.c.b16 %v356, %v349
  %v420 = vpack.c.b16 %v357, %v350
  %v421 = vpack.c.b16 %v358, %v351
  %v422 = vpack.c.b16 %v366, %v359
  %v423 = vpack.c.b16 %v367, %v360
  %v424 = vpack.c.b16 %v368, %v361
  %v425 = vpack.c.b16 %v369, %v362
  %v426 = vpack.c.b16 %v370, %v363
  %v427 = vpack.c.b16 %v371, %v364
  %v428 = vpack.c.b16 %v372, %v365
  %v597 = vunpack.c.l.b16 %v85
  %v598 = vunpack.c.l.b16 %v86
  %v599 = vunpack.c.l.b16 %v87
  %v600 = vunpack.c.l.b16 %v88
  %v601 = vunpack.c.l.b16 %v89
  %v602 = vunpack.c.l.b16 %v90
  %v603 = vunpack.c.l.b16 %v91
  %v604 = vunpack.c.l.b16 %v92
  %v605 = vunpack.c.l.b16 %v93
  %v606 = vunpack.c.l.b16 %v94
  %v607 = vunpack.c.l.b16 %v95
  %v608 = vunpack.c.l.b16 %v96
  %v609 = vunpack.c.l.b16 %v97
  %v610 = vunpack.c.l.b16 %v98
  %v611 = vunpack.c.l.b16 %v99
  %v612 = vunpack.c.l.b16 %v100
  %v613 = vunpack.c.l.b16 %v101
  %v614 = vunpack.c.l.b16 %v102
  %v615 = vunpack.c.l.b16 %v103
  %v616 = vunpack.c.l.b16 %v104
  %v617 = vunpack.c.l.b16 %v105
  %v618 = vunpack.c.l.b16 %v106
  %v619 = vunpack.c.l.b16 %v107
  %v620 = vunpack.c.l.b16 %v108
  %v621 = vunpack.c.l.b16 %v109
  %v622 = vunpack.c.l.b16 %v110
  %v623 = vunpack.c.l.b16 %v111
  %v624 = vunpack.c.l.b16 %v112
  %v625 = vunpack.c.l.b16 %v113
  %v626 = vunpack.c.l.b16 %v114
  %v627 = vunpack.c.l.b16 %v115
  %v628 = vunpack.c.l.b16 %v116
  %v629 = vunpack.c.l.b16 %v117
  %v630 = vunpack.c.l.b16 %v118
  %v631 = vunpack.c.l.b16 %v119
  %v632 = vunpack.c.l.b16 %v120
  %v633 = vunpack.c.l.b16 %v121
  %v634 = vunpack.c.l.b16 %v122
  %v635 = vunpack.c.l.b16 %v123
  %v636 = vunpack.c.l.b16 %v124
  %v637 = vunpack.c.l.b16 %v125
  %v638 = vunpack.c.l.b16 %v126
  %v639 = vunpack.c.l.b16 %v127
  %v640 = vunpack.c.l.b16 %v128
  %v641 = vunpack.c.l.b16 %v129
  %v642 = vunpack.c.l.b16 %v130
  %v643 = vunpack.c.l.b16 %v131
  %v644 = vunpack.c.l.b16 %v132
  %v645 = vunpack.c.l.b16 %v133
  %v646 = vunpack.c.l.b16 %v134
  %v647 = vunpack.c.l.b16 %v135
  %v648 = vunpack.c.l.b16 %v136
  %v649 = vunpack.c.l.b16 %v137
  %v650 = vunpack.c.l.b16 %v138
  %v651 = vunpack.c.l.b16 %v139
  %v652 = vunpack.c.l.b16 %v140
  %v653 = vunpack.c.l.b16 %v141
  %v654 = vunpack.c.l.b16 %v142
  %v655 = vunpack.c.l.b16 %v143
  %v656 = vunpack.c.l.b16 %v144
  %v657 = vunpack.c.l.b16 %v145
  %v658 = vunpack.c.l.b16 %v146
  %v659 = vunpack.c.l.b16 %v147
  %v660 = vunpack.c.l.b16 %v148
  %v661 = vunpack.c.l.b16 %v149
  %v662 = vunpack.c.l.b16 %v150
  %v663 = vunpack.c.l.b16 %v151
  %v664 = vunpack.c.l.b16 %v152
  %v665 = vunpack.c.l.b16 %v153
  %v666 = vunpack.c.l.b16 %v154
  %v667 = vunpack.c.l.b16 %v155
  %v668 = vunpack.c.l.b16 %v156
  %v669 = vunpack.c.l.b16 %v157
  %v670 = vunpack.c.l.b16 %v158
  %v671 = vunpack.c.l.b16 %v159
  %v672 = vunpack.c.l.b16 %v160
  %v673 = vunpack.c.l.b16 %v161
  %v674 = vunpack.c.l.b16 %v162
  %v675 = vunpack.c.l.b16 %v163
  %v676 = vunpack.c.l.b16 %v164
  %v677 = vunpack.c.l.b16 %v165
  %v678 = vunpack.c.l.b16 %v166
  %v679 = vunpack.c.l.b16 %v167
  %v680 = vunpack.c.l.b16 %v168
  %v681 = vunpack.c.l.b16 %v169
  %v682 = vunpack.c.l.b16 %v170
  %v683 = vunpack.c.l.b16 %v171
  %v684 = vunpack.c.l.b16 %v172
  %v685 = vunpack.c.l.b16 %v173
  %v686 = vunpack.c.l.b16 %v174
  %v687 = vunpack.c.l.b16 %v175
  %v688 = vunpack.c.l.b16 %v176
  %v689 = vunpack.c.l.b16 %v177
  %v690 = vunpack.c.l.b16 %v178
  %v691 = vunpack.c.l.b16 %v179
  %v692 = vunpack.c.l.b16 %v180
  %v693 = vunpack.c.l.b16 %v181
  %v694 = vunpack.c.l.b16 %v182
  %v695 = vunpack.c.l.b16 %v183
  %v696 = vunpack.c.l.b16 %v184
  %v697 = vunpack.c.l.b16 %v185
  %v698 = vunpack.c.l.b16 %v186
  %v699 = vunpack.c.l.b16 %v187
  %v700 = vunpack.c.l.b16 %v188
  %v701 = vunpack.c.l.b16 %v189
  %v702 = vunpack.c.l.b16 %v190
  %v703 = vunpack.c.l.b16 %v191
  %v704 = vunpack.c.l.b16 %v192
  %v705 = vunpack.c.l.b16 %v193
  %v706 = vunpack.c.l.b16 %v194
  %v707 = vunpack.c.l.b16 %v195
  %v708 = vunpack.c.l.b16 %v196
  %v709 = vpack.c.b16 %v598, %v597
  %v710 = vpack.c.b16 %v600, %v599
  %v711 = vpack.c.b16 %v602, %v601
  %v712 = vpack.c.b16 %v604, %v603
  %v713 = vpack.c.b16 %v606, %v605
  %v714 = vpack.c.b16 %v608, %v607
  %v715 = vpack.c.b16 %v610, %v609
  %v716 = vpack.c.b16 %v612, %v611
  %v717 = vpack.c.b16 %v614, %v613
  %v718 = vpack.c.b16 %v616, %v615
  %v719 = vpack.c.b16 %v618, %v617
  %v720 = vpack.c.b16 %v620, %v619
  %v721 = vpack.c.b16 %v622, %v621
  %v722 = vpack.c.b16 %v624, %v623
  %v723 = vpack.c.b16 %v626, %v625
  %v724 = vpack.c.b16 %v628, %v627
  %v725 = vpack.c.b16 %v630, %v629
  %v726 = vpack.c.b16 %v632, %v631
  %v727 = vpack.c.b16 %v634, %v633
  %v728 = vpack.c.b16 %v636, %v635
  %v729 = vpack.c.b16 %v638, %v637
  %v730 = vpack.c.b16 %v640, %v639
  %v731 = vpack.c.b16 %v642, %v641
  %v732 = vpack.c.b16 %v644, %v643
  %v733 = vpack.c.b16 %v646, %v645
  %v734 = vpack.c.b16 %v648, %v647
  %v735 = vpack.c.b16 %v650, %v649
  %v736 = vpack.c.b16 %v652, %v651
  %v737 = vpack.c.b16 %v654, %v653
  %v738 = vpack.c.b16 %v656, %v655
  %v739 = vpack.c.b16 %v658, %v657
  %v740 = vpack.c.b16 %v660, %v659
  %v741 = vpack.c.b16 %v662, %v661
  %v742 = vpack.c.b16 %v664, %v663
  %v743 = vpack.c.b16 %v666, %v665
  %v744 = vpack.c.b16 %v668, %v667
  %v745 = vpack.c.b16 %v670, %v669
  %v746 = vpack.c.b16 %v672, %v671
  %v747 = vpack.c.b16 %v674, %v673
  %v748 = vpack.c.b16 %v676, %v675
  %v749 = vpack.c.b16 %v678, %v677
  %v750 = vpack.c.b16 %v680, %v679
  %v751 = vpack.c.b16 %v682, %v681
  %v752 = vpack.c.b16 %v684, %v683
  %v753 = vpack.c.b16 %v686, %v685
  %v754 = vpack.c.b16 %v688, %v687
  %v755 = vpack.c.b16 %v690, %v689
  %v756 = vpack.c.b16 %v692, %v691
  %v757 = vpack.c.b16 %v694, %v693
  %v758 = vpack.c.b16 %v696, %v695
  %v759 = vpack.c.b16 %v698, %v697
  %v760 = vpack.c.b16 %v700, %v699
  %v761 = vpack.c.b16 %v702, %v701
  %v762 = vpack.c.b16 %v704, %v703
  %v763 = vpack.c.b16 %v706, %v705
  %v764 = vpack.c.b16 %v708, %v707
  %821 = vmatprep.subr.bf16.mxu0 0
  %822 = vmatpush1.bf16.msra.mxu0 %v716
  %823 = vmatprep.subr.bf16.mxu0 0
  %824 = vmatpush1.bf16.msra.mxu0 %v715
  %825 = vmatprep.subr.bf16.mxu0 0
  %826 = vmatpush1.bf16.msra.mxu0 %v714
  %827 = vmatprep.subr.bf16.mxu0 0
  %828 = vmatpush1.bf16.msra.mxu0 %v713
  %829 = vmatprep.subr.bf16.mxu0 0
  %830 = vmatpush1.bf16.msra.mxu0 %v712
  %831 = vmatprep.subr.bf16.mxu0 0
  %832 = vmatpush1.bf16.msra.mxu0 %v711
  %833 = vmatprep.subr.bf16.mxu0 0
  %834 = vmatpush1.bf16.msra.mxu0 %v710
  %835 = vmatprep.subr.bf16.mxu0 0
  %836 = vmatpush1.bf16.msra.mxu0 %v709
  %837 = vmatprep.subr.bf16.mxu0 0
  %838 = vmatpush2.bf16.msra.mxu0 %v724
  %839 = vmatprep.subr.bf16.mxu0 0
  %840 = vmatpush2.bf16.msra.mxu0 %v723
  %841 = vmatprep.subr.bf16.mxu0 0
  %842 = vmatpush2.bf16.msra.mxu0 %v722
  %843 = vmatprep.subr.bf16.mxu0 0
  %844 = vmatpush2.bf16.msra.mxu0 %v721
  %845 = vmatprep.subr.bf16.mxu0 0
  %846 = vmatpush2.bf16.msra.mxu0 %v720
  %847 = vmatprep.subr.bf16.mxu0 0
  %848 = vmatpush2.bf16.msra.mxu0 %v719
  %849 = vmatprep.subr.bf16.mxu0 0
  %850 = vmatpush2.bf16.msra.mxu0 %v718
  %851 = vmatprep.subr.bf16.mxu0 0
  %852 = vmatpush2.bf16.msra.mxu0 %v717
  %853 = vmatprep.mubr.bf16.mxu0 %v374
  %854 = vmatmul.mubr.bf16.gmra.mxu0 %v373
  %v855 = vpop.f32.mrf.mxu0
  %v856 = vadd.f32 0.0, %v855
  %v857 = vpop.f32.mrf.mxu0
  %v858 = vpop.f32.mrf.mxu0
  %v859 = vadd.f32 0.0, %v858
  %v860 = vpop.f32.mrf.mxu0
  %861 = vmatprep.mubr.bf16.mxu0 %v381
  %862 = vmatmul.mubr.bf16.gmra.mxu0 %v380
  %v863 = vpop.f32.mrf.mxu0
  %v864 = vadd.f32 0.0, %v863
  %v865 = vpop.f32.mrf.mxu0
  %v866 = vpop.f32.mrf.mxu0
  %v867 = vadd.f32 0.0, %v866
  %v868 = vpop.f32.mrf.mxu0
  %869 = vmatprep.mubr.bf16.mxu0 %v388
  %870 = vmatmul.mubr.bf16.gmra.mxu0 %v387
  %v871 = vpop.f32.mrf.mxu0
  %v872 = vadd.f32 0.0, %v871
  %v873 = vpop.f32.mrf.mxu0
  %v874 = vpop.f32.mrf.mxu0
  %v875 = vadd.f32 0.0, %v874
  %v876 = vpop.f32.mrf.mxu0
  %877 = vmatprep.mubr.bf16.mxu0 %v395
  %878 = vmatmul.mubr.bf16.gmra.mxu0 %v394
  %v879 = vpop.f32.mrf.mxu0
  %v880 = vadd.f32 0.0, %v879
  %v881 = vpop.f32.mrf.mxu0
  %v882 = vpop.f32.mrf.mxu0
  %v883 = vadd.f32 0.0, %v882
  %v884 = vpop.f32.mrf.mxu0
  %885 = vmatprep.mubr.bf16.mxu0 %v402
  %886 = vmatmul.mubr.bf16.gmra.mxu0 %v401
  %v887 = vpop.f32.mrf.mxu0
  %v888 = vadd.f32 0.0, %v887
  %v889 = vpop.f32.mrf.mxu0
  %v890 = vpop.f32.mrf.mxu0
  %v891 = vadd.f32 0.0, %v890
  %v892 = vpop.f32.mrf.mxu0
  %893 = vmatprep.mubr.bf16.mxu0 %v409
  %894 = vmatmul.mubr.bf16.gmra.mxu0 %v408
  %v895 = vpop.f32.mrf.mxu0
  %v896 = vadd.f32 0.0, %v895
  %v897 = vpop.f32.mrf.mxu0
  %v898 = vpop.f32.mrf.mxu0
  %v899 = vadd.f32 0.0, %v898
  %v900 = vpop.f32.mrf.mxu0
  %901 = vmatprep.mubr.bf16.mxu0 %v416
  %902 = vmatmul.mubr.bf16.gmra.mxu0 %v415
  %v903 = vpop.f32.mrf.mxu0
  %v904 = vadd.f32 0.0, %v903
  %v905 = vpop.f32.mrf.mxu0
  %v906 = vpop.f32.mrf.mxu0
  %v907 = vadd.f32 0.0, %v906
  %v908 = vpop.f32.mrf.mxu0
  %909 = vmatprep.mubr.bf16.mxu0 %v423
  %910 = vmatmul.mubr.bf16.gmra.mxu0 %v422
  %v911 = vpop.f32.mrf.mxu0
  %v912 = vadd.f32 0.0, %v911
  %v913 = vpop.f32.mrf.mxu0
  %v914 = vpop.f32.mrf.mxu0
  %v915 = vadd.f32 0.0, %v914
  %v916 = vpop.f32.mrf.mxu0
  %917 = vdwg.mxu0
  %918 = vmatprep.subr.bf16.mxu0 0
  %919 = vmatpush1.bf16.msra.mxu0 %v732
  %920 = vmatprep.subr.bf16.mxu0 0
  %921 = vmatpush1.bf16.msra.mxu0 %v731
  %922 = vmatprep.subr.bf16.mxu0 0
  %923 = vmatpush1.bf16.msra.mxu0 %v730
  %924 = vmatprep.subr.bf16.mxu0 0
  %925 = vmatpush1.bf16.msra.mxu0 %v729
  %926 = vmatprep.subr.bf16.mxu0 0
  %927 = vmatpush1.bf16.msra.mxu0 %v728
  %928 = vmatprep.subr.bf16.mxu0 0
  %929 = vmatpush1.bf16.msra.mxu0 %v727
  %930 = vmatprep.subr.bf16.mxu0 0
  %931 = vmatpush1.bf16.msra.mxu0 %v726
  %932 = vmatprep.subr.bf16.mxu0 0
  %933 = vmatpush1.bf16.msra.mxu0 %v725
  %934 = vmatprep.subr.bf16.mxu0 0
  %935 = vmatpush2.bf16.msra.mxu0 %v740
  %936 = vmatprep.subr.bf16.mxu0 0
  %937 = vmatpush2.bf16.msra.mxu0 %v739
  %938 = vmatprep.subr.bf16.mxu0 0
  %939 = vmatpush2.bf16.msra.mxu0 %v738
  %940 = vmatprep.subr.bf16.mxu0 0
  %941 = vmatpush2.bf16.msra.mxu0 %v737
  %942 = vmatprep.subr.bf16.mxu0 0
  %943 = vmatpush2.bf16.msra.mxu0 %v736
  %944 = vmatprep.subr.bf16.mxu0 0
  %945 = vmatpush2.bf16.msra.mxu0 %v735
  %946 = vmatprep.subr.bf16.mxu0 0
  %947 = vmatpush2.bf16.msra.mxu0 %v734
  %948 = vmatprep.subr.bf16.mxu0 0
  %949 = vmatpush2.bf16.msra.mxu0 %v733
  %950 = vmatprep.mubr.bf16.mxu0 %v376
  %951 = vmatmul.mubr.bf16.gmra.mxu0 %v375
  %v952 = vpop.f32.mrf.mxu0
  %v953 = vadd.f32 %v856, %v952
  %v954 = vpop.f32.mrf.mxu0
  %v955 = vpop.f32.mrf.mxu0
  %v956 = vadd.f32 %v859, %v955
  %v957 = vpop.f32.mrf.mxu0
  %958 = vmatprep.mubr.bf16.mxu0 %v383
  %959 = vmatmul.mubr.bf16.gmra.mxu0 %v382
  %v960 = vpop.f32.mrf.mxu0
  %v961 = vadd.f32 %v864, %v960
  %v962 = vpop.f32.mrf.mxu0
  %v963 = vpop.f32.mrf.mxu0
  %v964 = vadd.f32 %v867, %v963
  %v965 = vpop.f32.mrf.mxu0
  %966 = vmatprep.mubr.bf16.mxu0 %v390
  %967 = vmatmul.mubr.bf16.gmra.mxu0 %v389
  %v968 = vpop.f32.mrf.mxu0
  %v969 = vadd.f32 %v872, %v968
  %v970 = vpop.f32.mrf.mxu0
  %v971 = vpop.f32.mrf.mxu0
  %v972 = vadd.f32 %v875, %v971
  %v973 = vpop.f32.mrf.mxu0
  %974 = vmatprep.mubr.bf16.mxu0 %v397
  %975 = vmatmul.mubr.bf16.gmra.mxu0 %v396
  %v976 = vpop.f32.mrf.mxu0
  %v977 = vadd.f32 %v880, %v976
  %v978 = vpop.f32.mrf.mxu0
  %v979 = vpop.f32.mrf.mxu0
  %v980 = vadd.f32 %v883, %v979
  %v981 = vpop.f32.mrf.mxu0
  %982 = vmatprep.mubr.bf16.mxu0 %v404
  %983 = vmatmul.mubr.bf16.gmra.mxu0 %v403
  %v984 = vpop.f32.mrf.mxu0
  %v985 = vadd.f32 %v888, %v984
  %v986 = vpop.f32.mrf.mxu0
  %v987 = vpop.f32.mrf.mxu0
  %v988 = vadd.f32 %v891, %v987
  %v989 = vpop.f32.mrf.mxu0
  %990 = vmatprep.mubr.bf16.mxu0 %v411
  %991 = vmatmul.mubr.bf16.gmra.mxu0 %v410
  %v992 = vpop.f32.mrf.mxu0
  %v993 = vadd.f32 %v896, %v992
  %v994 = vpop.f32.mrf.mxu0
  %v995 = vpop.f32.mrf.mxu0
  %v996 = vadd.f32 %v899, %v995
  %v997 = vpop.f32.mrf.mxu0
  %998 = vmatprep.mubr.bf16.mxu0 %v418
  %999 = vmatmul.mubr.bf16.gmra.mxu0 %v417
  %v1000 = vpop.f32.mrf.mxu0
  %v1001 = vadd.f32 %v904, %v1000
  %v1002 = vpop.f32.mrf.mxu0
  %v1003 = vpop.f32.mrf.mxu0
  %v1004 = vadd.f32 %v907, %v1003
  %v1005 = vpop.f32.mrf.mxu0
  %1006 = vmatprep.mubr.bf16.mxu0 %v425
  %1007 = vmatmul.mubr.bf16.gmra.mxu0 %v424
  %v1008 = vpop.f32.mrf.mxu0
  %v1009 = vadd.f32 %v912, %v1008
  %v1010 = vpop.f32.mrf.mxu0
  %v1011 = vpop.f32.mrf.mxu0
  %v1012 = vadd.f32 %v915, %v1011
  %v1013 = vpop.f32.mrf.mxu0
  %1014 = vdwg.mxu0
  %1015 = vmatprep.subr.bf16.mxu0 0
  %1016 = vmatpush1.bf16.msra.mxu0 %v748
  %1017 = vmatprep.subr.bf16.mxu0 0
  %1018 = vmatpush1.bf16.msra.mxu0 %v747
  %1019 = vmatprep.subr.bf16.mxu0 0
  %1020 = vmatpush1.bf16.msra.mxu0 %v746
  %1021 = vmatprep.subr.bf16.mxu0 0
  %1022 = vmatpush1.bf16.msra.mxu0 %v745
  %1023 = vmatprep.subr.bf16.mxu0 0
  %1024 = vmatpush1.bf16.msra.mxu0 %v744
  %1025 = vmatprep.subr.bf16.mxu0 0
  %1026 = vmatpush1.bf16.msra.mxu0 %v743
  %1027 = vmatprep.subr.bf16.mxu0 0
  %1028 = vmatpush1.bf16.msra.mxu0 %v742
  %1029 = vmatprep.subr.bf16.mxu0 0
  %1030 = vmatpush1.bf16.msra.mxu0 %v741
  %1031 = vmatprep.subr.bf16.mxu0 0
  %1032 = vmatpush2.bf16.msra.mxu0 %v756
  %1033 = vmatprep.subr.bf16.mxu0 0
  %1034 = vmatpush2.bf16.msra.mxu0 %v755
  %1035 = vmatprep.subr.bf16.mxu0 0
  %1036 = vmatpush2.bf16.msra.mxu0 %v754
  %1037 = vmatprep.subr.bf16.mxu0 0
  %1038 = vmatpush2.bf16.msra.mxu0 %v753
  %1039 = vmatprep.subr.bf16.mxu0 0
  %1040 = vmatpush2.bf16.msra.mxu0 %v752
  %1041 = vmatprep.subr.bf16.mxu0 0
  %1042 = vmatpush2.bf16.msra.mxu0 %v751
  %1043 = vmatprep.subr.bf16.mxu0 0
  %1044 = vmatpush2.bf16.msra.mxu0 %v750
  %1045 = vmatprep.subr.bf16.mxu0 0
  %1046 = vmatpush2.bf16.msra.mxu0 %v749
  %1047 = vmatprep.mubr.bf16.mxu0 %v378
  %1048 = vmatmul.mubr.bf16.gmra.mxu0 %v377
  %v1049 = vpop.f32.mrf.mxu0
  %v1050 = vadd.f32 %v953, %v1049
  %v1051 = vpop.f32.mrf.mxu0
  %v1052 = vpop.f32.mrf.mxu0
  %v1053 = vadd.f32 %v956, %v1052
  %v1054 = vpop.f32.mrf.mxu0
  %1055 = vmatprep.mubr.bf16.mxu0 %v385
  %1056 = vmatmul.mubr.bf16.gmra.mxu0 %v384
  %v1057 = vpop.f32.mrf.mxu0
  %v1058 = vadd.f32 %v961, %v1057
  %v1059 = vpop.f32.mrf.mxu0
  %v1060 = vpop.f32.mrf.mxu0
  %v1061 = vadd.f32 %v964, %v1060
  %v1062 = vpop.f32.mrf.mxu0
  %1063 = vmatprep.mubr.bf16.mxu0 %v392
  %1064 = vmatmul.mubr.bf16.gmra.mxu0 %v391
  %v1065 = vpop.f32.mrf.mxu0
  %v1066 = vadd.f32 %v969, %v1065
  %v1067 = vpop.f32.mrf.mxu0
  %v1068 = vpop.f32.mrf.mxu0
  %v1069 = vadd.f32 %v972, %v1068
  %v1070 = vpop.f32.mrf.mxu0
  %1071 = vmatprep.mubr.bf16.mxu0 %v399
  %1072 = vmatmul.mubr.bf16.gmra.mxu0 %v398
  %v1073 = vpop.f32.mrf.mxu0
  %v1074 = vadd.f32 %v977, %v1073
  %v1075 = vpop.f32.mrf.mxu0
  %v1076 = vpop.f32.mrf.mxu0
  %v1077 = vadd.f32 %v980, %v1076
  %v1078 = vpop.f32.mrf.mxu0
  %1079 = vmatprep.mubr.bf16.mxu0 %v406
  %1080 = vmatmul.mubr.bf16.gmra.mxu0 %v405
  %v1081 = vpop.f32.mrf.mxu0
  %v1082 = vadd.f32 %v985, %v1081
  %v1083 = vpop.f32.mrf.mxu0
  %v1084 = vpop.f32.mrf.mxu0
  %v1085 = vadd.f32 %v988, %v1084
  %v1086 = vpop.f32.mrf.mxu0
  %1087 = vmatprep.mubr.bf16.mxu0 %v413
  %1088 = vmatmul.mubr.bf16.gmra.mxu0 %v412
  %v1089 = vpop.f32.mrf.mxu0
  %v1090 = vadd.f32 %v993, %v1089
  %v1091 = vpop.f32.mrf.mxu0
  %v1092 = vpop.f32.mrf.mxu0
  %v1093 = vadd.f32 %v996, %v1092
  %v1094 = vpop.f32.mrf.mxu0
  %1095 = vmatprep.mubr.bf16.mxu0 %v420
  %1096 = vmatmul.mubr.bf16.gmra.mxu0 %v419
  %v1097 = vpop.f32.mrf.mxu0
  %v1098 = vadd.f32 %v1001, %v1097
  %v1099 = vpop.f32.mrf.mxu0
  %v1100 = vpop.f32.mrf.mxu0
  %v1101 = vadd.f32 %v1004, %v1100
  %v1102 = vpop.f32.mrf.mxu0
  %1103 = vmatprep.mubr.bf16.mxu0 %v427
  %1104 = vmatmul.mubr.bf16.gmra.mxu0 %v426
  %v1105 = vpop.f32.mrf.mxu0
  %v1106 = vadd.f32 %v1009, %v1105
  %v1107 = vpop.f32.mrf.mxu0
  %v1108 = vpop.f32.mrf.mxu0
  %v1109 = vadd.f32 %v1012, %v1108
  %v1110 = vpop.f32.mrf.mxu0
  %1111 = vdwg.mxu0
  %1112 = vmatprep.subr.bf16.mxu0 0
  %1113 = vmatpush1.bf16.msra.mxu0 %v764
  %1114 = vmatprep.subr.bf16.mxu0 0
  %1115 = vmatpush1.bf16.msra.mxu0 %v763
  %1116 = vmatprep.subr.bf16.mxu0 0
  %1117 = vmatpush1.bf16.msra.mxu0 %v762
  %1118 = vmatprep.subr.bf16.mxu0 0
  %1119 = vmatpush1.bf16.msra.mxu0 %v761
  %1120 = vmatprep.subr.bf16.mxu0 0
  %1121 = vmatpush1.bf16.msra.mxu0 %v760
  %1122 = vmatprep.subr.bf16.mxu0 0
  %1123 = vmatpush1.bf16.msra.mxu0 %v759
  %1124 = vmatprep.subr.bf16.mxu0 0
  %1125 = vmatpush1.bf16.msra.mxu0 %v758
  %1126 = vmatprep.subr.bf16.mxu0 0
  %1127 = vmatpush1.bf16.msra.mxu0 %v757
  %1128 = vmatprep.subr.bf16.mxu0 0
  %1129 = vmatpush2.bf16.msra.mxu0 0
  %1130 = vmatprep.subr.bf16.mxu0 0
  %1131 = vmatpush2.bf16.msra.mxu0 0
  %1132 = vmatprep.subr.bf16.mxu0 0
  %1133 = vmatpush2.bf16.msra.mxu0 0
  %1134 = vmatprep.subr.bf16.mxu0 0
  %1135 = vmatpush2.bf16.msra.mxu0 0
  %1136 = vmatprep.subr.bf16.mxu0 0
  %1137 = vmatpush2.bf16.msra.mxu0 0
  %1138 = vmatprep.subr.bf16.mxu0 0
  %1139 = vmatpush2.bf16.msra.mxu0 0
  %1140 = vmatprep.subr.bf16.mxu0 0
  %1141 = vmatpush2.bf16.msra.mxu0 0
  %1142 = vmatprep.subr.bf16.mxu0 0
  %1143 = vmatpush2.bf16.msra.mxu0 0
  %1144 = vmatprep.mubr.bf16.mxu0 0
  %1145 = vmatmul.mubr.bf16.gmra.mxu0 %v379
  %v1146 = vpop.f32.mrf.mxu0
  %v1147 = vadd.f32 %v1050, %v1146
  %v1148 = vpop.f32.mrf.mxu0
  %v1149 = vpop.f32.mrf.mxu0
  %v1150 = vadd.f32 %v1053, %v1149
  %v1151 = vpop.f32.mrf.mxu0
  %1152 = vmatprep.mubr.bf16.mxu0 0
  %1153 = vmatmul.mubr.bf16.gmra.mxu0 %v386
  %v1154 = vpop.f32.mrf.mxu0
  %v1155 = vadd.f32 %v1058, %v1154
  %v1156 = vpop.f32.mrf.mxu0
  %v1157 = vpop.f32.mrf.mxu0
  %v1158 = vadd.f32 %v1061, %v1157
  %v1159 = vpop.f32.mrf.mxu0
  %1160 = vmatprep.mubr.bf16.mxu0 0
  %1161 = vmatmul.mubr.bf16.gmra.mxu0 %v393
  %v1162 = vpop.f32.mrf.mxu0
  %v1163 = vadd.f32 %v1066, %v1162
  %v1164 = vpop.f32.mrf.mxu0
  %v1165 = vpop.f32.mrf.mxu0
  %v1166 = vadd.f32 %v1069, %v1165
  %v1167 = vpop.f32.mrf.mxu0
  %1168 = vmatprep.mubr.bf16.mxu0 0
  %1169 = vmatmul.mubr.bf16.gmra.mxu0 %v400
  %v1170 = vpop.f32.mrf.mxu0
  %v1171 = vadd.f32 %v1074, %v1170
  %v1172 = vpop.f32.mrf.mxu0
  %v1173 = vpop.f32.mrf.mxu0
  %v1174 = vadd.f32 %v1077, %v1173
  %v1175 = vpop.f32.mrf.mxu0
  %1176 = vmatprep.mubr.bf16.mxu0 0
  %1177 = vmatmul.mubr.bf16.gmra.mxu0 %v407
  %v1178 = vpop.f32.mrf.mxu0
  %v1179 = vadd.f32 %v1082, %v1178
  %v1180 = vpop.f32.mrf.mxu0
  %v1181 = vpop.f32.mrf.mxu0
  %v1182 = vadd.f32 %v1085, %v1181
  %v1183 = vpop.f32.mrf.mxu0
  %1184 = vmatprep.mubr.bf16.mxu0 0
  %1185 = vmatmul.mubr.bf16.gmra.mxu0 %v414
  %v1186 = vpop.f32.mrf.mxu0
  %v1187 = vadd.f32 %v1090, %v1186
  %v1188 = vpop.f32.mrf.mxu0
  %v1189 = vpop.f32.mrf.mxu0
  %v1190 = vadd.f32 %v1093, %v1189
  %v1191 = vpop.f32.mrf.mxu0
  %1192 = vmatprep.mubr.bf16.mxu0 0
  %1193 = vmatmul.mubr.bf16.gmra.mxu0 %v421
  %v1194 = vpop.f32.mrf.mxu0
  %v1195 = vadd.f32 %v1098, %v1194
  %v1196 = vpop.f32.mrf.mxu0
  %v1197 = vpop.f32.mrf.mxu0
  %v1198 = vadd.f32 %v1101, %v1197
  %v1199 = vpop.f32.mrf.mxu0
  %1200 = vmatprep.mubr.bf16.mxu0 0
  %1201 = vmatmul.mubr.bf16.gmra.mxu0 %v428
  %v1202 = vpop.f32.mrf.mxu0
  %v1203 = vadd.f32 %v1106, %v1202
  %v1204 = vpop.f32.mrf.mxu0
  %v1205 = vpop.f32.mrf.mxu0
  %v1206 = vadd.f32 %v1109, %v1205
  %v1207 = vpop.f32.mrf.mxu0
  %1208 = vdwg.mxu0
  %s1209 = smul.u32 0, 128
  %s1210 = scalar_lea.vmem [#allocation2], %s1209
  %1211 = vst [vmem:[%s1210] sm:$0xff] %v1147
  %1212 = vst [vmem:[%s1210 + $0x8] sm:$0xff] %v1150
  %1213 = vst [vmem:[%s1210 + $0x10] sm:$0xff] %v1155
  %1214 = vst [vmem:[%s1210 + $0x18] sm:$0xff] %v1158
  %1215 = vst [vmem:[%s1210 + $0x20] sm:$0xff] %v1163
  %1216 = vst [vmem:[%s1210 + $0x28] sm:$0xff] %v1166
  %1217 = vst [vmem:[%s1210 + $0x30] sm:$0xff] %v1171
  %1218 = vst [vmem:[%s1210 + $0x38] sm:$0xff] %v1174
  %1219 = vst [vmem:[%s1210 + $0x40] sm:$0xff] %v1179
  %1220 = vst [vmem:[%s1210 + $0x48] sm:$0xff] %v1182
  %1221 = vst [vmem:[%s1210 + $0x50] sm:$0xff] %v1187
  %1222 = vst [vmem:[%s1210 + $0x58] sm:$0xff] %v1190
  %1223 = vst [vmem:[%s1210 + $0x60] sm:$0xff] %v1195
  %1224 = vst [vmem:[%s1210 + $0x68] sm:$0xff] %v1198
  %1225 = vst [vmem:[%s1210 + $0x70] sm:$0xff] %v1203
  %1226 = vst [vmem:[%s1210 + $0x78] sm:$0xff] %v1206
  %p1227 = scmp.eq.s32.totalorder 0, 0
  // Predicated region
  $region22: #{resnet_small_forward.13} parent=0 // pred_check
    %p1228 = pneg %p1227
  $region23: #{resnet_small_forward.13} parent=0 // pred_check_branch
    %1230 = sbr.rel (%p1228) target = $region25
  $region24: #{resnet_small_forward.13} parent=0 // pred_region
    %1231 = vst [vmem:[#allocation3] sm:$0x1] 0.0
    %1232 = vst [vmem:[#allocation4] sm:$0x1] 0.0
  $region25: #{resnet_small_forward.13} parent=0 // pred_fallthru
    _
  %v1233 = vld [vmem:[#allocation3] sm:$0x1]
  %v1234 = vadd.f32 %v1147, %v1150
  %v1235 = vadd.f32 %v1234, %v1155
  %v1236 = vadd.f32 %v1235, %v1158
  %v1237 = vadd.f32 %v1236, %v1163
  %v1238 = vadd.f32 %v1237, %v1166
  %v1239 = vadd.f32 %v1238, %v1171
  %v1240 = vadd.f32 %v1239, %v1174
  %v1241 = vadd.f32 %v1240, %v1179
  %v1242 = vadd.f32 %v1241, %v1182
  %v1243 = vadd.f32 %v1242, %v1187
  %v1244 = vadd.f32 %v1243, %v1190
  %v1245 = vadd.f32 %v1244, %v1195
  %v1246 = vadd.f32 %v1245, %v1198
  %v1247 = vadd.f32 %v1246, %v1203
  %v1248 = vadd.f32 %v1247, %v1206
  %v1249 = vrot.slane %v1248, 4
  %v1250 = vadd.f32 %v1248, %v1249
  %v1251 = vrot.slane %v1250, 2
  %v1252 = vadd.f32 %v1250, %v1251
  %v1253 = vrot.slane %v1252, 1
  %v1254 = vadd.f32 %v1252, %v1253
  %v1255 = vadd.f32 %v1233, %v1254
  %1256 = vst [vmem:[#allocation3] sm:$0x1] %v1255
  %v1257 = vld [vmem:[#allocation4] sm:$0x1]
  %v1258 = vmul.f32 %v1147, %v1147
  %v1259 = vmul.f32 %v1150, %v1150
  %v1260 = vmul.f32 %v1155, %v1155
  %v1261 = vmul.f32 %v1158, %v1158
  %v1262 = vmul.f32 %v1163, %v1163
  %v1263 = vmul.f32 %v1166, %v1166
  %v1264 = vmul.f32 %v1171, %v1171
  %v1265 = vmul.f32 %v1174, %v1174
  %v1266 = vmul.f32 %v1179, %v1179
  %v1267 = vmul.f32 %v1182, %v1182
  %v1268 = vmul.f32 %v1187, %v1187
  %v1269 = vmul.f32 %v1190, %v1190
  %v1270 = vmul.f32 %v1195, %v1195
  %v1271 = vmul.f32 %v1198, %v1198
  %v1272 = vmul.f32 %v1203, %v1203
  %v1273 = vmul.f32 %v1206, %v1206
  %v1274 = vadd.f32 %v1258, %v1259
  %v1275 = vadd.f32 %v1274, %v1260
  %v1276 = vadd.f32 %v1275, %v1261
  %v1277 = vadd.f32 %v1276, %v1262
  %v1278 = vadd.f32 %v1277, %v1263
  %v1279 = vadd.f32 %v1278, %v1264
  %v1280 = vadd.f32 %v1279, %v1265
  %v1281 = vadd.f32 %v1280, %v1266
  %v1282 = vadd.f32 %v1281, %v1267
  %v1283 = vadd.f32 %v1282, %v1268
  %v1284 = vadd.f32 %v1283, %v1269
  %v1285 = vadd.f32 %v1284, %v1270
  %v1286 = vadd.f32 %v1285, %v1271
  %v1287 = vadd.f32 %v1286, %v1272
  %v1288 = vadd.f32 %v1287, %v1273
  %v1289 = vrot.slane %v1288, 4
  %v1290 = vadd.f32 %v1288, %v1289
  %v1291 = vrot.slane %v1290, 2
  %v1292 = vadd.f32 %v1290, %v1291
  %v1293 = vrot.slane %v1292, 1
  %v1294 = vadd.f32 %v1292, %v1293
  %v1295 = vadd.f32 %v1257, %v1294
  %1296 = vst [vmem:[#allocation4] sm:$0x1] %v1295
  // Predicated region
  $region26: #{resnet_small_forward.13} parent=0 // pred_check
    %p1297 = pneg %p1227
  $region27: #{resnet_small_forward.13} parent=0 // pred_check_branch
    %1299 = sbr.rel (%p1297) target = $region29
  $region28: #{resnet_small_forward.13} parent=0 // pred_region
    %v1300 = vld [vmem:[#allocation3] sm:$0x1]
    %v1301 = vmul.f32 %v1300, 0.0078125
    %v1302 = vld [vmem:[#allocation4] sm:$0x1]
    %v1303 = vmul.f32 %v1302, 0.0078125
    %v1304 = vmul.f32 %v1301, %v1301
    %v1305 = vsub.f32 %v1303, %v1304
    %v1306 = vmax.f32 %v1305, 0.0
    %v1307 = vld [vmem:[%s2] sm:$0x1]
    %v1308 = vadd.f32 %v1306, 1e-05
    %v1309 = vrsqrt.pop %v1308
    %v1310 = vmul.f32 %v1307, %v1309
    %v1311 = vld [vmem:[%s3] sm:$0x1]
    %v1312 = vmul.f32 %v1301, %v1310
    %v1313 = vsub.f32 %v1311, %v1312
    %v1314 = vld [vmem:[#allocation2] sm:$0xff]
    %v1315 = vld [vmem:[#allocation2 + $0x8] sm:$0xff]
    %v1316 = vld [vmem:[#allocation2 + $0x10] sm:$0xff]
    %v1317 = vld [vmem:[#allocation2 + $0x18] sm:$0xff]
    %v1318 = vld [vmem:[#allocation2 + $0x20] sm:$0xff]
    %v1319 = vld [vmem:[#allocation2 + $0x28] sm:$0xff]
    %v1320 = vld [vmem:[#allocation2 + $0x30] sm:$0xff]
    %v1321 = vld [vmem:[#allocation2 + $0x38] sm:$0xff]
    %v1322 = vld [vmem:[#allocation2 + $0x40] sm:$0xff]
    %v1323 = vld [vmem:[#allocation2 + $0x48] sm:$0xff]
    %v1324 = vld [vmem:[#allocation2 + $0x50] sm:$0xff]
    %v1325 = vld [vmem:[#allocation2 + $0x58] sm:$0xff]
    %v1326 = vld [vmem:[#allocation2 + $0x60] sm:$0xff]
    %v1327 = vld [vmem:[#allocation2 + $0x68] sm:$0xff]
    %v1328 = vld [vmem:[#allocation2 + $0x70] sm:$0xff]
    %v1329 = vld [vmem:[#allocation2 + $0x78] sm:$0xff]
    %v1331 = vlaneseq
    %v1332 = vshrl.u32 %v1331, 7
    %v1333 = vsub.s32 0, %v1332
    %v1334 = vrot.slane %v1310, %v1333
    %v1336 = vmul.f32 %v1314, %v1334
    %v1337 = vmul.f32 %v1315, %v1334
    %v1338 = vmul.f32 %v1316, %v1334
    %v1339 = vmul.f32 %v1317, %v1334
    %v1340 = vmul.f32 %v1318, %v1334
    %v1341 = vmul.f32 %v1319, %v1334
    %v1342 = vmul.f32 %v1320, %v1334
    %v1343 = vmul.f32 %v1321, %v1334
    %v1344 = vmul.f32 %v1322, %v1334
    %v1345 = vmul.f32 %v1323, %v1334
    %v1346 = vmul.f32 %v1324, %v1334
    %v1347 = vmul.f32 %v1325, %v1334
    %v1348 = vmul.f32 %v1326, %v1334
    %v1349 = vmul.f32 %v1327, %v1334
    %v1350 = vmul.f32 %v1328, %v1334
    %v1351 = vmul.f32 %v1329, %v1334
    %v1353 = vlaneseq
    %v1354 = vshrl.u32 %v1353, 7
    %v1355 = vsub.s32 0, %v1354
    %v1356 = vrot.slane %v1313, %v1355
    %v1358 = vadd.f32 %v1336, %v1356
    %v1359 = vadd.f32 %v1337, %v1356
    %v1360 = vadd.f32 %v1338, %v1356
    %v1361 = vadd.f32 %v1339, %v1356
    %v1362 = vadd.f32 %v1340, %v1356
    %v1363 = vadd.f32 %v1341, %v1356
    %v1364 = vadd.f32 %v1342, %v1356
    %v1365 = vadd.f32 %v1343, %v1356
    %v1366 = vadd.f32 %v1344, %v1356
    %v1367 = vadd.f32 %v1345, %v1356
    %v1368 = vadd.f32 %v1346, %v1356
    %v1369 = vadd.f32 %v1347, %v1356
    %v1370 = vadd.f32 %v1348, %v1356
    %v1371 = vadd.f32 %v1349, %v1356
    %v1372 = vadd.f32 %v1350, %v1356
    %v1373 = vadd.f32 %v1351, %v1356
    %v1374 = vld [vmem:[%s4] sm:$0xf]
    %v1375 = vld [vmem:[%s4 + $0x4] sm:$0xf]
    %v1376 = vld [vmem:[%s4 + $0x8] sm:$0xf]
    %v1377 = vld [vmem:[%s4 + $0xc] sm:$0xf]
    %v1378 = vld [vmem:[%s4 + $0x10] sm:$0xf]
    %v1379 = vld [vmem:[%s4 + $0x14] sm:$0xf]
    %v1380 = vld [vmem:[%s4 + $0x18] sm:$0xf]
    %v1381 = vld [vmem:[%s4 + $0x1c] sm:$0xf]
    %v1382 = vld [vmem:[%s4 + $0x20] sm:$0xf]
    %v1383 = vld [vmem:[%s4 + $0x24] sm:$0xf]
    %v1384 = vld [vmem:[%s4 + $0x28] sm:$0xf]
    %v1385 = vld [vmem:[%s4 + $0x2c] sm:$0xf]
    %v1386 = vld [vmem:[%s4 + $0x30] sm:$0xf]
    %v1387 = vld [vmem:[%s4 + $0x34] sm:$0xf]
    %v1388 = vld [vmem:[%s4 + $0x38] sm:$0xf]
    %v1389 = vld [vmem:[%s4 + $0x3c] sm:$0xf]
    %v1390 = vunpack.c.l.bf16 %v1374
    %v1391 = vunpack.c.l.bf16 %v1375
    %v1392 = vunpack.c.l.bf16 %v1376
    %v1393 = vunpack.c.l.bf16 %v1377
    %v1394 = vunpack.c.l.bf16 %v1378
    %v1395 = vunpack.c.l.bf16 %v1379
    %v1396 = vunpack.c.l.bf16 %v1380
    %v1397 = vunpack.c.l.bf16 %v1381
    %v1398 = vunpack.c.l.bf16 %v1382
    %v1399 = vunpack.c.l.bf16 %v1383
    %v1400 = vunpack.c.l.bf16 %v1384
    %v1401 = vunpack.c.l.bf16 %v1385
    %v1402 = vunpack.c.l.bf16 %v1386
    %v1403 = vunpack.c.l.bf16 %v1387
    %v1404 = vunpack.c.l.bf16 %v1388
    %v1405 = vunpack.c.l.bf16 %v1389
    %v1406 = vadd.f32 %v1358, %v1390
    %v1407 = vadd.f32 %v1359, %v1391
    %v1408 = vadd.f32 %v1360, %v1392
    %v1409 = vadd.f32 %v1361, %v1393
    %v1410 = vadd.f32 %v1362, %v1394
    %v1411 = vadd.f32 %v1363, %v1395
    %v1412 = vadd.f32 %v1364, %v1396
    %v1413 = vadd.f32 %v1365, %v1397
    %v1414 = vadd.f32 %v1366, %v1398
    %v1415 = vadd.f32 %v1367, %v1399
    %v1416 = vadd.f32 %v1368, %v1400
    %v1417 = vadd.f32 %v1369, %v1401
    %v1418 = vadd.f32 %v1370, %v1402
    %v1419 = vadd.f32 %v1371, %v1403
    %v1420 = vadd.f32 %v1372, %v1404
    %v1421 = vadd.f32 %v1373, %v1405
    %v1422 = vmax.f32 %v1406, 0.0
    %v1423 = vmax.f32 %v1407, 0.0
    %v1424 = vmax.f32 %v1408, 0.0
    %v1425 = vmax.f32 %v1409, 0.0
    %v1426 = vmax.f32 %v1410, 0.0
    %v1427 = vmax.f32 %v1411, 0.0
    %v1428 = vmax.f32 %v1412, 0.0
    %v1429 = vmax.f32 %v1413, 0.0
    %v1430 = vmax.f32 %v1414, 0.0
    %v1431 = vmax.f32 %v1415, 0.0
    %v1432 = vmax.f32 %v1416, 0.0
    %v1433 = vmax.f32 %v1417, 0.0
    %v1434 = vmax.f32 %v1418, 0.0
    %v1435 = vmax.f32 %v1419, 0.0
    %v1436 = vmax.f32 %v1420, 0.0
    %v1437 = vmax.f32 %v1421, 0.0
    %v1438 = vpack.c.bf16 %v1423, %v1422
    %v1439 = vpack.c.bf16 %v1425, %v1424
    %v1440 = vpack.c.bf16 %v1427, %v1426
    %v1441 = vpack.c.bf16 %v1429, %v1428
    %v1442 = vpack.c.bf16 %v1431, %v1430
    %v1443 = vpack.c.bf16 %v1433, %v1432
    %v1444 = vpack.c.bf16 %v1435, %v1434
    %v1445 = vpack.c.bf16 %v1437, %v1436
    %v1454 = vunpack.c.l.b16 %v1438
    %v1455 = vunpack.c.h.b16 %v1438
    %v1456 = vunpack.c.l.b16 %v1439
    %v1457 = vunpack.c.h.b16 %v1439
    %v1458 = vunpack.c.l.b16 %v1440
    %v1459 = vunpack.c.h.b16 %v1440
    %v1460 = vunpack.c.l.b16 %v1441
    %v1461 = vunpack.c.h.b16 %v1441
    %v1462 = vunpack.c.l.b16 %v1442
    %v1463 = vunpack.c.h.b16 %v1442
    %v1464 = vunpack.c.l.b16 %v1443
    %v1465 = vunpack.c.h.b16 %v1443
    %v1466 = vunpack.c.l.b16 %v1444
    %v1467 = vunpack.c.h.b16 %v1444
    %v1468 = vunpack.c.l.b16 %v1445
    %v1469 = vunpack.c.h.b16 %v1445
    %v1470 = vpack.c.b16 %v1454, %v1454
    %v1471 = vpack.c.b16 %v1455, %v1455
    %v1472 = vpack.c.b16 %v1456, %v1456
    %v1473 = vpack.c.b16 %v1457, %v1457
    %v1474 = vpack.c.b16 %v1458, %v1458
    %v1475 = vpack.c.b16 %v1459, %v1459
    %v1476 = vpack.c.b16 %v1460, %v1460
    %v1477 = vpack.c.b16 %v1461, %v1461
    %v1478 = vpack.c.b16 %v1462, %v1462
    %v1479 = vpack.c.b16 %v1463, %v1463
    %v1480 = vpack.c.b16 %v1464, %v1464
    %v1481 = vpack.c.b16 %v1465, %v1465
    %v1482 = vpack.c.b16 %v1466, %v1466
    %v1483 = vpack.c.b16 %v1467, %v1467
    %v1484 = vpack.c.b16 %v1468, %v1468
    %v1485 = vpack.c.b16 %v1469, %v1469
    %1502 = vst [vmem:[%s5] sm:$0xf] %v1470
    %1503 = vst [vmem:[%s5 + $0x4] sm:$0xf] %v1471
    %1504 = vst [vmem:[%s5 + $0x8] sm:$0xf] %v1472
    %1505 = vst [vmem:[%s5 + $0xc] sm:$0xf] %v1473
    %1506 = vst [vmem:[%s5 + $0x10] sm:$0xf] %v1474
    %1507 = vst [vmem:[%s5 + $0x14] sm:$0xf] %v1475
    %1508 = vst [vmem:[%s5 + $0x18] sm:$0xf] %v1476
    %1509 = vst [vmem:[%s5 + $0x1c] sm:$0xf] %v1477
    %1510 = vst [vmem:[%s5 + $0x20] sm:$0xf] %v1478
    %1511 = vst [vmem:[%s5 + $0x24] sm:$0xf] %v1479
    %1512 = vst [vmem:[%s5 + $0x28] sm:$0xf] %v1480
    %1513 = vst [vmem:[%s5 + $0x2c] sm:$0xf] %v1481
    %1514 = vst [vmem:[%s5 + $0x30] sm:$0xf] %v1482
    %1515 = vst [vmem:[%s5 + $0x34] sm:$0xf] %v1483
    %1516 = vst [vmem:[%s5 + $0x38] sm:$0xf] %v1484
    %1517 = vst [vmem:[%s5 + $0x3c] sm:$0xf] %v1485
  $region29: #{resnet_small_forward.13} parent=0 // pred_fallthru
    _
  // Predicated region
  $region30: #{resnet_small_forward.13} parent=0 // pred_check
    _
  $region31: #{resnet_small_forward.13} parent=0 // pred_check_branch
    %1519 = sbr.rel (0) target = $region33
  $region32: #{resnet_small_forward.13} parent=0 // pred_region
    _
  $region33: #{resnet_small_forward.13} parent=0 // pred_fallthru
    _
  // Predicated region
  $region34: #{resnet_small_forward.13} parent=0 // pred_check
    _
  $region35: #{resnet_small_forward.13} parent=0 // pred_check_branch
    %1521 = sbr.rel (0) target = $region37
  $region36: #{resnet_small_forward.13} parent=0 // pred_region
    _
  $region37: #{resnet_small_forward.13} parent=0 // pred_fallthru
    _

// kernel: resnet_small_forward.14
$region0: #{resnet_small_forward.14}
  #allocation0 [shape = 'u32[]', space=smem, size = 0x4, offset = 0x4, fixed_abs, tag = 'smem constant byte address 0x4 - core index']
  #allocation1 [shape = 'u32[144,128]{1,0:T(1,128)}', space=vmem, size = 0x12000, scoped, tag = 'internal scratch']
  #allocation2 [shape = 'f32[128,128]{1,0:T(8,128)}', space=vmem, size = 0x10000, scoped, tag = 'scratch operand']
  #allocation3 [shape = 'f32[1,128]{1,0:T(1,128)}', space=vmem, size = 0x200, scoped, tag = 'scratch operand']
  #allocation4 [shape = 'f32[1,128]{1,0:T(1,128)}', space=vmem, size = 0x200, scoped, tag = 'scratch operand']
  %s0 = inlined_call_operand.vmem [shape: bf16[128,896], index: 0, kind: input, shape index: {}]
  %s1 = inlined_call_operand.vmem [shape: bf16[896,128], index: 1, kind: input, shape index: {}]
  %s2 = inlined_call_operand.vmem [shape: f32[1,128], index: 2, kind: input, shape index: {}]
  %s3 = inlined_call_operand.vmem [shape: f32[1,128], index: 3, kind: input, shape index: {}]
  %s4 = inlined_call_operand.vmem [shape: bf16[128,128], index: 4, kind: output, shape index: {}]
  %s5 = sld [smem:[#allocation0]]
  $region34: #{resnet_small_forward.14} parent=0
    _
  %s7 = ssub.s32 1, %s5
  %s8 = scalar_select 0, %s7, %s5
  // Predicated region
  $region2: #{resnet_small_forward.14} parent=0 // pred_check
    _
  $region3: #{resnet_small_forward.14} parent=0 // pred_check_branch
    %10 = sbr.rel (0) target = $region5
  $region4: #{resnet_small_forward.14} parent=0 // pred_region
    _
  $region5: #{resnet_small_forward.14} parent=0 // pred_fallthru
    _
  // Predicated region
  $region6: #{resnet_small_forward.14} parent=0 // pred_check
    _
  $region7: #{resnet_small_forward.14} parent=0 // pred_check_branch
    %12 = sbr.rel (0) target = $region9
  $region8: #{resnet_small_forward.14} parent=0 // pred_region
    _
  $region9: #{resnet_small_forward.14} parent=0 // pred_fallthru
    _
  // Predicated region
  $region10: #{resnet_small_forward.14} parent=0 // pred_check
    _
  $region11: #{resnet_small_forward.14} parent=0 // pred_check_branch
    %14 = sbr.rel (0) target = $region13
  $region12: #{resnet_small_forward.14} parent=0 // pred_region
    _
  $region13: #{resnet_small_forward.14} parent=0 // pred_fallthru
    _
  // Predicated region
  $region14: #{resnet_small_forward.14} parent=0 // pred_check
    _
  $region15: #{resnet_small_forward.14} parent=0 // pred_check_branch
    %16 = sbr.rel (0) target = $region17
  $region16: #{resnet_small_forward.14} parent=0 // pred_region
    _
  $region17: #{resnet_small_forward.14} parent=0 // pred_fallthru
    _
  %v18 = vld [vmem:[%s0] sm:$0xff]
  %v19 = vld [vmem:[%s0 + $0x8] sm:$0xff]
  %v20 = vld [vmem:[%s0 + $0x10] sm:$0xff]
  %v21 = vld [vmem:[%s0 + $0x18] sm:$0xf]
  %v22 = vld [vmem:[%s0 + $0x1c] sm:$0xff]
  %v23 = vld [vmem:[%s0 + $0x24] sm:$0xff]
  %v24 = vld [vmem:[%s0 + $0x2c] sm:$0xff]
  %v25 = vld [vmem:[%s0 + $0x34] sm:$0xf]
  %v26 = vld [vmem:[%s0 + $0x38] sm:$0xff]
  %v27 = vld [vmem:[%s0 + $0x40] sm:$0xff]
  %v28 = vld [vmem:[%s0 + $0x48] sm:$0xff]
  %v29 = vld [vmem:[%s0 + $0x50] sm:$0xf]
  %v30 = vld [vmem:[%s0 + $0x54] sm:$0xff]
  %v31 = vld [vmem:[%s0 + $0x5c] sm:$0xff]
  %v32 = vld [vmem:[%s0 + $0x64] sm:$0xff]
  %v33 = vld [vmem:[%s0 + $0x6c] sm:$0xf]
  %v34 = vld [vmem:[%s0 + $0x70] sm:$0xff]
  %v35 = vld [vmem:[%s0 + $0x78] sm:$0xff]
  %v36 = vld [vmem:[%s0 + $0x80] sm:$0xff]
  %v37 = vld [vmem:[%s0 + $0x88] sm:$0xf]
  %v38 = vld [vmem:[%s0 + $0x8c] sm:$0xff]
  %v39 = vld [vmem:[%s0 + $0x94] sm:$0xff]
  %v40 = vld [vmem:[%s0 + $0x9c] sm:$0xff]
  %v41 = vld [vmem:[%s0 + $0xa4] sm:$0xf]
  %v42 = vld [vmem:[%s0 + $0xa8] sm:$0xff]
  %v43 = vld [vmem:[%s0 + $0xb0] sm:$0xff]
  %v44 = vld [vmem:[%s0 + $0xb8] sm:$0xff]
  %v45 = vld [vmem:[%s0 + $0xc0] sm:$0xf]
  %v46 = vld [vmem:[%s0 + $0xc4] sm:$0xff]
  %v47 = vld [vmem:[%s0 + $0xcc] sm:$0xff]
  %v48 = vld [vmem:[%s0 + $0xd4] sm:$0xff]
  %v49 = vld [vmem:[%s0 + $0xdc] sm:$0xf]
  %v50 = vld [vmem:[%s0 + $0xe0] sm:$0xff]
  %v51 = vld [vmem:[%s0 + $0xe8] sm:$0xff]
  %v52 = vld [vmem:[%s0 + $0xf0] sm:$0xff]
  %v53 = vld [vmem:[%s0 + $0xf8] sm:$0xf]
  %v54 = vld [vmem:[%s0 + $0xfc] sm:$0xff]
  %v55 = vld [vmem:[%s0 + $0x104] sm:$0xff]
  %v56 = vld [vmem:[%s0 + $0x10c] sm:$0xff]
  %v57 = vld [vmem:[%s0 + $0x114] sm:$0xf]
  %v58 = vld [vmem:[%s0 + $0x118] sm:$0xff]
  %v59 = vld [vmem:[%s0 + $0x120] sm:$0xff]
  %v60 = vld [vmem:[%s0 + $0x128] sm:$0xff]
  %v61 = vld [vmem:[%s0 + $0x130] sm:$0xf]
  %v62 = vld [vmem:[%s0 + $0x134] sm:$0xff]
  %v63 = vld [vmem:[%s0 + $0x13c] sm:$0xff]
  %v64 = vld [vmem:[%s0 + $0x144] sm:$0xff]
  %v65 = vld [vmem:[%s0 + $0x14c] sm:$0xf]
  %v66 = vld [vmem:[%s0 + $0x150] sm:$0xff]
  %v67 = vld [vmem:[%s0 + $0x158] sm:$0xff]
  %v68 = vld [vmem:[%s0 + $0x160] sm:$0xff]
  %v69 = vld [vmem:[%s0 + $0x168] sm:$0xf]
  %v70 = vld [vmem:[%s0 + $0x16c] sm:$0xff]
  %v71 = vld [vmem:[%s0 + $0x174] sm:$0xff]
  %v72 = vld [vmem:[%s0 + $0x17c] sm:$0xff]
  %v73 = vld [vmem:[%s0 + $0x184] sm:$0xf]
  %v74 = vld [vmem:[%s0 + $0x188] sm:$0xff]
  %v75 = vld [vmem:[%s0 + $0x190] sm:$0xff]
  %v76 = vld [vmem:[%s0 + $0x198] sm:$0xff]
  %v77 = vld [vmem:[%s0 + $0x1a0] sm:$0xf]
  %v78 = vld [vmem:[%s0 + $0x1a4] sm:$0xff]
  %v79 = vld [vmem:[%s0 + $0x1ac] sm:$0xff]
  %v80 = vld [vmem:[%s0 + $0x1b4] sm:$0xff]
  %v81 = vld [vmem:[%s0 + $0x1bc] sm:$0xf]
  %v82 = vld [vmem:[%s1] sm:$0xf]
  %v83 = vld [vmem:[%s1 + $0x4] sm:$0xf]
  %v84 = vld [vmem:[%s1 + $0x8] sm:$0xf]
  %v85 = vld [vmem:[%s1 + $0xc] sm:$0xf]
  %v86 = vld [vmem:[%s1 + $0x10] sm:$0xf]
  %v87 = vld [vmem:[%s1 + $0x14] sm:$0xf]
  %v88 = vld [vmem:[%s1 + $0x18] sm:$0xf]
  %v89 = vld [vmem:[%s1 + $0x1c] sm:$0xf]
  %v90 = vld [vmem:[%s1 + $0x20] sm:$0xf]
  %v91 = vld [vmem:[%s1 + $0x24] sm:$0xf]
  %v92 = vld [vmem:[%s1 + $0x28] sm:$0xf]
  %v93 = vld [vmem:[%s1 + $0x2c] sm:$0xf]
  %v94 = vld [vmem:[%s1 + $0x30] sm:$0xf]
  %v95 = vld [vmem:[%s1 + $0x34] sm:$0xf]
  %v96 = vld [vmem:[%s1 + $0x38] sm:$0xf]
  %v97 = vld [vmem:[%s1 + $0x3c] sm:$0xf]
  %v98 = vld [vmem:[%s1 + $0x40] sm:$0xf]
  %v99 = vld [vmem:[%s1 + $0x44] sm:$0xf]
  %v100 = vld [vmem:[%s1 + $0x48] sm:$0xf]
  %v101 = vld [vmem:[%s1 + $0x4c] sm:$0xf]
  %v102 = vld [vmem:[%s1 + $0x50] sm:$0xf]
  %v103 = vld [vmem:[%s1 + $0x54] sm:$0xf]
  %v104 = vld [vmem:[%s1 + $0x58] sm:$0xf]
  %v105 = vld [vmem:[%s1 + $0x5c] sm:$0xf]
  %v106 = vld [vmem:[%s1 + $0x60] sm:$0xf]
  %v107 = vld [vmem:[%s1 + $0x64] sm:$0xf]
  %v108 = vld [vmem:[%s1 + $0x68] sm:$0xf]
  %v109 = vld [vmem:[%s1 + $0x6c] sm:$0xf]
  %v110 = vld [vmem:[%s1 + $0x70] sm:$0xf]
  %v111 = vld [vmem:[%s1 + $0x74] sm:$0xf]
  %v112 = vld [vmem:[%s1 + $0x78] sm:$0xf]
  %v113 = vld [vmem:[%s1 + $0x7c] sm:$0xf]
  %v114 = vld [vmem:[%s1 + $0x80] sm:$0xf]
  %v115 = vld [vmem:[%s1 + $0x84] sm:$0xf]
  %v116 = vld [vmem:[%s1 + $0x88] sm:$0xf]
  %v117 = vld [vmem:[%s1 + $0x8c] sm:$0xf]
  %v118 = vld [vmem:[%s1 + $0x90] sm:$0xf]
  %v119 = vld [vmem:[%s1 + $0x94] sm:$0xf]
  %v120 = vld [vmem:[%s1 + $0x98] sm:$0xf]
  %v121 = vld [vmem:[%s1 + $0x9c] sm:$0xf]
  %v122 = vld [vmem:[%s1 + $0xa0] sm:$0xf]
  %v123 = vld [vmem:[%s1 + $0xa4] sm:$0xf]
  %v124 = vld [vmem:[%s1 + $0xa8] sm:$0xf]
  %v125 = vld [vmem:[%s1 + $0xac] sm:$0xf]
  %v126 = vld [vmem:[%s1 + $0xb0] sm:$0xf]
  %v127 = vld [vmem:[%s1 + $0xb4] sm:$0xf]
  %v128 = vld [vmem:[%s1 + $0xb8] sm:$0xf]
  %v129 = vld [vmem:[%s1 + $0xbc] sm:$0xf]
  %v130 = vld [vmem:[%s1 + $0xc0] sm:$0xf]
  %v131 = vld [vmem:[%s1 + $0xc4] sm:$0xf]
  %v132 = vld [vmem:[%s1 + $0xc8] sm:$0xf]
  %v133 = vld [vmem:[%s1 + $0xcc] sm:$0xf]
  %v134 = vld [vmem:[%s1 + $0xd0] sm:$0xf]
  %v135 = vld [vmem:[%s1 + $0xd4] sm:$0xf]
  %v136 = vld [vmem:[%s1 + $0xd8] sm:$0xf]
  %v137 = vld [vmem:[%s1 + $0xdc] sm:$0xf]
  %v138 = vld [vmem:[%s1 + $0xe0] sm:$0xf]
  %v139 = vld [vmem:[%s1 + $0xe4] sm:$0xf]
  %v140 = vld [vmem:[%s1 + $0xe8] sm:$0xf]
  %v141 = vld [vmem:[%s1 + $0xec] sm:$0xf]
  %v142 = vld [vmem:[%s1 + $0xf0] sm:$0xf]
  %v143 = vld [vmem:[%s1 + $0xf4] sm:$0xf]
  %v144 = vld [vmem:[%s1 + $0xf8] sm:$0xf]
  %v145 = vld [vmem:[%s1 + $0xfc] sm:$0xf]
  %v146 = vld [vmem:[%s1 + $0x100] sm:$0xf]
  %v147 = vld [vmem:[%s1 + $0x104] sm:$0xf]
  %v148 = vld [vmem:[%s1 + $0x108] sm:$0xf]
  %v149 = vld [vmem:[%s1 + $0x10c] sm:$0xf]
  %v150 = vld [vmem:[%s1 + $0x110] sm:$0xf]
  %v151 = vld [vmem:[%s1 + $0x114] sm:$0xf]
  %v152 = vld [vmem:[%s1 + $0x118] sm:$0xf]
  %v153 = vld [vmem:[%s1 + $0x11c] sm:$0xf]
  %v154 = vld [vmem:[%s1 + $0x120] sm:$0xf]
  %v155 = vld [vmem:[%s1 + $0x124] sm:$0xf]
  %v156 = vld [vmem:[%s1 + $0x128] sm:$0xf]
  %v157 = vld [vmem:[%s1 + $0x12c] sm:$0xf]
  %v158 = vld [vmem:[%s1 + $0x130] sm:$0xf]
  %v159 = vld [vmem:[%s1 + $0x134] sm:$0xf]
  %v160 = vld [vmem:[%s1 + $0x138] sm:$0xf]
  %v161 = vld [vmem:[%s1 + $0x13c] sm:$0xf]
  %v162 = vld [vmem:[%s1 + $0x140] sm:$0xf]
  %v163 = vld [vmem:[%s1 + $0x144] sm:$0xf]
  %v164 = vld [vmem:[%s1 + $0x148] sm:$0xf]
  %v165 = vld [vmem:[%s1 + $0x14c] sm:$0xf]
  %v166 = vld [vmem:[%s1 + $0x150] sm:$0xf]
  %v167 = vld [vmem:[%s1 + $0x154] sm:$0xf]
  %v168 = vld [vmem:[%s1 + $0x158] sm:$0xf]
  %v169 = vld [vmem:[%s1 + $0x15c] sm:$0xf]
  %v170 = vld [vmem:[%s1 + $0x160] sm:$0xf]
  %v171 = vld [vmem:[%s1 + $0x164] sm:$0xf]
  %v172 = vld [vmem:[%s1 + $0x168] sm:$0xf]
  %v173 = vld [vmem:[%s1 + $0x16c] sm:$0xf]
  %v174 = vld [vmem:[%s1 + $0x170] sm:$0xf]
  %v175 = vld [vmem:[%s1 + $0x174] sm:$0xf]
  %v176 = vld [vmem:[%s1 + $0x178] sm:$0xf]
  %v177 = vld [vmem:[%s1 + $0x17c] sm:$0xf]
  %v178 = vld [vmem:[%s1 + $0x180] sm:$0xf]
  %v179 = vld [vmem:[%s1 + $0x184] sm:$0xf]
  %v180 = vld [vmem:[%s1 + $0x188] sm:$0xf]
  %v181 = vld [vmem:[%s1 + $0x18c] sm:$0xf]
  %v182 = vld [vmem:[%s1 + $0x190] sm:$0xf]
  %v183 = vld [vmem:[%s1 + $0x194] sm:$0xf]
  %v184 = vld [vmem:[%s1 + $0x198] sm:$0xf]
  %v185 = vld [vmem:[%s1 + $0x19c] sm:$0xf]
  %v186 = vld [vmem:[%s1 + $0x1a0] sm:$0xf]
  %v187 = vld [vmem:[%s1 + $0x1a4] sm:$0xf]
  %v188 = vld [vmem:[%s1 + $0x1a8] sm:$0xf]
  %v189 = vld [vmem:[%s1 + $0x1ac] sm:$0xf]
  %v190 = vld [vmem:[%s1 + $0x1b0] sm:$0xf]
  %v191 = vld [vmem:[%s1 + $0x1b4] sm:$0xf]
  %v192 = vld [vmem:[%s1 + $0x1b8] sm:$0xf]
  %v193 = vld [vmem:[%s1 + $0x1bc] sm:$0xf]
  %v258 = vunpack.c.l.b16 %v18
  %v259 = vunpack.c.h.b16 %v18
  %v260 = vunpack.c.l.b16 %v19
  %v261 = vunpack.c.h.b16 %v19
  %v262 = vunpack.c.l.b16 %v20
  %v263 = vunpack.c.h.b16 %v20
  %v264 = vunpack.c.l.b16 %v21
  %v265 = vunpack.c.l.b16 %v22
  %v266 = vunpack.c.h.b16 %v22
  %v267 = vunpack.c.l.b16 %v23
  %v268 = vunpack.c.h.b16 %v23
  %v269 = vunpack.c.l.b16 %v24
  %v270 = vunpack.c.h.b16 %v24
  %v271 = vunpack.c.l.b16 %v25
  %v272 = vunpack.c.l.b16 %v26
  %v273 = vunpack.c.h.b16 %v26
  %v274 = vunpack.c.l.b16 %v27
  %v275 = vunpack.c.h.b16 %v27
  %v276 = vunpack.c.l.b16 %v28
  %v277 = vunpack.c.h.b16 %v28
  %v278 = vunpack.c.l.b16 %v29
  %v279 = vunpack.c.l.b16 %v30
  %v280 = vunpack.c.h.b16 %v30
  %v281 = vunpack.c.l.b16 %v31
  %v282 = vunpack.c.h.b16 %v31
  %v283 = vunpack.c.l.b16 %v32
  %v284 = vunpack.c.h.b16 %v32
  %v285 = vunpack.c.l.b16 %v33
  %v286 = vunpack.c.l.b16 %v34
  %v287 = vunpack.c.h.b16 %v34
  %v288 = vunpack.c.l.b16 %v35
  %v289 = vunpack.c.h.b16 %v35
  %v290 = vunpack.c.l.b16 %v36
  %v291 = vunpack.c.h.b16 %v36
  %v292 = vunpack.c.l.b16 %v37
  %v293 = vunpack.c.l.b16 %v38
  %v294 = vunpack.c.h.b16 %v38
  %v295 = vunpack.c.l.b16 %v39
  %v296 = vunpack.c.h.b16 %v39
  %v297 = vunpack.c.l.b16 %v40
  %v298 = vunpack.c.h.b16 %v40
  %v299 = vunpack.c.l.b16 %v41
  %v300 = vunpack.c.l.b16 %v42
  %v301 = vunpack.c.h.b16 %v42
  %v302 = vunpack.c.l.b16 %v43
  %v303 = vunpack.c.h.b16 %v43
  %v304 = vunpack.c.l.b16 %v44
  %v305 = vunpack.c.h.b16 %v44
  %v306 = vunpack.c.l.b16 %v45
  %v307 = vunpack.c.l.b16 %v46
  %v308 = vunpack.c.h.b16 %v46
  %v309 = vunpack.c.l.b16 %v47
  %v310 = vunpack.c.h.b16 %v47
  %v311 = vunpack.c.l.b16 %v48
  %v312 = vunpack.c.h.b16 %v48
  %v313 = vunpack.c.l.b16 %v49
  %v314 = vunpack.c.l.b16 %v50
  %v315 = vunpack.c.h.b16 %v50
  %v316 = vunpack.c.l.b16 %v51
  %v317 = vunpack.c.h.b16 %v51
  %v318 = vunpack.c.l.b16 %v52
  %v319 = vunpack.c.h.b16 %v52
  %v320 = vunpack.c.l.b16 %v53
  %v321 = vunpack.c.l.b16 %v54
  %v322 = vunpack.c.h.b16 %v54
  %v323 = vunpack.c.l.b16 %v55
  %v324 = vunpack.c.h.b16 %v55
  %v325 = vunpack.c.l.b16 %v56
  %v326 = vunpack.c.h.b16 %v56
  %v327 = vunpack.c.l.b16 %v57
  %v328 = vunpack.c.l.b16 %v58
  %v329 = vunpack.c.h.b16 %v58
  %v330 = vunpack.c.l.b16 %v59
  %v331 = vunpack.c.h.b16 %v59
  %v332 = vunpack.c.l.b16 %v60
  %v333 = vunpack.c.h.b16 %v60
  %v334 = vunpack.c.l.b16 %v61
  %v335 = vunpack.c.l.b16 %v62
  %v336 = vunpack.c.h.b16 %v62
  %v337 = vunpack.c.l.b16 %v63
  %v338 = vunpack.c.h.b16 %v63
  %v339 = vunpack.c.l.b16 %v64
  %v340 = vunpack.c.h.b16 %v64
  %v341 = vunpack.c.l.b16 %v65
  %v342 = vunpack.c.l.b16 %v66
  %v343 = vunpack.c.h.b16 %v66
  %v344 = vunpack.c.l.b16 %v67
  %v345 = vunpack.c.h.b16 %v67
  %v346 = vunpack.c.l.b16 %v68
  %v347 = vunpack.c.h.b16 %v68
  %v348 = vunpack.c.l.b16 %v69
  %v349 = vunpack.c.l.b16 %v70
  %v350 = vunpack.c.h.b16 %v70
  %v351 = vunpack.c.l.b16 %v71
  %v352 = vunpack.c.h.b16 %v71
  %v353 = vunpack.c.l.b16 %v72
  %v354 = vunpack.c.h.b16 %v72
  %v355 = vunpack.c.l.b16 %v73
  %v356 = vunpack.c.l.b16 %v74
  %v357 = vunpack.c.h.b16 %v74
  %v358 = vunpack.c.l.b16 %v75
  %v359 = vunpack.c.h.b16 %v75
  %v360 = vunpack.c.l.b16 %v76
  %v361 = vunpack.c.h.b16 %v76
  %v362 = vunpack.c.l.b16 %v77
  %v363 = vunpack.c.l.b16 %v78
  %v364 = vunpack.c.h.b16 %v78
  %v365 = vunpack.c.l.b16 %v79
  %v366 = vunpack.c.h.b16 %v79
  %v367 = vunpack.c.l.b16 %v80
  %v368 = vunpack.c.h.b16 %v80
  %v369 = vunpack.c.l.b16 %v81
  %v370 = vpack.c.b16 %v265, %v258
  %v371 = vpack.c.b16 %v266, %v259
  %v372 = vpack.c.b16 %v267, %v260
  %v373 = vpack.c.b16 %v268, %v261
  %v374 = vpack.c.b16 %v269, %v262
  %v375 = vpack.c.b16 %v270, %v263
  %v376 = vpack.c.b16 %v271, %v264
  %v377 = vpack.c.b16 %v279, %v272
  %v378 = vpack.c.b16 %v280, %v273
  %v379 = vpack.c.b16 %v281, %v274
  %v380 = vpack.c.b16 %v282, %v275
  %v381 = vpack.c.b16 %v283, %v276
  %v382 = vpack.c.b16 %v284, %v277
  %v383 = vpack.c.b16 %v285, %v278
  %v384 = vpack.c.b16 %v293, %v286
  %v385 = vpack.c.b16 %v294, %v287
  %v386 = vpack.c.b16 %v295, %v288
  %v387 = vpack.c.b16 %v296, %v289
  %v388 = vpack.c.b16 %v297, %v290
  %v389 = vpack.c.b16 %v298, %v291
  %v390 = vpack.c.b16 %v299, %v292
  %v391 = vpack.c.b16 %v307, %v300
  %v392 = vpack.c.b16 %v308, %v301
  %v393 = vpack.c.b16 %v309, %v302
  %v394 = vpack.c.b16 %v310, %v303
  %v395 = vpack.c.b16 %v311, %v304
  %v396 = vpack.c.b16 %v312, %v305
  %v397 = vpack.c.b16 %v313, %v306
  %v398 = vpack.c.b16 %v321, %v314
  %v399 = vpack.c.b16 %v322, %v315
  %v400 = vpack.c.b16 %v323, %v316
  %v401 = vpack.c.b16 %v324, %v317
  %v402 = vpack.c.b16 %v325, %v318
  %v403 = vpack.c.b16 %v326, %v319
  %v404 = vpack.c.b16 %v327, %v320
  %v405 = vpack.c.b16 %v335, %v328
  %v406 = vpack.c.b16 %v336, %v329
  %v407 = vpack.c.b16 %v337, %v330
  %v408 = vpack.c.b16 %v338, %v331
  %v409 = vpack.c.b16 %v339, %v332
  %v410 = vpack.c.b16 %v340, %v333
  %v411 = vpack.c.b16 %v341, %v334
  %v412 = vpack.c.b16 %v349, %v342
  %v413 = vpack.c.b16 %v350, %v343
  %v414 = vpack.c.b16 %v351, %v344
  %v415 = vpack.c.b16 %v352, %v345
  %v416 = vpack.c.b16 %v353, %v346
  %v417 = vpack.c.b16 %v354, %v347
  %v418 = vpack.c.b16 %v355, %v348
  %v419 = vpack.c.b16 %v363, %v356
  %v420 = vpack.c.b16 %v364, %v357
  %v421 = vpack.c.b16 %v365, %v358
  %v422 = vpack.c.b16 %v366, %v359
  %v423 = vpack.c.b16 %v367, %v360
  %v424 = vpack.c.b16 %v368, %v361
  %v425 = vpack.c.b16 %v369, %v362
  %v594 = vunpack.c.l.b16 %v82
  %v595 = vunpack.c.l.b16 %v83
  %v596 = vunpack.c.l.b16 %v84
  %v597 = vunpack.c.l.b16 %v85
  %v598 = vunpack.c.l.b16 %v86
  %v599 = vunpack.c.l.b16 %v87
  %v600 = vunpack.c.l.b16 %v88
  %v601 = vunpack.c.l.b16 %v89
  %v602 = vunpack.c.l.b16 %v90
  %v603 = vunpack.c.l.b16 %v91
  %v604 = vunpack.c.l.b16 %v92
  %v605 = vunpack.c.l.b16 %v93
  %v606 = vunpack.c.l.b16 %v94
  %v607 = vunpack.c.l.b16 %v95
  %v608 = vunpack.c.l.b16 %v96
  %v609 = vunpack.c.l.b16 %v97
  %v610 = vunpack.c.l.b16 %v98
  %v611 = vunpack.c.l.b16 %v99
  %v612 = vunpack.c.l.b16 %v100
  %v613 = vunpack.c.l.b16 %v101
  %v614 = vunpack.c.l.b16 %v102
  %v615 = vunpack.c.l.b16 %v103
  %v616 = vunpack.c.l.b16 %v104
  %v617 = vunpack.c.l.b16 %v105
  %v618 = vunpack.c.l.b16 %v106
  %v619 = vunpack.c.l.b16 %v107
  %v620 = vunpack.c.l.b16 %v108
  %v621 = vunpack.c.l.b16 %v109
  %v622 = vunpack.c.l.b16 %v110
  %v623 = vunpack.c.l.b16 %v111
  %v624 = vunpack.c.l.b16 %v112
  %v625 = vunpack.c.l.b16 %v113
  %v626 = vunpack.c.l.b16 %v114
  %v627 = vunpack.c.l.b16 %v115
  %v628 = vunpack.c.l.b16 %v116
  %v629 = vunpack.c.l.b16 %v117
  %v630 = vunpack.c.l.b16 %v118
  %v631 = vunpack.c.l.b16 %v119
  %v632 = vunpack.c.l.b16 %v120
  %v633 = vunpack.c.l.b16 %v121
  %v634 = vunpack.c.l.b16 %v122
  %v635 = vunpack.c.l.b16 %v123
  %v636 = vunpack.c.l.b16 %v124
  %v637 = vunpack.c.l.b16 %v125
  %v638 = vunpack.c.l.b16 %v126
  %v639 = vunpack.c.l.b16 %v127
  %v640 = vunpack.c.l.b16 %v128
  %v641 = vunpack.c.l.b16 %v129
  %v642 = vunpack.c.l.b16 %v130
  %v643 = vunpack.c.l.b16 %v131
  %v644 = vunpack.c.l.b16 %v132
  %v645 = vunpack.c.l.b16 %v133
  %v646 = vunpack.c.l.b16 %v134
  %v647 = vunpack.c.l.b16 %v135
  %v648 = vunpack.c.l.b16 %v136
  %v649 = vunpack.c.l.b16 %v137
  %v650 = vunpack.c.l.b16 %v138
  %v651 = vunpack.c.l.b16 %v139
  %v652 = vunpack.c.l.b16 %v140
  %v653 = vunpack.c.l.b16 %v141
  %v654 = vunpack.c.l.b16 %v142
  %v655 = vunpack.c.l.b16 %v143
  %v656 = vunpack.c.l.b16 %v144
  %v657 = vunpack.c.l.b16 %v145
  %v658 = vunpack.c.l.b16 %v146
  %v659 = vunpack.c.l.b16 %v147
  %v660 = vunpack.c.l.b16 %v148
  %v661 = vunpack.c.l.b16 %v149
  %v662 = vunpack.c.l.b16 %v150
  %v663 = vunpack.c.l.b16 %v151
  %v664 = vunpack.c.l.b16 %v152
  %v665 = vunpack.c.l.b16 %v153
  %v666 = vunpack.c.l.b16 %v154
  %v667 = vunpack.c.l.b16 %v155
  %v668 = vunpack.c.l.b16 %v156
  %v669 = vunpack.c.l.b16 %v157
  %v670 = vunpack.c.l.b16 %v158
  %v671 = vunpack.c.l.b16 %v159
  %v672 = vunpack.c.l.b16 %v160
  %v673 = vunpack.c.l.b16 %v161
  %v674 = vunpack.c.l.b16 %v162
  %v675 = vunpack.c.l.b16 %v163
  %v676 = vunpack.c.l.b16 %v164
  %v677 = vunpack.c.l.b16 %v165
  %v678 = vunpack.c.l.b16 %v166
  %v679 = vunpack.c.l.b16 %v167
  %v680 = vunpack.c.l.b16 %v168
  %v681 = vunpack.c.l.b16 %v169
  %v682 = vunpack.c.l.b16 %v170
  %v683 = vunpack.c.l.b16 %v171
  %v684 = vunpack.c.l.b16 %v172
  %v685 = vunpack.c.l.b16 %v173
  %v686 = vunpack.c.l.b16 %v174
  %v687 = vunpack.c.l.b16 %v175
  %v688 = vunpack.c.l.b16 %v176
  %v689 = vunpack.c.l.b16 %v177
  %v690 = vunpack.c.l.b16 %v178
  %v691 = vunpack.c.l.b16 %v179
  %v692 = vunpack.c.l.b16 %v180
  %v693 = vunpack.c.l.b16 %v181
  %v694 = vunpack.c.l.b16 %v182
  %v695 = vunpack.c.l.b16 %v183
  %v696 = vunpack.c.l.b16 %v184
  %v697 = vunpack.c.l.b16 %v185
  %v698 = vunpack.c.l.b16 %v186
  %v699 = vunpack.c.l.b16 %v187
  %v700 = vunpack.c.l.b16 %v188
  %v701 = vunpack.c.l.b16 %v189
  %v702 = vunpack.c.l.b16 %v190
  %v703 = vunpack.c.l.b16 %v191
  %v704 = vunpack.c.l.b16 %v192
  %v705 = vunpack.c.l.b16 %v193
  %v706 = vpack.c.b16 %v595, %v594
  %v707 = vpack.c.b16 %v597, %v596
  %v708 = vpack.c.b16 %v599, %v598
  %v709 = vpack.c.b16 %v601, %v600
  %v710 = vpack.c.b16 %v603, %v602
  %v711 = vpack.c.b16 %v605, %v604
  %v712 = vpack.c.b16 %v607, %v606
  %v713 = vpack.c.b16 %v609, %v608
  %v714 = vpack.c.b16 %v611, %v610
  %v715 = vpack.c.b16 %v613, %v612
  %v716 = vpack.c.b16 %v615, %v614
  %v717 = vpack.c.b16 %v617, %v616
  %v718 = vpack.c.b16 %v619, %v618
  %v719 = vpack.c.b16 %v621, %v620
  %v720 = vpack.c.b16 %v623, %v622
  %v721 = vpack.c.b16 %v625, %v624
  %v722 = vpack.c.b16 %v627, %v626
  %v723 = vpack.c.b16 %v629, %v628
  %v724 = vpack.c.b16 %v631, %v630
  %v725 = vpack.c.b16 %v633, %v632
  %v726 = vpack.c.b16 %v635, %v634
  %v727 = vpack.c.b16 %v637, %v636
  %v728 = vpack.c.b16 %v639, %v638
  %v729 = vpack.c.b16 %v641, %v640
  %v730 = vpack.c.b16 %v643, %v642
  %v731 = vpack.c.b16 %v645, %v644
  %v732 = vpack.c.b16 %v647, %v646
  %v733 = vpack.c.b16 %v649, %v648
  %v734 = vpack.c.b16 %v651, %v650
  %v735 = vpack.c.b16 %v653, %v652
  %v736 = vpack.c.b16 %v655, %v654
  %v737 = vpack.c.b16 %v657, %v656
  %v738 = vpack.c.b16 %v659, %v658
  %v739 = vpack.c.b16 %v661, %v660
  %v740 = vpack.c.b16 %v663, %v662
  %v741 = vpack.c.b16 %v665, %v664
  %v742 = vpack.c.b16 %v667, %v666
  %v743 = vpack.c.b16 %v669, %v668
  %v744 = vpack.c.b16 %v671, %v670
  %v745 = vpack.c.b16 %v673, %v672
  %v746 = vpack.c.b16 %v675, %v674
  %v747 = vpack.c.b16 %v677, %v676
  %v748 = vpack.c.b16 %v679, %v678
  %v749 = vpack.c.b16 %v681, %v680
  %v750 = vpack.c.b16 %v683, %v682
  %v751 = vpack.c.b16 %v685, %v684
  %v752 = vpack.c.b16 %v687, %v686
  %v753 = vpack.c.b16 %v689, %v688
  %v754 = vpack.c.b16 %v691, %v690
  %v755 = vpack.c.b16 %v693, %v692
  %v756 = vpack.c.b16 %v695, %v694
  %v757 = vpack.c.b16 %v697, %v696
  %v758 = vpack.c.b16 %v699, %v698
  %v759 = vpack.c.b16 %v701, %v700
  %v760 = vpack.c.b16 %v703, %v702
  %v761 = vpack.c.b16 %v705, %v704
  %818 = vmatprep.subr.bf16.mxu0 0
  %819 = vmatpush1.bf16.msra.mxu0 %v713
  %820 = vmatprep.subr.bf16.mxu0 0
  %821 = vmatpush1.bf16.msra.mxu0 %v712
  %822 = vmatprep.subr.bf16.mxu0 0
  %823 = vmatpush1.bf16.msra.mxu0 %v711
  %824 = vmatprep.subr.bf16.mxu0 0
  %825 = vmatpush1.bf16.msra.mxu0 %v710
  %826 = vmatprep.subr.bf16.mxu0 0
  %827 = vmatpush1.bf16.msra.mxu0 %v709
  %828 = vmatprep.subr.bf16.mxu0 0
  %829 = vmatpush1.bf16.msra.mxu0 %v708
  %830 = vmatprep.subr.bf16.mxu0 0
  %831 = vmatpush1.bf16.msra.mxu0 %v707
  %832 = vmatprep.subr.bf16.mxu0 0
  %833 = vmatpush1.bf16.msra.mxu0 %v706
  %834 = vmatprep.subr.bf16.mxu0 0
  %835 = vmatpush2.bf16.msra.mxu0 %v721
  %836 = vmatprep.subr.bf16.mxu0 0
  %837 = vmatpush2.bf16.msra.mxu0 %v720
  %838 = vmatprep.subr.bf16.mxu0 0
  %839 = vmatpush2.bf16.msra.mxu0 %v719
  %840 = vmatprep.subr.bf16.mxu0 0
  %841 = vmatpush2.bf16.msra.mxu0 %v718
  %842 = vmatprep.subr.bf16.mxu0 0
  %843 = vmatpush2.bf16.msra.mxu0 %v717
  %844 = vmatprep.subr.bf16.mxu0 0
  %845 = vmatpush2.bf16.msra.mxu0 %v716
  %846 = vmatprep.subr.bf16.mxu0 0
  %847 = vmatpush2.bf16.msra.mxu0 %v715
  %848 = vmatprep.subr.bf16.mxu0 0
  %849 = vmatpush2.bf16.msra.mxu0 %v714
  %850 = vmatprep.mubr.bf16.mxu0 %v371
  %851 = vmatmul.mubr.bf16.gmra.mxu0 %v370
  %v852 = vpop.f32.mrf.mxu0
  %v853 = vadd.f32 0.0, %v852
  %v854 = vpop.f32.mrf.mxu0
  %v855 = vpop.f32.mrf.mxu0
  %v856 = vadd.f32 0.0, %v855
  %v857 = vpop.f32.mrf.mxu0
  %858 = vmatprep.mubr.bf16.mxu0 %v378
  %859 = vmatmul.mubr.bf16.gmra.mxu0 %v377
  %v860 = vpop.f32.mrf.mxu0
  %v861 = vadd.f32 0.0, %v860
  %v862 = vpop.f32.mrf.mxu0
  %v863 = vpop.f32.mrf.mxu0
  %v864 = vadd.f32 0.0, %v863
  %v865 = vpop.f32.mrf.mxu0
  %866 = vmatprep.mubr.bf16.mxu0 %v385
  %867 = vmatmul.mubr.bf16.gmra.mxu0 %v384
  %v868 = vpop.f32.mrf.mxu0
  %v869 = vadd.f32 0.0, %v868
  %v870 = vpop.f32.mrf.mxu0
  %v871 = vpop.f32.mrf.mxu0
  %v872 = vadd.f32 0.0, %v871
  %v873 = vpop.f32.mrf.mxu0
  %874 = vmatprep.mubr.bf16.mxu0 %v392
  %875 = vmatmul.mubr.bf16.gmra.mxu0 %v391
  %v876 = vpop.f32.mrf.mxu0
  %v877 = vadd.f32 0.0, %v876
  %v878 = vpop.f32.mrf.mxu0
  %v879 = vpop.f32.mrf.mxu0
  %v880 = vadd.f32 0.0, %v879
  %v881 = vpop.f32.mrf.mxu0
  %882 = vmatprep.mubr.bf16.mxu0 %v399
  %883 = vmatmul.mubr.bf16.gmra.mxu0 %v398
  %v884 = vpop.f32.mrf.mxu0
  %v885 = vadd.f32 0.0, %v884
  %v886 = vpop.f32.mrf.mxu0
  %v887 = vpop.f32.mrf.mxu0
  %v888 = vadd.f32 0.0, %v887
  %v889 = vpop.f32.mrf.mxu0
  %890 = vmatprep.mubr.bf16.mxu0 %v406
  %891 = vmatmul.mubr.bf16.gmra.mxu0 %v405
  %v892 = vpop.f32.mrf.mxu0
  %v893 = vadd.f32 0.0, %v892
  %v894 = vpop.f32.mrf.mxu0
  %v895 = vpop.f32.mrf.mxu0
  %v896 = vadd.f32 0.0, %v895
  %v897 = vpop.f32.mrf.mxu0
  %898 = vmatprep.mubr.bf16.mxu0 %v413
  %899 = vmatmul.mubr.bf16.gmra.mxu0 %v412
  %v900 = vpop.f32.mrf.mxu0
  %v901 = vadd.f32 0.0, %v900
  %v902 = vpop.f32.mrf.mxu0
  %v903 = vpop.f32.mrf.mxu0
  %v904 = vadd.f32 0.0, %v903
  %v905 = vpop.f32.mrf.mxu0
  %906 = vmatprep.mubr.bf16.mxu0 %v420
  %907 = vmatmul.mubr.bf16.gmra.mxu0 %v419
  %v908 = vpop.f32.mrf.mxu0
  %v909 = vadd.f32 0.0, %v908
  %v910 = vpop.f32.mrf.mxu0
  %v911 = vpop.f32.mrf.mxu0
  %v912 = vadd.f32 0.0, %v911
  %v913 = vpop.f32.mrf.mxu0
  %914 = vdwg.mxu0
  %915 = vmatprep.subr.bf16.mxu0 0
  %916 = vmatpush1.bf16.msra.mxu0 %v729
  %917 = vmatprep.subr.bf16.mxu0 0
  %918 = vmatpush1.bf16.msra.mxu0 %v728
  %919 = vmatprep.subr.bf16.mxu0 0
  %920 = vmatpush1.bf16.msra.mxu0 %v727
  %921 = vmatprep.subr.bf16.mxu0 0
  %922 = vmatpush1.bf16.msra.mxu0 %v726
  %923 = vmatprep.subr.bf16.mxu0 0
  %924 = vmatpush1.bf16.msra.mxu0 %v725
  %925 = vmatprep.subr.bf16.mxu0 0
  %926 = vmatpush1.bf16.msra.mxu0 %v724
  %927 = vmatprep.subr.bf16.mxu0 0
  %928 = vmatpush1.bf16.msra.mxu0 %v723
  %929 = vmatprep.subr.bf16.mxu0 0
  %930 = vmatpush1.bf16.msra.mxu0 %v722
  %931 = vmatprep.subr.bf16.mxu0 0
  %932 = vmatpush2.bf16.msra.mxu0 %v737
  %933 = vmatprep.subr.bf16.mxu0 0
  %934 = vmatpush2.bf16.msra.mxu0 %v736
  %935 = vmatprep.subr.bf16.mxu0 0
  %936 = vmatpush2.bf16.msra.mxu0 %v735
  %937 = vmatprep.subr.bf16.mxu0 0
  %938 = vmatpush2.bf16.msra.mxu0 %v734
  %939 = vmatprep.subr.bf16.mxu0 0
  %940 = vmatpush2.bf16.msra.mxu0 %v733
  %941 = vmatprep.subr.bf16.mxu0 0
  %942 = vmatpush2.bf16.msra.mxu0 %v732
  %943 = vmatprep.subr.bf16.mxu0 0
  %944 = vmatpush2.bf16.msra.mxu0 %v731
  %945 = vmatprep.subr.bf16.mxu0 0
  %946 = vmatpush2.bf16.msra.mxu0 %v730
  %947 = vmatprep.mubr.bf16.mxu0 %v373
  %948 = vmatmul.mubr.bf16.gmra.mxu0 %v372
  %v949 = vpop.f32.mrf.mxu0
  %v950 = vadd.f32 %v853, %v949
  %v951 = vpop.f32.mrf.mxu0
  %v952 = vpop.f32.mrf.mxu0
  %v953 = vadd.f32 %v856, %v952
  %v954 = vpop.f32.mrf.mxu0
  %955 = vmatprep.mubr.bf16.mxu0 %v380
  %956 = vmatmul.mubr.bf16.gmra.mxu0 %v379
  %v957 = vpop.f32.mrf.mxu0
  %v958 = vadd.f32 %v861, %v957
  %v959 = vpop.f32.mrf.mxu0
  %v960 = vpop.f32.mrf.mxu0
  %v961 = vadd.f32 %v864, %v960
  %v962 = vpop.f32.mrf.mxu0
  %963 = vmatprep.mubr.bf16.mxu0 %v387
  %964 = vmatmul.mubr.bf16.gmra.mxu0 %v386
  %v965 = vpop.f32.mrf.mxu0
  %v966 = vadd.f32 %v869, %v965
  %v967 = vpop.f32.mrf.mxu0
  %v968 = vpop.f32.mrf.mxu0
  %v969 = vadd.f32 %v872, %v968
  %v970 = vpop.f32.mrf.mxu0
  %971 = vmatprep.mubr.bf16.mxu0 %v394
  %972 = vmatmul.mubr.bf16.gmra.mxu0 %v393
  %v973 = vpop.f32.mrf.mxu0
  %v974 = vadd.f32 %v877, %v973
  %v975 = vpop.f32.mrf.mxu0
  %v976 = vpop.f32.mrf.mxu0
  %v977 = vadd.f32 %v880, %v976
  %v978 = vpop.f32.mrf.mxu0
  %979 = vmatprep.mubr.bf16.mxu0 %v401
  %980 = vmatmul.mubr.bf16.gmra.mxu0 %v400
  %v981 = vpop.f32.mrf.mxu0
  %v982 = vadd.f32 %v885, %v981
  %v983 = vpop.f32.mrf.mxu0
  %v984 = vpop.f32.mrf.mxu0
  %v985 = vadd.f32 %v888, %v984
  %v986 = vpop.f32.mrf.mxu0
  %987 = vmatprep.mubr.bf16.mxu0 %v408
  %988 = vmatmul.mubr.bf16.gmra.mxu0 %v407
  %v989 = vpop.f32.mrf.mxu0
  %v990 = vadd.f32 %v893, %v989
  %v991 = vpop.f32.mrf.mxu0
  %v992 = vpop.f32.mrf.mxu0
  %v993 = vadd.f32 %v896, %v992
  %v994 = vpop.f32.mrf.mxu0
  %995 = vmatprep.mubr.bf16.mxu0 %v415
  %996 = vmatmul.mubr.bf16.gmra.mxu0 %v414
  %v997 = vpop.f32.mrf.mxu0
  %v998 = vadd.f32 %v901, %v997
  %v999 = vpop.f32.mrf.mxu0
  %v1000 = vpop.f32.mrf.mxu0
  %v1001 = vadd.f32 %v904, %v1000
  %v1002 = vpop.f32.mrf.mxu0
  %1003 = vmatprep.mubr.bf16.mxu0 %v422
  %1004 = vmatmul.mubr.bf16.gmra.mxu0 %v421
  %v1005 = vpop.f32.mrf.mxu0
  %v1006 = vadd.f32 %v909, %v1005
  %v1007 = vpop.f32.mrf.mxu0
  %v1008 = vpop.f32.mrf.mxu0
  %v1009 = vadd.f32 %v912, %v1008
  %v1010 = vpop.f32.mrf.mxu0
  %1011 = vdwg.mxu0
  %1012 = vmatprep.subr.bf16.mxu0 0
  %1013 = vmatpush1.bf16.msra.mxu0 %v745
  %1014 = vmatprep.subr.bf16.mxu0 0
  %1015 = vmatpush1.bf16.msra.mxu0 %v744
  %1016 = vmatprep.subr.bf16.mxu0 0
  %1017 = vmatpush1.bf16.msra.mxu0 %v743
  %1018 = vmatprep.subr.bf16.mxu0 0
  %1019 = vmatpush1.bf16.msra.mxu0 %v742
  %1020 = vmatprep.subr.bf16.mxu0 0
  %1021 = vmatpush1.bf16.msra.mxu0 %v741
  %1022 = vmatprep.subr.bf16.mxu0 0
  %1023 = vmatpush1.bf16.msra.mxu0 %v740
  %1024 = vmatprep.subr.bf16.mxu0 0
  %1025 = vmatpush1.bf16.msra.mxu0 %v739
  %1026 = vmatprep.subr.bf16.mxu0 0
  %1027 = vmatpush1.bf16.msra.mxu0 %v738
  %1028 = vmatprep.subr.bf16.mxu0 0
  %1029 = vmatpush2.bf16.msra.mxu0 %v753
  %1030 = vmatprep.subr.bf16.mxu0 0
  %1031 = vmatpush2.bf16.msra.mxu0 %v752
  %1032 = vmatprep.subr.bf16.mxu0 0
  %1033 = vmatpush2.bf16.msra.mxu0 %v751
  %1034 = vmatprep.subr.bf16.mxu0 0
  %1035 = vmatpush2.bf16.msra.mxu0 %v750
  %1036 = vmatprep.subr.bf16.mxu0 0
  %1037 = vmatpush2.bf16.msra.mxu0 %v749
  %1038 = vmatprep.subr.bf16.mxu0 0
  %1039 = vmatpush2.bf16.msra.mxu0 %v748
  %1040 = vmatprep.subr.bf16.mxu0 0
  %1041 = vmatpush2.bf16.msra.mxu0 %v747
  %1042 = vmatprep.subr.bf16.mxu0 0
  %1043 = vmatpush2.bf16.msra.mxu0 %v746
  %1044 = vmatprep.mubr.bf16.mxu0 %v375
  %1045 = vmatmul.mubr.bf16.gmra.mxu0 %v374
  %v1046 = vpop.f32.mrf.mxu0
  %v1047 = vadd.f32 %v950, %v1046
  %v1048 = vpop.f32.mrf.mxu0
  %v1049 = vpop.f32.mrf.mxu0
  %v1050 = vadd.f32 %v953, %v1049
  %v1051 = vpop.f32.mrf.mxu0
  %1052 = vmatprep.mubr.bf16.mxu0 %v382
  %1053 = vmatmul.mubr.bf16.gmra.mxu0 %v381
  %v1054 = vpop.f32.mrf.mxu0
  %v1055 = vadd.f32 %v958, %v1054
  %v1056 = vpop.f32.mrf.mxu0
  %v1057 = vpop.f32.mrf.mxu0
  %v1058 = vadd.f32 %v961, %v1057
  %v1059 = vpop.f32.mrf.mxu0
  %1060 = vmatprep.mubr.bf16.mxu0 %v389
  %1061 = vmatmul.mubr.bf16.gmra.mxu0 %v388
  %v1062 = vpop.f32.mrf.mxu0
  %v1063 = vadd.f32 %v966, %v1062
  %v1064 = vpop.f32.mrf.mxu0
  %v1065 = vpop.f32.mrf.mxu0
  %v1066 = vadd.f32 %v969, %v1065
  %v1067 = vpop.f32.mrf.mxu0
  %1068 = vmatprep.mubr.bf16.mxu0 %v396
  %1069 = vmatmul.mubr.bf16.gmra.mxu0 %v395
  %v1070 = vpop.f32.mrf.mxu0
  %v1071 = vadd.f32 %v974, %v1070
  %v1072 = vpop.f32.mrf.mxu0
  %v1073 = vpop.f32.mrf.mxu0
  %v1074 = vadd.f32 %v977, %v1073
  %v1075 = vpop.f32.mrf.mxu0
  %1076 = vmatprep.mubr.bf16.mxu0 %v403
  %1077 = vmatmul.mubr.bf16.gmra.mxu0 %v402
  %v1078 = vpop.f32.mrf.mxu0
  %v1079 = vadd.f32 %v982, %v1078
  %v1080 = vpop.f32.mrf.mxu0
  %v1081 = vpop.f32.mrf.mxu0
  %v1082 = vadd.f32 %v985, %v1081
  %v1083 = vpop.f32.mrf.mxu0
  %1084 = vmatprep.mubr.bf16.mxu0 %v410
  %1085 = vmatmul.mubr.bf16.gmra.mxu0 %v409
  %v1086 = vpop.f32.mrf.mxu0
  %v1087 = vadd.f32 %v990, %v1086
  %v1088 = vpop.f32.mrf.mxu0
  %v1089 = vpop.f32.mrf.mxu0
  %v1090 = vadd.f32 %v993, %v1089
  %v1091 = vpop.f32.mrf.mxu0
  %1092 = vmatprep.mubr.bf16.mxu0 %v417
  %1093 = vmatmul.mubr.bf16.gmra.mxu0 %v416
  %v1094 = vpop.f32.mrf.mxu0
  %v1095 = vadd.f32 %v998, %v1094
  %v1096 = vpop.f32.mrf.mxu0
  %v1097 = vpop.f32.mrf.mxu0
  %v1098 = vadd.f32 %v1001, %v1097
  %v1099 = vpop.f32.mrf.mxu0
  %1100 = vmatprep.mubr.bf16.mxu0 %v424
  %1101 = vmatmul.mubr.bf16.gmra.mxu0 %v423
  %v1102 = vpop.f32.mrf.mxu0
  %v1103 = vadd.f32 %v1006, %v1102
  %v1104 = vpop.f32.mrf.mxu0
  %v1105 = vpop.f32.mrf.mxu0
  %v1106 = vadd.f32 %v1009, %v1105
  %v1107 = vpop.f32.mrf.mxu0
  %1108 = vdwg.mxu0
  %1109 = vmatprep.subr.bf16.mxu0 0
  %1110 = vmatpush1.bf16.msra.mxu0 %v761
  %1111 = vmatprep.subr.bf16.mxu0 0
  %1112 = vmatpush1.bf16.msra.mxu0 %v760
  %1113 = vmatprep.subr.bf16.mxu0 0
  %1114 = vmatpush1.bf16.msra.mxu0 %v759
  %1115 = vmatprep.subr.bf16.mxu0 0
  %1116 = vmatpush1.bf16.msra.mxu0 %v758
  %1117 = vmatprep.subr.bf16.mxu0 0
  %1118 = vmatpush1.bf16.msra.mxu0 %v757
  %1119 = vmatprep.subr.bf16.mxu0 0
  %1120 = vmatpush1.bf16.msra.mxu0 %v756
  %1121 = vmatprep.subr.bf16.mxu0 0
  %1122 = vmatpush1.bf16.msra.mxu0 %v755
  %1123 = vmatprep.subr.bf16.mxu0 0
  %1124 = vmatpush1.bf16.msra.mxu0 %v754
  %1125 = vmatprep.subr.bf16.mxu0 0
  %1126 = vmatpush2.bf16.msra.mxu0 0
  %1127 = vmatprep.subr.bf16.mxu0 0
  %1128 = vmatpush2.bf16.msra.mxu0 0
  %1129 = vmatprep.subr.bf16.mxu0 0
  %1130 = vmatpush2.bf16.msra.mxu0 0
  %1131 = vmatprep.subr.bf16.mxu0 0
  %1132 = vmatpush2.bf16.msra.mxu0 0
  %1133 = vmatprep.subr.bf16.mxu0 0
  %1134 = vmatpush2.bf16.msra.mxu0 0
  %1135 = vmatprep.subr.bf16.mxu0 0
  %1136 = vmatpush2.bf16.msra.mxu0 0
  %1137 = vmatprep.subr.bf16.mxu0 0
  %1138 = vmatpush2.bf16.msra.mxu0 0
  %1139 = vmatprep.subr.bf16.mxu0 0
  %1140 = vmatpush2.bf16.msra.mxu0 0
  %1141 = vmatprep.mubr.bf16.mxu0 0
  %1142 = vmatmul.mubr.bf16.gmra.mxu0 %v376
  %v1143 = vpop.f32.mrf.mxu0
  %v1144 = vadd.f32 %v1047, %v1143
  %v1145 = vpop.f32.mrf.mxu0
  %v1146 = vpop.f32.mrf.mxu0
  %v1147 = vadd.f32 %v1050, %v1146
  %v1148 = vpop.f32.mrf.mxu0
  %1149 = vmatprep.mubr.bf16.mxu0 0
  %1150 = vmatmul.mubr.bf16.gmra.mxu0 %v383
  %v1151 = vpop.f32.mrf.mxu0
  %v1152 = vadd.f32 %v1055, %v1151
  %v1153 = vpop.f32.mrf.mxu0
  %v1154 = vpop.f32.mrf.mxu0
  %v1155 = vadd.f32 %v1058, %v1154
  %v1156 = vpop.f32.mrf.mxu0
  %1157 = vmatprep.mubr.bf16.mxu0 0
  %1158 = vmatmul.mubr.bf16.gmra.mxu0 %v390
  %v1159 = vpop.f32.mrf.mxu0
  %v1160 = vadd.f32 %v1063, %v1159
  %v1161 = vpop.f32.mrf.mxu0
  %v1162 = vpop.f32.mrf.mxu0
  %v1163 = vadd.f32 %v1066, %v1162
  %v1164 = vpop.f32.mrf.mxu0
  %1165 = vmatprep.mubr.bf16.mxu0 0
  %1166 = vmatmul.mubr.bf16.gmra.mxu0 %v397
  %v1167 = vpop.f32.mrf.mxu0
  %v1168 = vadd.f32 %v1071, %v1167
  %v1169 = vpop.f32.mrf.mxu0
  %v1170 = vpop.f32.mrf.mxu0
  %v1171 = vadd.f32 %v1074, %v1170
  %v1172 = vpop.f32.mrf.mxu0
  %1173 = vmatprep.mubr.bf16.mxu0 0
  %1174 = vmatmul.mubr.bf16.gmra.mxu0 %v404
  %v1175 = vpop.f32.mrf.mxu0
  %v1176 = vadd.f32 %v1079, %v1175
  %v1177 = vpop.f32.mrf.mxu0
  %v1178 = vpop.f32.mrf.mxu0
  %v1179 = vadd.f32 %v1082, %v1178
  %v1180 = vpop.f32.mrf.mxu0
  %1181 = vmatprep.mubr.bf16.mxu0 0
  %1182 = vmatmul.mubr.bf16.gmra.mxu0 %v411
  %v1183 = vpop.f32.mrf.mxu0
  %v1184 = vadd.f32 %v1087, %v1183
  %v1185 = vpop.f32.mrf.mxu0
  %v1186 = vpop.f32.mrf.mxu0
  %v1187 = vadd.f32 %v1090, %v1186
  %v1188 = vpop.f32.mrf.mxu0
  %1189 = vmatprep.mubr.bf16.mxu0 0
  %1190 = vmatmul.mubr.bf16.gmra.mxu0 %v418
  %v1191 = vpop.f32.mrf.mxu0
  %v1192 = vadd.f32 %v1095, %v1191
  %v1193 = vpop.f32.mrf.mxu0
  %v1194 = vpop.f32.mrf.mxu0
  %v1195 = vadd.f32 %v1098, %v1194
  %v1196 = vpop.f32.mrf.mxu0
  %1197 = vmatprep.mubr.bf16.mxu0 0
  %1198 = vmatmul.mubr.bf16.gmra.mxu0 %v425
  %v1199 = vpop.f32.mrf.mxu0
  %v1200 = vadd.f32 %v1103, %v1199
  %v1201 = vpop.f32.mrf.mxu0
  %v1202 = vpop.f32.mrf.mxu0
  %v1203 = vadd.f32 %v1106, %v1202
  %v1204 = vpop.f32.mrf.mxu0
  %1205 = vdwg.mxu0
  %s1206 = smul.u32 0, 128
  %s1207 = scalar_lea.vmem [#allocation2], %s1206
  %1208 = vst [vmem:[%s1207] sm:$0xff] %v1144
  %1209 = vst [vmem:[%s1207 + $0x8] sm:$0xff] %v1147
  %1210 = vst [vmem:[%s1207 + $0x10] sm:$0xff] %v1152
  %1211 = vst [vmem:[%s1207 + $0x18] sm:$0xff] %v1155
  %1212 = vst [vmem:[%s1207 + $0x20] sm:$0xff] %v1160
  %1213 = vst [vmem:[%s1207 + $0x28] sm:$0xff] %v1163
  %1214 = vst [vmem:[%s1207 + $0x30] sm:$0xff] %v1168
  %1215 = vst [vmem:[%s1207 + $0x38] sm:$0xff] %v1171
  %1216 = vst [vmem:[%s1207 + $0x40] sm:$0xff] %v1176
  %1217 = vst [vmem:[%s1207 + $0x48] sm:$0xff] %v1179
  %1218 = vst [vmem:[%s1207 + $0x50] sm:$0xff] %v1184
  %1219 = vst [vmem:[%s1207 + $0x58] sm:$0xff] %v1187
  %1220 = vst [vmem:[%s1207 + $0x60] sm:$0xff] %v1192
  %1221 = vst [vmem:[%s1207 + $0x68] sm:$0xff] %v1195
  %1222 = vst [vmem:[%s1207 + $0x70] sm:$0xff] %v1200
  %1223 = vst [vmem:[%s1207 + $0x78] sm:$0xff] %v1203
  %p1224 = scmp.eq.s32.totalorder 0, 0
  // Predicated region
  $region18: #{resnet_small_forward.14} parent=0 // pred_check
    %p1225 = pneg %p1224
  $region19: #{resnet_small_forward.14} parent=0 // pred_check_branch
    %1227 = sbr.rel (%p1225) target = $region21
  $region20: #{resnet_small_forward.14} parent=0 // pred_region
    %1228 = vst [vmem:[#allocation3] sm:$0x1] 0.0
    %1229 = vst [vmem:[#allocation4] sm:$0x1] 0.0
  $region21: #{resnet_small_forward.14} parent=0 // pred_fallthru
    _
  %v1230 = vld [vmem:[#allocation3] sm:$0x1]
  %v1231 = vadd.f32 %v1144, %v1147
  %v1232 = vadd.f32 %v1231, %v1152
  %v1233 = vadd.f32 %v1232, %v1155
  %v1234 = vadd.f32 %v1233, %v1160
  %v1235 = vadd.f32 %v1234, %v1163
  %v1236 = vadd.f32 %v1235, %v1168
  %v1237 = vadd.f32 %v1236, %v1171
  %v1238 = vadd.f32 %v1237, %v1176
  %v1239 = vadd.f32 %v1238, %v1179
  %v1240 = vadd.f32 %v1239, %v1184
  %v1241 = vadd.f32 %v1240, %v1187
  %v1242 = vadd.f32 %v1241, %v1192
  %v1243 = vadd.f32 %v1242, %v1195
  %v1244 = vadd.f32 %v1243, %v1200
  %v1245 = vadd.f32 %v1244, %v1203
  %v1246 = vrot.slane %v1245, 4
  %v1247 = vadd.f32 %v1245, %v1246
  %v1248 = vrot.slane %v1247, 2
  %v1249 = vadd.f32 %v1247, %v1248
  %v1250 = vrot.slane %v1249, 1
  %v1251 = vadd.f32 %v1249, %v1250
  %v1252 = vadd.f32 %v1230, %v1251
  %1253 = vst [vmem:[#allocation3] sm:$0x1] %v1252
  %v1254 = vld [vmem:[#allocation4] sm:$0x1]
  %v1255 = vmul.f32 %v1144, %v1144
  %v1256 = vmul.f32 %v1147, %v1147
  %v1257 = vmul.f32 %v1152, %v1152
  %v1258 = vmul.f32 %v1155, %v1155
  %v1259 = vmul.f32 %v1160, %v1160
  %v1260 = vmul.f32 %v1163, %v1163
  %v1261 = vmul.f32 %v1168, %v1168
  %v1262 = vmul.f32 %v1171, %v1171
  %v1263 = vmul.f32 %v1176, %v1176
  %v1264 = vmul.f32 %v1179, %v1179
  %v1265 = vmul.f32 %v1184, %v1184
  %v1266 = vmul.f32 %v1187, %v1187
  %v1267 = vmul.f32 %v1192, %v1192
  %v1268 = vmul.f32 %v1195, %v1195
  %v1269 = vmul.f32 %v1200, %v1200
  %v1270 = vmul.f32 %v1203, %v1203
  %v1271 = vadd.f32 %v1255, %v1256
  %v1272 = vadd.f32 %v1271, %v1257
  %v1273 = vadd.f32 %v1272, %v1258
  %v1274 = vadd.f32 %v1273, %v1259
  %v1275 = vadd.f32 %v1274, %v1260
  %v1276 = vadd.f32 %v1275, %v1261
  %v1277 = vadd.f32 %v1276, %v1262
  %v1278 = vadd.f32 %v1277, %v1263
  %v1279 = vadd.f32 %v1278, %v1264
  %v1280 = vadd.f32 %v1279, %v1265
  %v1281 = vadd.f32 %v1280, %v1266
  %v1282 = vadd.f32 %v1281, %v1267
  %v1283 = vadd.f32 %v1282, %v1268
  %v1284 = vadd.f32 %v1283, %v1269
  %v1285 = vadd.f32 %v1284, %v1270
  %v1286 = vrot.slane %v1285, 4
  %v1287 = vadd.f32 %v1285, %v1286
  %v1288 = vrot.slane %v1287, 2
  %v1289 = vadd.f32 %v1287, %v1288
  %v1290 = vrot.slane %v1289, 1
  %v1291 = vadd.f32 %v1289, %v1290
  %v1292 = vadd.f32 %v1254, %v1291
  %1293 = vst [vmem:[#allocation4] sm:$0x1] %v1292
  // Predicated region
  $region22: #{resnet_small_forward.14} parent=0 // pred_check
    %p1294 = pneg %p1224
  $region23: #{resnet_small_forward.14} parent=0 // pred_check_branch
    %1296 = sbr.rel (%p1294) target = $region25
  $region24: #{resnet_small_forward.14} parent=0 // pred_region
    %v1297 = vld [vmem:[#allocation3] sm:$0x1]
    %v1298 = vmul.f32 %v1297, 0.0078125
    %v1299 = vld [vmem:[#allocation4] sm:$0x1]
    %v1300 = vmul.f32 %v1299, 0.0078125
    %v1301 = vmul.f32 %v1298, %v1298
    %v1302 = vsub.f32 %v1300, %v1301
    %v1303 = vmax.f32 %v1302, 0.0
    %v1304 = vld [vmem:[%s2] sm:$0x1]
    %v1305 = vadd.f32 %v1303, 1e-05
    %v1306 = vrsqrt.pop %v1305
    %v1307 = vmul.f32 %v1304, %v1306
    %v1308 = vld [vmem:[%s3] sm:$0x1]
    %v1309 = vmul.f32 %v1298, %v1307
    %v1310 = vsub.f32 %v1308, %v1309
    %v1311 = vld [vmem:[#allocation2] sm:$0xff]
    %v1312 = vld [vmem:[#allocation2 + $0x8] sm:$0xff]
    %v1313 = vld [vmem:[#allocation2 + $0x10] sm:$0xff]
    %v1314 = vld [vmem:[#allocation2 + $0x18] sm:$0xff]
    %v1315 = vld [vmem:[#allocation2 + $0x20] sm:$0xff]
    %v1316 = vld [vmem:[#allocation2 + $0x28] sm:$0xff]
    %v1317 = vld [vmem:[#allocation2 + $0x30] sm:$0xff]
    %v1318 = vld [vmem:[#allocation2 + $0x38] sm:$0xff]
    %v1319 = vld [vmem:[#allocation2 + $0x40] sm:$0xff]
    %v1320 = vld [vmem:[#allocation2 + $0x48] sm:$0xff]
    %v1321 = vld [vmem:[#allocation2 + $0x50] sm:$0xff]
    %v1322 = vld [vmem:[#allocation2 + $0x58] sm:$0xff]
    %v1323 = vld [vmem:[#allocation2 + $0x60] sm:$0xff]
    %v1324 = vld [vmem:[#allocation2 + $0x68] sm:$0xff]
    %v1325 = vld [vmem:[#allocation2 + $0x70] sm:$0xff]
    %v1326 = vld [vmem:[#allocation2 + $0x78] sm:$0xff]
    %v1328 = vlaneseq
    %v1329 = vshrl.u32 %v1328, 7
    %v1330 = vsub.s32 0, %v1329
    %v1331 = vrot.slane %v1307, %v1330
    %v1333 = vmul.f32 %v1311, %v1331
    %v1334 = vmul.f32 %v1312, %v1331
    %v1335 = vmul.f32 %v1313, %v1331
    %v1336 = vmul.f32 %v1314, %v1331
    %v1337 = vmul.f32 %v1315, %v1331
    %v1338 = vmul.f32 %v1316, %v1331
    %v1339 = vmul.f32 %v1317, %v1331
    %v1340 = vmul.f32 %v1318, %v1331
    %v1341 = vmul.f32 %v1319, %v1331
    %v1342 = vmul.f32 %v1320, %v1331
    %v1343 = vmul.f32 %v1321, %v1331
    %v1344 = vmul.f32 %v1322, %v1331
    %v1345 = vmul.f32 %v1323, %v1331
    %v1346 = vmul.f32 %v1324, %v1331
    %v1347 = vmul.f32 %v1325, %v1331
    %v1348 = vmul.f32 %v1326, %v1331
    %v1350 = vlaneseq
    %v1351 = vshrl.u32 %v1350, 7
    %v1352 = vsub.s32 0, %v1351
    %v1353 = vrot.slane %v1310, %v1352
    %v1355 = vadd.f32 %v1333, %v1353
    %v1356 = vadd.f32 %v1334, %v1353
    %v1357 = vadd.f32 %v1335, %v1353
    %v1358 = vadd.f32 %v1336, %v1353
    %v1359 = vadd.f32 %v1337, %v1353
    %v1360 = vadd.f32 %v1338, %v1353
    %v1361 = vadd.f32 %v1339, %v1353
    %v1362 = vadd.f32 %v1340, %v1353
    %v1363 = vadd.f32 %v1341, %v1353
    %v1364 = vadd.f32 %v1342, %v1353
    %v1365 = vadd.f32 %v1343, %v1353
    %v1366 = vadd.f32 %v1344, %v1353
    %v1367 = vadd.f32 %v1345, %v1353
    %v1368 = vadd.f32 %v1346, %v1353
    %v1369 = vadd.f32 %v1347, %v1353
    %v1370 = vadd.f32 %v1348, %v1353
    %v1371 = vmax.f32 %v1355, 0.0
    %v1372 = vmax.f32 %v1356, 0.0
    %v1373 = vmax.f32 %v1357, 0.0
    %v1374 = vmax.f32 %v1358, 0.0
    %v1375 = vmax.f32 %v1359, 0.0
    %v1376 = vmax.f32 %v1360, 0.0
    %v1377 = vmax.f32 %v1361, 0.0
    %v1378 = vmax.f32 %v1362, 0.0
    %v1379 = vmax.f32 %v1363, 0.0
    %v1380 = vmax.f32 %v1364, 0.0
    %v1381 = vmax.f32 %v1365, 0.0
    %v1382 = vmax.f32 %v1366, 0.0
    %v1383 = vmax.f32 %v1367, 0.0
    %v1384 = vmax.f32 %v1368, 0.0
    %v1385 = vmax.f32 %v1369, 0.0
    %v1386 = vmax.f32 %v1370, 0.0
    %v1387 = vpack.c.bf16 %v1372, %v1371
    %v1388 = vpack.c.bf16 %v1374, %v1373
    %v1389 = vpack.c.bf16 %v1376, %v1375
    %v1390 = vpack.c.bf16 %v1378, %v1377
    %v1391 = vpack.c.bf16 %v1380, %v1379
    %v1392 = vpack.c.bf16 %v1382, %v1381
    %v1393 = vpack.c.bf16 %v1384, %v1383
    %v1394 = vpack.c.bf16 %v1386, %v1385
    %v1403 = vunpack.c.l.b16 %v1387
    %v1404 = vunpack.c.h.b16 %v1387
    %v1405 = vunpack.c.l.b16 %v1388
    %v1406 = vunpack.c.h.b16 %v1388
    %v1407 = vunpack.c.l.b16 %v1389
    %v1408 = vunpack.c.h.b16 %v1389
    %v1409 = vunpack.c.l.b16 %v1390
    %v1410 = vunpack.c.h.b16 %v1390
    %v1411 = vunpack.c.l.b16 %v1391
    %v1412 = vunpack.c.h.b16 %v1391
    %v1413 = vunpack.c.l.b16 %v1392
    %v1414 = vunpack.c.h.b16 %v1392
    %v1415 = vunpack.c.l.b16 %v1393
    %v1416 = vunpack.c.h.b16 %v1393
    %v1417 = vunpack.c.l.b16 %v1394
    %v1418 = vunpack.c.h.b16 %v1394
    %v1419 = vpack.c.b16 %v1403, %v1403
    %v1420 = vpack.c.b16 %v1404, %v1404
    %v1421 = vpack.c.b16 %v1405, %v1405
    %v1422 = vpack.c.b16 %v1406, %v1406
    %v1423 = vpack.c.b16 %v1407, %v1407
    %v1424 = vpack.c.b16 %v1408, %v1408
    %v1425 = vpack.c.b16 %v1409, %v1409
    %v1426 = vpack.c.b16 %v1410, %v1410
    %v1427 = vpack.c.b16 %v1411, %v1411
    %v1428 = vpack.c.b16 %v1412, %v1412
    %v1429 = vpack.c.b16 %v1413, %v1413
    %v1430 = vpack.c.b16 %v1414, %v1414
    %v1431 = vpack.c.b16 %v1415, %v1415
    %v1432 = vpack.c.b16 %v1416, %v1416
    %v1433 = vpack.c.b16 %v1417, %v1417
    %v1434 = vpack.c.b16 %v1418, %v1418
    %1451 = vst [vmem:[%s4] sm:$0xf] %v1419
    %1452 = vst [vmem:[%s4 + $0x4] sm:$0xf] %v1420
    %1453 = vst [vmem:[%s4 + $0x8] sm:$0xf] %v1421
    %1454 = vst [vmem:[%s4 + $0xc] sm:$0xf] %v1422
    %1455 = vst [vmem:[%s4 + $0x10] sm:$0xf] %v1423
    %1456 = vst [vmem:[%s4 + $0x14] sm:$0xf] %v1424
    %1457 = vst [vmem:[%s4 + $0x18] sm:$0xf] %v1425
    %1458 = vst [vmem:[%s4 + $0x1c] sm:$0xf] %v1426
    %1459 = vst [vmem:[%s4 + $0x20] sm:$0xf] %v1427
    %1460 = vst [vmem:[%s4 + $0x24] sm:$0xf] %v1428
    %1461 = vst [vmem:[%s4 + $0x28] sm:$0xf] %v1429
    %1462 = vst [vmem:[%s4 + $0x2c] sm:$0xf] %v1430
    %1463 = vst [vmem:[%s4 + $0x30] sm:$0xf] %v1431
    %1464 = vst [vmem:[%s4 + $0x34] sm:$0xf] %v1432
    %1465 = vst [vmem:[%s4 + $0x38] sm:$0xf] %v1433
    %1466 = vst [vmem:[%s4 + $0x3c] sm:$0xf] %v1434
  $region25: #{resnet_small_forward.14} parent=0 // pred_fallthru
    _
  // Predicated region
  $region26: #{resnet_small_forward.14} parent=0 // pred_check
    _
  $region27: #{resnet_small_forward.14} parent=0 // pred_check_branch
    %1468 = sbr.rel (0) target = $region29
  $region28: #{resnet_small_forward.14} parent=0 // pred_region
    _
  $region29: #{resnet_small_forward.14} parent=0 // pred_fallthru
    _
  // Predicated region
  $region30: #{resnet_small_forward.14} parent=0 // pred_check
    _
  $region31: #{resnet_small_forward.14} parent=0 // pred_check_branch
    %1470 = sbr.rel (0) target = $region33
  $region32: #{resnet_small_forward.14} parent=0 // pred_region
    _
  $region33: #{resnet_small_forward.14} parent=0 // pred_fallthru
    _

</llo_original>
